<compile_context>
chip_gen: v5e
topology: v5e:2x2
jax: 0.10.0
libtpu: 0.0.40
codegen_flags: <defaults>
</compile_context>

<pallas_src>
import numpy as np
import jax
import jax.numpy as jnp
from jax.experimental import pallas as pl
from jax.experimental.pallas import tpu as pltpu


# ----------------------------------------------------------------------------
# Shared in-kernel math
# ----------------------------------------------------------------------------
def _sage_layer(self_rows, agg_rows, w_self, w_neigh, b):
    """One GraphSAGE layer: self/neighbor paths as two MXU dots (no lane concat)."""
    return (jnp.dot(self_rows, w_self, preferred_element_type=jnp.float32)
            + jnp.dot(agg_rows, w_neigh, preferred_element_type=jnp.float32)
            + b)


def _fgen(z, noise, wf1, bf1, wf2, bf2, wff, bff):
    """fGen MLP: tanh(fc_flat(relu(fc2(relu(fc1(z + noise))))))."""
    zn = (z + noise).astype(jnp.bfloat16)
    h = jnp.maximum(jnp.dot(zn, wf1, preferred_element_type=jnp.float32) + bf1, 0.0)
    h = jnp.maximum(jnp.dot(h.astype(jnp.bfloat16), wf2,
                            preferred_element_type=jnp.float32) + bf2, 0.0)
    # TODO(synk): dropout omitted (eval-mode identity).
    return jnp.tanh(jnp.dot(h.astype(jnp.bfloat16), wff,
                            preferred_element_type=jnp.float32) + bff)


# ----------------------------------------------------------------------------
# Kernels
# ----------------------------------------------------------------------------
def _make_sage1_kernel(tm):
    """Pass 1 (tiled): SAGE layer 1 for one row tile; self rows sliced from resident x."""
    def kernel(x_full_ref, a_ref, idg_ref, w1s_ref, w1n_ref, b1_ref, h1_ref):
        start = pl.multiple_of(pl.program_id(0) * tm, tm)
        x_tile = x_full_ref[pl.ds(start, tm), :]
        agg = jnp.dot(a_ref[...], x_full_ref[...], preferred_element_type=jnp.float32)
        agg = (agg * idg_ref[...]).astype(jnp.bfloat16)          # f32 1/deg, then bf16
        h1 = _sage_layer(x_tile, agg, w1s_ref[...], w1n_ref[...], b1_ref[...])
        h1_ref[...] = jnp.maximum(h1, 0.0).astype(h1_ref.dtype)
    return kernel


def _make_tail_kernel(tm):
    """Pass 2 (tiled): SAGE layer 2 (+ folded dGen column) + fGen for one row tile."""
    def kernel(h1_full_ref, a_ref, idg_ref, noise_ref,
               w2s_ref, w2n_ref, b2_ref,
               wf1_ref, bf1_ref, wf2_ref, bf2_ref, wff_ref, bff_ref,
               deg_ref, feat_ref):
        start = pl.multiple_of(pl.program_id(0) * tm, tm)
        h1_tile = h1_full_ref[pl.ds(start, tm), :]
        agg = jnp.dot(a_ref[...], h1_full_ref[...], preferred_element_type=jnp.float32)
        agg = (agg * idg_ref[...]).astype(jnp.bfloat16)
        z = _sage_layer(h1_tile, agg, w2s_ref[...], w2n_ref[...], b2_ref[...])
        # Lane-dense relu(z) slab; column `lat` holds the folded dGen output.
        deg_ref[...] = jnp.maximum(z, 0.0)
        feat_ref[...] = _fgen(z, noise_ref[...], wf1_ref[...], bf1_ref[...],
                              wf2_ref[...], bf2_ref[...], wff_ref[...],
                              bff_ref[...]).astype(feat_ref.dtype)
    return kernel


def _fused_kernel(x_ref, a_ref, idg_ref, noise_ref,
                  w1s_ref, w1n_ref, b1_ref,
                  w2s_ref, w2n_ref, b2_ref,
                  wf1_ref, bf1_ref, wf2_ref, bf2_ref, wff_ref, bff_ref,
                  deg_ref, feat_ref):
    """Whole graph fits in VMEM: both SAGE layers + dGen + fGen in one step (h1 stays on-chip)."""
    x = x_ref[...]
    a = a_ref[...]
    idg = idg_ref[...]
    agg1 = (jnp.dot(a, x, preferred_element_type=jnp.float32) * idg).astype(jnp.bfloat16)
    h1 = jnp.maximum(
        _sage_layer(x, agg1, w1s_ref[...], w1n_ref[...], b1_ref[...]), 0.0
    ).astype(jnp.bfloat16)
    agg2 = (jnp.dot(a, h1, preferred_element_type=jnp.float32) * idg).astype(jnp.bfloat16)
    z = _sage_layer(h1, agg2, w2s_ref[...], w2n_ref[...], b2_ref[...])
    deg_ref[...] = jnp.maximum(z, 0.0)
    feat_ref[...] = _fgen(z, noise_ref[...], wf1_ref[...], bf1_ref[...],
                          wf2_ref[...], bf2_ref[...], wff_ref[...],
                          bff_ref[...]).astype(feat_ref.dtype)


# ----------------------------------------------------------------------------
# Wrapper
# ----------------------------------------------------------------------------
def _round_up(v, m):
    return ((v + m - 1) // m) * m


def _nbytes(*arrs):
    return int(sum(int(a.size) * a.dtype.itemsize for a in arrs))


_FUSED_VMEM_BUDGET = 24 * 1024 * 1024     # conservative; fits all TPU generations


def _vmem_limit_bytes():
    # ~75% of physical VMEM: ~96 MiB on v5e/v6e (128 MiB), ~48 MiB on v7x (64 MiB).
    try:
        cap = int(pltpu.get_tpu_info().vmem_capacity_bytes)
    except Exception:
        cap = 64 * 1024 * 1024
    return min((cap * 3) // 4, 100 * 1024 * 1024)


def neighgen_forward(params, x, a_counts, inv_deg, noise, max_pred, input_dim,
                     *, tm=None, force_tiled=False):
    """NeighGen forward. Returns (pred_degree [N], pred_neig_feat [N, max_pred, input_dim])."""
    dims = params["dims"]
    hp, lp, ffp, lat = dims["hp"], dims["lp"], dims["ffp"], dims["lat"]
    n, din = x.shape
    mp_din = max_pred * input_dim

    w1 = tuple(params[k] for k in ("w1s", "w1n", "b1"))
    w2 = tuple(params[k] for k in ("w2s", "w2n", "b2",
                                   "wf1", "bf1", "wf2", "bf2", "wff", "bff"))

    # ---- choose the fully-resident fused path vs. the two-pass row-tiled path ----
    w_bytes = _nbytes(*w1, *w2)
    fused_est = (2 * (n * din * 2 + n * n * 2 + n * 4 + n * lp * 4      # inputs (x2 buffers)
                      + n * lp * 4 + n * ffp * 2 + w_bytes)             # outputs + weights
                 + n * (hp * 6 + lp * 4 + 2048 * 4 + 256 * 4))          # intermediates
    use_fused = (not force_tiled) and fused_est <= _FUSED_VMEM_BUDGET

    # Default row tile 256 (full MXU height on v6e/v7x); 128 may be better on v5e.
    row = 8 if use_fused else max(8, (256 if tm is None else int(tm)))
    n_pad = _round_up(n, row)
    pad = n_pad - n

    xb = x.astype(jnp.bfloat16)
    ab = a_counts.astype(jnp.bfloat16)       # exact small-integer edge counts
    idg = inv_deg.astype(jnp.float32)        # f32 per-row 1/deg, applied after the MXU pass
    noise_p = jnp.pad(noise.astype(jnp.float32), ((0, 0), (0, lp - noise.shape[1])))
    if pad:
        # Invariant: padded A rows/cols and idg rows are zero, so real-node outputs never
        # read padded garbage; padded output rows are sliced off below.
        xb = jnp.pad(xb, ((0, pad), (0, 0)))
        ab = jnp.pad(ab, ((0, pad), (0, pad)))
        idg = jnp.pad(idg, ((0, pad), (0, 0)))
        noise_p = jnp.pad(noise_p, ((0, pad), (0, 0)))

    vmem_limit = _vmem_limit_bytes()

    def resident(arr_or_shape):
        shape = arr_or_shape.shape if hasattr(arr_or_shape, "shape") else tuple(arr_or_shape)
        return pl.BlockSpec(tuple(shape), lambda i: (0, 0))

    if use_fused:
        ce = pl.CostEstimate(
            flops=int(2 * n_pad * (n_pad * (din + hp) + 2 * din * hp + 2 * hp * lp
                                   + lp * 256 + 256 * 2048 + 2048 * ffp)),
            transcendentals=int(n_pad * ffp),
            bytes_accessed=_nbytes(xb, ab, idg, noise_p, *w1, *w2)
            + n_pad * (lp * 4 + ffp * 2),
        )
        deg_pad, feat_pad = pl.pallas_call(
            _fused_kernel,
            grid=(1,),
            in_specs=[resident(xb), resident(ab), resident(idg), resident(noise_p)]
            + [resident(w) for w in w1] + [resident(w) for w in w2],
            out_specs=(resident((n_pad, lp)), resident((n_pad, ffp))),
            out_shape=(jax.ShapeDtypeStruct((n_pad, lp), jnp.float32),
                       jax.ShapeDtypeStruct((n_pad, ffp), jnp.bfloat16)),
            compiler_params=pltpu.CompilerParams(
                dimension_semantics=("arbitrary",), vmem_limit_bytes=vmem_limit),
            cost_estimate=ce,
        )(xb, ab, idg, noise_p, *w1, *w2)
    else:
        tm = row
        grid = (n_pad // tm,)
        cparams = pltpu.CompilerParams(
            dimension_semantics=("parallel",),   # independent row tiles (v7x 2-TC sharding)
            vmem_limit_bytes=vmem_limit)

        def rowtile(cols):
            return pl.BlockSpec((tm, cols), lambda i: (i, 0))

        # ---- pass 1: layer-1 embeddings for ALL nodes (layer-2 aggregates over all) ----
        ce1 = pl.CostEstimate(
            flops=int(2 * n_pad * (n_pad * din + 2 * din * hp)),
            transcendentals=0,
            bytes_accessed=_nbytes(xb, ab, idg, *w1) + n_pad * hp * 2,
        )
        h1 = pl.pallas_call(
            _make_sage1_kernel(tm),
            grid=grid,
            in_specs=[resident(xb), rowtile(n_pad), rowtile(1)]
            + [resident(w) for w in w1],
            out_specs=rowtile(hp),
            out_shape=jax.ShapeDtypeStruct((n_pad, hp), jnp.bfloat16),
            compiler_params=cparams,
            cost_estimate=ce1,
        )(xb, ab, idg, *w1)

        # ---- pass 2: layer 2 + folded dGen + fGen ----
        ce2 = pl.CostEstimate(
            flops=int(2 * n_pad * (n_pad * hp + 2 * hp * lp + lp * 256
                                   + 256 * 2048 + 2048 * ffp)),
            transcendentals=int(n_pad * ffp),
            bytes_accessed=_nbytes(h1, ab, idg, noise_p, *w2)
            + n_pad * (lp * 4 + ffp * 2),
        )
        deg_pad, feat_pad = pl.pallas_call(
            _make_tail_kernel(tm),
            grid=grid,
            in_specs=[resident(h1), rowtile(n_pad), rowtile(1), rowtile(lp)]
            + [resident(w) for w in w2],
            out_specs=(rowtile(lp), rowtile(ffp)),
            out_shape=(jax.ShapeDtypeStruct((n_pad, lp), jnp.float32),
                       jax.ShapeDtypeStruct((n_pad, ffp), jnp.bfloat16)),
            compiler_params=cparams,
            cost_estimate=ce2,
        )(h1, ab, idg, noise_p, *w2)

    pred_degree = deg_pad[:n, lat]                                  # folded dGen column
    pred_neig_feat = feat_pad[:n, :mp_din].astype(jnp.float32)
    return pred_degree, pred_neig_feat.reshape(n, max_pred, input_dim)


# ----------------------------------------------------------------------------
# Pure-JAX reference (mirrors the kernel's bf16 rounding points)
# ----------------------------------------------------------------------------
def neighgen_reference(params, x, a_counts, inv_deg, noise):
    d = params["dims"]
    lat, lp, mp_din = d["lat"], d["lp"], d["mp_din"]
    f32 = jnp.float32
    rb = lambda t: t.astype(jnp.bfloat16).astype(f32)
    W = lambda k: params[k].astype(f32)

    xb, ab, idg = rb(x), rb(a_counts), inv_deg.astype(f32)
    agg1 = rb((ab @ xb) * idg)
    h1 = rb(jnp.maximum(xb @ W("w1s") + agg1 @ W("w1n") + params["b1"], 0.0))
    agg2 = rb((ab @ h1) * idg)
    z = h1 @ W("w2s") + agg2 @ W("w2n") + params["b2"]
    deg = jnp.maximum(z, 0.0)[:, lat]
    noise_p = jnp.pad(noise.astype(f32), ((0, 0), (0, lp - noise.shape[1])))
    zn = rb(z + noise_p)
    h = jnp.maximum(zn @ W("wf1") + params["bf1"], 0.0)
    h = jnp.maximum(rb(h) @ W("wf2") + params["bf2"], 0.0)
    feat = rb(jnp.tanh(rb(h) @ W("wff") + params["bff"]))
    return deg, feat[:, :mp_din]


# ----------------------------------------------------------------------------
# Parameters / host-side glue
# ----------------------------------------------------------------------------
def init_params(key, input_dim, hid_dim, latent_dim, max_pred):
    """Synthetic parameters, pre-packed for the kernels:
       * linear weights as [in, out]; SAGE self/neighbor kept separate (two dots/layer);
       * hid / latent / fGen-out widths zero-padded to lane-dense (multiples of 128);
       * dGen folded into layer 2 as one extra output column at index `lat`."""
    ks = jax.random.split(key, 8)
    f32 = jnp.float32

    def lin(k, fan_in, fan_out):
        scale = 1.0 / np.sqrt(fan_in)
        kw, kb = jax.random.split(k)
        w = jax.random.uniform(kw, (fan_in, fan_out), f32, -scale, scale)
        b = jax.random.uniform(kb, (1, fan_out), f32, -scale, scale)
        return w, b

    w1s, b1 = lin(ks[0], input_dim, hid_dim)
    w1n, _ = lin(ks[1], input_dim, hid_dim)
    w2s, b2 = lin(ks[2], hid_dim, latent_dim)
    w2n, _ = lin(ks[3], hid_dim, latent_dim)
    wd, bd = lin(ks[4], latent_dim, 1)
    wf1, bf1 = lin(ks[5], latent_dim, 256)
    wf2, bf2 = lin(ks[6], 256, 2048)
    wff, bff = lin(ks[7], 2048, max_pred * input_dim)

    hp = _round_up(hid_dim, 128)
    lp = _round_up(latent_dim + 1, 128)          # +1: folded dGen column
    mp_din = max_pred * input_dim
    ffp = _round_up(mp_din, 128)
    lat = latent_dim

    def pad_cols(w, cols):
        return jnp.pad(w, ((0, 0), (0, cols - w.shape[1])))

    def fold_layer2(w):                          # [hid, lat] -> [hp, lp] with dGen column
        out = jnp.zeros((hp, lp), f32)
        out = out.at[:hid_dim, :lat].set(w)
        out = out.at[:hid_dim, lat:lat + 1].set(w @ wd)
        return out

    b2_ext = jnp.zeros((1, lp), f32)
    b2_ext = b2_ext.at[:, :lat].set(b2)
    b2_ext = b2_ext.at[:, lat:lat + 1].set(b2 @ wd + bd)
    wf1_ext = jnp.zeros((lp, 256), f32).at[:lat].set(wf1)

    bf16 = jnp.bfloat16
    return {
        "w1s": pad_cols(w1s, hp).astype(bf16), "w1n": pad_cols(w1n, hp).astype(bf16),
        "b1": pad_cols(b1, hp),
        "w2s": fold_layer2(w2s).astype(bf16), "w2n": fold_layer2(w2n).astype(bf16),
        "b2": b2_ext,
        "wf1": wf1_ext.astype(bf16), "bf1": bf1,
        "wf2": wf2.astype(bf16), "bf2": bf2,
        "wff": pad_cols(wff, ffp).astype(bf16), "bff": pad_cols(bff, ffp),
        "dims": {"hid": hid_dim, "lat": lat, "hp": hp, "lp": lp,
                 "ffp": ffp, "mp_din": mp_din},
    }


def build_adjacency(edge_index, num_nodes):
    """Dense in-edge count matrix (exact in bf16) + f32 per-row 1/deg for mean aggregation."""
    a = np.zeros((num_nodes, num_nodes), dtype=np.float32)
    src, dst = edge_index
    np.add.at(a, (dst, src), 1.0)     # count duplicate edges (multiset mean, matches PyG)
    deg = a.sum(axis=1, keepdims=True)
    inv_deg = np.where(deg > 0.0, 1.0 / np.maximum(deg, 1.0), 1.0).astype(np.float32)
    return a, inv_deg


def mend(x_np, edge_index_np, y_np, pred_degree_np, pred_neig_feat_np, max_pred):
    """Host-side dynamic graph surgery (NeighGen.mend); data-dependent shapes -> no kernel."""
    n = x_np.shape[0]
    ptr = n
    remain_feat, remain_edges = [], []
    pred_degree = pred_degree_np.astype(np.int32)
    for i in range(n):
        for j in range(min(max_pred, int(pred_degree[i]))):
            remain_feat.append(pred_neig_feat_np[i, j])
            remain_edges.append(np.array([[i], [ptr]], dtype=edge_index_np.dtype))
            ptr += 1
    if pred_degree.sum() > 0:
        mend_x = np.vstack([x_np, np.vstack(remain_feat)])
        mend_edge_index = np.hstack([edge_index_np] + remain_edges)
        mend_y = np.hstack([y_np, np.zeros(ptr - n, dtype=np.int64)])
    else:
        mend_x = x_np.copy()
        mend_edge_index = edge_index_np.copy()
        mend_y = y_np.copy()
    return {"x": mend_x, "edge_index": mend_edge_index, "y": mend_y}


if __name__ == "__main__":
    NUM_NODES = 256
    INPUT_DIM = 32
    HID_DIM = 64
    LATENT_DIM = 32
    MAX_PRED = 4
    DROPOUT = 0.5  # unused (eval mode)

    key = jax.random.PRNGKey(0)
    k_x, k_e, k_y, k_noise, k_params = jax.random.split(key, 5)

    x = jax.random.normal(k_x, (NUM_NODES, INPUT_DIM), jnp.float32)
    edge_index = np.asarray(
        jax.random.randint(k_e, (2, 4 * NUM_NODES), 0, NUM_NODES), dtype=np.int64)
    y = np.asarray(jax.random.randint(k_y, (NUM_NODES,), 0, 4), dtype=np.int64)
    a_counts_np, inv_deg_np = build_adjacency(edge_index, NUM_NODES)
    a_counts = jnp.asarray(a_counts_np)
    inv_deg = jnp.asarray(inv_deg_np)
    noise = jax.random.normal(k_noise, (NUM_NODES, LATENT_DIM), jnp.float32)

    params = init_params(k_params, INPUT_DIM, HID_DIM, LATENT_DIM, MAX_PRED)
    ref_deg, ref_feat = neighgen_reference(params, x, a_counts, inv_deg, noise)

    # Small graph -> single fused, fully VMEM-resident kernel (auto-selected).
    pred_degree, pred_neig_feat = neighgen_forward(
        params, x, a_counts, inv_deg, noise, MAX_PRED, INPUT_DIM)
    jax.block_until_ready((pred_degree, pred_neig_feat))
    np.testing.assert_allclose(np.asarray(pred_degree), np.asarray(ref_deg),
                               rtol=1e-2, atol=1e-2)
    np.testing.assert_allclose(np.asarray(pred_neig_feat).reshape(NUM_NODES, -1),
                               np.asarray(ref_feat), rtol=1e-2, atol=1e-2)

    # Also exercise the two-pass row-tiled pipeline used for large graphs.
    deg_t, feat_t = neighgen_forward(
        params, x, a_counts, inv_deg, noise, MAX_PRED, INPUT_DIM,
        tm=128, force_tiled=True)
    jax.block_until_ready((deg_t, feat_t))
    np.testing.assert_allclose(np.asarray(deg_t), np.asarray(ref_deg),
                               rtol=1e-2, atol=1e-2)
    np.testing.assert_allclose(np.asarray(feat_t).reshape(NUM_NODES, -1),
                               np.asarray(ref_feat), rtol=1e-2, atol=1e-2)

    mend_graph = mend(np.asarray(x), edge_index, y,
                      np.asarray(pred_degree), np.asarray(pred_neig_feat), MAX_PRED)

    assert pred_degree.shape == (NUM_NODES,)
    assert pred_neig_feat.shape == (NUM_NODES, MAX_PRED, INPUT_DIM)
    assert mend_graph["x"].shape[1] == INPUT_DIM
    print("KERNEL_OK")
</pallas_src>

<mosaic_0001>
module attributes {stable_mosaic.version = 11 : i64} {
  func.func @_fused_kernel(%arg0: i32, %arg1: memref<256x32xbf16, #tpu.memory_space<vmem>>, %arg2: memref<256x256xbf16, #tpu.memory_space<vmem>>, %arg3: memref<256x1xf32, #tpu.memory_space<vmem>>, %arg4: memref<256x128xf32, #tpu.memory_space<vmem>>, %arg5: memref<32x128xbf16, #tpu.memory_space<vmem>>, %arg6: memref<32x128xbf16, #tpu.memory_space<vmem>>, %arg7: memref<1x128xf32, #tpu.memory_space<vmem>>, %arg8: memref<128x128xbf16, #tpu.memory_space<vmem>>, %arg9: memref<128x128xbf16, #tpu.memory_space<vmem>>, %arg10: memref<1x128xf32, #tpu.memory_space<vmem>>, %arg11: memref<128x256xbf16, #tpu.memory_space<vmem>>, %arg12: memref<1x256xf32, #tpu.memory_space<vmem>>, %arg13: memref<256x2048xbf16, #tpu.memory_space<vmem>>, %arg14: memref<1x2048xf32, #tpu.memory_space<vmem>>, %arg15: memref<2048x128xbf16, #tpu.memory_space<vmem>>, %arg16: memref<1x128xf32, #tpu.memory_space<vmem>>, %arg17: memref<256x128xf32, #tpu.memory_space<vmem>>, %arg18: memref<256x128xbf16, #tpu.memory_space<vmem>>) attributes {dimension_semantics = [#tpu.dimension_semantics<arbitrary>], iteration_bounds = array<i64: 1>, scalar_prefetch = 0 : i64, scratch_operands = 0 : i64, tpu.core_type = #tpu.core_type<tc>, window_params = [{pipeline_mode = #tpu.pipeline_mode<synchronous>, transform_indices = @transform_0, window_bounds = array<i64: 256, 32>}, {pipeline_mode = #tpu.pipeline_mode<synchronous>, transform_indices = @transform_1, window_bounds = array<i64: 256, 256>}, {pipeline_mode = #tpu.pipeline_mode<synchronous>, transform_indices = @transform_2, window_bounds = array<i64: 256, 1>}, {pipeline_mode = #tpu.pipeline_mode<synchronous>, transform_indices = @transform_3, window_bounds = array<i64: 256, 128>}, {pipeline_mode = #tpu.pipeline_mode<synchronous>, transform_indices = @transform_4, window_bounds = array<i64: 32, 128>}, {pipeline_mode = #tpu.pipeline_mode<synchronous>, transform_indices = @transform_5, window_bounds = array<i64: 32, 128>}, {pipeline_mode = #tpu.pipeline_mode<synchronous>, transform_indices = @transform_6, window_bounds = array<i64: 1, 128>}, {pipeline_mode = #tpu.pipeline_mode<synchronous>, transform_indices = @transform_7, window_bounds = array<i64: 128, 128>}, {pipeline_mode = #tpu.pipeline_mode<synchronous>, transform_indices = @transform_8, window_bounds = array<i64: 128, 128>}, {pipeline_mode = #tpu.pipeline_mode<synchronous>, transform_indices = @transform_9, window_bounds = array<i64: 1, 128>}, {pipeline_mode = #tpu.pipeline_mode<synchronous>, transform_indices = @transform_10, window_bounds = array<i64: 128, 256>}, {pipeline_mode = #tpu.pipeline_mode<synchronous>, transform_indices = @transform_11, window_bounds = array<i64: 1, 256>}, {pipeline_mode = #tpu.pipeline_mode<synchronous>, transform_indices = @transform_12, window_bounds = array<i64: 256, 2048>}, {pipeline_mode = #tpu.pipeline_mode<synchronous>, transform_indices = @transform_13, window_bounds = array<i64: 1, 2048>}, {pipeline_mode = #tpu.pipeline_mode<synchronous>, transform_indices = @transform_14, window_bounds = array<i64: 2048, 128>}, {pipeline_mode = #tpu.pipeline_mode<synchronous>, transform_indices = @transform_15, window_bounds = array<i64: 1, 128>}, {pipeline_mode = #tpu.pipeline_mode<synchronous>, transform_indices = @transform_16, window_bounds = array<i64: 256, 128>}, {pipeline_mode = #tpu.pipeline_mode<synchronous>, transform_indices = @transform_17, window_bounds = array<i64: 256, 128>}]} {
    %c0 = arith.constant 0 : index
    %c0_0 = arith.constant 0 : index
    %0 = vector.load %arg1[%c0, %c0_0] : memref<256x32xbf16, #tpu.memory_space<vmem>>, vector<256x32xbf16>
    %c0_1 = arith.constant 0 : index
    %c0_2 = arith.constant 0 : index
    %1 = vector.load %arg2[%c0_1, %c0_2] : memref<256x256xbf16, #tpu.memory_space<vmem>>, vector<256x256xbf16>
    %c0_3 = arith.constant 0 : index
    %c0_4 = arith.constant 0 : index
    %2 = vector.load %arg3[%c0_3, %c0_4] : memref<256x1xf32, #tpu.memory_space<vmem>>, vector<256x1xf32>
    %cst = arith.constant dense<0.000000e+00> : vector<256x32xf32>
    %3 = tpu.matmul %1, %0, %cst {dimension_numbers = #tpu.dot_dimension_numbers<[1], [0], [0], [1], [0, 0, 1, 1], [], []>} : vector<256x256xbf16>, vector<256x32xbf16>, vector<256x32xf32> -> vector<256x32xf32>
    %4 = vector.broadcast %2 : vector<256x1xf32> to vector<256x32xf32>
    %5 = arith.mulf %3, %4 : vector<256x32xf32>
    %6 = arith.truncf %5 : vector<256x32xf32> to vector<256x32xbf16>
    %c0_5 = arith.constant 0 : index
    %c0_6 = arith.constant 0 : index
    %7 = vector.load %arg5[%c0_5, %c0_6] : memref<32x128xbf16, #tpu.memory_space<vmem>>, vector<32x128xbf16>
    %c0_7 = arith.constant 0 : index
    %c0_8 = arith.constant 0 : index
    %8 = vector.load %arg6[%c0_7, %c0_8] : memref<32x128xbf16, #tpu.memory_space<vmem>>, vector<32x128xbf16>
    %c0_9 = arith.constant 0 : index
    %c0_10 = arith.constant 0 : index
    %9 = vector.load %arg7[%c0_9, %c0_10] : memref<1x128xf32, #tpu.memory_space<vmem>>, vector<1x128xf32>
    %cst_11 = arith.constant dense<0.000000e+00> : vector<256x128xf32>
    %10 = tpu.matmul %0, %7, %cst_11 {dimension_numbers = #tpu.dot_dimension_numbers<[1], [0], [0], [1], [0, 0, 1, 1], [], []>} : vector<256x32xbf16>, vector<32x128xbf16>, vector<256x128xf32> -> vector<256x128xf32>
    %cst_12 = arith.constant dense<0.000000e+00> : vector<256x128xf32>
    %11 = tpu.matmul %6, %8, %cst_12 {dimension_numbers = #tpu.dot_dimension_numbers<[1], [0], [0], [1], [0, 0, 1, 1], [], []>} : vector<256x32xbf16>, vector<32x128xbf16>, vector<256x128xf32> -> vector<256x128xf32>
    %12 = arith.addf %10, %11 : vector<256x128xf32>
    %13 = vector.broadcast %9 : vector<1x128xf32> to vector<256x128xf32>
    %14 = arith.addf %12, %13 : vector<256x128xf32>
    %cst_13 = arith.constant 0.000000e+00 : f32
    %15 = vector.broadcast %cst_13 : f32 to vector<256x128xf32>
    %16 = arith.maximumf %14, %15 : vector<256x128xf32>
    %17 = arith.truncf %16 : vector<256x128xf32> to vector<256x128xbf16>
    %cst_14 = arith.constant dense<0.000000e+00> : vector<256x128xf32>
    %18 = tpu.matmul %1, %17, %cst_14 {dimension_numbers = #tpu.dot_dimension_numbers<[1], [0], [0], [1], [0, 0, 1, 1], [], []>} : vector<256x256xbf16>, vector<256x128xbf16>, vector<256x128xf32> -> vector<256x128xf32>
    %19 = vector.broadcast %2 : vector<256x1xf32> to vector<256x128xf32>
    %20 = arith.mulf %18, %19 : vector<256x128xf32>
    %21 = arith.truncf %20 : vector<256x128xf32> to vector<256x128xbf16>
    %c0_15 = arith.constant 0 : index
    %c0_16 = arith.constant 0 : index
    %22 = vector.load %arg8[%c0_15, %c0_16] : memref<128x128xbf16, #tpu.memory_space<vmem>>, vector<128x128xbf16>
    %c0_17 = arith.constant 0 : index
    %c0_18 = arith.constant 0 : index
    %23 = vector.load %arg9[%c0_17, %c0_18] : memref<128x128xbf16, #tpu.memory_space<vmem>>, vector<128x128xbf16>
    %c0_19 = arith.constant 0 : index
    %c0_20 = arith.constant 0 : index
    %24 = vector.load %arg10[%c0_19, %c0_20] : memref<1x128xf32, #tpu.memory_space<vmem>>, vector<1x128xf32>
    %cst_21 = arith.constant dense<0.000000e+00> : vector<256x128xf32>
    %25 = tpu.matmul %17, %22, %cst_21 {dimension_numbers = #tpu.dot_dimension_numbers<[1], [0], [0], [1], [0, 0, 1, 1], [], []>} : vector<256x128xbf16>, vector<128x128xbf16>, vector<256x128xf32> -> vector<256x128xf32>
    %cst_22 = arith.constant dense<0.000000e+00> : vector<256x128xf32>
    %26 = tpu.matmul %21, %23, %cst_22 {dimension_numbers = #tpu.dot_dimension_numbers<[1], [0], [0], [1], [0, 0, 1, 1], [], []>} : vector<256x128xbf16>, vector<128x128xbf16>, vector<256x128xf32> -> vector<256x128xf32>
    %27 = arith.addf %25, %26 : vector<256x128xf32>
    %28 = vector.broadcast %24 : vector<1x128xf32> to vector<256x128xf32>
    %29 = arith.addf %27, %28 : vector<256x128xf32>
    %cst_23 = arith.constant 0.000000e+00 : f32
    %30 = vector.broadcast %cst_23 : f32 to vector<256x128xf32>
    %31 = arith.maximumf %29, %30 : vector<256x128xf32>
    %c0_24 = arith.constant 0 : index
    %c0_25 = arith.constant 0 : index
    %32 = vector.load %arg17[%c0_24, %c0_25] : memref<256x128xf32, #tpu.memory_space<vmem>>, vector<256x128xf32>
    tpu.vector_store %arg17[%c0_24, %c0_25], %31 {strides = array<i32>} : memref<256x128xf32, #tpu.memory_space<vmem>>, vector<256x128xf32>,
    %c0_26 = arith.constant 0 : index
    %c0_27 = arith.constant 0 : index
    %33 = vector.load %arg4[%c0_26, %c0_27] : memref<256x128xf32, #tpu.memory_space<vmem>>, vector<256x128xf32>
    %c0_28 = arith.constant 0 : index
    %c0_29 = arith.constant 0 : index
    %34 = vector.load %arg11[%c0_28, %c0_29] : memref<128x256xbf16, #tpu.memory_space<vmem>>, vector<128x256xbf16>
    %c0_30 = arith.constant 0 : index
    %c0_31 = arith.constant 0 : index
    %35 = vector.load %arg12[%c0_30, %c0_31] : memref<1x256xf32, #tpu.memory_space<vmem>>, vector<1x256xf32>
    %c0_32 = arith.constant 0 : index
    %c0_33 = arith.constant 0 : index
    %36 = vector.load %arg13[%c0_32, %c0_33] : memref<256x2048xbf16, #tpu.memory_space<vmem>>, vector<256x2048xbf16>
    %c0_34 = arith.constant 0 : index
    %c0_35 = arith.constant 0 : index
    %37 = vector.load %arg14[%c0_34, %c0_35] : memref<1x2048xf32, #tpu.memory_space<vmem>>, vector<1x2048xf32>
    %c0_36 = arith.constant 0 : index
    %c0_37 = arith.constant 0 : index
    %38 = vector.load %arg15[%c0_36, %c0_37] : memref<2048x128xbf16, #tpu.memory_space<vmem>>, vector<2048x128xbf16>
    %c0_38 = arith.constant 0 : index
    %c0_39 = arith.constant 0 : index
    %39 = vector.load %arg16[%c0_38, %c0_39] : memref<1x128xf32, #tpu.memory_space<vmem>>, vector<1x128xf32>
    %40 = arith.addf %29, %33 : vector<256x128xf32>
    %41 = arith.truncf %40 : vector<256x128xf32> to vector<256x128xbf16>
    %cst_40 = arith.constant dense<0.000000e+00> : vector<256x256xf32>
    %42 = tpu.matmul %41, %34, %cst_40 {dimension_numbers = #tpu.dot_dimension_numbers<[1], [0], [0], [1], [0, 0, 1, 1], [], []>} : vector<256x128xbf16>, vector<128x256xbf16>, vector<256x256xf32> -> vector<256x256xf32>
    %43 = vector.broadcast %35 : vector<1x256xf32> to vector<256x256xf32>
    %44 = arith.addf %42, %43 : vector<256x256xf32>
    %cst_41 = arith.constant 0.000000e+00 : f32
    %45 = vector.broadcast %cst_41 : f32 to vector<256x256xf32>
    %46 = arith.maximumf %44, %45 : vector<256x256xf32>
    %47 = arith.truncf %46 : vector<256x256xf32> to vector<256x256xbf16>
    %cst_42 = arith.constant dense<0.000000e+00> : vector<256x2048xf32>
    %48 = tpu.matmul %47, %36, %cst_42 {dimension_numbers = #tpu.dot_dimension_numbers<[1], [0], [0], [1], [0, 0, 1, 1], [], []>} : vector<256x256xbf16>, vector<256x2048xbf16>, vector<256x2048xf32> -> vector<256x2048xf32>
    %49 = vector.broadcast %37 : vector<1x2048xf32> to vector<256x2048xf32>
    %50 = arith.addf %48, %49 : vector<256x2048xf32>
    %cst_43 = arith.constant 0.000000e+00 : f32
    %51 = vector.broadcast %cst_43 : f32 to vector<256x2048xf32>
    %52 = arith.maximumf %50, %51 : vector<256x2048xf32>
    %53 = arith.truncf %52 : vector<256x2048xf32> to vector<256x2048xbf16>
    %cst_44 = arith.constant dense<0.000000e+00> : vector<256x128xf32>
    %54 = tpu.matmul %53, %38, %cst_44 {dimension_numbers = #tpu.dot_dimension_numbers<[1], [0], [0], [1], [0, 0, 1, 1], [], []>} : vector<256x2048xbf16>, vector<2048x128xbf16>, vector<256x128xf32> -> vector<256x128xf32>
    %55 = vector.broadcast %39 : vector<1x128xf32> to vector<256x128xf32>
    %56 = arith.addf %54, %55 : vector<256x128xf32>
    %57 = math.tanh %56 : vector<256x128xf32>
    %58 = arith.truncf %57 : vector<256x128xf32> to vector<256x128xbf16>
    %c0_45 = arith.constant 0 : index
    %c0_46 = arith.constant 0 : index
    %59 = vector.load %arg18[%c0_45, %c0_46] : memref<256x128xbf16, #tpu.memory_space<vmem>>, vector<256x128xbf16>
    tpu.vector_store %arg18[%c0_45, %c0_46], %58 {strides = array<i32>} : memref<256x128xbf16, #tpu.memory_space<vmem>>, vector<256x128xbf16>,
    return
  }
  func.func @transform_0(%arg0: i32) -> (i32, i32) {
    %c0_i32 = arith.constant 0 : i32
    %c0_i32_0 = arith.constant 0 : i32
    %c0_i32_1 = arith.constant 0 : i32
    return %c0_i32, %c0_i32_0 : i32, i32
  }
  func.func @transform_1(%arg0: i32) -> (i32, i32) {
    %c0_i32 = arith.constant 0 : i32
    %c0_i32_0 = arith.constant 0 : i32
    %c0_i32_1 = arith.constant 0 : i32
    return %c0_i32, %c0_i32_0 : i32, i32
  }
  func.func @transform_2(%arg0: i32) -> (i32, i32) {
    %c0_i32 = arith.constant 0 : i32
    %c0_i32_0 = arith.constant 0 : i32
    %c0_i32_1 = arith.constant 0 : i32
    return %c0_i32, %c0_i32_0 : i32, i32
  }
  func.func @transform_3(%arg0: i32) -> (i32, i32) {
    %c0_i32 = arith.constant 0 : i32
    %c0_i32_0 = arith.constant 0 : i32
    %c0_i32_1 = arith.constant 0 : i32
    return %c0_i32, %c0_i32_0 : i32, i32
  }
  func.func @transform_4(%arg0: i32) -> (i32, i32) {
    %c0_i32 = arith.constant 0 : i32
    %c0_i32_0 = arith.constant 0 : i32
    %c0_i32_1 = arith.constant 0 : i32
    return %c0_i32, %c0_i32_0 : i32, i32
  }
  func.func @transform_5(%arg0: i32) -> (i32, i32) {
    %c0_i32 = arith.constant 0 : i32
    %c0_i32_0 = arith.constant 0 : i32
    %c0_i32_1 = arith.constant 0 : i32
    return %c0_i32, %c0_i32_0 : i32, i32
  }
  func.func @transform_6(%arg0: i32) -> (i32, i32) {
    %c0_i32 = arith.constant 0 : i32
    %c0_i32_0 = arith.constant 0 : i32
    %c0_i32_1 = arith.constant 0 : i32
    return %c0_i32, %c0_i32_0 : i32, i32
  }
  func.func @transform_7(%arg0: i32) -> (i32, i32) {
    %c0_i32 = arith.constant 0 : i32
    %c0_i32_0 = arith.constant 0 : i32
    %c0_i32_1 = arith.constant 0 : i32
    return %c0_i32, %c0_i32_0 : i32, i32
  }
  func.func @transform_8(%arg0: i32) -> (i32, i32) {
    %c0_i32 = arith.constant 0 : i32
    %c0_i32_0 = arith.constant 0 : i32
    %c0_i32_1 = arith.constant 0 : i32
    return %c0_i32, %c0_i32_0 : i32, i32
  }
  func.func @transform_9(%arg0: i32) -> (i32, i32) {
    %c0_i32 = arith.constant 0 : i32
    %c0_i32_0 = arith.constant 0 : i32
    %c0_i32_1 = arith.constant 0 : i32
    return %c0_i32, %c0_i32_0 : i32, i32
  }
  func.func @transform_10(%arg0: i32) -> (i32, i32) {
    %c0_i32 = arith.constant 0 : i32
    %c0_i32_0 = arith.constant 0 : i32
    %c0_i32_1 = arith.constant 0 : i32
    return %c0_i32, %c0_i32_0 : i32, i32
  }
  func.func @transform_11(%arg0: i32) -> (i32, i32) {
    %c0_i32 = arith.constant 0 : i32
    %c0_i32_0 = arith.constant 0 : i32
    %c0_i32_1 = arith.constant 0 : i32
    return %c0_i32, %c0_i32_0 : i32, i32
  }
  func.func @transform_12(%arg0: i32) -> (i32, i32) {
    %c0_i32 = arith.constant 0 : i32
    %c0_i32_0 = arith.constant 0 : i32
    %c0_i32_1 = arith.constant 0 : i32
    return %c0_i32, %c0_i32_0 : i32, i32
  }
  func.func @transform_13(%arg0: i32) -> (i32, i32) {
    %c0_i32 = arith.constant 0 : i32
    %c0_i32_0 = arith.constant 0 : i32
    %c0_i32_1 = arith.constant 0 : i32
    return %c0_i32, %c0_i32_0 : i32, i32
  }
  func.func @transform_14(%arg0: i32) -> (i32, i32) {
    %c0_i32 = arith.constant 0 : i32
    %c0_i32_0 = arith.constant 0 : i32
    %c0_i32_1 = arith.constant 0 : i32
    return %c0_i32, %c0_i32_0 : i32, i32
  }
  func.func @transform_15(%arg0: i32) -> (i32, i32) {
    %c0_i32 = arith.constant 0 : i32
    %c0_i32_0 = arith.constant 0 : i32
    %c0_i32_1 = arith.constant 0 : i32
    return %c0_i32, %c0_i32_0 : i32, i32
  }
  func.func @transform_16(%arg0: i32) -> (i32, i32) {
    %c0_i32 = arith.constant 0 : i32
    %c0_i32_0 = arith.constant 0 : i32
    %c0_i32_1 = arith.constant 0 : i32
    return %c0_i32, %c0_i32_0 : i32, i32
  }
  func.func @transform_17(%arg0: i32) -> (i32, i32) {
    %c0_i32 = arith.constant 0 : i32
    %c0_i32_0 = arith.constant 0 : i32
    %c0_i32_1 = arith.constant 0 : i32
    return %c0_i32, %c0_i32_0 : i32, i32
  }
}

</mosaic_0001>

<llo_original>
// kernel: tpu_custom_call.1
$region0: #{tpu_custom_call.1}
  #allocation0 [shape = 'u32[]', space=smem, size = 0x4, offset = 0x4, fixed_abs, tag = 'smem constant byte address 0x4 - core index']
  #allocation1 [shape = 'u32[72,128]{1,0:T(1,128)}', space=vmem, size = 0x9000, scoped, tag = 'internal scratch']
  %s0 = inlined_call_operand.vmem [shape: bf16[256,32], index: 0, kind: input, shape index: {}]
  %s1 = inlined_call_operand.vmem [shape: bf16[256,256], index: 1, kind: input, shape index: {}]
  %s2 = inlined_call_operand.vmem [shape: f32[256,1], index: 2, kind: input, shape index: {}]
  %s3 = inlined_call_operand.hbm [shape: f32[256,128], index: 3, kind: input, shape index: {}]
  %s4 = inlined_call_operand.vmem [shape: bf16[32,128], index: 4, kind: input, shape index: {}]
  %s5 = inlined_call_operand.vmem [shape: bf16[32,128], index: 5, kind: input, shape index: {}]
  %s6 = inlined_call_operand.vmem [shape: f32[1,128], index: 6, kind: input, shape index: {}]
  %s7 = inlined_call_operand.hbm [shape: bf16[128,128], index: 7, kind: input, shape index: {}]
  %s8 = inlined_call_operand.hbm [shape: bf16[128,128], index: 8, kind: input, shape index: {}]
  %s9 = inlined_call_operand.vmem [shape: f32[1,128], index: 9, kind: input, shape index: {}]
  %s10 = inlined_call_operand.vmem [shape: bf16[128,256], index: 10, kind: input, shape index: {}]
  %s11 = inlined_call_operand.vmem [shape: f32[1,256], index: 11, kind: input, shape index: {}]
  %s12 = inlined_call_operand.hbm [shape: bf16[256,2048], index: 12, kind: input, shape index: {}]
  %s13 = inlined_call_operand.hbm [shape: f32[1,2048], index: 13, kind: input, shape index: {}]
  %s14 = inlined_call_operand.hbm [shape: bf16[2048,128], index: 14, kind: input, shape index: {}]
  %s15 = inlined_call_operand.vmem [shape: f32[1,128], index: 15, kind: input, shape index: {}]
  %s16 = inlined_call_operand.hbm [shape: f32[256,128], index: 16, kind: output, shape index: {0}]
  %s17 = inlined_call_operand.hbm [shape: bf16[256,128], index: 17, kind: output, shape index: {1}]
  %18 = xla_tuple %s16, %s17
  %s19 = sld [smem:[#allocation0]]
  $region106: #{tpu_custom_call.1} parent=0
    _
  %s21 = ssub.s32 1, %s19
  %s22 = scalar_select 0, %s21, %s19
  $region1: #{tpu_custom_call.1} parent=0
    #allocation2 [shape = 'u8[131072]{0}', space=vmem, size = 0x20000, scoped, tag = 'input window, operand 3, single buffered']
    #allocation3 [shape = 's32[1]{0}', space=sflag, size = 0x4, scoped, tag = 'scoped memory for tpu_custom_call.1']
    #allocation4 [shape = 's32[1]{0}', space=sflag, size = 0x4, scoped, tag = 'scoped memory for tpu_custom_call.1']
    #allocation5 [shape = 'u8[32768]{0}', space=vmem, size = 0x8000, scoped, tag = 'input window, operand 7, single buffered']
    #allocation6 [shape = 's32[1]{0}', space=sflag, size = 0x4, scoped, tag = 'scoped memory for tpu_custom_call.1']
    #allocation7 [shape = 'u8[32768]{0}', space=vmem, size = 0x8000, scoped, tag = 'input window, operand 8, single buffered']
    #allocation8 [shape = 'u8[1048576]{0}', space=vmem, size = 0x100000, scoped, tag = 'input window, operand 12, single buffered']
    #allocation9 [shape = 's32[1]{0}', space=sflag, size = 0x4, scoped, tag = 'scoped memory for tpu_custom_call.1']
    #allocation10 [shape = 'u8[8192]{0}', space=vmem, size = 0x2000, scoped, tag = 'input window, operand 13, single buffered']
    #allocation11 [shape = 'u8[524288]{0}', space=vmem, size = 0x80000, scoped, tag = 'input window, operand 14, single buffered']
    #allocation12 [shape = 's32[1]{0}', space=sflag, size = 0x4, scoped, tag = 'scoped memory for tpu_custom_call.1']
    #allocation13 [shape = 'u8[131072]{0}', space=vmem, size = 0x20000, scoped, tag = 'output window, operand 0, single buffered']
    #allocation14 [shape = 'u8[65536]{0}', space=vmem, size = 0x10000, scoped, tag = 'output window, operand 1, single buffered']
    #allocation15 [shape = 's32[1]{0}', space=sflag, size = 0x4, scoped, tag = 'scoped memory for tpu_custom_call.1']
    %23 = vsyncpa [#allocation3], 0
    %24 = vsyncpa [#allocation6], 0
    %25 = vsyncpa [#allocation9], 0
    %26 = vsyncpa [#allocation12], 0
    %27 = vsyncpa [#allocation4], 0
    %28 = vsyncpa [#allocation15], 0
    // Predicated region
    $region2: #{tpu_custom_call.1} parent=1 // pred_check
      _
    $region3: #{tpu_custom_call.1} parent=1 // pred_check_branch
      %30 = sbr.rel (0) target = $region5
    $region4: #{tpu_custom_call.1} parent=1 // pred_region
      _
    $region5: #{tpu_custom_call.1} parent=1 // pred_fallthru
      _
    // Predicated region
    $region6: #{tpu_custom_call.1} parent=1 // pred_check
      _
    $region7: #{tpu_custom_call.1} parent=1 // pred_check_branch
      %32 = sbr.rel (0) target = $region9
    $region8: #{tpu_custom_call.1} parent=1 // pred_region
      _
    $region9: #{tpu_custom_call.1} parent=1 // pred_fallthru
      _
    // Predicated region
    $region10: #{tpu_custom_call.1} parent=1 // pred_check
      _
    $region11: #{tpu_custom_call.1} parent=1 // pred_check_branch
      %34 = sbr.rel (0) target = $region13
    $region12: #{tpu_custom_call.1} parent=1 // pred_region
      _
    $region13: #{tpu_custom_call.1} parent=1 // pred_fallthru
      _
    // Predicated region
    $region14: #{tpu_custom_call.1} parent=1 // pred_check
      _
    $region15: #{tpu_custom_call.1} parent=1 // pred_check_branch
      %36 = sbr.rel (0) target = $region17
    $region16: #{tpu_custom_call.1} parent=1 // pred_region
      %38 = vsyncadd [#allocation3], 0
      %s39 = sshll.u32 %s3, 4
      %s40 = int_to_ptr.hbm [resolvable:$true] %s39
      %s41 = sshll.u32 [#allocation2], 4
      %s42 = int_to_ptr.vmem [resolvable:$true] %s41
      %47 = dma.hbm_to_vmem [thread:$0]  %s40, 4096, %s42, [#allocation3], 128, 128, 8
    $region17: #{tpu_custom_call.1} parent=1 // pred_fallthru
      _
    // Predicated region
    $region18: #{tpu_custom_call.1} parent=1 // pred_check
      _
    $region19: #{tpu_custom_call.1} parent=1 // pred_check_branch
      %49 = sbr.rel (0) target = $region21
    $region20: #{tpu_custom_call.1} parent=1 // pred_region
      _
    $region21: #{tpu_custom_call.1} parent=1 // pred_fallthru
      _
    // Predicated region
    $region22: #{tpu_custom_call.1} parent=1 // pred_check
      _
    $region23: #{tpu_custom_call.1} parent=1 // pred_check_branch
      %51 = sbr.rel (0) target = $region25
    $region24: #{tpu_custom_call.1} parent=1 // pred_region
      _
    $region25: #{tpu_custom_call.1} parent=1 // pred_fallthru
      _
    // Predicated region
    $region26: #{tpu_custom_call.1} parent=1 // pred_check
      _
    $region27: #{tpu_custom_call.1} parent=1 // pred_check_branch
      %53 = sbr.rel (0) target = $region29
    $region28: #{tpu_custom_call.1} parent=1 // pred_region
      _
    $region29: #{tpu_custom_call.1} parent=1 // pred_fallthru
      _
    // Predicated region
    $region30: #{tpu_custom_call.1} parent=1 // pred_check
      _
    $region31: #{tpu_custom_call.1} parent=1 // pred_check_branch
      %55 = sbr.rel (0) target = $region33
    $region32: #{tpu_custom_call.1} parent=1 // pred_region
      %57 = vsyncadd [#allocation6], 0
      %s58 = sshll.u32 %s7, 4
      %s59 = int_to_ptr.hbm [resolvable:$true] %s58
      %s60 = sshll.u32 [#allocation5], 4
      %s61 = int_to_ptr.vmem [resolvable:$true] %s60
      %66 = dma.hbm_to_vmem [thread:$0]  %s59, 1024, %s61, [#allocation6], 64, 64, 4
    $region33: #{tpu_custom_call.1} parent=1 // pred_fallthru
      _
    // Predicated region
    $region34: #{tpu_custom_call.1} parent=1 // pred_check
      _
    $region35: #{tpu_custom_call.1} parent=1 // pred_check_branch
      %68 = sbr.rel (0) target = $region37
    $region36: #{tpu_custom_call.1} parent=1 // pred_region
      %70 = vsyncadd [#allocation6], 0
      %s71 = sshll.u32 %s8, 4
      %s72 = int_to_ptr.hbm [resolvable:$true] %s71
      %s73 = sshll.u32 [#allocation7], 4
      %s74 = int_to_ptr.vmem [resolvable:$true] %s73
      %79 = dma.hbm_to_vmem [thread:$0]  %s72, 1024, %s74, [#allocation6], 64, 64, 4
    $region37: #{tpu_custom_call.1} parent=1 // pred_fallthru
      _
    // Predicated region
    $region38: #{tpu_custom_call.1} parent=1 // pred_check
      _
    $region39: #{tpu_custom_call.1} parent=1 // pred_check_branch
      %81 = sbr.rel (0) target = $region41
    $region40: #{tpu_custom_call.1} parent=1 // pred_region
      _
    $region41: #{tpu_custom_call.1} parent=1 // pred_fallthru
      _
    // Predicated region
    $region42: #{tpu_custom_call.1} parent=1 // pred_check
      _
    $region43: #{tpu_custom_call.1} parent=1 // pred_check_branch
      %83 = sbr.rel (0) target = $region45
    $region44: #{tpu_custom_call.1} parent=1 // pred_region
      _
    $region45: #{tpu_custom_call.1} parent=1 // pred_fallthru
      _
    // Predicated region
    $region46: #{tpu_custom_call.1} parent=1 // pred_check
      _
    $region47: #{tpu_custom_call.1} parent=1 // pred_check_branch
      %85 = sbr.rel (0) target = $region49
    $region48: #{tpu_custom_call.1} parent=1 // pred_region
      _
    $region49: #{tpu_custom_call.1} parent=1 // pred_fallthru
      _
    // Predicated region
    $region50: #{tpu_custom_call.1} parent=1 // pred_check
      _
    $region51: #{tpu_custom_call.1} parent=1 // pred_check_branch
      %87 = sbr.rel (0) target = $region53
    $region52: #{tpu_custom_call.1} parent=1 // pred_region
      %89 = vsyncadd [#allocation9], 0
      %s90 = sshll.u32 %s12, 4
      %s91 = int_to_ptr.hbm [resolvable:$true] %s90
      %s92 = sshll.u32 [#allocation8], 4
      %s93 = int_to_ptr.vmem [resolvable:$true] %s92
      %98 = dma.hbm_to_vmem [thread:$0]  %s91, 32768, %s93, [#allocation9], 1024, 1024, 64
    $region53: #{tpu_custom_call.1} parent=1 // pred_fallthru
      _
    // Predicated region
    $region54: #{tpu_custom_call.1} parent=1 // pred_check
      _
    $region55: #{tpu_custom_call.1} parent=1 // pred_check_branch
      %100 = sbr.rel (0) target = $region57
    $region56: #{tpu_custom_call.1} parent=1 // pred_region
      %102 = vsyncadd [#allocation9], 0
      %s104 = sshll.u32 %s13, 4
      %s105 = int_to_ptr.hbm [resolvable:$true] %s104
      %s106 = sshll.u32 [#allocation10], 4
      %s107 = int_to_ptr.vmem [resolvable:$true] %s106
      %109 = dma.hbm_to_vmem [thread:$0]  %s105, 256, %s107, [#allocation9]
    $region57: #{tpu_custom_call.1} parent=1 // pred_fallthru
      _
    // Predicated region
    $region58: #{tpu_custom_call.1} parent=1 // pred_check
      _
    $region59: #{tpu_custom_call.1} parent=1 // pred_check_branch
      %111 = sbr.rel (0) target = $region61
    $region60: #{tpu_custom_call.1} parent=1 // pred_region
      %113 = vsyncadd [#allocation12], 0
      %s114 = sshll.u32 %s14, 4
      %s115 = int_to_ptr.hbm [resolvable:$true] %s114
      %s116 = sshll.u32 [#allocation11], 4
      %s117 = int_to_ptr.vmem [resolvable:$true] %s116
      %122 = dma.hbm_to_vmem [thread:$0]  %s115, 16384, %s117, [#allocation12], 64, 64, 4
    $region61: #{tpu_custom_call.1} parent=1 // pred_fallthru
      _
    // Predicated region
    $region62: #{tpu_custom_call.1} parent=1 // pred_check
      _
    $region63: #{tpu_custom_call.1} parent=1 // pred_check_branch
      %124 = sbr.rel (0) target = $region65
    $region64: #{tpu_custom_call.1} parent=1 // pred_region
      _
    $region65: #{tpu_custom_call.1} parent=1 // pred_fallthru
      _
    // Predicated region
    $region66: #{tpu_custom_call.1} parent=1 // pred_check
      _
    $region67: #{tpu_custom_call.1} parent=1 // pred_check_branch
      %126 = sbr.rel (0) target = $region69
    $region68: #{tpu_custom_call.1} parent=1 // pred_region
      %128 = dma.done [#allocation3], 4096
    $region69: #{tpu_custom_call.1} parent=1 // pred_fallthru
      _
    // Predicated region
    $region70: #{tpu_custom_call.1} parent=1 // pred_check
      _
    $region71: #{tpu_custom_call.1} parent=1 // pred_check_branch
      %130 = sbr.rel (0) target = $region73
    $region72: #{tpu_custom_call.1} parent=1 // pred_region
      %132 = dma.done [#allocation6], 1024
    $region73: #{tpu_custom_call.1} parent=1 // pred_fallthru
      _
    // Predicated region
    $region74: #{tpu_custom_call.1} parent=1 // pred_check
      _
    $region75: #{tpu_custom_call.1} parent=1 // pred_check_branch
      %134 = sbr.rel (0) target = $region77
    $region76: #{tpu_custom_call.1} parent=1 // pred_region
      %136 = dma.done [#allocation6], 1024
    $region77: #{tpu_custom_call.1} parent=1 // pred_fallthru
      _
    // Predicated region
    $region78: #{tpu_custom_call.1} parent=1 // pred_check
      _
    $region79: #{tpu_custom_call.1} parent=1 // pred_check_branch
      %138 = sbr.rel (0) target = $region81
    $region80: #{tpu_custom_call.1} parent=1 // pred_region
      %140 = dma.done [#allocation9], 32768
    $region81: #{tpu_custom_call.1} parent=1 // pred_fallthru
      _
    // Predicated region
    $region82: #{tpu_custom_call.1} parent=1 // pred_check
      _
    $region83: #{tpu_custom_call.1} parent=1 // pred_check_branch
      %142 = sbr.rel (0) target = $region85
    $region84: #{tpu_custom_call.1} parent=1 // pred_region
      %144 = dma.done [#allocation9], 256
    $region85: #{tpu_custom_call.1} parent=1 // pred_fallthru
      _
    // Predicated region
    $region86: #{tpu_custom_call.1} parent=1 // pred_check
      _
    $region87: #{tpu_custom_call.1} parent=1 // pred_check_branch
      %146 = sbr.rel (0) target = $region89
    $region88: #{tpu_custom_call.1} parent=1 // pred_region
      %148 = dma.done [#allocation12], 16384
    $region89: #{tpu_custom_call.1} parent=1 // pred_fallthru
      _
    %v150 = vld [vmem:[%s0] sm:$0xf]
    %v151 = vld [vmem:[%s0 + $0x4] sm:$0xf]
    %v152 = vld [vmem:[%s0 + $0x8] sm:$0xf]
    %v153 = vld [vmem:[%s0 + $0xc] sm:$0xf]
    %v154 = vld [vmem:[%s0 + $0x10] sm:$0xf]
    %v155 = vld [vmem:[%s0 + $0x14] sm:$0xf]
    %v156 = vld [vmem:[%s0 + $0x18] sm:$0xf]
    %v157 = vld [vmem:[%s0 + $0x1c] sm:$0xf]
    %v158 = vld [vmem:[%s0 + $0x20] sm:$0xf]
    %v159 = vld [vmem:[%s0 + $0x24] sm:$0xf]
    %v160 = vld [vmem:[%s0 + $0x28] sm:$0xf]
    %v161 = vld [vmem:[%s0 + $0x2c] sm:$0xf]
    %v162 = vld [vmem:[%s0 + $0x30] sm:$0xf]
    %v163 = vld [vmem:[%s0 + $0x34] sm:$0xf]
    %v164 = vld [vmem:[%s0 + $0x38] sm:$0xf]
    %v165 = vld [vmem:[%s0 + $0x3c] sm:$0xf]
    %v166 = vld [vmem:[%s0 + $0x40] sm:$0xf]
    %v167 = vld [vmem:[%s0 + $0x44] sm:$0xf]
    %v168 = vld [vmem:[%s0 + $0x48] sm:$0xf]
    %v169 = vld [vmem:[%s0 + $0x4c] sm:$0xf]
    %v170 = vld [vmem:[%s0 + $0x50] sm:$0xf]
    %v171 = vld [vmem:[%s0 + $0x54] sm:$0xf]
    %v172 = vld [vmem:[%s0 + $0x58] sm:$0xf]
    %v173 = vld [vmem:[%s0 + $0x5c] sm:$0xf]
    %v174 = vld [vmem:[%s0 + $0x60] sm:$0xf]
    %v175 = vld [vmem:[%s0 + $0x64] sm:$0xf]
    %v176 = vld [vmem:[%s0 + $0x68] sm:$0xf]
    %v177 = vld [vmem:[%s0 + $0x6c] sm:$0xf]
    %v178 = vld [vmem:[%s0 + $0x70] sm:$0xf]
    %v179 = vld [vmem:[%s0 + $0x74] sm:$0xf]
    %v180 = vld [vmem:[%s0 + $0x78] sm:$0xf]
    %v181 = vld [vmem:[%s0 + $0x7c] sm:$0xf]
    %v182 = vld [vmem:[%s1] sm:$0xff]
    %v183 = vld [vmem:[%s1 + $0x8] sm:$0xff]
    %v184 = vld [vmem:[%s1 + $0x10] sm:$0xff]
    %v185 = vld [vmem:[%s1 + $0x18] sm:$0xff]
    %v186 = vld [vmem:[%s1 + $0x20] sm:$0xff]
    %v187 = vld [vmem:[%s1 + $0x28] sm:$0xff]
    %v188 = vld [vmem:[%s1 + $0x30] sm:$0xff]
    %v189 = vld [vmem:[%s1 + $0x38] sm:$0xff]
    %v190 = vld [vmem:[%s1 + $0x40] sm:$0xff]
    %v191 = vld [vmem:[%s1 + $0x48] sm:$0xff]
    %v192 = vld [vmem:[%s1 + $0x50] sm:$0xff]
    %v193 = vld [vmem:[%s1 + $0x58] sm:$0xff]
    %v194 = vld [vmem:[%s1 + $0x60] sm:$0xff]
    %v195 = vld [vmem:[%s1 + $0x68] sm:$0xff]
    %v196 = vld [vmem:[%s1 + $0x70] sm:$0xff]
    %v197 = vld [vmem:[%s1 + $0x78] sm:$0xff]
    %v198 = vld [vmem:[%s1 + $0x80] sm:$0xff]
    %v199 = vld [vmem:[%s1 + $0x88] sm:$0xff]
    %v200 = vld [vmem:[%s1 + $0x90] sm:$0xff]
    %v201 = vld [vmem:[%s1 + $0x98] sm:$0xff]
    %v202 = vld [vmem:[%s1 + $0xa0] sm:$0xff]
    %v203 = vld [vmem:[%s1 + $0xa8] sm:$0xff]
    %v204 = vld [vmem:[%s1 + $0xb0] sm:$0xff]
    %v205 = vld [vmem:[%s1 + $0xb8] sm:$0xff]
    %v206 = vld [vmem:[%s1 + $0xc0] sm:$0xff]
    %v207 = vld [vmem:[%s1 + $0xc8] sm:$0xff]
    %v208 = vld [vmem:[%s1 + $0xd0] sm:$0xff]
    %v209 = vld [vmem:[%s1 + $0xd8] sm:$0xff]
    %v210 = vld [vmem:[%s1 + $0xe0] sm:$0xff]
    %v211 = vld [vmem:[%s1 + $0xe8] sm:$0xff]
    %v212 = vld [vmem:[%s1 + $0xf0] sm:$0xff]
    %v213 = vld [vmem:[%s1 + $0xf8] sm:$0xff]
    %v214 = vld [vmem:[%s2] sm:$0xff]
    %v215 = vld [vmem:[%s2 + $0x8] sm:$0xff]
    %v216 = vld [vmem:[%s2 + $0x10] sm:$0xff]
    %v217 = vld [vmem:[%s2 + $0x18] sm:$0xff]
    %v218 = vld [vmem:[%s2 + $0x20] sm:$0xff]
    %v219 = vld [vmem:[%s2 + $0x28] sm:$0xff]
    %v220 = vld [vmem:[%s2 + $0x30] sm:$0xff]
    %v221 = vld [vmem:[%s2 + $0x38] sm:$0xff]
    %v222 = vld [vmem:[%s2 + $0x40] sm:$0xff]
    %v223 = vld [vmem:[%s2 + $0x48] sm:$0xff]
    %v224 = vld [vmem:[%s2 + $0x50] sm:$0xff]
    %v225 = vld [vmem:[%s2 + $0x58] sm:$0xff]
    %v226 = vld [vmem:[%s2 + $0x60] sm:$0xff]
    %v227 = vld [vmem:[%s2 + $0x68] sm:$0xff]
    %v228 = vld [vmem:[%s2 + $0x70] sm:$0xff]
    %v229 = vld [vmem:[%s2 + $0x78] sm:$0xff]
    %v230 = vld [vmem:[%s2 + $0x80] sm:$0xff]
    %v231 = vld [vmem:[%s2 + $0x88] sm:$0xff]
    %v232 = vld [vmem:[%s2 + $0x90] sm:$0xff]
    %v233 = vld [vmem:[%s2 + $0x98] sm:$0xff]
    %v234 = vld [vmem:[%s2 + $0xa0] sm:$0xff]
    %v235 = vld [vmem:[%s2 + $0xa8] sm:$0xff]
    %v236 = vld [vmem:[%s2 + $0xb0] sm:$0xff]
    %v237 = vld [vmem:[%s2 + $0xb8] sm:$0xff]
    %v238 = vld [vmem:[%s2 + $0xc0] sm:$0xff]
    %v239 = vld [vmem:[%s2 + $0xc8] sm:$0xff]
    %v240 = vld [vmem:[%s2 + $0xd0] sm:$0xff]
    %v241 = vld [vmem:[%s2 + $0xd8] sm:$0xff]
    %v242 = vld [vmem:[%s2 + $0xe0] sm:$0xff]
    %v243 = vld [vmem:[%s2 + $0xe8] sm:$0xff]
    %v244 = vld [vmem:[%s2 + $0xf0] sm:$0xff]
    %v245 = vld [vmem:[%s2 + $0xf8] sm:$0xff]
    %v278 = vunpack.c.l.b16 %v182
    %v279 = vunpack.c.h.b16 %v182
    %v280 = vunpack.c.l.b16 %v183
    %v281 = vunpack.c.h.b16 %v183
    %v282 = vunpack.c.l.b16 %v184
    %v283 = vunpack.c.h.b16 %v184
    %v284 = vunpack.c.l.b16 %v185
    %v285 = vunpack.c.h.b16 %v185
    %v286 = vunpack.c.l.b16 %v186
    %v287 = vunpack.c.h.b16 %v186
    %v288 = vunpack.c.l.b16 %v187
    %v289 = vunpack.c.h.b16 %v187
    %v290 = vunpack.c.l.b16 %v188
    %v291 = vunpack.c.h.b16 %v188
    %v292 = vunpack.c.l.b16 %v189
    %v293 = vunpack.c.h.b16 %v189
    %v294 = vunpack.c.l.b16 %v190
    %v295 = vunpack.c.h.b16 %v190
    %v296 = vunpack.c.l.b16 %v191
    %v297 = vunpack.c.h.b16 %v191
    %v298 = vunpack.c.l.b16 %v192
    %v299 = vunpack.c.h.b16 %v192
    %v300 = vunpack.c.l.b16 %v193
    %v301 = vunpack.c.h.b16 %v193
    %v302 = vunpack.c.l.b16 %v194
    %v303 = vunpack.c.h.b16 %v194
    %v304 = vunpack.c.l.b16 %v195
    %v305 = vunpack.c.h.b16 %v195
    %v306 = vunpack.c.l.b16 %v196
    %v307 = vunpack.c.h.b16 %v196
    %v308 = vunpack.c.l.b16 %v197
    %v309 = vunpack.c.h.b16 %v197
    %v310 = vunpack.c.l.b16 %v198
    %v311 = vunpack.c.h.b16 %v198
    %v312 = vunpack.c.l.b16 %v199
    %v313 = vunpack.c.h.b16 %v199
    %v314 = vunpack.c.l.b16 %v200
    %v315 = vunpack.c.h.b16 %v200
    %v316 = vunpack.c.l.b16 %v201
    %v317 = vunpack.c.h.b16 %v201
    %v318 = vunpack.c.l.b16 %v202
    %v319 = vunpack.c.h.b16 %v202
    %v320 = vunpack.c.l.b16 %v203
    %v321 = vunpack.c.h.b16 %v203
    %v322 = vunpack.c.l.b16 %v204
    %v323 = vunpack.c.h.b16 %v204
    %v324 = vunpack.c.l.b16 %v205
    %v325 = vunpack.c.h.b16 %v205
    %v326 = vunpack.c.l.b16 %v206
    %v327 = vunpack.c.h.b16 %v206
    %v328 = vunpack.c.l.b16 %v207
    %v329 = vunpack.c.h.b16 %v207
    %v330 = vunpack.c.l.b16 %v208
    %v331 = vunpack.c.h.b16 %v208
    %v332 = vunpack.c.l.b16 %v209
    %v333 = vunpack.c.h.b16 %v209
    %v334 = vunpack.c.l.b16 %v210
    %v335 = vunpack.c.h.b16 %v210
    %v336 = vunpack.c.l.b16 %v211
    %v337 = vunpack.c.h.b16 %v211
    %v338 = vunpack.c.l.b16 %v212
    %v339 = vunpack.c.h.b16 %v212
    %v340 = vunpack.c.l.b16 %v213
    %v341 = vunpack.c.h.b16 %v213
    %v342 = vpack.c.b16 %v280, %v278
    %v343 = vpack.c.b16 %v281, %v279
    %v344 = vpack.c.b16 %v284, %v282
    %v345 = vpack.c.b16 %v285, %v283
    %v346 = vpack.c.b16 %v288, %v286
    %v347 = vpack.c.b16 %v289, %v287
    %v348 = vpack.c.b16 %v292, %v290
    %v349 = vpack.c.b16 %v293, %v291
    %v350 = vpack.c.b16 %v296, %v294
    %v351 = vpack.c.b16 %v297, %v295
    %v352 = vpack.c.b16 %v300, %v298
    %v353 = vpack.c.b16 %v301, %v299
    %v354 = vpack.c.b16 %v304, %v302
    %v355 = vpack.c.b16 %v305, %v303
    %v356 = vpack.c.b16 %v308, %v306
    %v357 = vpack.c.b16 %v309, %v307
    %v358 = vpack.c.b16 %v312, %v310
    %v359 = vpack.c.b16 %v313, %v311
    %v360 = vpack.c.b16 %v316, %v314
    %v361 = vpack.c.b16 %v317, %v315
    %v362 = vpack.c.b16 %v320, %v318
    %v363 = vpack.c.b16 %v321, %v319
    %v364 = vpack.c.b16 %v324, %v322
    %v365 = vpack.c.b16 %v325, %v323
    %v366 = vpack.c.b16 %v328, %v326
    %v367 = vpack.c.b16 %v329, %v327
    %v368 = vpack.c.b16 %v332, %v330
    %v369 = vpack.c.b16 %v333, %v331
    %v370 = vpack.c.b16 %v336, %v334
    %v371 = vpack.c.b16 %v337, %v335
    %v372 = vpack.c.b16 %v340, %v338
    %v373 = vpack.c.b16 %v341, %v339
    %v438 = vunpack.c.l.b16 %v150
    %v439 = vunpack.c.l.b16 %v151
    %v440 = vunpack.c.l.b16 %v152
    %v441 = vunpack.c.l.b16 %v153
    %v442 = vunpack.c.l.b16 %v154
    %v443 = vunpack.c.l.b16 %v155
    %v444 = vunpack.c.l.b16 %v156
    %v445 = vunpack.c.l.b16 %v157
    %v446 = vunpack.c.l.b16 %v158
    %v447 = vunpack.c.l.b16 %v159
    %v448 = vunpack.c.l.b16 %v160
    %v449 = vunpack.c.l.b16 %v161
    %v450 = vunpack.c.l.b16 %v162
    %v451 = vunpack.c.l.b16 %v163
    %v452 = vunpack.c.l.b16 %v164
    %v453 = vunpack.c.l.b16 %v165
    %v454 = vunpack.c.l.b16 %v166
    %v455 = vunpack.c.l.b16 %v167
    %v456 = vunpack.c.l.b16 %v168
    %v457 = vunpack.c.l.b16 %v169
    %v458 = vunpack.c.l.b16 %v170
    %v459 = vunpack.c.l.b16 %v171
    %v460 = vunpack.c.l.b16 %v172
    %v461 = vunpack.c.l.b16 %v173
    %v462 = vunpack.c.l.b16 %v174
    %v463 = vunpack.c.l.b16 %v175
    %v464 = vunpack.c.l.b16 %v176
    %v465 = vunpack.c.l.b16 %v177
    %v466 = vunpack.c.l.b16 %v178
    %v467 = vunpack.c.l.b16 %v179
    %v468 = vunpack.c.l.b16 %v180
    %v469 = vunpack.c.l.b16 %v181
    %v470 = vpack.c.b16 %v439, %v438
    %v471 = vpack.c.b16 %v441, %v440
    %v472 = vpack.c.b16 %v443, %v442
    %v473 = vpack.c.b16 %v445, %v444
    %v474 = vpack.c.b16 %v447, %v446
    %v475 = vpack.c.b16 %v449, %v448
    %v476 = vpack.c.b16 %v451, %v450
    %v477 = vpack.c.b16 %v453, %v452
    %v478 = vpack.c.b16 %v455, %v454
    %v479 = vpack.c.b16 %v457, %v456
    %v480 = vpack.c.b16 %v459, %v458
    %v481 = vpack.c.b16 %v461, %v460
    %v482 = vpack.c.b16 %v463, %v462
    %v483 = vpack.c.b16 %v465, %v464
    %v484 = vpack.c.b16 %v467, %v466
    %v485 = vpack.c.b16 %v469, %v468
    %502 = vmatpush.bf16.msra.mxu0 %v477
    %503 = vmatpush.bf16.msra.mxu0 %v476
    %504 = vmatpush.bf16.msra.mxu0 %v475
    %505 = vmatpush.bf16.msra.mxu0 %v474
    %506 = vmatpush.bf16.msra.mxu0 %v473
    %507 = vmatpush.bf16.msra.mxu0 %v472
    %508 = vmatpush.bf16.msra.mxu0 %v471
    %509 = vmatpush.bf16.msra.mxu0 %v470
    %510 = vmatmul.bf16.gmra.mxu0 %v342
    %v511 = vpop.f32.mrf.mxu0
    %v512 = vadd.f32 0.0, %v511
    %v513 = vpop.f32.mrf.mxu0
    %v514 = vadd.f32 0.0, %v513
    %515 = vmatmul.bf16.gmra.mxu0 %v344
    %v516 = vpop.f32.mrf.mxu0
    %v517 = vadd.f32 0.0, %v516
    %v518 = vpop.f32.mrf.mxu0
    %v519 = vadd.f32 0.0, %v518
    %520 = vmatmul.bf16.gmra.mxu0 %v346
    %v521 = vpop.f32.mrf.mxu0
    %v522 = vadd.f32 0.0, %v521
    %v523 = vpop.f32.mrf.mxu0
    %v524 = vadd.f32 0.0, %v523
    %525 = vmatmul.bf16.gmra.mxu0 %v348
    %v526 = vpop.f32.mrf.mxu0
    %v527 = vadd.f32 0.0, %v526
    %v528 = vpop.f32.mrf.mxu0
    %v529 = vadd.f32 0.0, %v528
    %530 = vmatmul.bf16.gmra.mxu0 %v350
    %v531 = vpop.f32.mrf.mxu0
    %v532 = vadd.f32 0.0, %v531
    %v533 = vpop.f32.mrf.mxu0
    %v534 = vadd.f32 0.0, %v533
    %535 = vmatmul.bf16.gmra.mxu0 %v352
    %v536 = vpop.f32.mrf.mxu0
    %v537 = vadd.f32 0.0, %v536
    %v538 = vpop.f32.mrf.mxu0
    %v539 = vadd.f32 0.0, %v538
    %540 = vmatmul.bf16.gmra.mxu0 %v354
    %v541 = vpop.f32.mrf.mxu0
    %v542 = vadd.f32 0.0, %v541
    %v543 = vpop.f32.mrf.mxu0
    %v544 = vadd.f32 0.0, %v543
    %545 = vmatmul.bf16.gmra.mxu0 %v356
    %v546 = vpop.f32.mrf.mxu0
    %v547 = vadd.f32 0.0, %v546
    %v548 = vpop.f32.mrf.mxu0
    %v549 = vadd.f32 0.0, %v548
    %550 = vmatmul.bf16.gmra.mxu0 %v358
    %v551 = vpop.f32.mrf.mxu0
    %v552 = vadd.f32 0.0, %v551
    %v553 = vpop.f32.mrf.mxu0
    %v554 = vadd.f32 0.0, %v553
    %555 = vmatmul.bf16.gmra.mxu0 %v360
    %v556 = vpop.f32.mrf.mxu0
    %v557 = vadd.f32 0.0, %v556
    %v558 = vpop.f32.mrf.mxu0
    %v559 = vadd.f32 0.0, %v558
    %560 = vmatmul.bf16.gmra.mxu0 %v362
    %v561 = vpop.f32.mrf.mxu0
    %v562 = vadd.f32 0.0, %v561
    %v563 = vpop.f32.mrf.mxu0
    %v564 = vadd.f32 0.0, %v563
    %565 = vmatmul.bf16.gmra.mxu0 %v364
    %v566 = vpop.f32.mrf.mxu0
    %v567 = vadd.f32 0.0, %v566
    %v568 = vpop.f32.mrf.mxu0
    %v569 = vadd.f32 0.0, %v568
    %570 = vmatmul.bf16.gmra.mxu0 %v366
    %v571 = vpop.f32.mrf.mxu0
    %v572 = vadd.f32 0.0, %v571
    %v573 = vpop.f32.mrf.mxu0
    %v574 = vadd.f32 0.0, %v573
    %575 = vmatmul.bf16.gmra.mxu0 %v368
    %v576 = vpop.f32.mrf.mxu0
    %v577 = vadd.f32 0.0, %v576
    %v578 = vpop.f32.mrf.mxu0
    %v579 = vadd.f32 0.0, %v578
    %580 = vmatmul.bf16.gmra.mxu0 %v370
    %v581 = vpop.f32.mrf.mxu0
    %v582 = vadd.f32 0.0, %v581
    %v583 = vpop.f32.mrf.mxu0
    %v584 = vadd.f32 0.0, %v583
    %585 = vmatmul.bf16.gmra.mxu0 %v372
    %v586 = vpop.f32.mrf.mxu0
    %v587 = vadd.f32 0.0, %v586
    %v588 = vpop.f32.mrf.mxu0
    %v589 = vadd.f32 0.0, %v588
    %590 = vdwg.mxu0
    %591 = vmatpush.bf16.msra.mxu0 %v485
    %592 = vmatpush.bf16.msra.mxu0 %v484
    %593 = vmatpush.bf16.msra.mxu0 %v483
    %594 = vmatpush.bf16.msra.mxu0 %v482
    %595 = vmatpush.bf16.msra.mxu0 %v481
    %596 = vmatpush.bf16.msra.mxu0 %v480
    %597 = vmatpush.bf16.msra.mxu0 %v479
    %598 = vmatpush.bf16.msra.mxu0 %v478
    %599 = vmatmul.bf16.gmra.mxu0 %v343
    %v600 = vpop.f32.mrf.mxu0
    %v601 = vadd.f32 %v512, %v600
    %v602 = vpop.f32.mrf.mxu0
    %v603 = vadd.f32 %v514, %v602
    %604 = vmatmul.bf16.gmra.mxu0 %v345
    %v605 = vpop.f32.mrf.mxu0
    %v606 = vadd.f32 %v517, %v605
    %v607 = vpop.f32.mrf.mxu0
    %v608 = vadd.f32 %v519, %v607
    %609 = vmatmul.bf16.gmra.mxu0 %v347
    %v610 = vpop.f32.mrf.mxu0
    %v611 = vadd.f32 %v522, %v610
    %v612 = vpop.f32.mrf.mxu0
    %v613 = vadd.f32 %v524, %v612
    %614 = vmatmul.bf16.gmra.mxu0 %v349
    %v615 = vpop.f32.mrf.mxu0
    %v616 = vadd.f32 %v527, %v615
    %v617 = vpop.f32.mrf.mxu0
    %v618 = vadd.f32 %v529, %v617
    %619 = vmatmul.bf16.gmra.mxu0 %v351
    %v620 = vpop.f32.mrf.mxu0
    %v621 = vadd.f32 %v532, %v620
    %v622 = vpop.f32.mrf.mxu0
    %v623 = vadd.f32 %v534, %v622
    %624 = vmatmul.bf16.gmra.mxu0 %v353
    %v625 = vpop.f32.mrf.mxu0
    %v626 = vadd.f32 %v537, %v625
    %v627 = vpop.f32.mrf.mxu0
    %v628 = vadd.f32 %v539, %v627
    %629 = vmatmul.bf16.gmra.mxu0 %v355
    %v630 = vpop.f32.mrf.mxu0
    %v631 = vadd.f32 %v542, %v630
    %v632 = vpop.f32.mrf.mxu0
    %v633 = vadd.f32 %v544, %v632
    %634 = vmatmul.bf16.gmra.mxu0 %v357
    %v635 = vpop.f32.mrf.mxu0
    %v636 = vadd.f32 %v547, %v635
    %v637 = vpop.f32.mrf.mxu0
    %v638 = vadd.f32 %v549, %v637
    %639 = vmatmul.bf16.gmra.mxu0 %v359
    %v640 = vpop.f32.mrf.mxu0
    %v641 = vadd.f32 %v552, %v640
    %v642 = vpop.f32.mrf.mxu0
    %v643 = vadd.f32 %v554, %v642
    %644 = vmatmul.bf16.gmra.mxu0 %v361
    %v645 = vpop.f32.mrf.mxu0
    %v646 = vadd.f32 %v557, %v645
    %v647 = vpop.f32.mrf.mxu0
    %v648 = vadd.f32 %v559, %v647
    %649 = vmatmul.bf16.gmra.mxu0 %v363
    %v650 = vpop.f32.mrf.mxu0
    %v651 = vadd.f32 %v562, %v650
    %v652 = vpop.f32.mrf.mxu0
    %v653 = vadd.f32 %v564, %v652
    %654 = vmatmul.bf16.gmra.mxu0 %v365
    %v655 = vpop.f32.mrf.mxu0
    %v656 = vadd.f32 %v567, %v655
    %v657 = vpop.f32.mrf.mxu0
    %v658 = vadd.f32 %v569, %v657
    %659 = vmatmul.bf16.gmra.mxu0 %v367
    %v660 = vpop.f32.mrf.mxu0
    %v661 = vadd.f32 %v572, %v660
    %v662 = vpop.f32.mrf.mxu0
    %v663 = vadd.f32 %v574, %v662
    %664 = vmatmul.bf16.gmra.mxu0 %v369
    %v665 = vpop.f32.mrf.mxu0
    %v666 = vadd.f32 %v577, %v665
    %v667 = vpop.f32.mrf.mxu0
    %v668 = vadd.f32 %v579, %v667
    %669 = vmatmul.bf16.gmra.mxu0 %v371
    %v670 = vpop.f32.mrf.mxu0
    %v671 = vadd.f32 %v582, %v670
    %v672 = vpop.f32.mrf.mxu0
    %v673 = vadd.f32 %v584, %v672
    %674 = vmatmul.bf16.gmra.mxu0 %v373
    %v675 = vpop.f32.mrf.mxu0
    %v676 = vadd.f32 %v587, %v675
    %v677 = vpop.f32.mrf.mxu0
    %v678 = vadd.f32 %v589, %v677
    %679 = vdwg.mxu0
    %681 = vset.pattern.permute.xlu0 0
    %682 = vperm.xlu0 %681, %v214
    %v683 = vpop.permute.xlu0 %682
    %686 = vset.pattern.permute.xlu0 0
    %687 = vperm.xlu0 %686, %v215
    %v688 = vpop.permute.xlu0 %687
    %691 = vset.pattern.permute.xlu0 0
    %692 = vperm.xlu0 %691, %v216
    %v693 = vpop.permute.xlu0 %692
    %696 = vset.pattern.permute.xlu0 0
    %697 = vperm.xlu0 %696, %v217
    %v698 = vpop.permute.xlu0 %697
    %701 = vset.pattern.permute.xlu0 0
    %702 = vperm.xlu0 %701, %v218
    %v703 = vpop.permute.xlu0 %702
    %706 = vset.pattern.permute.xlu0 0
    %707 = vperm.xlu0 %706, %v219
    %v708 = vpop.permute.xlu0 %707
    %711 = vset.pattern.permute.xlu0 0
    %712 = vperm.xlu0 %711, %v220
    %v713 = vpop.permute.xlu0 %712
    %716 = vset.pattern.permute.xlu0 0
    %717 = vperm.xlu0 %716, %v221
    %v718 = vpop.permute.xlu0 %717
    %721 = vset.pattern.permute.xlu0 0
    %722 = vperm.xlu0 %721, %v222
    %v723 = vpop.permute.xlu0 %722
    %726 = vset.pattern.permute.xlu0 0
    %727 = vperm.xlu0 %726, %v223
    %v728 = vpop.permute.xlu0 %727
    %731 = vset.pattern.permute.xlu0 0
    %732 = vperm.xlu0 %731, %v224
    %v733 = vpop.permute.xlu0 %732
    %736 = vset.pattern.permute.xlu0 0
    %737 = vperm.xlu0 %736, %v225
    %v738 = vpop.permute.xlu0 %737
    %741 = vset.pattern.permute.xlu0 0
    %742 = vperm.xlu0 %741, %v226
    %v743 = vpop.permute.xlu0 %742
    %746 = vset.pattern.permute.xlu0 0
    %747 = vperm.xlu0 %746, %v227
    %v748 = vpop.permute.xlu0 %747
    %751 = vset.pattern.permute.xlu0 0
    %752 = vperm.xlu0 %751, %v228
    %v753 = vpop.permute.xlu0 %752
    %756 = vset.pattern.permute.xlu0 0
    %757 = vperm.xlu0 %756, %v229
    %v758 = vpop.permute.xlu0 %757
    %761 = vset.pattern.permute.xlu0 0
    %762 = vperm.xlu0 %761, %v230
    %v763 = vpop.permute.xlu0 %762
    %766 = vset.pattern.permute.xlu0 0
    %767 = vperm.xlu0 %766, %v231
    %v768 = vpop.permute.xlu0 %767
    %771 = vset.pattern.permute.xlu0 0
    %772 = vperm.xlu0 %771, %v232
    %v773 = vpop.permute.xlu0 %772
    %776 = vset.pattern.permute.xlu0 0
    %777 = vperm.xlu0 %776, %v233
    %v778 = vpop.permute.xlu0 %777
    %781 = vset.pattern.permute.xlu0 0
    %782 = vperm.xlu0 %781, %v234
    %v783 = vpop.permute.xlu0 %782
    %786 = vset.pattern.permute.xlu0 0
    %787 = vperm.xlu0 %786, %v235
    %v788 = vpop.permute.xlu0 %787
    %791 = vset.pattern.permute.xlu0 0
    %792 = vperm.xlu0 %791, %v236
    %v793 = vpop.permute.xlu0 %792
    %796 = vset.pattern.permute.xlu0 0
    %797 = vperm.xlu0 %796, %v237
    %v798 = vpop.permute.xlu0 %797
    %801 = vset.pattern.permute.xlu0 0
    %802 = vperm.xlu0 %801, %v238
    %v803 = vpop.permute.xlu0 %802
    %806 = vset.pattern.permute.xlu0 0
    %807 = vperm.xlu0 %806, %v239
    %v808 = vpop.permute.xlu0 %807
    %811 = vset.pattern.permute.xlu0 0
    %812 = vperm.xlu0 %811, %v240
    %v813 = vpop.permute.xlu0 %812
    %816 = vset.pattern.permute.xlu0 0
    %817 = vperm.xlu0 %816, %v241
    %v818 = vpop.permute.xlu0 %817
    %821 = vset.pattern.permute.xlu0 0
    %822 = vperm.xlu0 %821, %v242
    %v823 = vpop.permute.xlu0 %822
    %826 = vset.pattern.permute.xlu0 0
    %827 = vperm.xlu0 %826, %v243
    %v828 = vpop.permute.xlu0 %827
    %831 = vset.pattern.permute.xlu0 0
    %832 = vperm.xlu0 %831, %v244
    %v833 = vpop.permute.xlu0 %832
    %836 = vset.pattern.permute.xlu0 0
    %837 = vperm.xlu0 %836, %v245
    %v838 = vpop.permute.xlu0 %837
    %v840 = vmul.f32 %v601, %v683
    %v841 = vmul.f32 %v603, %v688
    %v842 = vmul.f32 %v606, %v693
    %v843 = vmul.f32 %v608, %v698
    %v844 = vmul.f32 %v611, %v703
    %v845 = vmul.f32 %v613, %v708
    %v846 = vmul.f32 %v616, %v713
    %v847 = vmul.f32 %v618, %v718
    %v848 = vmul.f32 %v621, %v723
    %v849 = vmul.f32 %v623, %v728
    %v850 = vmul.f32 %v626, %v733
    %v851 = vmul.f32 %v628, %v738
    %v852 = vmul.f32 %v631, %v743
    %v853 = vmul.f32 %v633, %v748
    %v854 = vmul.f32 %v636, %v753
    %v855 = vmul.f32 %v638, %v758
    %v856 = vmul.f32 %v641, %v763
    %v857 = vmul.f32 %v643, %v768
    %v858 = vmul.f32 %v646, %v773
    %v859 = vmul.f32 %v648, %v778
    %v860 = vmul.f32 %v651, %v783
    %v861 = vmul.f32 %v653, %v788
    %v862 = vmul.f32 %v656, %v793
    %v863 = vmul.f32 %v658, %v798
    %v864 = vmul.f32 %v661, %v803
    %v865 = vmul.f32 %v663, %v808
    %v866 = vmul.f32 %v666, %v813
    %v867 = vmul.f32 %v668, %v818
    %v868 = vmul.f32 %v671, %v823
    %v869 = vmul.f32 %v673, %v828
    %v870 = vmul.f32 %v676, %v833
    %v871 = vmul.f32 %v678, %v838
    %v872 = vpack.c.bf16 %v841, %v840
    %v873 = vpack.c.bf16 %v843, %v842
    %v874 = vpack.c.bf16 %v845, %v844
    %v875 = vpack.c.bf16 %v847, %v846
    %v876 = vpack.c.bf16 %v849, %v848
    %v877 = vpack.c.bf16 %v851, %v850
    %v878 = vpack.c.bf16 %v853, %v852
    %v879 = vpack.c.bf16 %v855, %v854
    %v880 = vpack.c.bf16 %v857, %v856
    %v881 = vpack.c.bf16 %v859, %v858
    %v882 = vpack.c.bf16 %v861, %v860
    %v883 = vpack.c.bf16 %v863, %v862
    %v884 = vpack.c.bf16 %v865, %v864
    %v885 = vpack.c.bf16 %v867, %v866
    %v886 = vpack.c.bf16 %v869, %v868
    %v887 = vpack.c.bf16 %v871, %v870
    %v888 = vld [vmem:[%s4] sm:$0xf]
    %v889 = vld [vmem:[%s4 + $0x4] sm:$0xf]
    %v890 = vld [vmem:[%s4 + $0x8] sm:$0xf]
    %v891 = vld [vmem:[%s4 + $0xc] sm:$0xf]
    %v892 = vld [vmem:[%s5] sm:$0xf]
    %v893 = vld [vmem:[%s5 + $0x4] sm:$0xf]
    %v894 = vld [vmem:[%s5 + $0x8] sm:$0xf]
    %v895 = vld [vmem:[%s5 + $0xc] sm:$0xf]
    %v896 = vld [vmem:[%s6] sm:$0x1]
    %v901 = vunpack.c.l.b16 %v892
    %v902 = vunpack.c.l.b16 %v893
    %v903 = vunpack.c.l.b16 %v894
    %v904 = vunpack.c.l.b16 %v895
    %v905 = vpack.c.b16 %v902, %v901
    %v906 = vpack.c.b16 %v904, %v903
    %vm909 = vcmask 261120
    %v911 = vsel %vm909, %v872, 0
    %v914 = vsel %vm909, %v873, 0
    %v917 = vsel %vm909, %v874, 0
    %v920 = vsel %vm909, %v875, 0
    %v923 = vsel %vm909, %v876, 0
    %v926 = vsel %vm909, %v877, 0
    %v929 = vsel %vm909, %v878, 0
    %v932 = vsel %vm909, %v879, 0
    %v935 = vsel %vm909, %v880, 0
    %v938 = vsel %vm909, %v881, 0
    %v941 = vsel %vm909, %v882, 0
    %v944 = vsel %vm909, %v883, 0
    %v947 = vsel %vm909, %v884, 0
    %v950 = vsel %vm909, %v885, 0
    %v953 = vsel %vm909, %v886, 0
    %v956 = vsel %vm909, %v887, 0
    %958 = vmatpush.bf16.msra.mxu0 0
    %959 = vmatpush.bf16.msra.mxu0 0
    %960 = vmatpush.bf16.msra.mxu0 0
    %961 = vmatpush.bf16.msra.mxu0 0
    %962 = vmatpush.bf16.msra.mxu0 0
    %963 = vmatpush.bf16.msra.mxu0 0
    %964 = vmatpush.bf16.msra.mxu0 %v906
    %965 = vmatpush.bf16.msra.mxu0 %v905
    %966 = vmatmul.bf16.gmra.mxu0 %v911
    %v967 = vpop.f32.mrf.mxu0
    %v968 = vadd.f32 0.0, %v967
    %v969 = vpop.f32.mrf.mxu0
    %v970 = vadd.f32 0.0, %v969
    %971 = vmatmul.bf16.gmra.mxu0 %v914
    %v972 = vpop.f32.mrf.mxu0
    %v973 = vadd.f32 0.0, %v972
    %v974 = vpop.f32.mrf.mxu0
    %v975 = vadd.f32 0.0, %v974
    %976 = vmatmul.bf16.gmra.mxu0 %v917
    %v977 = vpop.f32.mrf.mxu0
    %v978 = vadd.f32 0.0, %v977
    %v979 = vpop.f32.mrf.mxu0
    %v980 = vadd.f32 0.0, %v979
    %981 = vmatmul.bf16.gmra.mxu0 %v920
    %v982 = vpop.f32.mrf.mxu0
    %v983 = vadd.f32 0.0, %v982
    %v984 = vpop.f32.mrf.mxu0
    %v985 = vadd.f32 0.0, %v984
    %986 = vmatmul.bf16.gmra.mxu0 %v923
    %v987 = vpop.f32.mrf.mxu0
    %v988 = vadd.f32 0.0, %v987
    %v989 = vpop.f32.mrf.mxu0
    %v990 = vadd.f32 0.0, %v989
    %991 = vmatmul.bf16.gmra.mxu0 %v926
    %v992 = vpop.f32.mrf.mxu0
    %v993 = vadd.f32 0.0, %v992
    %v994 = vpop.f32.mrf.mxu0
    %v995 = vadd.f32 0.0, %v994
    %996 = vmatmul.bf16.gmra.mxu0 %v929
    %v997 = vpop.f32.mrf.mxu0
    %v998 = vadd.f32 0.0, %v997
    %v999 = vpop.f32.mrf.mxu0
    %v1000 = vadd.f32 0.0, %v999
    %1001 = vmatmul.bf16.gmra.mxu0 %v932
    %v1002 = vpop.f32.mrf.mxu0
    %v1003 = vadd.f32 0.0, %v1002
    %v1004 = vpop.f32.mrf.mxu0
    %v1005 = vadd.f32 0.0, %v1004
    %1006 = vmatmul.bf16.gmra.mxu0 %v935
    %v1007 = vpop.f32.mrf.mxu0
    %v1008 = vadd.f32 0.0, %v1007
    %v1009 = vpop.f32.mrf.mxu0
    %v1010 = vadd.f32 0.0, %v1009
    %1011 = vmatmul.bf16.gmra.mxu0 %v938
    %v1012 = vpop.f32.mrf.mxu0
    %v1013 = vadd.f32 0.0, %v1012
    %v1014 = vpop.f32.mrf.mxu0
    %v1015 = vadd.f32 0.0, %v1014
    %1016 = vmatmul.bf16.gmra.mxu0 %v941
    %v1017 = vpop.f32.mrf.mxu0
    %v1018 = vadd.f32 0.0, %v1017
    %v1019 = vpop.f32.mrf.mxu0
    %v1020 = vadd.f32 0.0, %v1019
    %1021 = vmatmul.bf16.gmra.mxu0 %v944
    %v1022 = vpop.f32.mrf.mxu0
    %v1023 = vadd.f32 0.0, %v1022
    %v1024 = vpop.f32.mrf.mxu0
    %v1025 = vadd.f32 0.0, %v1024
    %1026 = vmatmul.bf16.gmra.mxu0 %v947
    %v1027 = vpop.f32.mrf.mxu0
    %v1028 = vadd.f32 0.0, %v1027
    %v1029 = vpop.f32.mrf.mxu0
    %v1030 = vadd.f32 0.0, %v1029
    %1031 = vmatmul.bf16.gmra.mxu0 %v950
    %v1032 = vpop.f32.mrf.mxu0
    %v1033 = vadd.f32 0.0, %v1032
    %v1034 = vpop.f32.mrf.mxu0
    %v1035 = vadd.f32 0.0, %v1034
    %1036 = vmatmul.bf16.gmra.mxu0 %v953
    %v1037 = vpop.f32.mrf.mxu0
    %v1038 = vadd.f32 0.0, %v1037
    %v1039 = vpop.f32.mrf.mxu0
    %v1040 = vadd.f32 0.0, %v1039
    %1041 = vmatmul.bf16.gmra.mxu0 %v956
    %v1042 = vpop.f32.mrf.mxu0
    %v1043 = vadd.f32 0.0, %v1042
    %v1044 = vpop.f32.mrf.mxu0
    %v1045 = vadd.f32 0.0, %v1044
    %1046 = vdwg.mxu0
    %v1051 = vunpack.c.l.b16 %v888
    %v1052 = vunpack.c.l.b16 %v889
    %v1053 = vunpack.c.l.b16 %v890
    %v1054 = vunpack.c.l.b16 %v891
    %v1055 = vpack.c.b16 %v1052, %v1051
    %v1056 = vpack.c.b16 %v1054, %v1053
    %v1060 = vsel %vm909, %v470, 0
    %v1063 = vsel %vm909, %v471, 0
    %v1066 = vsel %vm909, %v472, 0
    %v1069 = vsel %vm909, %v473, 0
    %v1072 = vsel %vm909, %v474, 0
    %v1075 = vsel %vm909, %v475, 0
    %v1078 = vsel %vm909, %v476, 0
    %v1081 = vsel %vm909, %v477, 0
    %v1084 = vsel %vm909, %v478, 0
    %v1087 = vsel %vm909, %v479, 0
    %v1090 = vsel %vm909, %v480, 0
    %v1093 = vsel %vm909, %v481, 0
    %v1096 = vsel %vm909, %v482, 0
    %v1099 = vsel %vm909, %v483, 0
    %v1102 = vsel %vm909, %v484, 0
    %v1105 = vsel %vm909, %v485, 0
    %1107 = vmatpush.bf16.msra.mxu0 0
    %1108 = vmatpush.bf16.msra.mxu0 0
    %1109 = vmatpush.bf16.msra.mxu0 0
    %1110 = vmatpush.bf16.msra.mxu0 0
    %1111 = vmatpush.bf16.msra.mxu0 0
    %1112 = vmatpush.bf16.msra.mxu0 0
    %1113 = vmatpush.bf16.msra.mxu0 %v1056
    %1114 = vmatpush.bf16.msra.mxu0 %v1055
    %1115 = vmatmul.bf16.gmra.mxu0 %v1060
    %v1116 = vpop.f32.mrf.mxu0
    %v1117 = vadd.f32 %v968, %v1116
    %v1118 = vpop.f32.mrf.mxu0
    %v1119 = vadd.f32 %v970, %v1118
    %1120 = vmatmul.bf16.gmra.mxu0 %v1063
    %v1121 = vpop.f32.mrf.mxu0
    %v1122 = vadd.f32 %v973, %v1121
    %v1123 = vpop.f32.mrf.mxu0
    %v1124 = vadd.f32 %v975, %v1123
    %1125 = vmatmul.bf16.gmra.mxu0 %v1066
    %v1126 = vpop.f32.mrf.mxu0
    %v1127 = vadd.f32 %v978, %v1126
    %v1128 = vpop.f32.mrf.mxu0
    %v1129 = vadd.f32 %v980, %v1128
    %1130 = vmatmul.bf16.gmra.mxu0 %v1069
    %v1131 = vpop.f32.mrf.mxu0
    %v1132 = vadd.f32 %v983, %v1131
    %v1133 = vpop.f32.mrf.mxu0
    %v1134 = vadd.f32 %v985, %v1133
    %1135 = vmatmul.bf16.gmra.mxu0 %v1072
    %v1136 = vpop.f32.mrf.mxu0
    %v1137 = vadd.f32 %v988, %v1136
    %v1138 = vpop.f32.mrf.mxu0
    %v1139 = vadd.f32 %v990, %v1138
    %1140 = vmatmul.bf16.gmra.mxu0 %v1075
    %v1141 = vpop.f32.mrf.mxu0
    %v1142 = vadd.f32 %v993, %v1141
    %v1143 = vpop.f32.mrf.mxu0
    %v1144 = vadd.f32 %v995, %v1143
    %1145 = vmatmul.bf16.gmra.mxu0 %v1078
    %v1146 = vpop.f32.mrf.mxu0
    %v1147 = vadd.f32 %v998, %v1146
    %v1148 = vpop.f32.mrf.mxu0
    %v1149 = vadd.f32 %v1000, %v1148
    %1150 = vmatmul.bf16.gmra.mxu0 %v1081
    %v1151 = vpop.f32.mrf.mxu0
    %v1152 = vadd.f32 %v1003, %v1151
    %v1153 = vpop.f32.mrf.mxu0
    %v1154 = vadd.f32 %v1005, %v1153
    %1155 = vmatmul.bf16.gmra.mxu0 %v1084
    %v1156 = vpop.f32.mrf.mxu0
    %v1157 = vadd.f32 %v1008, %v1156
    %v1158 = vpop.f32.mrf.mxu0
    %v1159 = vadd.f32 %v1010, %v1158
    %1160 = vmatmul.bf16.gmra.mxu0 %v1087
    %v1161 = vpop.f32.mrf.mxu0
    %v1162 = vadd.f32 %v1013, %v1161
    %v1163 = vpop.f32.mrf.mxu0
    %v1164 = vadd.f32 %v1015, %v1163
    %1165 = vmatmul.bf16.gmra.mxu0 %v1090
    %v1166 = vpop.f32.mrf.mxu0
    %v1167 = vadd.f32 %v1018, %v1166
    %v1168 = vpop.f32.mrf.mxu0
    %v1169 = vadd.f32 %v1020, %v1168
    %1170 = vmatmul.bf16.gmra.mxu0 %v1093
    %v1171 = vpop.f32.mrf.mxu0
    %v1172 = vadd.f32 %v1023, %v1171
    %v1173 = vpop.f32.mrf.mxu0
    %v1174 = vadd.f32 %v1025, %v1173
    %1175 = vmatmul.bf16.gmra.mxu0 %v1096
    %v1176 = vpop.f32.mrf.mxu0
    %v1177 = vadd.f32 %v1028, %v1176
    %v1178 = vpop.f32.mrf.mxu0
    %v1179 = vadd.f32 %v1030, %v1178
    %1180 = vmatmul.bf16.gmra.mxu0 %v1099
    %v1181 = vpop.f32.mrf.mxu0
    %v1182 = vadd.f32 %v1033, %v1181
    %v1183 = vpop.f32.mrf.mxu0
    %v1184 = vadd.f32 %v1035, %v1183
    %1185 = vmatmul.bf16.gmra.mxu0 %v1102
    %v1186 = vpop.f32.mrf.mxu0
    %v1187 = vadd.f32 %v1038, %v1186
    %v1188 = vpop.f32.mrf.mxu0
    %v1189 = vadd.f32 %v1040, %v1188
    %1190 = vmatmul.bf16.gmra.mxu0 %v1105
    %v1191 = vpop.f32.mrf.mxu0
    %v1192 = vadd.f32 %v1043, %v1191
    %v1193 = vpop.f32.mrf.mxu0
    %v1194 = vadd.f32 %v1045, %v1193
    %1195 = vdwg.mxu0
    %v1197 = vperm.slane %v896, 0
    %v1199 = vadd.f32 %v1117, %v1197
    %v1200 = vadd.f32 %v1119, %v1197
    %v1201 = vadd.f32 %v1122, %v1197
    %v1202 = vadd.f32 %v1124, %v1197
    %v1203 = vadd.f32 %v1127, %v1197
    %v1204 = vadd.f32 %v1129, %v1197
    %v1205 = vadd.f32 %v1132, %v1197
    %v1206 = vadd.f32 %v1134, %v1197
    %v1207 = vadd.f32 %v1137, %v1197
    %v1208 = vadd.f32 %v1139, %v1197
    %v1209 = vadd.f32 %v1142, %v1197
    %v1210 = vadd.f32 %v1144, %v1197
    %v1211 = vadd.f32 %v1147, %v1197
    %v1212 = vadd.f32 %v1149, %v1197
    %v1213 = vadd.f32 %v1152, %v1197
    %v1214 = vadd.f32 %v1154, %v1197
    %v1215 = vadd.f32 %v1157, %v1197
    %v1216 = vadd.f32 %v1159, %v1197
    %v1217 = vadd.f32 %v1162, %v1197
    %v1218 = vadd.f32 %v1164, %v1197
    %v1219 = vadd.f32 %v1167, %v1197
    %v1220 = vadd.f32 %v1169, %v1197
    %v1221 = vadd.f32 %v1172, %v1197
    %v1222 = vadd.f32 %v1174, %v1197
    %v1223 = vadd.f32 %v1177, %v1197
    %v1224 = vadd.f32 %v1179, %v1197
    %v1225 = vadd.f32 %v1182, %v1197
    %v1226 = vadd.f32 %v1184, %v1197
    %v1227 = vadd.f32 %v1187, %v1197
    %v1228 = vadd.f32 %v1189, %v1197
    %v1229 = vadd.f32 %v1192, %v1197
    %v1230 = vadd.f32 %v1194, %v1197
    %v1231 = vmax.f32 %v1199, 0.0
    %v1232 = vmax.f32 %v1200, 0.0
    %v1233 = vmax.f32 %v1201, 0.0
    %v1234 = vmax.f32 %v1202, 0.0
    %v1235 = vmax.f32 %v1203, 0.0
    %v1236 = vmax.f32 %v1204, 0.0
    %v1237 = vmax.f32 %v1205, 0.0
    %v1238 = vmax.f32 %v1206, 0.0
    %v1239 = vmax.f32 %v1207, 0.0
    %v1240 = vmax.f32 %v1208, 0.0
    %v1241 = vmax.f32 %v1209, 0.0
    %v1242 = vmax.f32 %v1210, 0.0
    %v1243 = vmax.f32 %v1211, 0.0
    %v1244 = vmax.f32 %v1212, 0.0
    %v1245 = vmax.f32 %v1213, 0.0
    %v1246 = vmax.f32 %v1214, 0.0
    %v1247 = vmax.f32 %v1215, 0.0
    %v1248 = vmax.f32 %v1216, 0.0
    %v1249 = vmax.f32 %v1217, 0.0
    %v1250 = vmax.f32 %v1218, 0.0
    %v1251 = vmax.f32 %v1219, 0.0
    %v1252 = vmax.f32 %v1220, 0.0
    %v1253 = vmax.f32 %v1221, 0.0
    %v1254 = vmax.f32 %v1222, 0.0
    %v1255 = vmax.f32 %v1223, 0.0
    %v1256 = vmax.f32 %v1224, 0.0
    %v1257 = vmax.f32 %v1225, 0.0
    %v1258 = vmax.f32 %v1226, 0.0
    %v1259 = vmax.f32 %v1227, 0.0
    %v1260 = vmax.f32 %v1228, 0.0
    %v1261 = vmax.f32 %v1229, 0.0
    %v1262 = vmax.f32 %v1230, 0.0
    %v1263 = vpack.c.bf16 %v1232, %v1231
    %v1264 = vpack.c.bf16 %v1234, %v1233
    %v1265 = vpack.c.bf16 %v1236, %v1235
    %v1266 = vpack.c.bf16 %v1238, %v1237
    %v1267 = vpack.c.bf16 %v1240, %v1239
    %v1268 = vpack.c.bf16 %v1242, %v1241
    %v1269 = vpack.c.bf16 %v1244, %v1243
    %v1270 = vpack.c.bf16 %v1246, %v1245
    %v1271 = vpack.c.bf16 %v1248, %v1247
    %v1272 = vpack.c.bf16 %v1250, %v1249
    %v1273 = vpack.c.bf16 %v1252, %v1251
    %v1274 = vpack.c.bf16 %v1254, %v1253
    %v1275 = vpack.c.bf16 %v1256, %v1255
    %v1276 = vpack.c.bf16 %v1258, %v1257
    %v1277 = vpack.c.bf16 %v1260, %v1259
    %v1278 = vpack.c.bf16 %v1262, %v1261
    %1279 = vmatpush.bf16.msra.mxu0 %v1270
    %1280 = vmatpush.bf16.msra.mxu0 %v1269
    %1281 = vmatpush.bf16.msra.mxu0 %v1268
    %1282 = vmatpush.bf16.msra.mxu0 %v1267
    %1283 = vmatpush.bf16.msra.mxu0 %v1266
    %1284 = vmatpush.bf16.msra.mxu0 %v1265
    %1285 = vmatpush.bf16.msra.mxu0 %v1264
    %1286 = vmatpush.bf16.msra.mxu0 %v1263
    %1287 = vmatmul.bf16.gmra.mxu0 %v342
    %v1288 = vpop.f32.mrf.mxu0
    %v1289 = vadd.f32 0.0, %v1288
    %v1290 = vpop.f32.mrf.mxu0
    %v1291 = vadd.f32 0.0, %v1290
    %1292 = vmatmul.bf16.gmra.mxu0 %v344
    %v1293 = vpop.f32.mrf.mxu0
    %v1294 = vadd.f32 0.0, %v1293
    %v1295 = vpop.f32.mrf.mxu0
    %v1296 = vadd.f32 0.0, %v1295
    %1297 = vmatmul.bf16.gmra.mxu0 %v346
    %v1298 = vpop.f32.mrf.mxu0
    %v1299 = vadd.f32 0.0, %v1298
    %v1300 = vpop.f32.mrf.mxu0
    %v1301 = vadd.f32 0.0, %v1300
    %1302 = vmatmul.bf16.gmra.mxu0 %v348
    %v1303 = vpop.f32.mrf.mxu0
    %v1304 = vadd.f32 0.0, %v1303
    %v1305 = vpop.f32.mrf.mxu0
    %v1306 = vadd.f32 0.0, %v1305
    %1307 = vmatmul.bf16.gmra.mxu0 %v350
    %v1308 = vpop.f32.mrf.mxu0
    %v1309 = vadd.f32 0.0, %v1308
    %v1310 = vpop.f32.mrf.mxu0
    %v1311 = vadd.f32 0.0, %v1310
    %1312 = vmatmul.bf16.gmra.mxu0 %v352
    %v1313 = vpop.f32.mrf.mxu0
    %v1314 = vadd.f32 0.0, %v1313
    %v1315 = vpop.f32.mrf.mxu0
    %v1316 = vadd.f32 0.0, %v1315
    %1317 = vmatmul.bf16.gmra.mxu0 %v354
    %v1318 = vpop.f32.mrf.mxu0
    %v1319 = vadd.f32 0.0, %v1318
    %v1320 = vpop.f32.mrf.mxu0
    %v1321 = vadd.f32 0.0, %v1320
    %1322 = vmatmul.bf16.gmra.mxu0 %v356
    %v1323 = vpop.f32.mrf.mxu0
    %v1324 = vadd.f32 0.0, %v1323
    %v1325 = vpop.f32.mrf.mxu0
    %v1326 = vadd.f32 0.0, %v1325
    %1327 = vmatmul.bf16.gmra.mxu0 %v358
    %v1328 = vpop.f32.mrf.mxu0
    %v1329 = vadd.f32 0.0, %v1328
    %v1330 = vpop.f32.mrf.mxu0
    %v1331 = vadd.f32 0.0, %v1330
    %1332 = vmatmul.bf16.gmra.mxu0 %v360
    %v1333 = vpop.f32.mrf.mxu0
    %v1334 = vadd.f32 0.0, %v1333
    %v1335 = vpop.f32.mrf.mxu0
    %v1336 = vadd.f32 0.0, %v1335
    %1337 = vmatmul.bf16.gmra.mxu0 %v362
    %v1338 = vpop.f32.mrf.mxu0
    %v1339 = vadd.f32 0.0, %v1338
    %v1340 = vpop.f32.mrf.mxu0
    %v1341 = vadd.f32 0.0, %v1340
    %1342 = vmatmul.bf16.gmra.mxu0 %v364
    %v1343 = vpop.f32.mrf.mxu0
    %v1344 = vadd.f32 0.0, %v1343
    %v1345 = vpop.f32.mrf.mxu0
    %v1346 = vadd.f32 0.0, %v1345
    %1347 = vmatmul.bf16.gmra.mxu0 %v366
    %v1348 = vpop.f32.mrf.mxu0
    %v1349 = vadd.f32 0.0, %v1348
    %v1350 = vpop.f32.mrf.mxu0
    %v1351 = vadd.f32 0.0, %v1350
    %1352 = vmatmul.bf16.gmra.mxu0 %v368
    %v1353 = vpop.f32.mrf.mxu0
    %v1354 = vadd.f32 0.0, %v1353
    %v1355 = vpop.f32.mrf.mxu0
    %v1356 = vadd.f32 0.0, %v1355
    %1357 = vmatmul.bf16.gmra.mxu0 %v370
    %v1358 = vpop.f32.mrf.mxu0
    %v1359 = vadd.f32 0.0, %v1358
    %v1360 = vpop.f32.mrf.mxu0
    %v1361 = vadd.f32 0.0, %v1360
    %1362 = vmatmul.bf16.gmra.mxu0 %v372
    %v1363 = vpop.f32.mrf.mxu0
    %v1364 = vadd.f32 0.0, %v1363
    %v1365 = vpop.f32.mrf.mxu0
    %v1366 = vadd.f32 0.0, %v1365
    %1367 = vdwg.mxu0
    %1368 = vmatpush.bf16.msra.mxu0 %v1278
    %1369 = vmatpush.bf16.msra.mxu0 %v1277
    %1370 = vmatpush.bf16.msra.mxu0 %v1276
    %1371 = vmatpush.bf16.msra.mxu0 %v1275
    %1372 = vmatpush.bf16.msra.mxu0 %v1274
    %1373 = vmatpush.bf16.msra.mxu0 %v1273
    %1374 = vmatpush.bf16.msra.mxu0 %v1272
    %1375 = vmatpush.bf16.msra.mxu0 %v1271
    %1376 = vmatmul.bf16.gmra.mxu0 %v343
    %v1377 = vpop.f32.mrf.mxu0
    %v1378 = vadd.f32 %v1289, %v1377
    %v1379 = vpop.f32.mrf.mxu0
    %v1380 = vadd.f32 %v1291, %v1379
    %1381 = vmatmul.bf16.gmra.mxu0 %v345
    %v1382 = vpop.f32.mrf.mxu0
    %v1383 = vadd.f32 %v1294, %v1382
    %v1384 = vpop.f32.mrf.mxu0
    %v1385 = vadd.f32 %v1296, %v1384
    %1386 = vmatmul.bf16.gmra.mxu0 %v347
    %v1387 = vpop.f32.mrf.mxu0
    %v1388 = vadd.f32 %v1299, %v1387
    %v1389 = vpop.f32.mrf.mxu0
    %v1390 = vadd.f32 %v1301, %v1389
    %1391 = vmatmul.bf16.gmra.mxu0 %v349
    %v1392 = vpop.f32.mrf.mxu0
    %v1393 = vadd.f32 %v1304, %v1392
    %v1394 = vpop.f32.mrf.mxu0
    %v1395 = vadd.f32 %v1306, %v1394
    %1396 = vmatmul.bf16.gmra.mxu0 %v351
    %v1397 = vpop.f32.mrf.mxu0
    %v1398 = vadd.f32 %v1309, %v1397
    %v1399 = vpop.f32.mrf.mxu0
    %v1400 = vadd.f32 %v1311, %v1399
    %1401 = vmatmul.bf16.gmra.mxu0 %v353
    %v1402 = vpop.f32.mrf.mxu0
    %v1403 = vadd.f32 %v1314, %v1402
    %v1404 = vpop.f32.mrf.mxu0
    %v1405 = vadd.f32 %v1316, %v1404
    %1406 = vmatmul.bf16.gmra.mxu0 %v355
    %v1407 = vpop.f32.mrf.mxu0
    %v1408 = vadd.f32 %v1319, %v1407
    %v1409 = vpop.f32.mrf.mxu0
    %v1410 = vadd.f32 %v1321, %v1409
    %1411 = vmatmul.bf16.gmra.mxu0 %v357
    %v1412 = vpop.f32.mrf.mxu0
    %v1413 = vadd.f32 %v1324, %v1412
    %v1414 = vpop.f32.mrf.mxu0
    %v1415 = vadd.f32 %v1326, %v1414
    %1416 = vmatmul.bf16.gmra.mxu0 %v359
    %v1417 = vpop.f32.mrf.mxu0
    %v1418 = vadd.f32 %v1329, %v1417
    %v1419 = vpop.f32.mrf.mxu0
    %v1420 = vadd.f32 %v1331, %v1419
    %1421 = vmatmul.bf16.gmra.mxu0 %v361
    %v1422 = vpop.f32.mrf.mxu0
    %v1423 = vadd.f32 %v1334, %v1422
    %v1424 = vpop.f32.mrf.mxu0
    %v1425 = vadd.f32 %v1336, %v1424
    %1426 = vmatmul.bf16.gmra.mxu0 %v363
    %v1427 = vpop.f32.mrf.mxu0
    %v1428 = vadd.f32 %v1339, %v1427
    %v1429 = vpop.f32.mrf.mxu0
    %v1430 = vadd.f32 %v1341, %v1429
    %1431 = vmatmul.bf16.gmra.mxu0 %v365
    %v1432 = vpop.f32.mrf.mxu0
    %v1433 = vadd.f32 %v1344, %v1432
    %v1434 = vpop.f32.mrf.mxu0
    %v1435 = vadd.f32 %v1346, %v1434
    %1436 = vmatmul.bf16.gmra.mxu0 %v367
    %v1437 = vpop.f32.mrf.mxu0
    %v1438 = vadd.f32 %v1349, %v1437
    %v1439 = vpop.f32.mrf.mxu0
    %v1440 = vadd.f32 %v1351, %v1439
    %1441 = vmatmul.bf16.gmra.mxu0 %v369
    %v1442 = vpop.f32.mrf.mxu0
    %v1443 = vadd.f32 %v1354, %v1442
    %v1444 = vpop.f32.mrf.mxu0
    %v1445 = vadd.f32 %v1356, %v1444
    %1446 = vmatmul.bf16.gmra.mxu0 %v371
    %v1447 = vpop.f32.mrf.mxu0
    %v1448 = vadd.f32 %v1359, %v1447
    %v1449 = vpop.f32.mrf.mxu0
    %v1450 = vadd.f32 %v1361, %v1449
    %1451 = vmatmul.bf16.gmra.mxu0 %v373
    %v1452 = vpop.f32.mrf.mxu0
    %v1453 = vadd.f32 %v1364, %v1452
    %v1454 = vpop.f32.mrf.mxu0
    %v1455 = vadd.f32 %v1366, %v1454
    %1456 = vdwg.mxu0
    %v1457 = vmul.f32 %v1378, %v683
    %v1458 = vmul.f32 %v1380, %v688
    %v1459 = vmul.f32 %v1383, %v693
    %v1460 = vmul.f32 %v1385, %v698
    %v1461 = vmul.f32 %v1388, %v703
    %v1462 = vmul.f32 %v1390, %v708
    %v1463 = vmul.f32 %v1393, %v713
    %v1464 = vmul.f32 %v1395, %v718
    %v1465 = vmul.f32 %v1398, %v723
    %v1466 = vmul.f32 %v1400, %v728
    %v1467 = vmul.f32 %v1403, %v733
    %v1468 = vmul.f32 %v1405, %v738
    %v1469 = vmul.f32 %v1408, %v743
    %v1470 = vmul.f32 %v1410, %v748
    %v1471 = vmul.f32 %v1413, %v753
    %v1472 = vmul.f32 %v1415, %v758
    %v1473 = vmul.f32 %v1418, %v763
    %v1474 = vmul.f32 %v1420, %v768
    %v1475 = vmul.f32 %v1423, %v773
    %v1476 = vmul.f32 %v1425, %v778
    %v1477 = vmul.f32 %v1428, %v783
    %v1478 = vmul.f32 %v1430, %v788
    %v1479 = vmul.f32 %v1433, %v793
    %v1480 = vmul.f32 %v1435, %v798
    %v1481 = vmul.f32 %v1438, %v803
    %v1482 = vmul.f32 %v1440, %v808
    %v1483 = vmul.f32 %v1443, %v813
    %v1484 = vmul.f32 %v1445, %v818
    %v1485 = vmul.f32 %v1448, %v823
    %v1486 = vmul.f32 %v1450, %v828
    %v1487 = vmul.f32 %v1453, %v833
    %v1488 = vmul.f32 %v1455, %v838
    %v1489 = vpack.c.bf16 %v1458, %v1457
    %v1490 = vpack.c.bf16 %v1460, %v1459
    %v1491 = vpack.c.bf16 %v1462, %v1461
    %v1492 = vpack.c.bf16 %v1464, %v1463
    %v1493 = vpack.c.bf16 %v1466, %v1465
    %v1494 = vpack.c.bf16 %v1468, %v1467
    %v1495 = vpack.c.bf16 %v1470, %v1469
    %v1496 = vpack.c.bf16 %v1472, %v1471
    %v1497 = vpack.c.bf16 %v1474, %v1473
    %v1498 = vpack.c.bf16 %v1476, %v1475
    %v1499 = vpack.c.bf16 %v1478, %v1477
    %v1500 = vpack.c.bf16 %v1480, %v1479
    %v1501 = vpack.c.bf16 %v1482, %v1481
    %v1502 = vpack.c.bf16 %v1484, %v1483
    %v1503 = vpack.c.bf16 %v1486, %v1485
    %v1504 = vpack.c.bf16 %v1488, %v1487
    %v1505 = vld [vmem:[#allocation5] sm:$0xf]
    %v1506 = vld [vmem:[#allocation5 + $0x4] sm:$0xf]
    %v1507 = vld [vmem:[#allocation5 + $0x8] sm:$0xf]
    %v1508 = vld [vmem:[#allocation5 + $0xc] sm:$0xf]
    %v1509 = vld [vmem:[#allocation5 + $0x10] sm:$0xf]
    %v1510 = vld [vmem:[#allocation5 + $0x14] sm:$0xf]
    %v1511 = vld [vmem:[#allocation5 + $0x18] sm:$0xf]
    %v1512 = vld [vmem:[#allocation5 + $0x1c] sm:$0xf]
    %v1513 = vld [vmem:[#allocation5 + $0x20] sm:$0xf]
    %v1514 = vld [vmem:[#allocation5 + $0x24] sm:$0xf]
    %v1515 = vld [vmem:[#allocation5 + $0x28] sm:$0xf]
    %v1516 = vld [vmem:[#allocation5 + $0x2c] sm:$0xf]
    %v1517 = vld [vmem:[#allocation5 + $0x30] sm:$0xf]
    %v1518 = vld [vmem:[#allocation5 + $0x34] sm:$0xf]
    %v1519 = vld [vmem:[#allocation5 + $0x38] sm:$0xf]
    %v1520 = vld [vmem:[#allocation5 + $0x3c] sm:$0xf]
    %v1521 = vld [vmem:[#allocation7] sm:$0xf]
    %v1522 = vld [vmem:[#allocation7 + $0x4] sm:$0xf]
    %v1523 = vld [vmem:[#allocation7 + $0x8] sm:$0xf]
    %v1524 = vld [vmem:[#allocation7 + $0xc] sm:$0xf]
    %v1525 = vld [vmem:[#allocation7 + $0x10] sm:$0xf]
    %v1526 = vld [vmem:[#allocation7 + $0x14] sm:$0xf]
    %v1527 = vld [vmem:[#allocation7 + $0x18] sm:$0xf]
    %v1528 = vld [vmem:[#allocation7 + $0x1c] sm:$0xf]
    %v1529 = vld [vmem:[#allocation7 + $0x20] sm:$0xf]
    %v1530 = vld [vmem:[#allocation7 + $0x24] sm:$0xf]
    %v1531 = vld [vmem:[#allocation7 + $0x28] sm:$0xf]
    %v1532 = vld [vmem:[#allocation7 + $0x2c] sm:$0xf]
    %v1533 = vld [vmem:[#allocation7 + $0x30] sm:$0xf]
    %v1534 = vld [vmem:[#allocation7 + $0x34] sm:$0xf]
    %v1535 = vld [vmem:[#allocation7 + $0x38] sm:$0xf]
    %v1536 = vld [vmem:[#allocation7 + $0x3c] sm:$0xf]
    %v1537 = vld [vmem:[%s9] sm:$0x1]
    %v1554 = vunpack.c.l.b16 %v1521
    %v1555 = vunpack.c.l.b16 %v1522
    %v1556 = vunpack.c.l.b16 %v1523
    %v1557 = vunpack.c.l.b16 %v1524
    %v1558 = vunpack.c.l.b16 %v1525
    %v1559 = vunpack.c.l.b16 %v1526
    %v1560 = vunpack.c.l.b16 %v1527
    %v1561 = vunpack.c.l.b16 %v1528
    %v1562 = vunpack.c.l.b16 %v1529
    %v1563 = vunpack.c.l.b16 %v1530
    %v1564 = vunpack.c.l.b16 %v1531
    %v1565 = vunpack.c.l.b16 %v1532
    %v1566 = vunpack.c.l.b16 %v1533
    %v1567 = vunpack.c.l.b16 %v1534
    %v1568 = vunpack.c.l.b16 %v1535
    %v1569 = vunpack.c.l.b16 %v1536
    %v1570 = vpack.c.b16 %v1555, %v1554
    %v1571 = vpack.c.b16 %v1557, %v1556
    %v1572 = vpack.c.b16 %v1559, %v1558
    %v1573 = vpack.c.b16 %v1561, %v1560
    %v1574 = vpack.c.b16 %v1563, %v1562
    %v1575 = vpack.c.b16 %v1565, %v1564
    %v1576 = vpack.c.b16 %v1567, %v1566
    %v1577 = vpack.c.b16 %v1569, %v1568
    %1586 = vmatpush.bf16.msra.mxu0 %v1577
    %1587 = vmatpush.bf16.msra.mxu0 %v1576
    %1588 = vmatpush.bf16.msra.mxu0 %v1575
    %1589 = vmatpush.bf16.msra.mxu0 %v1574
    %1590 = vmatpush.bf16.msra.mxu0 %v1573
    %1591 = vmatpush.bf16.msra.mxu0 %v1572
    %1592 = vmatpush.bf16.msra.mxu0 %v1571
    %1593 = vmatpush.bf16.msra.mxu0 %v1570
    %1594 = vmatmul.bf16.gmra.mxu0 %v1489
    %v1595 = vpop.f32.mrf.mxu0
    %v1596 = vadd.f32 0.0, %v1595
    %v1597 = vpop.f32.mrf.mxu0
    %v1598 = vadd.f32 0.0, %v1597
    %1599 = vmatmul.bf16.gmra.mxu0 %v1490
    %v1600 = vpop.f32.mrf.mxu0
    %v1601 = vadd.f32 0.0, %v1600
    %v1602 = vpop.f32.mrf.mxu0
    %v1603 = vadd.f32 0.0, %v1602
    %1604 = vmatmul.bf16.gmra.mxu0 %v1491
    %v1605 = vpop.f32.mrf.mxu0
    %v1606 = vadd.f32 0.0, %v1605
    %v1607 = vpop.f32.mrf.mxu0
    %v1608 = vadd.f32 0.0, %v1607
    %1609 = vmatmul.bf16.gmra.mxu0 %v1492
    %v1610 = vpop.f32.mrf.mxu0
    %v1611 = vadd.f32 0.0, %v1610
    %v1612 = vpop.f32.mrf.mxu0
    %v1613 = vadd.f32 0.0, %v1612
    %1614 = vmatmul.bf16.gmra.mxu0 %v1493
    %v1615 = vpop.f32.mrf.mxu0
    %v1616 = vadd.f32 0.0, %v1615
    %v1617 = vpop.f32.mrf.mxu0
    %v1618 = vadd.f32 0.0, %v1617
    %1619 = vmatmul.bf16.gmra.mxu0 %v1494
    %v1620 = vpop.f32.mrf.mxu0
    %v1621 = vadd.f32 0.0, %v1620
    %v1622 = vpop.f32.mrf.mxu0
    %v1623 = vadd.f32 0.0, %v1622
    %1624 = vmatmul.bf16.gmra.mxu0 %v1495
    %v1625 = vpop.f32.mrf.mxu0
    %v1626 = vadd.f32 0.0, %v1625
    %v1627 = vpop.f32.mrf.mxu0
    %v1628 = vadd.f32 0.0, %v1627
    %1629 = vmatmul.bf16.gmra.mxu0 %v1496
    %v1630 = vpop.f32.mrf.mxu0
    %v1631 = vadd.f32 0.0, %v1630
    %v1632 = vpop.f32.mrf.mxu0
    %v1633 = vadd.f32 0.0, %v1632
    %1634 = vmatmul.bf16.gmra.mxu0 %v1497
    %v1635 = vpop.f32.mrf.mxu0
    %v1636 = vadd.f32 0.0, %v1635
    %v1637 = vpop.f32.mrf.mxu0
    %v1638 = vadd.f32 0.0, %v1637
    %1639 = vmatmul.bf16.gmra.mxu0 %v1498
    %v1640 = vpop.f32.mrf.mxu0
    %v1641 = vadd.f32 0.0, %v1640
    %v1642 = vpop.f32.mrf.mxu0
    %v1643 = vadd.f32 0.0, %v1642
    %1644 = vmatmul.bf16.gmra.mxu0 %v1499
    %v1645 = vpop.f32.mrf.mxu0
    %v1646 = vadd.f32 0.0, %v1645
    %v1647 = vpop.f32.mrf.mxu0
    %v1648 = vadd.f32 0.0, %v1647
    %1649 = vmatmul.bf16.gmra.mxu0 %v1500
    %v1650 = vpop.f32.mrf.mxu0
    %v1651 = vadd.f32 0.0, %v1650
    %v1652 = vpop.f32.mrf.mxu0
    %v1653 = vadd.f32 0.0, %v1652
    %1654 = vmatmul.bf16.gmra.mxu0 %v1501
    %v1655 = vpop.f32.mrf.mxu0
    %v1656 = vadd.f32 0.0, %v1655
    %v1657 = vpop.f32.mrf.mxu0
    %v1658 = vadd.f32 0.0, %v1657
    %1659 = vmatmul.bf16.gmra.mxu0 %v1502
    %v1660 = vpop.f32.mrf.mxu0
    %v1661 = vadd.f32 0.0, %v1660
    %v1662 = vpop.f32.mrf.mxu0
    %v1663 = vadd.f32 0.0, %v1662
    %1664 = vmatmul.bf16.gmra.mxu0 %v1503
    %v1665 = vpop.f32.mrf.mxu0
    %v1666 = vadd.f32 0.0, %v1665
    %v1667 = vpop.f32.mrf.mxu0
    %v1668 = vadd.f32 0.0, %v1667
    %1669 = vmatmul.bf16.gmra.mxu0 %v1504
    %v1670 = vpop.f32.mrf.mxu0
    %v1671 = vadd.f32 0.0, %v1670
    %v1672 = vpop.f32.mrf.mxu0
    %v1673 = vadd.f32 0.0, %v1672
    %1674 = vdwg.mxu0
    %v1691 = vunpack.c.l.b16 %v1505
    %v1692 = vunpack.c.l.b16 %v1506
    %v1693 = vunpack.c.l.b16 %v1507
    %v1694 = vunpack.c.l.b16 %v1508
    %v1695 = vunpack.c.l.b16 %v1509
    %v1696 = vunpack.c.l.b16 %v1510
    %v1697 = vunpack.c.l.b16 %v1511
    %v1698 = vunpack.c.l.b16 %v1512
    %v1699 = vunpack.c.l.b16 %v1513
    %v1700 = vunpack.c.l.b16 %v1514
    %v1701 = vunpack.c.l.b16 %v1515
    %v1702 = vunpack.c.l.b16 %v1516
    %v1703 = vunpack.c.l.b16 %v1517
    %v1704 = vunpack.c.l.b16 %v1518
    %v1705 = vunpack.c.l.b16 %v1519
    %v1706 = vunpack.c.l.b16 %v1520
    %v1707 = vpack.c.b16 %v1692, %v1691
    %v1708 = vpack.c.b16 %v1694, %v1693
    %v1709 = vpack.c.b16 %v1696, %v1695
    %v1710 = vpack.c.b16 %v1698, %v1697
    %v1711 = vpack.c.b16 %v1700, %v1699
    %v1712 = vpack.c.b16 %v1702, %v1701
    %v1713 = vpack.c.b16 %v1704, %v1703
    %v1714 = vpack.c.b16 %v1706, %v1705
    %1723 = vmatpush.bf16.msra.mxu0 %v1714
    %1724 = vmatpush.bf16.msra.mxu0 %v1713
    %1725 = vmatpush.bf16.msra.mxu0 %v1712
    %1726 = vmatpush.bf16.msra.mxu0 %v1711
    %1727 = vmatpush.bf16.msra.mxu0 %v1710
    %1728 = vmatpush.bf16.msra.mxu0 %v1709
    %1729 = vmatpush.bf16.msra.mxu0 %v1708
    %1730 = vmatpush.bf16.msra.mxu0 %v1707
    %1731 = vmatmul.bf16.gmra.mxu0 %v1263
    %v1732 = vpop.f32.mrf.mxu0
    %v1733 = vadd.f32 %v1596, %v1732
    %v1734 = vpop.f32.mrf.mxu0
    %v1735 = vadd.f32 %v1598, %v1734
    %1736 = vmatmul.bf16.gmra.mxu0 %v1264
    %v1737 = vpop.f32.mrf.mxu0
    %v1738 = vadd.f32 %v1601, %v1737
    %v1739 = vpop.f32.mrf.mxu0
    %v1740 = vadd.f32 %v1603, %v1739
    %1741 = vmatmul.bf16.gmra.mxu0 %v1265
    %v1742 = vpop.f32.mrf.mxu0
    %v1743 = vadd.f32 %v1606, %v1742
    %v1744 = vpop.f32.mrf.mxu0
    %v1745 = vadd.f32 %v1608, %v1744
    %1746 = vmatmul.bf16.gmra.mxu0 %v1266
    %v1747 = vpop.f32.mrf.mxu0
    %v1748 = vadd.f32 %v1611, %v1747
    %v1749 = vpop.f32.mrf.mxu0
    %v1750 = vadd.f32 %v1613, %v1749
    %1751 = vmatmul.bf16.gmra.mxu0 %v1267
    %v1752 = vpop.f32.mrf.mxu0
    %v1753 = vadd.f32 %v1616, %v1752
    %v1754 = vpop.f32.mrf.mxu0
    %v1755 = vadd.f32 %v1618, %v1754
    %1756 = vmatmul.bf16.gmra.mxu0 %v1268
    %v1757 = vpop.f32.mrf.mxu0
    %v1758 = vadd.f32 %v1621, %v1757
    %v1759 = vpop.f32.mrf.mxu0
    %v1760 = vadd.f32 %v1623, %v1759
    %1761 = vmatmul.bf16.gmra.mxu0 %v1269
    %v1762 = vpop.f32.mrf.mxu0
    %v1763 = vadd.f32 %v1626, %v1762
    %v1764 = vpop.f32.mrf.mxu0
    %v1765 = vadd.f32 %v1628, %v1764
    %1766 = vmatmul.bf16.gmra.mxu0 %v1270
    %v1767 = vpop.f32.mrf.mxu0
    %v1768 = vadd.f32 %v1631, %v1767
    %v1769 = vpop.f32.mrf.mxu0
    %v1770 = vadd.f32 %v1633, %v1769
    %1771 = vmatmul.bf16.gmra.mxu0 %v1271
    %v1772 = vpop.f32.mrf.mxu0
    %v1773 = vadd.f32 %v1636, %v1772
    %v1774 = vpop.f32.mrf.mxu0
    %v1775 = vadd.f32 %v1638, %v1774
    %1776 = vmatmul.bf16.gmra.mxu0 %v1272
    %v1777 = vpop.f32.mrf.mxu0
    %v1778 = vadd.f32 %v1641, %v1777
    %v1779 = vpop.f32.mrf.mxu0
    %v1780 = vadd.f32 %v1643, %v1779
    %1781 = vmatmul.bf16.gmra.mxu0 %v1273
    %v1782 = vpop.f32.mrf.mxu0
    %v1783 = vadd.f32 %v1646, %v1782
    %v1784 = vpop.f32.mrf.mxu0
    %v1785 = vadd.f32 %v1648, %v1784
    %1786 = vmatmul.bf16.gmra.mxu0 %v1274
    %v1787 = vpop.f32.mrf.mxu0
    %v1788 = vadd.f32 %v1651, %v1787
    %v1789 = vpop.f32.mrf.mxu0
    %v1790 = vadd.f32 %v1653, %v1789
    %1791 = vmatmul.bf16.gmra.mxu0 %v1275
    %v1792 = vpop.f32.mrf.mxu0
    %v1793 = vadd.f32 %v1656, %v1792
    %v1794 = vpop.f32.mrf.mxu0
    %v1795 = vadd.f32 %v1658, %v1794
    %1796 = vmatmul.bf16.gmra.mxu0 %v1276
    %v1797 = vpop.f32.mrf.mxu0
    %v1798 = vadd.f32 %v1661, %v1797
    %v1799 = vpop.f32.mrf.mxu0
    %v1800 = vadd.f32 %v1663, %v1799
    %1801 = vmatmul.bf16.gmra.mxu0 %v1277
    %v1802 = vpop.f32.mrf.mxu0
    %v1803 = vadd.f32 %v1666, %v1802
    %v1804 = vpop.f32.mrf.mxu0
    %v1805 = vadd.f32 %v1668, %v1804
    %1806 = vmatmul.bf16.gmra.mxu0 %v1278
    %v1807 = vpop.f32.mrf.mxu0
    %v1808 = vadd.f32 %v1671, %v1807
    %v1809 = vpop.f32.mrf.mxu0
    %v1810 = vadd.f32 %v1673, %v1809
    %1811 = vdwg.mxu0
    %v1813 = vperm.slane %v1537, 0
    %v1815 = vadd.f32 %v1733, %v1813
    %v1816 = vadd.f32 %v1735, %v1813
    %v1817 = vadd.f32 %v1738, %v1813
    %v1818 = vadd.f32 %v1740, %v1813
    %v1819 = vadd.f32 %v1743, %v1813
    %v1820 = vadd.f32 %v1745, %v1813
    %v1821 = vadd.f32 %v1748, %v1813
    %v1822 = vadd.f32 %v1750, %v1813
    %v1823 = vadd.f32 %v1753, %v1813
    %v1824 = vadd.f32 %v1755, %v1813
    %v1825 = vadd.f32 %v1758, %v1813
    %v1826 = vadd.f32 %v1760, %v1813
    %v1827 = vadd.f32 %v1763, %v1813
    %v1828 = vadd.f32 %v1765, %v1813
    %v1829 = vadd.f32 %v1768, %v1813
    %v1830 = vadd.f32 %v1770, %v1813
    %v1831 = vadd.f32 %v1773, %v1813
    %v1832 = vadd.f32 %v1775, %v1813
    %v1833 = vadd.f32 %v1778, %v1813
    %v1834 = vadd.f32 %v1780, %v1813
    %v1835 = vadd.f32 %v1783, %v1813
    %v1836 = vadd.f32 %v1785, %v1813
    %v1837 = vadd.f32 %v1788, %v1813
    %v1838 = vadd.f32 %v1790, %v1813
    %v1839 = vadd.f32 %v1793, %v1813
    %v1840 = vadd.f32 %v1795, %v1813
    %v1841 = vadd.f32 %v1798, %v1813
    %v1842 = vadd.f32 %v1800, %v1813
    %v1843 = vadd.f32 %v1803, %v1813
    %v1844 = vadd.f32 %v1805, %v1813
    %v1845 = vadd.f32 %v1808, %v1813
    %v1846 = vadd.f32 %v1810, %v1813
    %v1847 = vmax.f32 %v1815, 0.0
    %v1848 = vmax.f32 %v1816, 0.0
    %v1849 = vmax.f32 %v1817, 0.0
    %v1850 = vmax.f32 %v1818, 0.0
    %v1851 = vmax.f32 %v1819, 0.0
    %v1852 = vmax.f32 %v1820, 0.0
    %v1853 = vmax.f32 %v1821, 0.0
    %v1854 = vmax.f32 %v1822, 0.0
    %v1855 = vmax.f32 %v1823, 0.0
    %v1856 = vmax.f32 %v1824, 0.0
    %v1857 = vmax.f32 %v1825, 0.0
    %v1858 = vmax.f32 %v1826, 0.0
    %v1859 = vmax.f32 %v1827, 0.0
    %v1860 = vmax.f32 %v1828, 0.0
    %v1861 = vmax.f32 %v1829, 0.0
    %v1862 = vmax.f32 %v1830, 0.0
    %v1863 = vmax.f32 %v1831, 0.0
    %v1864 = vmax.f32 %v1832, 0.0
    %v1865 = vmax.f32 %v1833, 0.0
    %v1866 = vmax.f32 %v1834, 0.0
    %v1867 = vmax.f32 %v1835, 0.0
    %v1868 = vmax.f32 %v1836, 0.0
    %v1869 = vmax.f32 %v1837, 0.0
    %v1870 = vmax.f32 %v1838, 0.0
    %v1871 = vmax.f32 %v1839, 0.0
    %v1872 = vmax.f32 %v1840, 0.0
    %v1873 = vmax.f32 %v1841, 0.0
    %v1874 = vmax.f32 %v1842, 0.0
    %v1875 = vmax.f32 %v1843, 0.0
    %v1876 = vmax.f32 %v1844, 0.0
    %v1877 = vmax.f32 %v1845, 0.0
    %v1878 = vmax.f32 %v1846, 0.0
    %1879 = vst [vmem:[#allocation13] sm:$0xff] %v1847
    %1880 = vst [vmem:[#allocation13 + $0x8] sm:$0xff] %v1848
    %1881 = vst [vmem:[#allocation13 + $0x10] sm:$0xff] %v1849
    %1882 = vst [vmem:[#allocation13 + $0x18] sm:$0xff] %v1850
    %1883 = vst [vmem:[#allocation13 + $0x20] sm:$0xff] %v1851
    %1884 = vst [vmem:[#allocation13 + $0x28] sm:$0xff] %v1852
    %1885 = vst [vmem:[#allocation13 + $0x30] sm:$0xff] %v1853
    %1886 = vst [vmem:[#allocation13 + $0x38] sm:$0xff] %v1854
    %1887 = vst [vmem:[#allocation13 + $0x40] sm:$0xff] %v1855
    %1888 = vst [vmem:[#allocation13 + $0x48] sm:$0xff] %v1856
    %1889 = vst [vmem:[#allocation13 + $0x50] sm:$0xff] %v1857
    %1890 = vst [vmem:[#allocation13 + $0x58] sm:$0xff] %v1858
    %1891 = vst [vmem:[#allocation13 + $0x60] sm:$0xff] %v1859
    %1892 = vst [vmem:[#allocation13 + $0x68] sm:$0xff] %v1860
    %1893 = vst [vmem:[#allocation13 + $0x70] sm:$0xff] %v1861
    %1894 = vst [vmem:[#allocation13 + $0x78] sm:$0xff] %v1862
    %1895 = vst [vmem:[#allocation13 + $0x80] sm:$0xff] %v1863
    %1896 = vst [vmem:[#allocation13 + $0x88] sm:$0xff] %v1864
    %1897 = vst [vmem:[#allocation13 + $0x90] sm:$0xff] %v1865
    %1898 = vst [vmem:[#allocation13 + $0x98] sm:$0xff] %v1866
    %1899 = vst [vmem:[#allocation13 + $0xa0] sm:$0xff] %v1867
    %1900 = vst [vmem:[#allocation13 + $0xa8] sm:$0xff] %v1868
    %1901 = vst [vmem:[#allocation13 + $0xb0] sm:$0xff] %v1869
    %1902 = vst [vmem:[#allocation13 + $0xb8] sm:$0xff] %v1870
    %1903 = vst [vmem:[#allocation13 + $0xc0] sm:$0xff] %v1871
    %1904 = vst [vmem:[#allocation13 + $0xc8] sm:$0xff] %v1872
    %1905 = vst [vmem:[#allocation13 + $0xd0] sm:$0xff] %v1873
    %1906 = vst [vmem:[#allocation13 + $0xd8] sm:$0xff] %v1874
    %1907 = vst [vmem:[#allocation13 + $0xe0] sm:$0xff] %v1875
    %1908 = vst [vmem:[#allocation13 + $0xe8] sm:$0xff] %v1876
    %1909 = vst [vmem:[#allocation13 + $0xf0] sm:$0xff] %v1877
    %1910 = vst [vmem:[#allocation13 + $0xf8] sm:$0xff] %v1878
    %v1911 = vld [vmem:[#allocation2] sm:$0xff]
    %v1912 = vld [vmem:[#allocation2 + $0x8] sm:$0xff]
    %v1913 = vld [vmem:[#allocation2 + $0x10] sm:$0xff]
    %v1914 = vld [vmem:[#allocation2 + $0x18] sm:$0xff]
    %v1915 = vld [vmem:[#allocation2 + $0x20] sm:$0xff]
    %v1916 = vld [vmem:[#allocation2 + $0x28] sm:$0xff]
    %v1917 = vld [vmem:[#allocation2 + $0x30] sm:$0xff]
    %v1918 = vld [vmem:[#allocation2 + $0x38] sm:$0xff]
    %v1919 = vld [vmem:[#allocation2 + $0x40] sm:$0xff]
    %v1920 = vld [vmem:[#allocation2 + $0x48] sm:$0xff]
    %v1921 = vld [vmem:[#allocation2 + $0x50] sm:$0xff]
    %v1922 = vld [vmem:[#allocation2 + $0x58] sm:$0xff]
    %v1923 = vld [vmem:[#allocation2 + $0x60] sm:$0xff]
    %v1924 = vld [vmem:[#allocation2 + $0x68] sm:$0xff]
    %v1925 = vld [vmem:[#allocation2 + $0x70] sm:$0xff]
    %v1926 = vld [vmem:[#allocation2 + $0x78] sm:$0xff]
    %v1927 = vld [vmem:[#allocation2 + $0x80] sm:$0xff]
    %v1928 = vld [vmem:[#allocation2 + $0x88] sm:$0xff]
    %v1929 = vld [vmem:[#allocation2 + $0x90] sm:$0xff]
    %v1930 = vld [vmem:[#allocation2 + $0x98] sm:$0xff]
    %v1931 = vld [vmem:[#allocation2 + $0xa0] sm:$0xff]
    %v1932 = vld [vmem:[#allocation2 + $0xa8] sm:$0xff]
    %v1933 = vld [vmem:[#allocation2 + $0xb0] sm:$0xff]
    %v1934 = vld [vmem:[#allocation2 + $0xb8] sm:$0xff]
    %v1935 = vld [vmem:[#allocation2 + $0xc0] sm:$0xff]
    %v1936 = vld [vmem:[#allocation2 + $0xc8] sm:$0xff]
    %v1937 = vld [vmem:[#allocation2 + $0xd0] sm:$0xff]
    %v1938 = vld [vmem:[#allocation2 + $0xd8] sm:$0xff]
    %v1939 = vld [vmem:[#allocation2 + $0xe0] sm:$0xff]
    %v1940 = vld [vmem:[#allocation2 + $0xe8] sm:$0xff]
    %v1941 = vld [vmem:[#allocation2 + $0xf0] sm:$0xff]
    %v1942 = vld [vmem:[#allocation2 + $0xf8] sm:$0xff]
    %v1943 = vld [vmem:[%s10] sm:$0xff]
    %v1944 = vld [vmem:[%s10 + $0x8] sm:$0xff]
    %v1945 = vld [vmem:[%s10 + $0x10] sm:$0xff]
    %v1946 = vld [vmem:[%s10 + $0x18] sm:$0xff]
    %v1947 = vld [vmem:[%s10 + $0x20] sm:$0xff]
    %v1948 = vld [vmem:[%s10 + $0x28] sm:$0xff]
    %v1949 = vld [vmem:[%s10 + $0x30] sm:$0xff]
    %v1950 = vld [vmem:[%s10 + $0x38] sm:$0xff]
    %v1951 = vld [vmem:[%s10 + $0x40] sm:$0xff]
    %v1952 = vld [vmem:[%s10 + $0x48] sm:$0xff]
    %v1953 = vld [vmem:[%s10 + $0x50] sm:$0xff]
    %v1954 = vld [vmem:[%s10 + $0x58] sm:$0xff]
    %v1955 = vld [vmem:[%s10 + $0x60] sm:$0xff]
    %v1956 = vld [vmem:[%s10 + $0x68] sm:$0xff]
    %v1957 = vld [vmem:[%s10 + $0x70] sm:$0xff]
    %v1958 = vld [vmem:[%s10 + $0x78] sm:$0xff]
    %v1959 = vld [vmem:[%s11] sm:$0x3]
    %v1960 = vld [vmem:[#allocation8] sm:$0xff]
    %v1961 = vld [vmem:[#allocation8 + $0x8] sm:$0xff]
    %v1962 = vld [vmem:[#allocation8 + $0x10] sm:$0xff]
    %v1963 = vld [vmem:[#allocation8 + $0x18] sm:$0xff]
    %v1964 = vld [vmem:[#allocation8 + $0x20] sm:$0xff]
    %v1965 = vld [vmem:[#allocation8 + $0x28] sm:$0xff]
    %v1966 = vld [vmem:[#allocation8 + $0x30] sm:$0xff]
    %v1967 = vld [vmem:[#allocation8 + $0x38] sm:$0xff]
    %v1968 = vld [vmem:[#allocation8 + $0x40] sm:$0xff]
    %v1969 = vld [vmem:[#allocation8 + $0x48] sm:$0xff]
    %v1970 = vld [vmem:[#allocation8 + $0x50] sm:$0xff]
    %v1971 = vld [vmem:[#allocation8 + $0x58] sm:$0xff]
    %v1972 = vld [vmem:[#allocation8 + $0x60] sm:$0xff]
    %v1973 = vld [vmem:[#allocation8 + $0x68] sm:$0xff]
    %v1974 = vld [vmem:[#allocation8 + $0x70] sm:$0xff]
    %v1975 = vld [vmem:[#allocation8 + $0x78] sm:$0xff]
    %v1976 = vld [vmem:[#allocation8 + $0x80] sm:$0xff]
    %v1977 = vld [vmem:[#allocation8 + $0x88] sm:$0xff]
    %v1978 = vld [vmem:[#allocation8 + $0x90] sm:$0xff]
    %v1979 = vld [vmem:[#allocation8 + $0x98] sm:$0xff]
    %v1980 = vld [vmem:[#allocation8 + $0xa0] sm:$0xff]
    %v1981 = vld [vmem:[#allocation8 + $0xa8] sm:$0xff]
    %v1982 = vld [vmem:[#allocation8 + $0xb0] sm:$0xff]
    %v1983 = vld [vmem:[#allocation8 + $0xb8] sm:$0xff]
    %v1984 = vld [vmem:[#allocation8 + $0xc0] sm:$0xff]
    %v1985 = vld [vmem:[#allocation8 + $0xc8] sm:$0xff]
    %v1986 = vld [vmem:[#allocation8 + $0xd0] sm:$0xff]
    %v1987 = vld [vmem:[#allocation8 + $0xd8] sm:$0xff]
    %v1988 = vld [vmem:[#allocation8 + $0xe0] sm:$0xff]
    %v1989 = vld [vmem:[#allocation8 + $0xe8] sm:$0xff]
    %v1990 = vld [vmem:[#allocation8 + $0xf0] sm:$0xff]
    %v1991 = vld [vmem:[#allocation8 + $0xf8] sm:$0xff]
    %v1992 = vld [vmem:[#allocation8 + $0x100] sm:$0xff]
    %v1993 = vld [vmem:[#allocation8 + $0x108] sm:$0xff]
    %v1994 = vld [vmem:[#allocation8 + $0x110] sm:$0xff]
    %v1995 = vld [vmem:[#allocation8 + $0x118] sm:$0xff]
    %v1996 = vld [vmem:[#allocation8 + $0x120] sm:$0xff]
    %v1997 = vld [vmem:[#allocation8 + $0x128] sm:$0xff]
    %v1998 = vld [vmem:[#allocation8 + $0x130] sm:$0xff]
    %v1999 = vld [vmem:[#allocation8 + $0x138] sm:$0xff]
    %v2000 = vld [vmem:[#allocation8 + $0x140] sm:$0xff]
    %v2001 = vld [vmem:[#allocation8 + $0x148] sm:$0xff]
    %v2002 = vld [vmem:[#allocation8 + $0x150] sm:$0xff]
    %v2003 = vld [vmem:[#allocation8 + $0x158] sm:$0xff]
    %v2004 = vld [vmem:[#allocation8 + $0x160] sm:$0xff]
    %v2005 = vld [vmem:[#allocation8 + $0x168] sm:$0xff]
    %v2006 = vld [vmem:[#allocation8 + $0x170] sm:$0xff]
    %v2007 = vld [vmem:[#allocation8 + $0x178] sm:$0xff]
    %v2008 = vld [vmem:[#allocation8 + $0x180] sm:$0xff]
    %v2009 = vld [vmem:[#allocation8 + $0x188] sm:$0xff]
    %v2010 = vld [vmem:[#allocation8 + $0x190] sm:$0xff]
    %v2011 = vld [vmem:[#allocation8 + $0x198] sm:$0xff]
    %v2012 = vld [vmem:[#allocation8 + $0x1a0] sm:$0xff]
    %v2013 = vld [vmem:[#allocation8 + $0x1a8] sm:$0xff]
    %v2014 = vld [vmem:[#allocation8 + $0x1b0] sm:$0xff]
    %v2015 = vld [vmem:[#allocation8 + $0x1b8] sm:$0xff]
    %v2016 = vld [vmem:[#allocation8 + $0x1c0] sm:$0xff]
    %v2017 = vld [vmem:[#allocation8 + $0x1c8] sm:$0xff]
    %v2018 = vld [vmem:[#allocation8 + $0x1d0] sm:$0xff]
    %v2019 = vld [vmem:[#allocation8 + $0x1d8] sm:$0xff]
    %v2020 = vld [vmem:[#allocation8 + $0x1e0] sm:$0xff]
    %v2021 = vld [vmem:[#allocation8 + $0x1e8] sm:$0xff]
    %v2022 = vld [vmem:[#allocation8 + $0x1f0] sm:$0xff]
    %v2023 = vld [vmem:[#allocation8 + $0x1f8] sm:$0xff]
    %v2024 = vld [vmem:[#allocation8 + $0x200] sm:$0xff]
    %v2025 = vld [vmem:[#allocation8 + $0x208] sm:$0xff]
    %v2026 = vld [vmem:[#allocation8 + $0x210] sm:$0xff]
    %v2027 = vld [vmem:[#allocation8 + $0x218] sm:$0xff]
    %v2028 = vld [vmem:[#allocation8 + $0x220] sm:$0xff]
    %v2029 = vld [vmem:[#allocation8 + $0x228] sm:$0xff]
    %v2030 = vld [vmem:[#allocation8 + $0x230] sm:$0xff]
    %v2031 = vld [vmem:[#allocation8 + $0x238] sm:$0xff]
    %v2032 = vld [vmem:[#allocation8 + $0x240] sm:$0xff]
    %v2033 = vld [vmem:[#allocation8 + $0x248] sm:$0xff]
    %v2034 = vld [vmem:[#allocation8 + $0x250] sm:$0xff]
    %v2035 = vld [vmem:[#allocation8 + $0x258] sm:$0xff]
    %v2036 = vld [vmem:[#allocation8 + $0x260] sm:$0xff]
    %v2037 = vld [vmem:[#allocation8 + $0x268] sm:$0xff]
    %v2038 = vld [vmem:[#allocation8 + $0x270] sm:$0xff]
    %v2039 = vld [vmem:[#allocation8 + $0x278] sm:$0xff]
    %v2040 = vld [vmem:[#allocation8 + $0x280] sm:$0xff]
    %v2041 = vld [vmem:[#allocation8 + $0x288] sm:$0xff]
    %v2042 = vld [vmem:[#allocation8 + $0x290] sm:$0xff]
    %v2043 = vld [vmem:[#allocation8 + $0x298] sm:$0xff]
    %v2044 = vld [vmem:[#allocation8 + $0x2a0] sm:$0xff]
    %v2045 = vld [vmem:[#allocation8 + $0x2a8] sm:$0xff]
    %v2046 = vld [vmem:[#allocation8 + $0x2b0] sm:$0xff]
    %v2047 = vld [vmem:[#allocation8 + $0x2b8] sm:$0xff]
    %v2048 = vld [vmem:[#allocation8 + $0x2c0] sm:$0xff]
    %v2049 = vld [vmem:[#allocation8 + $0x2c8] sm:$0xff]
    %v2050 = vld [vmem:[#allocation8 + $0x2d0] sm:$0xff]
    %v2051 = vld [vmem:[#allocation8 + $0x2d8] sm:$0xff]
    %v2052 = vld [vmem:[#allocation8 + $0x2e0] sm:$0xff]
    %v2053 = vld [vmem:[#allocation8 + $0x2e8] sm:$0xff]
    %v2054 = vld [vmem:[#allocation8 + $0x2f0] sm:$0xff]
    %v2055 = vld [vmem:[#allocation8 + $0x2f8] sm:$0xff]
    %v2056 = vld [vmem:[#allocation8 + $0x300] sm:$0xff]
    %v2057 = vld [vmem:[#allocation8 + $0x308] sm:$0xff]
    %v2058 = vld [vmem:[#allocation8 + $0x310] sm:$0xff]
    %v2059 = vld [vmem:[#allocation8 + $0x318] sm:$0xff]
    %v2060 = vld [vmem:[#allocation8 + $0x320] sm:$0xff]
    %v2061 = vld [vmem:[#allocation8 + $0x328] sm:$0xff]
    %v2062 = vld [vmem:[#allocation8 + $0x330] sm:$0xff]
    %v2063 = vld [vmem:[#allocation8 + $0x338] sm:$0xff]
    %v2064 = vld [vmem:[#allocation8 + $0x340] sm:$0xff]
    %v2065 = vld [vmem:[#allocation8 + $0x348] sm:$0xff]
    %v2066 = vld [vmem:[#allocation8 + $0x350] sm:$0xff]
    %v2067 = vld [vmem:[#allocation8 + $0x358] sm:$0xff]
    %v2068 = vld [vmem:[#allocation8 + $0x360] sm:$0xff]
    %v2069 = vld [vmem:[#allocation8 + $0x368] sm:$0xff]
    %v2070 = vld [vmem:[#allocation8 + $0x370] sm:$0xff]
    %v2071 = vld [vmem:[#allocation8 + $0x378] sm:$0xff]
    %v2072 = vld [vmem:[#allocation8 + $0x380] sm:$0xff]
    %v2073 = vld [vmem:[#allocation8 + $0x388] sm:$0xff]
    %v2074 = vld [vmem:[#allocation8 + $0x390] sm:$0xff]
    %v2075 = vld [vmem:[#allocation8 + $0x398] sm:$0xff]
    %v2076 = vld [vmem:[#allocation8 + $0x3a0] sm:$0xff]
    %v2077 = vld [vmem:[#allocation8 + $0x3a8] sm:$0xff]
    %v2078 = vld [vmem:[#allocation8 + $0x3b0] sm:$0xff]
    %v2079 = vld [vmem:[#allocation8 + $0x3b8] sm:$0xff]
    %v2080 = vld [vmem:[#allocation8 + $0x3c0] sm:$0xff]
    %v2081 = vld [vmem:[#allocation8 + $0x3c8] sm:$0xff]
    %v2082 = vld [vmem:[#allocation8 + $0x3d0] sm:$0xff]
    %v2083 = vld [vmem:[#allocation8 + $0x3d8] sm:$0xff]
    %v2084 = vld [vmem:[#allocation8 + $0x3e0] sm:$0xff]
    %v2085 = vld [vmem:[#allocation8 + $0x3e8] sm:$0xff]
    %v2086 = vld [vmem:[#allocation8 + $0x3f0] sm:$0xff]
    %v2087 = vld [vmem:[#allocation8 + $0x3f8] sm:$0xff]
    %v2088 = vld [vmem:[#allocation8 + $0x400] sm:$0xff]
    %v2089 = vld [vmem:[#allocation8 + $0x408] sm:$0xff]
    %v2090 = vld [vmem:[#allocation8 + $0x410] sm:$0xff]
    %v2091 = vld [vmem:[#allocation8 + $0x418] sm:$0xff]
    %v2092 = vld [vmem:[#allocation8 + $0x420] sm:$0xff]
    %v2093 = vld [vmem:[#allocation8 + $0x428] sm:$0xff]
    %v2094 = vld [vmem:[#allocation8 + $0x430] sm:$0xff]
    %v2095 = vld [vmem:[#allocation8 + $0x438] sm:$0xff]
    %v2096 = vld [vmem:[#allocation8 + $0x440] sm:$0xff]
    %v2097 = vld [vmem:[#allocation8 + $0x448] sm:$0xff]
    %v2098 = vld [vmem:[#allocation8 + $0x450] sm:$0xff]
    %v2099 = vld [vmem:[#allocation8 + $0x458] sm:$0xff]
    %v2100 = vld [vmem:[#allocation8 + $0x460] sm:$0xff]
    %v2101 = vld [vmem:[#allocation8 + $0x468] sm:$0xff]
    %v2102 = vld [vmem:[#allocation8 + $0x470] sm:$0xff]
    %v2103 = vld [vmem:[#allocation8 + $0x478] sm:$0xff]
    %v2104 = vld [vmem:[#allocation8 + $0x480] sm:$0xff]
    %v2105 = vld [vmem:[#allocation8 + $0x488] sm:$0xff]
    %v2106 = vld [vmem:[#allocation8 + $0x490] sm:$0xff]
    %v2107 = vld [vmem:[#allocation8 + $0x498] sm:$0xff]
    %v2108 = vld [vmem:[#allocation8 + $0x4a0] sm:$0xff]
    %v2109 = vld [vmem:[#allocation8 + $0x4a8] sm:$0xff]
    %v2110 = vld [vmem:[#allocation8 + $0x4b0] sm:$0xff]
    %v2111 = vld [vmem:[#allocation8 + $0x4b8] sm:$0xff]
    %v2112 = vld [vmem:[#allocation8 + $0x4c0] sm:$0xff]
    %v2113 = vld [vmem:[#allocation8 + $0x4c8] sm:$0xff]
    %v2114 = vld [vmem:[#allocation8 + $0x4d0] sm:$0xff]
    %v2115 = vld [vmem:[#allocation8 + $0x4d8] sm:$0xff]
    %v2116 = vld [vmem:[#allocation8 + $0x4e0] sm:$0xff]
    %v2117 = vld [vmem:[#allocation8 + $0x4e8] sm:$0xff]
    %v2118 = vld [vmem:[#allocation8 + $0x4f0] sm:$0xff]
    %v2119 = vld [vmem:[#allocation8 + $0x4f8] sm:$0xff]
    %v2120 = vld [vmem:[#allocation8 + $0x500] sm:$0xff]
    %v2121 = vld [vmem:[#allocation8 + $0x508] sm:$0xff]
    %v2122 = vld [vmem:[#allocation8 + $0x510] sm:$0xff]
    %v2123 = vld [vmem:[#allocation8 + $0x518] sm:$0xff]
    %v2124 = vld [vmem:[#allocation8 + $0x520] sm:$0xff]
    %v2125 = vld [vmem:[#allocation8 + $0x528] sm:$0xff]
    %v2126 = vld [vmem:[#allocation8 + $0x530] sm:$0xff]
    %v2127 = vld [vmem:[#allocation8 + $0x538] sm:$0xff]
    %v2128 = vld [vmem:[#allocation8 + $0x540] sm:$0xff]
    %v2129 = vld [vmem:[#allocation8 + $0x548] sm:$0xff]
    %v2130 = vld [vmem:[#allocation8 + $0x550] sm:$0xff]
    %v2131 = vld [vmem:[#allocation8 + $0x558] sm:$0xff]
    %v2132 = vld [vmem:[#allocation8 + $0x560] sm:$0xff]
    %v2133 = vld [vmem:[#allocation8 + $0x568] sm:$0xff]
    %v2134 = vld [vmem:[#allocation8 + $0x570] sm:$0xff]
    %v2135 = vld [vmem:[#allocation8 + $0x578] sm:$0xff]
    %v2136 = vld [vmem:[#allocation8 + $0x580] sm:$0xff]
    %v2137 = vld [vmem:[#allocation8 + $0x588] sm:$0xff]
    %v2138 = vld [vmem:[#allocation8 + $0x590] sm:$0xff]
    %v2139 = vld [vmem:[#allocation8 + $0x598] sm:$0xff]
    %v2140 = vld [vmem:[#allocation8 + $0x5a0] sm:$0xff]
    %v2141 = vld [vmem:[#allocation8 + $0x5a8] sm:$0xff]
    %v2142 = vld [vmem:[#allocation8 + $0x5b0] sm:$0xff]
    %v2143 = vld [vmem:[#allocation8 + $0x5b8] sm:$0xff]
    %v2144 = vld [vmem:[#allocation8 + $0x5c0] sm:$0xff]
    %v2145 = vld [vmem:[#allocation8 + $0x5c8] sm:$0xff]
    %v2146 = vld [vmem:[#allocation8 + $0x5d0] sm:$0xff]
    %v2147 = vld [vmem:[#allocation8 + $0x5d8] sm:$0xff]
    %v2148 = vld [vmem:[#allocation8 + $0x5e0] sm:$0xff]
    %v2149 = vld [vmem:[#allocation8 + $0x5e8] sm:$0xff]
    %v2150 = vld [vmem:[#allocation8 + $0x5f0] sm:$0xff]
    %v2151 = vld [vmem:[#allocation8 + $0x5f8] sm:$0xff]
    %v2152 = vld [vmem:[#allocation8 + $0x600] sm:$0xff]
    %v2153 = vld [vmem:[#allocation8 + $0x608] sm:$0xff]
    %v2154 = vld [vmem:[#allocation8 + $0x610] sm:$0xff]
    %v2155 = vld [vmem:[#allocation8 + $0x618] sm:$0xff]
    %v2156 = vld [vmem:[#allocation8 + $0x620] sm:$0xff]
    %v2157 = vld [vmem:[#allocation8 + $0x628] sm:$0xff]
    %v2158 = vld [vmem:[#allocation8 + $0x630] sm:$0xff]
    %v2159 = vld [vmem:[#allocation8 + $0x638] sm:$0xff]
    %v2160 = vld [vmem:[#allocation8 + $0x640] sm:$0xff]
    %v2161 = vld [vmem:[#allocation8 + $0x648] sm:$0xff]
    %v2162 = vld [vmem:[#allocation8 + $0x650] sm:$0xff]
    %v2163 = vld [vmem:[#allocation8 + $0x658] sm:$0xff]
    %v2164 = vld [vmem:[#allocation8 + $0x660] sm:$0xff]
    %v2165 = vld [vmem:[#allocation8 + $0x668] sm:$0xff]
    %v2166 = vld [vmem:[#allocation8 + $0x670] sm:$0xff]
    %v2167 = vld [vmem:[#allocation8 + $0x678] sm:$0xff]
    %v2168 = vld [vmem:[#allocation8 + $0x680] sm:$0xff]
    %v2169 = vld [vmem:[#allocation8 + $0x688] sm:$0xff]
    %v2170 = vld [vmem:[#allocation8 + $0x690] sm:$0xff]
    %v2171 = vld [vmem:[#allocation8 + $0x698] sm:$0xff]
    %v2172 = vld [vmem:[#allocation8 + $0x6a0] sm:$0xff]
    %v2173 = vld [vmem:[#allocation8 + $0x6a8] sm:$0xff]
    %v2174 = vld [vmem:[#allocation8 + $0x6b0] sm:$0xff]
    %v2175 = vld [vmem:[#allocation8 + $0x6b8] sm:$0xff]
    %v2176 = vld [vmem:[#allocation8 + $0x6c0] sm:$0xff]
    %v2177 = vld [vmem:[#allocation8 + $0x6c8] sm:$0xff]
    %v2178 = vld [vmem:[#allocation8 + $0x6d0] sm:$0xff]
    %v2179 = vld [vmem:[#allocation8 + $0x6d8] sm:$0xff]
    %v2180 = vld [vmem:[#allocation8 + $0x6e0] sm:$0xff]
    %v2181 = vld [vmem:[#allocation8 + $0x6e8] sm:$0xff]
    %v2182 = vld [vmem:[#allocation8 + $0x6f0] sm:$0xff]
    %v2183 = vld [vmem:[#allocation8 + $0x6f8] sm:$0xff]
    %v2184 = vld [vmem:[#allocation8 + $0x700] sm:$0xff]
    %v2185 = vld [vmem:[#allocation8 + $0x708] sm:$0xff]
    %v2186 = vld [vmem:[#allocation8 + $0x710] sm:$0xff]
    %v2187 = vld [vmem:[#allocation8 + $0x718] sm:$0xff]
    %v2188 = vld [vmem:[#allocation8 + $0x720] sm:$0xff]
    %v2189 = vld [vmem:[#allocation8 + $0x728] sm:$0xff]
    %v2190 = vld [vmem:[#allocation8 + $0x730] sm:$0xff]
    %v2191 = vld [vmem:[#allocation8 + $0x738] sm:$0xff]
    %v2192 = vld [vmem:[#allocation8 + $0x740] sm:$0xff]
    %v2193 = vld [vmem:[#allocation8 + $0x748] sm:$0xff]
    %v2194 = vld [vmem:[#allocation8 + $0x750] sm:$0xff]
    %v2195 = vld [vmem:[#allocation8 + $0x758] sm:$0xff]
    %v2196 = vld [vmem:[#allocation8 + $0x760] sm:$0xff]
    %v2197 = vld [vmem:[#allocation8 + $0x768] sm:$0xff]
    %v2198 = vld [vmem:[#allocation8 + $0x770] sm:$0xff]
    %v2199 = vld [vmem:[#allocation8 + $0x778] sm:$0xff]
    %v2200 = vld [vmem:[#allocation8 + $0x780] sm:$0xff]
    %v2201 = vld [vmem:[#allocation8 + $0x788] sm:$0xff]
    %v2202 = vld [vmem:[#allocation8 + $0x790] sm:$0xff]
    %v2203 = vld [vmem:[#allocation8 + $0x798] sm:$0xff]
    %v2204 = vld [vmem:[#allocation8 + $0x7a0] sm:$0xff]
    %v2205 = vld [vmem:[#allocation8 + $0x7a8] sm:$0xff]
    %v2206 = vld [vmem:[#allocation8 + $0x7b0] sm:$0xff]
    %v2207 = vld [vmem:[#allocation8 + $0x7b8] sm:$0xff]
    %v2208 = vld [vmem:[#allocation8 + $0x7c0] sm:$0xff]
    %v2209 = vld [vmem:[#allocation8 + $0x7c8] sm:$0xff]
    %v2210 = vld [vmem:[#allocation8 + $0x7d0] sm:$0xff]
    %v2211 = vld [vmem:[#allocation8 + $0x7d8] sm:$0xff]
    %v2212 = vld [vmem:[#allocation8 + $0x7e0] sm:$0xff]
    %v2213 = vld [vmem:[#allocation8 + $0x7e8] sm:$0xff]
    %v2214 = vld [vmem:[#allocation8 + $0x7f0] sm:$0xff]
    %v2215 = vld [vmem:[#allocation8 + $0x7f8] sm:$0xff]
    %v2216 = vld [vmem:[#allocation10] sm:$0xff]
    %v2217 = vld [vmem:[#allocation10 + $0x8] sm:$0xff]
    %v2218 = vld [vmem:[#allocation11] sm:$0xf]
    %v2219 = vld [vmem:[#allocation11 + $0x4] sm:$0xf]
    %v2220 = vld [vmem:[#allocation11 + $0x8] sm:$0xf]
    %v2221 = vld [vmem:[#allocation11 + $0xc] sm:$0xf]
    %v2222 = vld [vmem:[#allocation11 + $0x10] sm:$0xf]
    %v2223 = vld [vmem:[#allocation11 + $0x14] sm:$0xf]
    %v2224 = vld [vmem:[#allocation11 + $0x18] sm:$0xf]
    %v2225 = vld [vmem:[#allocation11 + $0x1c] sm:$0xf]
    %v2226 = vld [vmem:[#allocation11 + $0x20] sm:$0xf]
    %v2227 = vld [vmem:[#allocation11 + $0x24] sm:$0xf]
    %v2228 = vld [vmem:[#allocation11 + $0x28] sm:$0xf]
    %v2229 = vld [vmem:[#allocation11 + $0x2c] sm:$0xf]
    %v2230 = vld [vmem:[#allocation11 + $0x30] sm:$0xf]
    %v2231 = vld [vmem:[#allocation11 + $0x34] sm:$0xf]
    %v2232 = vld [vmem:[#allocation11 + $0x38] sm:$0xf]
    %v2233 = vld [vmem:[#allocation11 + $0x3c] sm:$0xf]
    %v2234 = vld [vmem:[#allocation11 + $0x40] sm:$0xf]
    %v2235 = vld [vmem:[#allocation11 + $0x44] sm:$0xf]
    %v2236 = vld [vmem:[#allocation11 + $0x48] sm:$0xf]
    %v2237 = vld [vmem:[#allocation11 + $0x4c] sm:$0xf]
    %v2238 = vld [vmem:[#allocation11 + $0x50] sm:$0xf]
    %v2239 = vld [vmem:[#allocation11 + $0x54] sm:$0xf]
    %v2240 = vld [vmem:[#allocation11 + $0x58] sm:$0xf]
    %v2241 = vld [vmem:[#allocation11 + $0x5c] sm:$0xf]
    %v2242 = vld [vmem:[#allocation11 + $0x60] sm:$0xf]
    %v2243 = vld [vmem:[#allocation11 + $0x64] sm:$0xf]
    %v2244 = vld [vmem:[#allocation11 + $0x68] sm:$0xf]
    %v2245 = vld [vmem:[#allocation11 + $0x6c] sm:$0xf]
    %v2246 = vld [vmem:[#allocation11 + $0x70] sm:$0xf]
    %v2247 = vld [vmem:[#allocation11 + $0x74] sm:$0xf]
    %v2248 = vld [vmem:[#allocation11 + $0x78] sm:$0xf]
    %v2249 = vld [vmem:[#allocation11 + $0x7c] sm:$0xf]
    %v2250 = vld [vmem:[#allocation11 + $0x80] sm:$0xf]
    %v2251 = vld [vmem:[#allocation11 + $0x84] sm:$0xf]
    %v2252 = vld [vmem:[#allocation11 + $0x88] sm:$0xf]
    %v2253 = vld [vmem:[#allocation11 + $0x8c] sm:$0xf]
    %v2254 = vld [vmem:[#allocation11 + $0x90] sm:$0xf]
    %v2255 = vld [vmem:[#allocation11 + $0x94] sm:$0xf]
    %v2256 = vld [vmem:[#allocation11 + $0x98] sm:$0xf]
    %v2257 = vld [vmem:[#allocation11 + $0x9c] sm:$0xf]
    %v2258 = vld [vmem:[#allocation11 + $0xa0] sm:$0xf]
    %v2259 = vld [vmem:[#allocation11 + $0xa4] sm:$0xf]
    %v2260 = vld [vmem:[#allocation11 + $0xa8] sm:$0xf]
    %v2261 = vld [vmem:[#allocation11 + $0xac] sm:$0xf]
    %v2262 = vld [vmem:[#allocation11 + $0xb0] sm:$0xf]
    %v2263 = vld [vmem:[#allocation11 + $0xb4] sm:$0xf]
    %v2264 = vld [vmem:[#allocation11 + $0xb8] sm:$0xf]
    %v2265 = vld [vmem:[#allocation11 + $0xbc] sm:$0xf]
    %v2266 = vld [vmem:[#allocation11 + $0xc0] sm:$0xf]
    %v2267 = vld [vmem:[#allocation11 + $0xc4] sm:$0xf]
    %v2268 = vld [vmem:[#allocation11 + $0xc8] sm:$0xf]
    %v2269 = vld [vmem:[#allocation11 + $0xcc] sm:$0xf]
    %v2270 = vld [vmem:[#allocation11 + $0xd0] sm:$0xf]
    %v2271 = vld [vmem:[#allocation11 + $0xd4] sm:$0xf]
    %v2272 = vld [vmem:[#allocation11 + $0xd8] sm:$0xf]
    %v2273 = vld [vmem:[#allocation11 + $0xdc] sm:$0xf]
    %v2274 = vld [vmem:[#allocation11 + $0xe0] sm:$0xf]
    %v2275 = vld [vmem:[#allocation11 + $0xe4] sm:$0xf]
    %v2276 = vld [vmem:[#allocation11 + $0xe8] sm:$0xf]
    %v2277 = vld [vmem:[#allocation11 + $0xec] sm:$0xf]
    %v2278 = vld [vmem:[#allocation11 + $0xf0] sm:$0xf]
    %v2279 = vld [vmem:[#allocation11 + $0xf4] sm:$0xf]
    %v2280 = vld [vmem:[#allocation11 + $0xf8] sm:$0xf]
    %v2281 = vld [vmem:[#allocation11 + $0xfc] sm:$0xf]
    %v2282 = vld [vmem:[#allocation11 + $0x100] sm:$0xf]
    %v2283 = vld [vmem:[#allocation11 + $0x104] sm:$0xf]
    %v2284 = vld [vmem:[#allocation11 + $0x108] sm:$0xf]
    %v2285 = vld [vmem:[#allocation11 + $0x10c] sm:$0xf]
    %v2286 = vld [vmem:[#allocation11 + $0x110] sm:$0xf]
    %v2287 = vld [vmem:[#allocation11 + $0x114] sm:$0xf]
    %v2288 = vld [vmem:[#allocation11 + $0x118] sm:$0xf]
    %v2289 = vld [vmem:[#allocation11 + $0x11c] sm:$0xf]
    %v2290 = vld [vmem:[#allocation11 + $0x120] sm:$0xf]
    %v2291 = vld [vmem:[#allocation11 + $0x124] sm:$0xf]
    %v2292 = vld [vmem:[#allocation11 + $0x128] sm:$0xf]
    %v2293 = vld [vmem:[#allocation11 + $0x12c] sm:$0xf]
    %v2294 = vld [vmem:[#allocation11 + $0x130] sm:$0xf]
    %v2295 = vld [vmem:[#allocation11 + $0x134] sm:$0xf]
    %v2296 = vld [vmem:[#allocation11 + $0x138] sm:$0xf]
    %v2297 = vld [vmem:[#allocation11 + $0x13c] sm:$0xf]
    %v2298 = vld [vmem:[#allocation11 + $0x140] sm:$0xf]
    %v2299 = vld [vmem:[#allocation11 + $0x144] sm:$0xf]
    %v2300 = vld [vmem:[#allocation11 + $0x148] sm:$0xf]
    %v2301 = vld [vmem:[#allocation11 + $0x14c] sm:$0xf]
    %v2302 = vld [vmem:[#allocation11 + $0x150] sm:$0xf]
    %v2303 = vld [vmem:[#allocation11 + $0x154] sm:$0xf]
    %v2304 = vld [vmem:[#allocation11 + $0x158] sm:$0xf]
    %v2305 = vld [vmem:[#allocation11 + $0x15c] sm:$0xf]
    %v2306 = vld [vmem:[#allocation11 + $0x160] sm:$0xf]
    %v2307 = vld [vmem:[#allocation11 + $0x164] sm:$0xf]
    %v2308 = vld [vmem:[#allocation11 + $0x168] sm:$0xf]
    %v2309 = vld [vmem:[#allocation11 + $0x16c] sm:$0xf]
    %v2310 = vld [vmem:[#allocation11 + $0x170] sm:$0xf]
    %v2311 = vld [vmem:[#allocation11 + $0x174] sm:$0xf]
    %v2312 = vld [vmem:[#allocation11 + $0x178] sm:$0xf]
    %v2313 = vld [vmem:[#allocation11 + $0x17c] sm:$0xf]
    %v2314 = vld [vmem:[#allocation11 + $0x180] sm:$0xf]
    %v2315 = vld [vmem:[#allocation11 + $0x184] sm:$0xf]
    %v2316 = vld [vmem:[#allocation11 + $0x188] sm:$0xf]
    %v2317 = vld [vmem:[#allocation11 + $0x18c] sm:$0xf]
    %v2318 = vld [vmem:[#allocation11 + $0x190] sm:$0xf]
    %v2319 = vld [vmem:[#allocation11 + $0x194] sm:$0xf]
    %v2320 = vld [vmem:[#allocation11 + $0x198] sm:$0xf]
    %v2321 = vld [vmem:[#allocation11 + $0x19c] sm:$0xf]
    %v2322 = vld [vmem:[#allocation11 + $0x1a0] sm:$0xf]
    %v2323 = vld [vmem:[#allocation11 + $0x1a4] sm:$0xf]
    %v2324 = vld [vmem:[#allocation11 + $0x1a8] sm:$0xf]
    %v2325 = vld [vmem:[#allocation11 + $0x1ac] sm:$0xf]
    %v2326 = vld [vmem:[#allocation11 + $0x1b0] sm:$0xf]
    %v2327 = vld [vmem:[#allocation11 + $0x1b4] sm:$0xf]
    %v2328 = vld [vmem:[#allocation11 + $0x1b8] sm:$0xf]
    %v2329 = vld [vmem:[#allocation11 + $0x1bc] sm:$0xf]
    %v2330 = vld [vmem:[#allocation11 + $0x1c0] sm:$0xf]
    %v2331 = vld [vmem:[#allocation11 + $0x1c4] sm:$0xf]
    %v2332 = vld [vmem:[#allocation11 + $0x1c8] sm:$0xf]
    %v2333 = vld [vmem:[#allocation11 + $0x1cc] sm:$0xf]
    %v2334 = vld [vmem:[#allocation11 + $0x1d0] sm:$0xf]
    %v2335 = vld [vmem:[#allocation11 + $0x1d4] sm:$0xf]
    %v2336 = vld [vmem:[#allocation11 + $0x1d8] sm:$0xf]
    %v2337 = vld [vmem:[#allocation11 + $0x1dc] sm:$0xf]
    %v2338 = vld [vmem:[#allocation11 + $0x1e0] sm:$0xf]
    %v2339 = vld [vmem:[#allocation11 + $0x1e4] sm:$0xf]
    %v2340 = vld [vmem:[#allocation11 + $0x1e8] sm:$0xf]
    %v2341 = vld [vmem:[#allocation11 + $0x1ec] sm:$0xf]
    %v2342 = vld [vmem:[#allocation11 + $0x1f0] sm:$0xf]
    %v2343 = vld [vmem:[#allocation11 + $0x1f4] sm:$0xf]
    %v2344 = vld [vmem:[#allocation11 + $0x1f8] sm:$0xf]
    %v2345 = vld [vmem:[#allocation11 + $0x1fc] sm:$0xf]
    %v2346 = vld [vmem:[#allocation11 + $0x200] sm:$0xf]
    %v2347 = vld [vmem:[#allocation11 + $0x204] sm:$0xf]
    %v2348 = vld [vmem:[#allocation11 + $0x208] sm:$0xf]
    %v2349 = vld [vmem:[#allocation11 + $0x20c] sm:$0xf]
    %v2350 = vld [vmem:[#allocation11 + $0x210] sm:$0xf]
    %v2351 = vld [vmem:[#allocation11 + $0x214] sm:$0xf]
    %v2352 = vld [vmem:[#allocation11 + $0x218] sm:$0xf]
    %v2353 = vld [vmem:[#allocation11 + $0x21c] sm:$0xf]
    %v2354 = vld [vmem:[#allocation11 + $0x220] sm:$0xf]
    %v2355 = vld [vmem:[#allocation11 + $0x224] sm:$0xf]
    %v2356 = vld [vmem:[#allocation11 + $0x228] sm:$0xf]
    %v2357 = vld [vmem:[#allocation11 + $0x22c] sm:$0xf]
    %v2358 = vld [vmem:[#allocation11 + $0x230] sm:$0xf]
    %v2359 = vld [vmem:[#allocation11 + $0x234] sm:$0xf]
    %v2360 = vld [vmem:[#allocation11 + $0x238] sm:$0xf]
    %v2361 = vld [vmem:[#allocation11 + $0x23c] sm:$0xf]
    %v2362 = vld [vmem:[#allocation11 + $0x240] sm:$0xf]
    %v2363 = vld [vmem:[#allocation11 + $0x244] sm:$0xf]
    %v2364 = vld [vmem:[#allocation11 + $0x248] sm:$0xf]
    %v2365 = vld [vmem:[#allocation11 + $0x24c] sm:$0xf]
    %v2366 = vld [vmem:[#allocation11 + $0x250] sm:$0xf]
    %v2367 = vld [vmem:[#allocation11 + $0x254] sm:$0xf]
    %v2368 = vld [vmem:[#allocation11 + $0x258] sm:$0xf]
    %v2369 = vld [vmem:[#allocation11 + $0x25c] sm:$0xf]
    %v2370 = vld [vmem:[#allocation11 + $0x260] sm:$0xf]
    %v2371 = vld [vmem:[#allocation11 + $0x264] sm:$0xf]
    %v2372 = vld [vmem:[#allocation11 + $0x268] sm:$0xf]
    %v2373 = vld [vmem:[#allocation11 + $0x26c] sm:$0xf]
    %v2374 = vld [vmem:[#allocation11 + $0x270] sm:$0xf]
    %v2375 = vld [vmem:[#allocation11 + $0x274] sm:$0xf]
    %v2376 = vld [vmem:[#allocation11 + $0x278] sm:$0xf]
    %v2377 = vld [vmem:[#allocation11 + $0x27c] sm:$0xf]
    %v2378 = vld [vmem:[#allocation11 + $0x280] sm:$0xf]
    %v2379 = vld [vmem:[#allocation11 + $0x284] sm:$0xf]
    %v2380 = vld [vmem:[#allocation11 + $0x288] sm:$0xf]
    %v2381 = vld [vmem:[#allocation11 + $0x28c] sm:$0xf]
    %v2382 = vld [vmem:[#allocation11 + $0x290] sm:$0xf]
    %v2383 = vld [vmem:[#allocation11 + $0x294] sm:$0xf]
    %v2384 = vld [vmem:[#allocation11 + $0x298] sm:$0xf]
    %v2385 = vld [vmem:[#allocation11 + $0x29c] sm:$0xf]
    %v2386 = vld [vmem:[#allocation11 + $0x2a0] sm:$0xf]
    %v2387 = vld [vmem:[#allocation11 + $0x2a4] sm:$0xf]
    %v2388 = vld [vmem:[#allocation11 + $0x2a8] sm:$0xf]
    %v2389 = vld [vmem:[#allocation11 + $0x2ac] sm:$0xf]
    %v2390 = vld [vmem:[#allocation11 + $0x2b0] sm:$0xf]
    %v2391 = vld [vmem:[#allocation11 + $0x2b4] sm:$0xf]
    %v2392 = vld [vmem:[#allocation11 + $0x2b8] sm:$0xf]
    %v2393 = vld [vmem:[#allocation11 + $0x2bc] sm:$0xf]
    %v2394 = vld [vmem:[#allocation11 + $0x2c0] sm:$0xf]
    %v2395 = vld [vmem:[#allocation11 + $0x2c4] sm:$0xf]
    %v2396 = vld [vmem:[#allocation11 + $0x2c8] sm:$0xf]
    %v2397 = vld [vmem:[#allocation11 + $0x2cc] sm:$0xf]
    %v2398 = vld [vmem:[#allocation11 + $0x2d0] sm:$0xf]
    %v2399 = vld [vmem:[#allocation11 + $0x2d4] sm:$0xf]
    %v2400 = vld [vmem:[#allocation11 + $0x2d8] sm:$0xf]
    %v2401 = vld [vmem:[#allocation11 + $0x2dc] sm:$0xf]
    %v2402 = vld [vmem:[#allocation11 + $0x2e0] sm:$0xf]
    %v2403 = vld [vmem:[#allocation11 + $0x2e4] sm:$0xf]
    %v2404 = vld [vmem:[#allocation11 + $0x2e8] sm:$0xf]
    %v2405 = vld [vmem:[#allocation11 + $0x2ec] sm:$0xf]
    %v2406 = vld [vmem:[#allocation11 + $0x2f0] sm:$0xf]
    %v2407 = vld [vmem:[#allocation11 + $0x2f4] sm:$0xf]
    %v2408 = vld [vmem:[#allocation11 + $0x2f8] sm:$0xf]
    %v2409 = vld [vmem:[#allocation11 + $0x2fc] sm:$0xf]
    %v2410 = vld [vmem:[#allocation11 + $0x300] sm:$0xf]
    %v2411 = vld [vmem:[#allocation11 + $0x304] sm:$0xf]
    %v2412 = vld [vmem:[#allocation11 + $0x308] sm:$0xf]
    %v2413 = vld [vmem:[#allocation11 + $0x30c] sm:$0xf]
    %v2414 = vld [vmem:[#allocation11 + $0x310] sm:$0xf]
    %v2415 = vld [vmem:[#allocation11 + $0x314] sm:$0xf]
    %v2416 = vld [vmem:[#allocation11 + $0x318] sm:$0xf]
    %v2417 = vld [vmem:[#allocation11 + $0x31c] sm:$0xf]
    %v2418 = vld [vmem:[#allocation11 + $0x320] sm:$0xf]
    %v2419 = vld [vmem:[#allocation11 + $0x324] sm:$0xf]
    %v2420 = vld [vmem:[#allocation11 + $0x328] sm:$0xf]
    %v2421 = vld [vmem:[#allocation11 + $0x32c] sm:$0xf]
    %v2422 = vld [vmem:[#allocation11 + $0x330] sm:$0xf]
    %v2423 = vld [vmem:[#allocation11 + $0x334] sm:$0xf]
    %v2424 = vld [vmem:[#allocation11 + $0x338] sm:$0xf]
    %v2425 = vld [vmem:[#allocation11 + $0x33c] sm:$0xf]
    %v2426 = vld [vmem:[#allocation11 + $0x340] sm:$0xf]
    %v2427 = vld [vmem:[#allocation11 + $0x344] sm:$0xf]
    %v2428 = vld [vmem:[#allocation11 + $0x348] sm:$0xf]
    %v2429 = vld [vmem:[#allocation11 + $0x34c] sm:$0xf]
    %v2430 = vld [vmem:[#allocation11 + $0x350] sm:$0xf]
    %v2431 = vld [vmem:[#allocation11 + $0x354] sm:$0xf]
    %v2432 = vld [vmem:[#allocation11 + $0x358] sm:$0xf]
    %v2433 = vld [vmem:[#allocation11 + $0x35c] sm:$0xf]
    %v2434 = vld [vmem:[#allocation11 + $0x360] sm:$0xf]
    %v2435 = vld [vmem:[#allocation11 + $0x364] sm:$0xf]
    %v2436 = vld [vmem:[#allocation11 + $0x368] sm:$0xf]
    %v2437 = vld [vmem:[#allocation11 + $0x36c] sm:$0xf]
    %v2438 = vld [vmem:[#allocation11 + $0x370] sm:$0xf]
    %v2439 = vld [vmem:[#allocation11 + $0x374] sm:$0xf]
    %v2440 = vld [vmem:[#allocation11 + $0x378] sm:$0xf]
    %v2441 = vld [vmem:[#allocation11 + $0x37c] sm:$0xf]
    %v2442 = vld [vmem:[#allocation11 + $0x380] sm:$0xf]
    %v2443 = vld [vmem:[#allocation11 + $0x384] sm:$0xf]
    %v2444 = vld [vmem:[#allocation11 + $0x388] sm:$0xf]
    %v2445 = vld [vmem:[#allocation11 + $0x38c] sm:$0xf]
    %v2446 = vld [vmem:[#allocation11 + $0x390] sm:$0xf]
    %v2447 = vld [vmem:[#allocation11 + $0x394] sm:$0xf]
    %v2448 = vld [vmem:[#allocation11 + $0x398] sm:$0xf]
    %v2449 = vld [vmem:[#allocation11 + $0x39c] sm:$0xf]
    %v2450 = vld [vmem:[#allocation11 + $0x3a0] sm:$0xf]
    %v2451 = vld [vmem:[#allocation11 + $0x3a4] sm:$0xf]
    %v2452 = vld [vmem:[#allocation11 + $0x3a8] sm:$0xf]
    %v2453 = vld [vmem:[#allocation11 + $0x3ac] sm:$0xf]
    %v2454 = vld [vmem:[#allocation11 + $0x3b0] sm:$0xf]
    %v2455 = vld [vmem:[#allocation11 + $0x3b4] sm:$0xf]
    %v2456 = vld [vmem:[#allocation11 + $0x3b8] sm:$0xf]
    %v2457 = vld [vmem:[#allocation11 + $0x3bc] sm:$0xf]
    %v2458 = vld [vmem:[#allocation11 + $0x3c0] sm:$0xf]
    %v2459 = vld [vmem:[#allocation11 + $0x3c4] sm:$0xf]
    %v2460 = vld [vmem:[#allocation11 + $0x3c8] sm:$0xf]
    %v2461 = vld [vmem:[#allocation11 + $0x3cc] sm:$0xf]
    %v2462 = vld [vmem:[#allocation11 + $0x3d0] sm:$0xf]
    %v2463 = vld [vmem:[#allocation11 + $0x3d4] sm:$0xf]
    %v2464 = vld [vmem:[#allocation11 + $0x3d8] sm:$0xf]
    %v2465 = vld [vmem:[#allocation11 + $0x3dc] sm:$0xf]
    %v2466 = vld [vmem:[#allocation11 + $0x3e0] sm:$0xf]
    %v2467 = vld [vmem:[#allocation11 + $0x3e4] sm:$0xf]
    %v2468 = vld [vmem:[#allocation11 + $0x3e8] sm:$0xf]
    %v2469 = vld [vmem:[#allocation11 + $0x3ec] sm:$0xf]
    %v2470 = vld [vmem:[#allocation11 + $0x3f0] sm:$0xf]
    %v2471 = vld [vmem:[#allocation11 + $0x3f4] sm:$0xf]
    %v2472 = vld [vmem:[#allocation11 + $0x3f8] sm:$0xf]
    %v2473 = vld [vmem:[#allocation11 + $0x3fc] sm:$0xf]
    %v2474 = vld [vmem:[%s15] sm:$0x1]
    %v2475 = vadd.f32 %v1815, %v1911
    %v2476 = vadd.f32 %v1816, %v1912
    %v2477 = vadd.f32 %v1817, %v1913
    %v2478 = vadd.f32 %v1818, %v1914
    %v2479 = vadd.f32 %v1819, %v1915
    %v2480 = vadd.f32 %v1820, %v1916
    %v2481 = vadd.f32 %v1821, %v1917
    %v2482 = vadd.f32 %v1822, %v1918
    %v2483 = vadd.f32 %v1823, %v1919
    %v2484 = vadd.f32 %v1824, %v1920
    %v2485 = vadd.f32 %v1825, %v1921
    %v2486 = vadd.f32 %v1826, %v1922
    %v2487 = vadd.f32 %v1827, %v1923
    %v2488 = vadd.f32 %v1828, %v1924
    %v2489 = vadd.f32 %v1829, %v1925
    %v2490 = vadd.f32 %v1830, %v1926
    %v2491 = vadd.f32 %v1831, %v1927
    %v2492 = vadd.f32 %v1832, %v1928
    %v2493 = vadd.f32 %v1833, %v1929
    %v2494 = vadd.f32 %v1834, %v1930
    %v2495 = vadd.f32 %v1835, %v1931
    %v2496 = vadd.f32 %v1836, %v1932
    %v2497 = vadd.f32 %v1837, %v1933
    %v2498 = vadd.f32 %v1838, %v1934
    %v2499 = vadd.f32 %v1839, %v1935
    %v2500 = vadd.f32 %v1840, %v1936
    %v2501 = vadd.f32 %v1841, %v1937
    %v2502 = vadd.f32 %v1842, %v1938
    %v2503 = vadd.f32 %v1843, %v1939
    %v2504 = vadd.f32 %v1844, %v1940
    %v2505 = vadd.f32 %v1845, %v1941
    %v2506 = vadd.f32 %v1846, %v1942
    %v2507 = vpack.c.bf16 %v2476, %v2475
    %v2508 = vpack.c.bf16 %v2478, %v2477
    %v2509 = vpack.c.bf16 %v2480, %v2479
    %v2510 = vpack.c.bf16 %v2482, %v2481
    %v2511 = vpack.c.bf16 %v2484, %v2483
    %v2512 = vpack.c.bf16 %v2486, %v2485
    %v2513 = vpack.c.bf16 %v2488, %v2487
    %v2514 = vpack.c.bf16 %v2490, %v2489
    %v2515 = vpack.c.bf16 %v2492, %v2491
    %v2516 = vpack.c.bf16 %v2494, %v2493
    %v2517 = vpack.c.bf16 %v2496, %v2495
    %v2518 = vpack.c.bf16 %v2498, %v2497
    %v2519 = vpack.c.bf16 %v2500, %v2499
    %v2520 = vpack.c.bf16 %v2502, %v2501
    %v2521 = vpack.c.bf16 %v2504, %v2503
    %v2522 = vpack.c.bf16 %v2506, %v2505
    %v2524 = vperm.slane %v1959, 0
    %v2525 = vperm.slane %v1959, 1
    %v2544 = vunpack.c.l.b16 %v1943
    %v2545 = vunpack.c.h.b16 %v1943
    %v2546 = vunpack.c.l.b16 %v1944
    %v2547 = vunpack.c.h.b16 %v1944
    %v2548 = vunpack.c.l.b16 %v1945
    %v2549 = vunpack.c.h.b16 %v1945
    %v2550 = vunpack.c.l.b16 %v1946
    %v2551 = vunpack.c.h.b16 %v1946
    %v2552 = vunpack.c.l.b16 %v1947
    %v2553 = vunpack.c.h.b16 %v1947
    %v2554 = vunpack.c.l.b16 %v1948
    %v2555 = vunpack.c.h.b16 %v1948
    %v2556 = vunpack.c.l.b16 %v1949
    %v2557 = vunpack.c.h.b16 %v1949
    %v2558 = vunpack.c.l.b16 %v1950
    %v2559 = vunpack.c.h.b16 %v1950
    %v2560 = vunpack.c.l.b16 %v1951
    %v2561 = vunpack.c.h.b16 %v1951
    %v2562 = vunpack.c.l.b16 %v1952
    %v2563 = vunpack.c.h.b16 %v1952
    %v2564 = vunpack.c.l.b16 %v1953
    %v2565 = vunpack.c.h.b16 %v1953
    %v2566 = vunpack.c.l.b16 %v1954
    %v2567 = vunpack.c.h.b16 %v1954
    %v2568 = vunpack.c.l.b16 %v1955
    %v2569 = vunpack.c.h.b16 %v1955
    %v2570 = vunpack.c.l.b16 %v1956
    %v2571 = vunpack.c.h.b16 %v1956
    %v2572 = vunpack.c.l.b16 %v1957
    %v2573 = vunpack.c.h.b16 %v1957
    %v2574 = vunpack.c.l.b16 %v1958
    %v2575 = vunpack.c.h.b16 %v1958
    %v2576 = vpack.c.b16 %v2546, %v2544
    %v2577 = vpack.c.b16 %v2547, %v2545
    %v2578 = vpack.c.b16 %v2550, %v2548
    %v2579 = vpack.c.b16 %v2551, %v2549
    %v2580 = vpack.c.b16 %v2554, %v2552
    %v2581 = vpack.c.b16 %v2555, %v2553
    %v2582 = vpack.c.b16 %v2558, %v2556
    %v2583 = vpack.c.b16 %v2559, %v2557
    %v2584 = vpack.c.b16 %v2562, %v2560
    %v2585 = vpack.c.b16 %v2563, %v2561
    %v2586 = vpack.c.b16 %v2566, %v2564
    %v2587 = vpack.c.b16 %v2567, %v2565
    %v2588 = vpack.c.b16 %v2570, %v2568
    %v2589 = vpack.c.b16 %v2571, %v2569
    %v2590 = vpack.c.b16 %v2574, %v2572
    %v2591 = vpack.c.b16 %v2575, %v2573
    %2608 = vmatpush.bf16.msra.mxu0 %v2590
    %2609 = vmatpush.bf16.msra.mxu0 %v2588
    %2610 = vmatpush.bf16.msra.mxu0 %v2586
    %2611 = vmatpush.bf16.msra.mxu0 %v2584
    %2612 = vmatpush.bf16.msra.mxu0 %v2582
    %2613 = vmatpush.bf16.msra.mxu0 %v2580
    %2614 = vmatpush.bf16.msra.mxu0 %v2578
    %2615 = vmatpush.bf16.msra.mxu0 %v2576
    %2616 = vmatmul.bf16.gmra.mxu0 %v2507
    %v2617 = vpop.f32.mrf.mxu0
    %v2618 = vadd.f32 %v2524, %v2617
    %v2619 = vpop.f32.mrf.mxu0
    %v2620 = vadd.f32 %v2524, %v2619
    %2621 = vmatmul.bf16.gmra.mxu0 %v2508
    %v2622 = vpop.f32.mrf.mxu0
    %v2623 = vadd.f32 %v2524, %v2622
    %v2624 = vpop.f32.mrf.mxu0
    %v2625 = vadd.f32 %v2524, %v2624
    %2626 = vmatmul.bf16.gmra.mxu0 %v2509
    %v2627 = vpop.f32.mrf.mxu0
    %v2628 = vadd.f32 %v2524, %v2627
    %v2629 = vpop.f32.mrf.mxu0
    %v2630 = vadd.f32 %v2524, %v2629
    %2631 = vmatmul.bf16.gmra.mxu0 %v2510
    %v2632 = vpop.f32.mrf.mxu0
    %v2633 = vadd.f32 %v2524, %v2632
    %v2634 = vpop.f32.mrf.mxu0
    %v2635 = vadd.f32 %v2524, %v2634
    %2636 = vmatmul.bf16.gmra.mxu0 %v2511
    %v2637 = vpop.f32.mrf.mxu0
    %v2638 = vadd.f32 %v2524, %v2637
    %v2639 = vpop.f32.mrf.mxu0
    %v2640 = vadd.f32 %v2524, %v2639
    %2641 = vmatmul.bf16.gmra.mxu0 %v2512
    %v2642 = vpop.f32.mrf.mxu0
    %v2643 = vadd.f32 %v2524, %v2642
    %v2644 = vpop.f32.mrf.mxu0
    %v2645 = vadd.f32 %v2524, %v2644
    %2646 = vmatmul.bf16.gmra.mxu0 %v2513
    %v2647 = vpop.f32.mrf.mxu0
    %v2648 = vadd.f32 %v2524, %v2647
    %v2649 = vpop.f32.mrf.mxu0
    %v2650 = vadd.f32 %v2524, %v2649
    %2651 = vmatmul.bf16.gmra.mxu0 %v2514
    %v2652 = vpop.f32.mrf.mxu0
    %v2653 = vadd.f32 %v2524, %v2652
    %v2654 = vpop.f32.mrf.mxu0
    %v2655 = vadd.f32 %v2524, %v2654
    %2656 = vmatmul.bf16.gmra.mxu0 %v2515
    %v2657 = vpop.f32.mrf.mxu0
    %v2658 = vadd.f32 %v2524, %v2657
    %v2659 = vpop.f32.mrf.mxu0
    %v2660 = vadd.f32 %v2524, %v2659
    %2661 = vmatmul.bf16.gmra.mxu0 %v2516
    %v2662 = vpop.f32.mrf.mxu0
    %v2663 = vadd.f32 %v2524, %v2662
    %v2664 = vpop.f32.mrf.mxu0
    %v2665 = vadd.f32 %v2524, %v2664
    %2666 = vmatmul.bf16.gmra.mxu0 %v2517
    %v2667 = vpop.f32.mrf.mxu0
    %v2668 = vadd.f32 %v2524, %v2667
    %v2669 = vpop.f32.mrf.mxu0
    %v2670 = vadd.f32 %v2524, %v2669
    %2671 = vmatmul.bf16.gmra.mxu0 %v2518
    %v2672 = vpop.f32.mrf.mxu0
    %v2673 = vadd.f32 %v2524, %v2672
    %v2674 = vpop.f32.mrf.mxu0
    %v2675 = vadd.f32 %v2524, %v2674
    %2676 = vmatmul.bf16.gmra.mxu0 %v2519
    %v2677 = vpop.f32.mrf.mxu0
    %v2678 = vadd.f32 %v2524, %v2677
    %v2679 = vpop.f32.mrf.mxu0
    %v2680 = vadd.f32 %v2524, %v2679
    %2681 = vmatmul.bf16.gmra.mxu0 %v2520
    %v2682 = vpop.f32.mrf.mxu0
    %v2683 = vadd.f32 %v2524, %v2682
    %v2684 = vpop.f32.mrf.mxu0
    %v2685 = vadd.f32 %v2524, %v2684
    %2686 = vmatmul.bf16.gmra.mxu0 %v2521
    %v2687 = vpop.f32.mrf.mxu0
    %v2688 = vadd.f32 %v2524, %v2687
    %v2689 = vpop.f32.mrf.mxu0
    %v2690 = vadd.f32 %v2524, %v2689
    %2691 = vmatmul.bf16.gmra.mxu0 %v2522
    %v2692 = vpop.f32.mrf.mxu0
    %v2693 = vadd.f32 %v2524, %v2692
    %v2694 = vpop.f32.mrf.mxu0
    %v2695 = vadd.f32 %v2524, %v2694
    %2696 = vdwg.mxu0
    %2697 = vmatpush.bf16.msra.mxu0 %v2591
    %2698 = vmatpush.bf16.msra.mxu0 %v2589
    %2699 = vmatpush.bf16.msra.mxu0 %v2587
    %2700 = vmatpush.bf16.msra.mxu0 %v2585
    %2701 = vmatpush.bf16.msra.mxu0 %v2583
    %2702 = vmatpush.bf16.msra.mxu0 %v2581
    %2703 = vmatpush.bf16.msra.mxu0 %v2579
    %2704 = vmatpush.bf16.msra.mxu0 %v2577
    %2705 = vmatmul.bf16.gmra.mxu0 %v2507
    %v2706 = vpop.f32.mrf.mxu0
    %v2707 = vadd.f32 %v2525, %v2706
    %v2708 = vpop.f32.mrf.mxu0
    %v2709 = vadd.f32 %v2525, %v2708
    %2710 = vmatmul.bf16.gmra.mxu0 %v2508
    %v2711 = vpop.f32.mrf.mxu0
    %v2712 = vadd.f32 %v2525, %v2711
    %v2713 = vpop.f32.mrf.mxu0
    %v2714 = vadd.f32 %v2525, %v2713
    %2715 = vmatmul.bf16.gmra.mxu0 %v2509
    %v2716 = vpop.f32.mrf.mxu0
    %v2717 = vadd.f32 %v2525, %v2716
    %v2718 = vpop.f32.mrf.mxu0
    %v2719 = vadd.f32 %v2525, %v2718
    %2720 = vmatmul.bf16.gmra.mxu0 %v2510
    %v2721 = vpop.f32.mrf.mxu0
    %v2722 = vadd.f32 %v2525, %v2721
    %v2723 = vpop.f32.mrf.mxu0
    %v2724 = vadd.f32 %v2525, %v2723
    %2725 = vmatmul.bf16.gmra.mxu0 %v2511
    %v2726 = vpop.f32.mrf.mxu0
    %v2727 = vadd.f32 %v2525, %v2726
    %v2728 = vpop.f32.mrf.mxu0
    %v2729 = vadd.f32 %v2525, %v2728
    %2730 = vmatmul.bf16.gmra.mxu0 %v2512
    %v2731 = vpop.f32.mrf.mxu0
    %v2732 = vadd.f32 %v2525, %v2731
    %v2733 = vpop.f32.mrf.mxu0
    %v2734 = vadd.f32 %v2525, %v2733
    %2735 = vmatmul.bf16.gmra.mxu0 %v2513
    %v2736 = vpop.f32.mrf.mxu0
    %v2737 = vadd.f32 %v2525, %v2736
    %v2738 = vpop.f32.mrf.mxu0
    %v2739 = vadd.f32 %v2525, %v2738
    %2740 = vmatmul.bf16.gmra.mxu0 %v2514
    %v2741 = vpop.f32.mrf.mxu0
    %v2742 = vadd.f32 %v2525, %v2741
    %v2743 = vpop.f32.mrf.mxu0
    %v2744 = vadd.f32 %v2525, %v2743
    %2745 = vmatmul.bf16.gmra.mxu0 %v2515
    %v2746 = vpop.f32.mrf.mxu0
    %v2747 = vadd.f32 %v2525, %v2746
    %v2748 = vpop.f32.mrf.mxu0
    %v2749 = vadd.f32 %v2525, %v2748
    %2750 = vmatmul.bf16.gmra.mxu0 %v2516
    %v2751 = vpop.f32.mrf.mxu0
    %v2752 = vadd.f32 %v2525, %v2751
    %v2753 = vpop.f32.mrf.mxu0
    %v2754 = vadd.f32 %v2525, %v2753
    %2755 = vmatmul.bf16.gmra.mxu0 %v2517
    %v2756 = vpop.f32.mrf.mxu0
    %v2757 = vadd.f32 %v2525, %v2756
    %v2758 = vpop.f32.mrf.mxu0
    %v2759 = vadd.f32 %v2525, %v2758
    %2760 = vmatmul.bf16.gmra.mxu0 %v2518
    %v2761 = vpop.f32.mrf.mxu0
    %v2762 = vadd.f32 %v2525, %v2761
    %v2763 = vpop.f32.mrf.mxu0
    %v2764 = vadd.f32 %v2525, %v2763
    %2765 = vmatmul.bf16.gmra.mxu0 %v2519
    %v2766 = vpop.f32.mrf.mxu0
    %v2767 = vadd.f32 %v2525, %v2766
    %v2768 = vpop.f32.mrf.mxu0
    %v2769 = vadd.f32 %v2525, %v2768
    %2770 = vmatmul.bf16.gmra.mxu0 %v2520
    %v2771 = vpop.f32.mrf.mxu0
    %v2772 = vadd.f32 %v2525, %v2771
    %v2773 = vpop.f32.mrf.mxu0
    %v2774 = vadd.f32 %v2525, %v2773
    %2775 = vmatmul.bf16.gmra.mxu0 %v2521
    %v2776 = vpop.f32.mrf.mxu0
    %v2777 = vadd.f32 %v2525, %v2776
    %v2778 = vpop.f32.mrf.mxu0
    %v2779 = vadd.f32 %v2525, %v2778
    %2780 = vmatmul.bf16.gmra.mxu0 %v2522
    %v2781 = vpop.f32.mrf.mxu0
    %v2782 = vadd.f32 %v2525, %v2781
    %v2783 = vpop.f32.mrf.mxu0
    %v2784 = vadd.f32 %v2525, %v2783
    %2785 = vdwg.mxu0
    %v2786 = vmax.f32 %v2618, 0.0
    %v2787 = vmax.f32 %v2707, 0.0
    %v2788 = vmax.f32 %v2620, 0.0
    %v2789 = vmax.f32 %v2709, 0.0
    %v2790 = vmax.f32 %v2623, 0.0
    %v2791 = vmax.f32 %v2712, 0.0
    %v2792 = vmax.f32 %v2625, 0.0
    %v2793 = vmax.f32 %v2714, 0.0
    %v2794 = vmax.f32 %v2628, 0.0
    %v2795 = vmax.f32 %v2717, 0.0
    %v2796 = vmax.f32 %v2630, 0.0
    %v2797 = vmax.f32 %v2719, 0.0
    %v2798 = vmax.f32 %v2633, 0.0
    %v2799 = vmax.f32 %v2722, 0.0
    %v2800 = vmax.f32 %v2635, 0.0
    %v2801 = vmax.f32 %v2724, 0.0
    %v2802 = vmax.f32 %v2638, 0.0
    %v2803 = vmax.f32 %v2727, 0.0
    %v2804 = vmax.f32 %v2640, 0.0
    %v2805 = vmax.f32 %v2729, 0.0
    %v2806 = vmax.f32 %v2643, 0.0
    %v2807 = vmax.f32 %v2732, 0.0
    %v2808 = vmax.f32 %v2645, 0.0
    %v2809 = vmax.f32 %v2734, 0.0
    %v2810 = vmax.f32 %v2648, 0.0
    %v2811 = vmax.f32 %v2737, 0.0
    %v2812 = vmax.f32 %v2650, 0.0
    %v2813 = vmax.f32 %v2739, 0.0
    %v2814 = vmax.f32 %v2653, 0.0
    %v2815 = vmax.f32 %v2742, 0.0
    %v2816 = vmax.f32 %v2655, 0.0
    %v2817 = vmax.f32 %v2744, 0.0
    %v2818 = vmax.f32 %v2658, 0.0
    %v2819 = vmax.f32 %v2747, 0.0
    %v2820 = vmax.f32 %v2660, 0.0
    %v2821 = vmax.f32 %v2749, 0.0
    %v2822 = vmax.f32 %v2663, 0.0
    %v2823 = vmax.f32 %v2752, 0.0
    %v2824 = vmax.f32 %v2665, 0.0
    %v2825 = vmax.f32 %v2754, 0.0
    %v2826 = vmax.f32 %v2668, 0.0
    %v2827 = vmax.f32 %v2757, 0.0
    %v2828 = vmax.f32 %v2670, 0.0
    %v2829 = vmax.f32 %v2759, 0.0
    %v2830 = vmax.f32 %v2673, 0.0
    %v2831 = vmax.f32 %v2762, 0.0
    %v2832 = vmax.f32 %v2675, 0.0
    %v2833 = vmax.f32 %v2764, 0.0
    %v2834 = vmax.f32 %v2678, 0.0
    %v2835 = vmax.f32 %v2767, 0.0
    %v2836 = vmax.f32 %v2680, 0.0
    %v2837 = vmax.f32 %v2769, 0.0
    %v2838 = vmax.f32 %v2683, 0.0
    %v2839 = vmax.f32 %v2772, 0.0
    %v2840 = vmax.f32 %v2685, 0.0
    %v2841 = vmax.f32 %v2774, 0.0
    %v2842 = vmax.f32 %v2688, 0.0
    %v2843 = vmax.f32 %v2777, 0.0
    %v2844 = vmax.f32 %v2690, 0.0
    %v2845 = vmax.f32 %v2779, 0.0
    %v2846 = vmax.f32 %v2693, 0.0
    %v2847 = vmax.f32 %v2782, 0.0
    %v2848 = vmax.f32 %v2695, 0.0
    %v2849 = vmax.f32 %v2784, 0.0
    %v2850 = vpack.c.bf16 %v2788, %v2786
    %v2851 = vpack.c.bf16 %v2789, %v2787
    %v2852 = vpack.c.bf16 %v2792, %v2790
    %v2853 = vpack.c.bf16 %v2793, %v2791
    %v2854 = vpack.c.bf16 %v2796, %v2794
    %v2855 = vpack.c.bf16 %v2797, %v2795
    %v2856 = vpack.c.bf16 %v2800, %v2798
    %v2857 = vpack.c.bf16 %v2801, %v2799
    %v2858 = vpack.c.bf16 %v2804, %v2802
    %v2859 = vpack.c.bf16 %v2805, %v2803
    %v2860 = vpack.c.bf16 %v2808, %v2806
    %v2861 = vpack.c.bf16 %v2809, %v2807
    %v2862 = vpack.c.bf16 %v2812, %v2810
    %v2863 = vpack.c.bf16 %v2813, %v2811
    %v2864 = vpack.c.bf16 %v2816, %v2814
    %v2865 = vpack.c.bf16 %v2817, %v2815
    %v2866 = vpack.c.bf16 %v2820, %v2818
    %v2867 = vpack.c.bf16 %v2821, %v2819
    %v2868 = vpack.c.bf16 %v2824, %v2822
    %v2869 = vpack.c.bf16 %v2825, %v2823
    %v2870 = vpack.c.bf16 %v2828, %v2826
    %v2871 = vpack.c.bf16 %v2829, %v2827
    %v2872 = vpack.c.bf16 %v2832, %v2830
    %v2873 = vpack.c.bf16 %v2833, %v2831
    %v2874 = vpack.c.bf16 %v2836, %v2834
    %v2875 = vpack.c.bf16 %v2837, %v2835
    %v2876 = vpack.c.bf16 %v2840, %v2838
    %v2877 = vpack.c.bf16 %v2841, %v2839
    %v2878 = vpack.c.bf16 %v2844, %v2842
    %v2879 = vpack.c.bf16 %v2845, %v2843
    %v2880 = vpack.c.bf16 %v2848, %v2846
    %v2881 = vpack.c.bf16 %v2849, %v2847
    %v2884 = vperm.slane %v2216, 0
    %v2885 = vperm.slane %v2216, 1
    %v2886 = vperm.slane %v2216, 2
    %v2887 = vperm.slane %v2216, 3
    %v2888 = vperm.slane %v2216, 4
    %v2889 = vperm.slane %v2216, 5
    %v2890 = vperm.slane %v2216, 6
    %v2891 = vperm.slane %v2216, 7
    %v2892 = vperm.slane %v2217, 0
    %v2893 = vperm.slane %v2217, 1
    %v2894 = vperm.slane %v2217, 2
    %v2895 = vperm.slane %v2217, 3
    %v2896 = vperm.slane %v2217, 4
    %v2897 = vperm.slane %v2217, 5
    %v2898 = vperm.slane %v2217, 6
    %v2899 = vperm.slane %v2217, 7
    %v3172 = vunpack.c.l.b16 %v1960
    %v3173 = vunpack.c.h.b16 %v1960
    %v3174 = vunpack.c.l.b16 %v1961
    %v3175 = vunpack.c.h.b16 %v1961
    %v3176 = vunpack.c.l.b16 %v1962
    %v3177 = vunpack.c.h.b16 %v1962
    %v3178 = vunpack.c.l.b16 %v1963
    %v3179 = vunpack.c.h.b16 %v1963
    %v3180 = vunpack.c.l.b16 %v1964
    %v3181 = vunpack.c.h.b16 %v1964
    %v3182 = vunpack.c.l.b16 %v1965
    %v3183 = vunpack.c.h.b16 %v1965
    %v3184 = vunpack.c.l.b16 %v1966
    %v3185 = vunpack.c.h.b16 %v1966
    %v3186 = vunpack.c.l.b16 %v1967
    %v3187 = vunpack.c.h.b16 %v1967
    %v3188 = vunpack.c.l.b16 %v1968
    %v3189 = vunpack.c.h.b16 %v1968
    %v3190 = vunpack.c.l.b16 %v1969
    %v3191 = vunpack.c.h.b16 %v1969
    %v3192 = vunpack.c.l.b16 %v1970
    %v3193 = vunpack.c.h.b16 %v1970
    %v3194 = vunpack.c.l.b16 %v1971
    %v3195 = vunpack.c.h.b16 %v1971
    %v3196 = vunpack.c.l.b16 %v1972
    %v3197 = vunpack.c.h.b16 %v1972
    %v3198 = vunpack.c.l.b16 %v1973
    %v3199 = vunpack.c.h.b16 %v1973
    %v3200 = vunpack.c.l.b16 %v1974
    %v3201 = vunpack.c.h.b16 %v1974
    %v3202 = vunpack.c.l.b16 %v1975
    %v3203 = vunpack.c.h.b16 %v1975
    %v3204 = vunpack.c.l.b16 %v1976
    %v3205 = vunpack.c.h.b16 %v1976
    %v3206 = vunpack.c.l.b16 %v1977
    %v3207 = vunpack.c.h.b16 %v1977
    %v3208 = vunpack.c.l.b16 %v1978
    %v3209 = vunpack.c.h.b16 %v1978
    %v3210 = vunpack.c.l.b16 %v1979
    %v3211 = vunpack.c.h.b16 %v1979
    %v3212 = vunpack.c.l.b16 %v1980
    %v3213 = vunpack.c.h.b16 %v1980
    %v3214 = vunpack.c.l.b16 %v1981
    %v3215 = vunpack.c.h.b16 %v1981
    %v3216 = vunpack.c.l.b16 %v1982
    %v3217 = vunpack.c.h.b16 %v1982
    %v3218 = vunpack.c.l.b16 %v1983
    %v3219 = vunpack.c.h.b16 %v1983
    %v3220 = vunpack.c.l.b16 %v1984
    %v3221 = vunpack.c.h.b16 %v1984
    %v3222 = vunpack.c.l.b16 %v1985
    %v3223 = vunpack.c.h.b16 %v1985
    %v3224 = vunpack.c.l.b16 %v1986
    %v3225 = vunpack.c.h.b16 %v1986
    %v3226 = vunpack.c.l.b16 %v1987
    %v3227 = vunpack.c.h.b16 %v1987
    %v3228 = vunpack.c.l.b16 %v1988
    %v3229 = vunpack.c.h.b16 %v1988
    %v3230 = vunpack.c.l.b16 %v1989
    %v3231 = vunpack.c.h.b16 %v1989
    %v3232 = vunpack.c.l.b16 %v1990
    %v3233 = vunpack.c.h.b16 %v1990
    %v3234 = vunpack.c.l.b16 %v1991
    %v3235 = vunpack.c.h.b16 %v1991
    %v3236 = vunpack.c.l.b16 %v1992
    %v3237 = vunpack.c.h.b16 %v1992
    %v3238 = vunpack.c.l.b16 %v1993
    %v3239 = vunpack.c.h.b16 %v1993
    %v3240 = vunpack.c.l.b16 %v1994
    %v3241 = vunpack.c.h.b16 %v1994
    %v3242 = vunpack.c.l.b16 %v1995
    %v3243 = vunpack.c.h.b16 %v1995
    %v3244 = vunpack.c.l.b16 %v1996
    %v3245 = vunpack.c.h.b16 %v1996
    %v3246 = vunpack.c.l.b16 %v1997
    %v3247 = vunpack.c.h.b16 %v1997
    %v3248 = vunpack.c.l.b16 %v1998
    %v3249 = vunpack.c.h.b16 %v1998
    %v3250 = vunpack.c.l.b16 %v1999
    %v3251 = vunpack.c.h.b16 %v1999
    %v3252 = vunpack.c.l.b16 %v2000
    %v3253 = vunpack.c.h.b16 %v2000
    %v3254 = vunpack.c.l.b16 %v2001
    %v3255 = vunpack.c.h.b16 %v2001
    %v3256 = vunpack.c.l.b16 %v2002
    %v3257 = vunpack.c.h.b16 %v2002
    %v3258 = vunpack.c.l.b16 %v2003
    %v3259 = vunpack.c.h.b16 %v2003
    %v3260 = vunpack.c.l.b16 %v2004
    %v3261 = vunpack.c.h.b16 %v2004
    %v3262 = vunpack.c.l.b16 %v2005
    %v3263 = vunpack.c.h.b16 %v2005
    %v3264 = vunpack.c.l.b16 %v2006
    %v3265 = vunpack.c.h.b16 %v2006
    %v3266 = vunpack.c.l.b16 %v2007
    %v3267 = vunpack.c.h.b16 %v2007
    %v3268 = vunpack.c.l.b16 %v2008
    %v3269 = vunpack.c.h.b16 %v2008
    %v3270 = vunpack.c.l.b16 %v2009
    %v3271 = vunpack.c.h.b16 %v2009
    %v3272 = vunpack.c.l.b16 %v2010
    %v3273 = vunpack.c.h.b16 %v2010
    %v3274 = vunpack.c.l.b16 %v2011
    %v3275 = vunpack.c.h.b16 %v2011
    %v3276 = vunpack.c.l.b16 %v2012
    %v3277 = vunpack.c.h.b16 %v2012
    %v3278 = vunpack.c.l.b16 %v2013
    %v3279 = vunpack.c.h.b16 %v2013
    %v3280 = vunpack.c.l.b16 %v2014
    %v3281 = vunpack.c.h.b16 %v2014
    %v3282 = vunpack.c.l.b16 %v2015
    %v3283 = vunpack.c.h.b16 %v2015
    %v3284 = vunpack.c.l.b16 %v2016
    %v3285 = vunpack.c.h.b16 %v2016
    %v3286 = vunpack.c.l.b16 %v2017
    %v3287 = vunpack.c.h.b16 %v2017
    %v3288 = vunpack.c.l.b16 %v2018
    %v3289 = vunpack.c.h.b16 %v2018
    %v3290 = vunpack.c.l.b16 %v2019
    %v3291 = vunpack.c.h.b16 %v2019
    %v3292 = vunpack.c.l.b16 %v2020
    %v3293 = vunpack.c.h.b16 %v2020
    %v3294 = vunpack.c.l.b16 %v2021
    %v3295 = vunpack.c.h.b16 %v2021
    %v3296 = vunpack.c.l.b16 %v2022
    %v3297 = vunpack.c.h.b16 %v2022
    %v3298 = vunpack.c.l.b16 %v2023
    %v3299 = vunpack.c.h.b16 %v2023
    %v3300 = vunpack.c.l.b16 %v2024
    %v3301 = vunpack.c.h.b16 %v2024
    %v3302 = vunpack.c.l.b16 %v2025
    %v3303 = vunpack.c.h.b16 %v2025
    %v3304 = vunpack.c.l.b16 %v2026
    %v3305 = vunpack.c.h.b16 %v2026
    %v3306 = vunpack.c.l.b16 %v2027
    %v3307 = vunpack.c.h.b16 %v2027
    %v3308 = vunpack.c.l.b16 %v2028
    %v3309 = vunpack.c.h.b16 %v2028
    %v3310 = vunpack.c.l.b16 %v2029
    %v3311 = vunpack.c.h.b16 %v2029
    %v3312 = vunpack.c.l.b16 %v2030
    %v3313 = vunpack.c.h.b16 %v2030
    %v3314 = vunpack.c.l.b16 %v2031
    %v3315 = vunpack.c.h.b16 %v2031
    %v3316 = vunpack.c.l.b16 %v2032
    %v3317 = vunpack.c.h.b16 %v2032
    %v3318 = vunpack.c.l.b16 %v2033
    %v3319 = vunpack.c.h.b16 %v2033
    %v3320 = vunpack.c.l.b16 %v2034
    %v3321 = vunpack.c.h.b16 %v2034
    %v3322 = vunpack.c.l.b16 %v2035
    %v3323 = vunpack.c.h.b16 %v2035
    %v3324 = vunpack.c.l.b16 %v2036
    %v3325 = vunpack.c.h.b16 %v2036
    %v3326 = vunpack.c.l.b16 %v2037
    %v3327 = vunpack.c.h.b16 %v2037
    %v3328 = vunpack.c.l.b16 %v2038
    %v3329 = vunpack.c.h.b16 %v2038
    %v3330 = vunpack.c.l.b16 %v2039
    %v3331 = vunpack.c.h.b16 %v2039
    %v3332 = vunpack.c.l.b16 %v2040
    %v3333 = vunpack.c.h.b16 %v2040
    %v3334 = vunpack.c.l.b16 %v2041
    %v3335 = vunpack.c.h.b16 %v2041
    %v3336 = vunpack.c.l.b16 %v2042
    %v3337 = vunpack.c.h.b16 %v2042
    %v3338 = vunpack.c.l.b16 %v2043
    %v3339 = vunpack.c.h.b16 %v2043
    %v3340 = vunpack.c.l.b16 %v2044
    %v3341 = vunpack.c.h.b16 %v2044
    %v3342 = vunpack.c.l.b16 %v2045
    %v3343 = vunpack.c.h.b16 %v2045
    %v3344 = vunpack.c.l.b16 %v2046
    %v3345 = vunpack.c.h.b16 %v2046
    %v3346 = vunpack.c.l.b16 %v2047
    %v3347 = vunpack.c.h.b16 %v2047
    %v3348 = vunpack.c.l.b16 %v2048
    %v3349 = vunpack.c.h.b16 %v2048
    %v3350 = vunpack.c.l.b16 %v2049
    %v3351 = vunpack.c.h.b16 %v2049
    %v3352 = vunpack.c.l.b16 %v2050
    %v3353 = vunpack.c.h.b16 %v2050
    %v3354 = vunpack.c.l.b16 %v2051
    %v3355 = vunpack.c.h.b16 %v2051
    %v3356 = vunpack.c.l.b16 %v2052
    %v3357 = vunpack.c.h.b16 %v2052
    %v3358 = vunpack.c.l.b16 %v2053
    %v3359 = vunpack.c.h.b16 %v2053
    %v3360 = vunpack.c.l.b16 %v2054
    %v3361 = vunpack.c.h.b16 %v2054
    %v3362 = vunpack.c.l.b16 %v2055
    %v3363 = vunpack.c.h.b16 %v2055
    %v3364 = vunpack.c.l.b16 %v2056
    %v3365 = vunpack.c.h.b16 %v2056
    %v3366 = vunpack.c.l.b16 %v2057
    %v3367 = vunpack.c.h.b16 %v2057
    %v3368 = vunpack.c.l.b16 %v2058
    %v3369 = vunpack.c.h.b16 %v2058
    %v3370 = vunpack.c.l.b16 %v2059
    %v3371 = vunpack.c.h.b16 %v2059
    %v3372 = vunpack.c.l.b16 %v2060
    %v3373 = vunpack.c.h.b16 %v2060
    %v3374 = vunpack.c.l.b16 %v2061
    %v3375 = vunpack.c.h.b16 %v2061
    %v3376 = vunpack.c.l.b16 %v2062
    %v3377 = vunpack.c.h.b16 %v2062
    %v3378 = vunpack.c.l.b16 %v2063
    %v3379 = vunpack.c.h.b16 %v2063
    %v3380 = vunpack.c.l.b16 %v2064
    %v3381 = vunpack.c.h.b16 %v2064
    %v3382 = vunpack.c.l.b16 %v2065
    %v3383 = vunpack.c.h.b16 %v2065
    %v3384 = vunpack.c.l.b16 %v2066
    %v3385 = vunpack.c.h.b16 %v2066
    %v3386 = vunpack.c.l.b16 %v2067
    %v3387 = vunpack.c.h.b16 %v2067
    %v3388 = vunpack.c.l.b16 %v2068
    %v3389 = vunpack.c.h.b16 %v2068
    %v3390 = vunpack.c.l.b16 %v2069
    %v3391 = vunpack.c.h.b16 %v2069
    %v3392 = vunpack.c.l.b16 %v2070
    %v3393 = vunpack.c.h.b16 %v2070
    %v3394 = vunpack.c.l.b16 %v2071
    %v3395 = vunpack.c.h.b16 %v2071
    %v3396 = vunpack.c.l.b16 %v2072
    %v3397 = vunpack.c.h.b16 %v2072
    %v3398 = vunpack.c.l.b16 %v2073
    %v3399 = vunpack.c.h.b16 %v2073
    %v3400 = vunpack.c.l.b16 %v2074
    %v3401 = vunpack.c.h.b16 %v2074
    %v3402 = vunpack.c.l.b16 %v2075
    %v3403 = vunpack.c.h.b16 %v2075
    %v3404 = vunpack.c.l.b16 %v2076
    %v3405 = vunpack.c.h.b16 %v2076
    %v3406 = vunpack.c.l.b16 %v2077
    %v3407 = vunpack.c.h.b16 %v2077
    %v3408 = vunpack.c.l.b16 %v2078
    %v3409 = vunpack.c.h.b16 %v2078
    %v3410 = vunpack.c.l.b16 %v2079
    %v3411 = vunpack.c.h.b16 %v2079
    %v3412 = vunpack.c.l.b16 %v2080
    %v3413 = vunpack.c.h.b16 %v2080
    %v3414 = vunpack.c.l.b16 %v2081
    %v3415 = vunpack.c.h.b16 %v2081
    %v3416 = vunpack.c.l.b16 %v2082
    %v3417 = vunpack.c.h.b16 %v2082
    %v3418 = vunpack.c.l.b16 %v2083
    %v3419 = vunpack.c.h.b16 %v2083
    %v3420 = vunpack.c.l.b16 %v2084
    %v3421 = vunpack.c.h.b16 %v2084
    %v3422 = vunpack.c.l.b16 %v2085
    %v3423 = vunpack.c.h.b16 %v2085
    %v3424 = vunpack.c.l.b16 %v2086
    %v3425 = vunpack.c.h.b16 %v2086
    %v3426 = vunpack.c.l.b16 %v2087
    %v3427 = vunpack.c.h.b16 %v2087
    %v3428 = vunpack.c.l.b16 %v2088
    %v3429 = vunpack.c.h.b16 %v2088
    %v3430 = vunpack.c.l.b16 %v2089
    %v3431 = vunpack.c.h.b16 %v2089
    %v3432 = vunpack.c.l.b16 %v2090
    %v3433 = vunpack.c.h.b16 %v2090
    %v3434 = vunpack.c.l.b16 %v2091
    %v3435 = vunpack.c.h.b16 %v2091
    %v3436 = vunpack.c.l.b16 %v2092
    %v3437 = vunpack.c.h.b16 %v2092
    %v3438 = vunpack.c.l.b16 %v2093
    %v3439 = vunpack.c.h.b16 %v2093
    %v3440 = vunpack.c.l.b16 %v2094
    %v3441 = vunpack.c.h.b16 %v2094
    %v3442 = vunpack.c.l.b16 %v2095
    %v3443 = vunpack.c.h.b16 %v2095
    %v3444 = vunpack.c.l.b16 %v2096
    %v3445 = vunpack.c.h.b16 %v2096
    %v3446 = vunpack.c.l.b16 %v2097
    %v3447 = vunpack.c.h.b16 %v2097
    %v3448 = vunpack.c.l.b16 %v2098
    %v3449 = vunpack.c.h.b16 %v2098
    %v3450 = vunpack.c.l.b16 %v2099
    %v3451 = vunpack.c.h.b16 %v2099
    %v3452 = vunpack.c.l.b16 %v2100
    %v3453 = vunpack.c.h.b16 %v2100
    %v3454 = vunpack.c.l.b16 %v2101
    %v3455 = vunpack.c.h.b16 %v2101
    %v3456 = vunpack.c.l.b16 %v2102
    %v3457 = vunpack.c.h.b16 %v2102
    %v3458 = vunpack.c.l.b16 %v2103
    %v3459 = vunpack.c.h.b16 %v2103
    %v3460 = vunpack.c.l.b16 %v2104
    %v3461 = vunpack.c.h.b16 %v2104
    %v3462 = vunpack.c.l.b16 %v2105
    %v3463 = vunpack.c.h.b16 %v2105
    %v3464 = vunpack.c.l.b16 %v2106
    %v3465 = vunpack.c.h.b16 %v2106
    %v3466 = vunpack.c.l.b16 %v2107
    %v3467 = vunpack.c.h.b16 %v2107
    %v3468 = vunpack.c.l.b16 %v2108
    %v3469 = vunpack.c.h.b16 %v2108
    %v3470 = vunpack.c.l.b16 %v2109
    %v3471 = vunpack.c.h.b16 %v2109
    %v3472 = vunpack.c.l.b16 %v2110
    %v3473 = vunpack.c.h.b16 %v2110
    %v3474 = vunpack.c.l.b16 %v2111
    %v3475 = vunpack.c.h.b16 %v2111
    %v3476 = vunpack.c.l.b16 %v2112
    %v3477 = vunpack.c.h.b16 %v2112
    %v3478 = vunpack.c.l.b16 %v2113
    %v3479 = vunpack.c.h.b16 %v2113
    %v3480 = vunpack.c.l.b16 %v2114
    %v3481 = vunpack.c.h.b16 %v2114
    %v3482 = vunpack.c.l.b16 %v2115
    %v3483 = vunpack.c.h.b16 %v2115
    %v3484 = vunpack.c.l.b16 %v2116
    %v3485 = vunpack.c.h.b16 %v2116
    %v3486 = vunpack.c.l.b16 %v2117
    %v3487 = vunpack.c.h.b16 %v2117
    %v3488 = vunpack.c.l.b16 %v2118
    %v3489 = vunpack.c.h.b16 %v2118
    %v3490 = vunpack.c.l.b16 %v2119
    %v3491 = vunpack.c.h.b16 %v2119
    %v3492 = vunpack.c.l.b16 %v2120
    %v3493 = vunpack.c.h.b16 %v2120
    %v3494 = vunpack.c.l.b16 %v2121
    %v3495 = vunpack.c.h.b16 %v2121
    %v3496 = vunpack.c.l.b16 %v2122
    %v3497 = vunpack.c.h.b16 %v2122
    %v3498 = vunpack.c.l.b16 %v2123
    %v3499 = vunpack.c.h.b16 %v2123
    %v3500 = vunpack.c.l.b16 %v2124
    %v3501 = vunpack.c.h.b16 %v2124
    %v3502 = vunpack.c.l.b16 %v2125
    %v3503 = vunpack.c.h.b16 %v2125
    %v3504 = vunpack.c.l.b16 %v2126
    %v3505 = vunpack.c.h.b16 %v2126
    %v3506 = vunpack.c.l.b16 %v2127
    %v3507 = vunpack.c.h.b16 %v2127
    %v3508 = vunpack.c.l.b16 %v2128
    %v3509 = vunpack.c.h.b16 %v2128
    %v3510 = vunpack.c.l.b16 %v2129
    %v3511 = vunpack.c.h.b16 %v2129
    %v3512 = vunpack.c.l.b16 %v2130
    %v3513 = vunpack.c.h.b16 %v2130
    %v3514 = vunpack.c.l.b16 %v2131
    %v3515 = vunpack.c.h.b16 %v2131
    %v3516 = vunpack.c.l.b16 %v2132
    %v3517 = vunpack.c.h.b16 %v2132
    %v3518 = vunpack.c.l.b16 %v2133
    %v3519 = vunpack.c.h.b16 %v2133
    %v3520 = vunpack.c.l.b16 %v2134
    %v3521 = vunpack.c.h.b16 %v2134
    %v3522 = vunpack.c.l.b16 %v2135
    %v3523 = vunpack.c.h.b16 %v2135
    %v3524 = vunpack.c.l.b16 %v2136
    %v3525 = vunpack.c.h.b16 %v2136
    %v3526 = vunpack.c.l.b16 %v2137
    %v3527 = vunpack.c.h.b16 %v2137
    %v3528 = vunpack.c.l.b16 %v2138
    %v3529 = vunpack.c.h.b16 %v2138
    %v3530 = vunpack.c.l.b16 %v2139
    %v3531 = vunpack.c.h.b16 %v2139
    %v3532 = vunpack.c.l.b16 %v2140
    %v3533 = vunpack.c.h.b16 %v2140
    %v3534 = vunpack.c.l.b16 %v2141
    %v3535 = vunpack.c.h.b16 %v2141
    %v3536 = vunpack.c.l.b16 %v2142
    %v3537 = vunpack.c.h.b16 %v2142
    %v3538 = vunpack.c.l.b16 %v2143
    %v3539 = vunpack.c.h.b16 %v2143
    %v3540 = vunpack.c.l.b16 %v2144
    %v3541 = vunpack.c.h.b16 %v2144
    %v3542 = vunpack.c.l.b16 %v2145
    %v3543 = vunpack.c.h.b16 %v2145
    %v3544 = vunpack.c.l.b16 %v2146
    %v3545 = vunpack.c.h.b16 %v2146
    %v3546 = vunpack.c.l.b16 %v2147
    %v3547 = vunpack.c.h.b16 %v2147
    %v3548 = vunpack.c.l.b16 %v2148
    %v3549 = vunpack.c.h.b16 %v2148
    %v3550 = vunpack.c.l.b16 %v2149
    %v3551 = vunpack.c.h.b16 %v2149
    %v3552 = vunpack.c.l.b16 %v2150
    %v3553 = vunpack.c.h.b16 %v2150
    %v3554 = vunpack.c.l.b16 %v2151
    %v3555 = vunpack.c.h.b16 %v2151
    %v3556 = vunpack.c.l.b16 %v2152
    %v3557 = vunpack.c.h.b16 %v2152
    %v3558 = vunpack.c.l.b16 %v2153
    %v3559 = vunpack.c.h.b16 %v2153
    %v3560 = vunpack.c.l.b16 %v2154
    %v3561 = vunpack.c.h.b16 %v2154
    %v3562 = vunpack.c.l.b16 %v2155
    %v3563 = vunpack.c.h.b16 %v2155
    %v3564 = vunpack.c.l.b16 %v2156
    %v3565 = vunpack.c.h.b16 %v2156
    %v3566 = vunpack.c.l.b16 %v2157
    %v3567 = vunpack.c.h.b16 %v2157
    %v3568 = vunpack.c.l.b16 %v2158
    %v3569 = vunpack.c.h.b16 %v2158
    %v3570 = vunpack.c.l.b16 %v2159
    %v3571 = vunpack.c.h.b16 %v2159
    %v3572 = vunpack.c.l.b16 %v2160
    %v3573 = vunpack.c.h.b16 %v2160
    %v3574 = vunpack.c.l.b16 %v2161
    %v3575 = vunpack.c.h.b16 %v2161
    %v3576 = vunpack.c.l.b16 %v2162
    %v3577 = vunpack.c.h.b16 %v2162
    %v3578 = vunpack.c.l.b16 %v2163
    %v3579 = vunpack.c.h.b16 %v2163
    %v3580 = vunpack.c.l.b16 %v2164
    %v3581 = vunpack.c.h.b16 %v2164
    %v3582 = vunpack.c.l.b16 %v2165
    %v3583 = vunpack.c.h.b16 %v2165
    %v3584 = vunpack.c.l.b16 %v2166
    %v3585 = vunpack.c.h.b16 %v2166
    %v3586 = vunpack.c.l.b16 %v2167
    %v3587 = vunpack.c.h.b16 %v2167
    %v3588 = vunpack.c.l.b16 %v2168
    %v3589 = vunpack.c.h.b16 %v2168
    %v3590 = vunpack.c.l.b16 %v2169
    %v3591 = vunpack.c.h.b16 %v2169
    %v3592 = vunpack.c.l.b16 %v2170
    %v3593 = vunpack.c.h.b16 %v2170
    %v3594 = vunpack.c.l.b16 %v2171
    %v3595 = vunpack.c.h.b16 %v2171
    %v3596 = vunpack.c.l.b16 %v2172
    %v3597 = vunpack.c.h.b16 %v2172
    %v3598 = vunpack.c.l.b16 %v2173
    %v3599 = vunpack.c.h.b16 %v2173
    %v3600 = vunpack.c.l.b16 %v2174
    %v3601 = vunpack.c.h.b16 %v2174
    %v3602 = vunpack.c.l.b16 %v2175
    %v3603 = vunpack.c.h.b16 %v2175
    %v3604 = vunpack.c.l.b16 %v2176
    %v3605 = vunpack.c.h.b16 %v2176
    %v3606 = vunpack.c.l.b16 %v2177
    %v3607 = vunpack.c.h.b16 %v2177
    %v3608 = vunpack.c.l.b16 %v2178
    %v3609 = vunpack.c.h.b16 %v2178
    %v3610 = vunpack.c.l.b16 %v2179
    %v3611 = vunpack.c.h.b16 %v2179
    %v3612 = vunpack.c.l.b16 %v2180
    %v3613 = vunpack.c.h.b16 %v2180
    %v3614 = vunpack.c.l.b16 %v2181
    %v3615 = vunpack.c.h.b16 %v2181
    %v3616 = vunpack.c.l.b16 %v2182
    %v3617 = vunpack.c.h.b16 %v2182
    %v3618 = vunpack.c.l.b16 %v2183
    %v3619 = vunpack.c.h.b16 %v2183
    %v3620 = vunpack.c.l.b16 %v2184
    %v3621 = vunpack.c.h.b16 %v2184
    %v3622 = vunpack.c.l.b16 %v2185
    %v3623 = vunpack.c.h.b16 %v2185
    %v3624 = vunpack.c.l.b16 %v2186
    %v3625 = vunpack.c.h.b16 %v2186
    %v3626 = vunpack.c.l.b16 %v2187
    %v3627 = vunpack.c.h.b16 %v2187
    %v3628 = vunpack.c.l.b16 %v2188
    %v3629 = vunpack.c.h.b16 %v2188
    %v3630 = vunpack.c.l.b16 %v2189
    %v3631 = vunpack.c.h.b16 %v2189
    %v3632 = vunpack.c.l.b16 %v2190
    %v3633 = vunpack.c.h.b16 %v2190
    %v3634 = vunpack.c.l.b16 %v2191
    %v3635 = vunpack.c.h.b16 %v2191
    %v3636 = vunpack.c.l.b16 %v2192
    %v3637 = vunpack.c.h.b16 %v2192
    %v3638 = vunpack.c.l.b16 %v2193
    %v3639 = vunpack.c.h.b16 %v2193
    %v3640 = vunpack.c.l.b16 %v2194
    %v3641 = vunpack.c.h.b16 %v2194
    %v3642 = vunpack.c.l.b16 %v2195
    %v3643 = vunpack.c.h.b16 %v2195
    %v3644 = vunpack.c.l.b16 %v2196
    %v3645 = vunpack.c.h.b16 %v2196
    %v3646 = vunpack.c.l.b16 %v2197
    %v3647 = vunpack.c.h.b16 %v2197
    %v3648 = vunpack.c.l.b16 %v2198
    %v3649 = vunpack.c.h.b16 %v2198
    %v3650 = vunpack.c.l.b16 %v2199
    %v3651 = vunpack.c.h.b16 %v2199
    %v3652 = vunpack.c.l.b16 %v2200
    %v3653 = vunpack.c.h.b16 %v2200
    %v3654 = vunpack.c.l.b16 %v2201
    %v3655 = vunpack.c.h.b16 %v2201
    %v3656 = vunpack.c.l.b16 %v2202
    %v3657 = vunpack.c.h.b16 %v2202
    %v3658 = vunpack.c.l.b16 %v2203
    %v3659 = vunpack.c.h.b16 %v2203
    %v3660 = vunpack.c.l.b16 %v2204
    %v3661 = vunpack.c.h.b16 %v2204
    %v3662 = vunpack.c.l.b16 %v2205
    %v3663 = vunpack.c.h.b16 %v2205
    %v3664 = vunpack.c.l.b16 %v2206
    %v3665 = vunpack.c.h.b16 %v2206
    %v3666 = vunpack.c.l.b16 %v2207
    %v3667 = vunpack.c.h.b16 %v2207
    %v3668 = vunpack.c.l.b16 %v2208
    %v3669 = vunpack.c.h.b16 %v2208
    %v3670 = vunpack.c.l.b16 %v2209
    %v3671 = vunpack.c.h.b16 %v2209
    %v3672 = vunpack.c.l.b16 %v2210
    %v3673 = vunpack.c.h.b16 %v2210
    %v3674 = vunpack.c.l.b16 %v2211
    %v3675 = vunpack.c.h.b16 %v2211
    %v3676 = vunpack.c.l.b16 %v2212
    %v3677 = vunpack.c.h.b16 %v2212
    %v3678 = vunpack.c.l.b16 %v2213
    %v3679 = vunpack.c.h.b16 %v2213
    %v3680 = vunpack.c.l.b16 %v2214
    %v3681 = vunpack.c.h.b16 %v2214
    %v3682 = vunpack.c.l.b16 %v2215
    %v3683 = vunpack.c.h.b16 %v2215
    %v3684 = vpack.c.b16 %v3188, %v3172
    %v3685 = vpack.c.b16 %v3189, %v3173
    %v3686 = vpack.c.b16 %v3190, %v3174
    %v3687 = vpack.c.b16 %v3191, %v3175
    %v3688 = vpack.c.b16 %v3192, %v3176
    %v3689 = vpack.c.b16 %v3193, %v3177
    %v3690 = vpack.c.b16 %v3194, %v3178
    %v3691 = vpack.c.b16 %v3195, %v3179
    %v3692 = vpack.c.b16 %v3196, %v3180
    %v3693 = vpack.c.b16 %v3197, %v3181
    %v3694 = vpack.c.b16 %v3198, %v3182
    %v3695 = vpack.c.b16 %v3199, %v3183
    %v3696 = vpack.c.b16 %v3200, %v3184
    %v3697 = vpack.c.b16 %v3201, %v3185
    %v3698 = vpack.c.b16 %v3202, %v3186
    %v3699 = vpack.c.b16 %v3203, %v3187
    %v3700 = vpack.c.b16 %v3220, %v3204
    %v3701 = vpack.c.b16 %v3221, %v3205
    %v3702 = vpack.c.b16 %v3222, %v3206
    %v3703 = vpack.c.b16 %v3223, %v3207
    %v3704 = vpack.c.b16 %v3224, %v3208
    %v3705 = vpack.c.b16 %v3225, %v3209
    %v3706 = vpack.c.b16 %v3226, %v3210
    %v3707 = vpack.c.b16 %v3227, %v3211
    %v3708 = vpack.c.b16 %v3228, %v3212
    %v3709 = vpack.c.b16 %v3229, %v3213
    %v3710 = vpack.c.b16 %v3230, %v3214
    %v3711 = vpack.c.b16 %v3231, %v3215
    %v3712 = vpack.c.b16 %v3232, %v3216
    %v3713 = vpack.c.b16 %v3233, %v3217
    %v3714 = vpack.c.b16 %v3234, %v3218
    %v3715 = vpack.c.b16 %v3235, %v3219
    %v3716 = vpack.c.b16 %v3252, %v3236
    %v3717 = vpack.c.b16 %v3253, %v3237
    %v3718 = vpack.c.b16 %v3254, %v3238
    %v3719 = vpack.c.b16 %v3255, %v3239
    %v3720 = vpack.c.b16 %v3256, %v3240
    %v3721 = vpack.c.b16 %v3257, %v3241
    %v3722 = vpack.c.b16 %v3258, %v3242
    %v3723 = vpack.c.b16 %v3259, %v3243
    %v3724 = vpack.c.b16 %v3260, %v3244
    %v3725 = vpack.c.b16 %v3261, %v3245
    %v3726 = vpack.c.b16 %v3262, %v3246
    %v3727 = vpack.c.b16 %v3263, %v3247
    %v3728 = vpack.c.b16 %v3264, %v3248
    %v3729 = vpack.c.b16 %v3265, %v3249
    %v3730 = vpack.c.b16 %v3266, %v3250
    %v3731 = vpack.c.b16 %v3267, %v3251
    %v3732 = vpack.c.b16 %v3284, %v3268
    %v3733 = vpack.c.b16 %v3285, %v3269
    %v3734 = vpack.c.b16 %v3286, %v3270
    %v3735 = vpack.c.b16 %v3287, %v3271
    %v3736 = vpack.c.b16 %v3288, %v3272
    %v3737 = vpack.c.b16 %v3289, %v3273
    %v3738 = vpack.c.b16 %v3290, %v3274
    %v3739 = vpack.c.b16 %v3291, %v3275
    %v3740 = vpack.c.b16 %v3292, %v3276
    %v3741 = vpack.c.b16 %v3293, %v3277
    %v3742 = vpack.c.b16 %v3294, %v3278
    %v3743 = vpack.c.b16 %v3295, %v3279
    %v3744 = vpack.c.b16 %v3296, %v3280
    %v3745 = vpack.c.b16 %v3297, %v3281
    %v3746 = vpack.c.b16 %v3298, %v3282
    %v3747 = vpack.c.b16 %v3299, %v3283
    %v3748 = vpack.c.b16 %v3316, %v3300
    %v3749 = vpack.c.b16 %v3317, %v3301
    %v3750 = vpack.c.b16 %v3318, %v3302
    %v3751 = vpack.c.b16 %v3319, %v3303
    %v3752 = vpack.c.b16 %v3320, %v3304
    %v3753 = vpack.c.b16 %v3321, %v3305
    %v3754 = vpack.c.b16 %v3322, %v3306
    %v3755 = vpack.c.b16 %v3323, %v3307
    %v3756 = vpack.c.b16 %v3324, %v3308
    %v3757 = vpack.c.b16 %v3325, %v3309
    %v3758 = vpack.c.b16 %v3326, %v3310
    %v3759 = vpack.c.b16 %v3327, %v3311
    %v3760 = vpack.c.b16 %v3328, %v3312
    %v3761 = vpack.c.b16 %v3329, %v3313
    %v3762 = vpack.c.b16 %v3330, %v3314
    %v3763 = vpack.c.b16 %v3331, %v3315
    %v3764 = vpack.c.b16 %v3348, %v3332
    %v3765 = vpack.c.b16 %v3349, %v3333
    %v3766 = vpack.c.b16 %v3350, %v3334
    %v3767 = vpack.c.b16 %v3351, %v3335
    %v3768 = vpack.c.b16 %v3352, %v3336
    %v3769 = vpack.c.b16 %v3353, %v3337
    %v3770 = vpack.c.b16 %v3354, %v3338
    %v3771 = vpack.c.b16 %v3355, %v3339
    %v3772 = vpack.c.b16 %v3356, %v3340
    %v3773 = vpack.c.b16 %v3357, %v3341
    %v3774 = vpack.c.b16 %v3358, %v3342
    %v3775 = vpack.c.b16 %v3359, %v3343
    %v3776 = vpack.c.b16 %v3360, %v3344
    %v3777 = vpack.c.b16 %v3361, %v3345
    %v3778 = vpack.c.b16 %v3362, %v3346
    %v3779 = vpack.c.b16 %v3363, %v3347
    %v3780 = vpack.c.b16 %v3380, %v3364
    %v3781 = vpack.c.b16 %v3381, %v3365
    %v3782 = vpack.c.b16 %v3382, %v3366
    %v3783 = vpack.c.b16 %v3383, %v3367
    %v3784 = vpack.c.b16 %v3384, %v3368
    %v3785 = vpack.c.b16 %v3385, %v3369
    %v3786 = vpack.c.b16 %v3386, %v3370
    %v3787 = vpack.c.b16 %v3387, %v3371
    %v3788 = vpack.c.b16 %v3388, %v3372
    %v3789 = vpack.c.b16 %v3389, %v3373
    %v3790 = vpack.c.b16 %v3390, %v3374
    %v3791 = vpack.c.b16 %v3391, %v3375
    %v3792 = vpack.c.b16 %v3392, %v3376
    %v3793 = vpack.c.b16 %v3393, %v3377
    %v3794 = vpack.c.b16 %v3394, %v3378
    %v3795 = vpack.c.b16 %v3395, %v3379
    %v3796 = vpack.c.b16 %v3412, %v3396
    %v3797 = vpack.c.b16 %v3413, %v3397
    %v3798 = vpack.c.b16 %v3414, %v3398
    %v3799 = vpack.c.b16 %v3415, %v3399
    %v3800 = vpack.c.b16 %v3416, %v3400
    %v3801 = vpack.c.b16 %v3417, %v3401
    %v3802 = vpack.c.b16 %v3418, %v3402
    %v3803 = vpack.c.b16 %v3419, %v3403
    %v3804 = vpack.c.b16 %v3420, %v3404
    %v3805 = vpack.c.b16 %v3421, %v3405
    %v3806 = vpack.c.b16 %v3422, %v3406
    %v3807 = vpack.c.b16 %v3423, %v3407
    %v3808 = vpack.c.b16 %v3424, %v3408
    %v3809 = vpack.c.b16 %v3425, %v3409
    %v3810 = vpack.c.b16 %v3426, %v3410
    %v3811 = vpack.c.b16 %v3427, %v3411
    %v3812 = vpack.c.b16 %v3444, %v3428
    %v3813 = vpack.c.b16 %v3445, %v3429
    %v3814 = vpack.c.b16 %v3446, %v3430
    %v3815 = vpack.c.b16 %v3447, %v3431
    %v3816 = vpack.c.b16 %v3448, %v3432
    %v3817 = vpack.c.b16 %v3449, %v3433
    %v3818 = vpack.c.b16 %v3450, %v3434
    %v3819 = vpack.c.b16 %v3451, %v3435
    %v3820 = vpack.c.b16 %v3452, %v3436
    %v3821 = vpack.c.b16 %v3453, %v3437
    %v3822 = vpack.c.b16 %v3454, %v3438
    %v3823 = vpack.c.b16 %v3455, %v3439
    %v3824 = vpack.c.b16 %v3456, %v3440
    %v3825 = vpack.c.b16 %v3457, %v3441
    %v3826 = vpack.c.b16 %v3458, %v3442
    %v3827 = vpack.c.b16 %v3459, %v3443
    %v3828 = vpack.c.b16 %v3476, %v3460
    %v3829 = vpack.c.b16 %v3477, %v3461
    %v3830 = vpack.c.b16 %v3478, %v3462
    %v3831 = vpack.c.b16 %v3479, %v3463
    %v3832 = vpack.c.b16 %v3480, %v3464
    %v3833 = vpack.c.b16 %v3481, %v3465
    %v3834 = vpack.c.b16 %v3482, %v3466
    %v3835 = vpack.c.b16 %v3483, %v3467
    %v3836 = vpack.c.b16 %v3484, %v3468
    %v3837 = vpack.c.b16 %v3485, %v3469
    %v3838 = vpack.c.b16 %v3486, %v3470
    %v3839 = vpack.c.b16 %v3487, %v3471
    %v3840 = vpack.c.b16 %v3488, %v3472
    %v3841 = vpack.c.b16 %v3489, %v3473
    %v3842 = vpack.c.b16 %v3490, %v3474
    %v3843 = vpack.c.b16 %v3491, %v3475
    %v3844 = vpack.c.b16 %v3508, %v3492
    %v3845 = vpack.c.b16 %v3509, %v3493
    %v3846 = vpack.c.b16 %v3510, %v3494
    %v3847 = vpack.c.b16 %v3511, %v3495
    %v3848 = vpack.c.b16 %v3512, %v3496
    %v3849 = vpack.c.b16 %v3513, %v3497
    %v3850 = vpack.c.b16 %v3514, %v3498
    %v3851 = vpack.c.b16 %v3515, %v3499
    %v3852 = vpack.c.b16 %v3516, %v3500
    %v3853 = vpack.c.b16 %v3517, %v3501
    %v3854 = vpack.c.b16 %v3518, %v3502
    %v3855 = vpack.c.b16 %v3519, %v3503
    %v3856 = vpack.c.b16 %v3520, %v3504
    %v3857 = vpack.c.b16 %v3521, %v3505
    %v3858 = vpack.c.b16 %v3522, %v3506
    %v3859 = vpack.c.b16 %v3523, %v3507
    %v3860 = vpack.c.b16 %v3540, %v3524
    %v3861 = vpack.c.b16 %v3541, %v3525
    %v3862 = vpack.c.b16 %v3542, %v3526
    %v3863 = vpack.c.b16 %v3543, %v3527
    %v3864 = vpack.c.b16 %v3544, %v3528
    %v3865 = vpack.c.b16 %v3545, %v3529
    %v3866 = vpack.c.b16 %v3546, %v3530
    %v3867 = vpack.c.b16 %v3547, %v3531
    %v3868 = vpack.c.b16 %v3548, %v3532
    %v3869 = vpack.c.b16 %v3549, %v3533
    %v3870 = vpack.c.b16 %v3550, %v3534
    %v3871 = vpack.c.b16 %v3551, %v3535
    %v3872 = vpack.c.b16 %v3552, %v3536
    %v3873 = vpack.c.b16 %v3553, %v3537
    %v3874 = vpack.c.b16 %v3554, %v3538
    %v3875 = vpack.c.b16 %v3555, %v3539
    %v3876 = vpack.c.b16 %v3572, %v3556
    %v3877 = vpack.c.b16 %v3573, %v3557
    %v3878 = vpack.c.b16 %v3574, %v3558
    %v3879 = vpack.c.b16 %v3575, %v3559
    %v3880 = vpack.c.b16 %v3576, %v3560
    %v3881 = vpack.c.b16 %v3577, %v3561
    %v3882 = vpack.c.b16 %v3578, %v3562
    %v3883 = vpack.c.b16 %v3579, %v3563
    %v3884 = vpack.c.b16 %v3580, %v3564
    %v3885 = vpack.c.b16 %v3581, %v3565
    %v3886 = vpack.c.b16 %v3582, %v3566
    %v3887 = vpack.c.b16 %v3583, %v3567
    %v3888 = vpack.c.b16 %v3584, %v3568
    %v3889 = vpack.c.b16 %v3585, %v3569
    %v3890 = vpack.c.b16 %v3586, %v3570
    %v3891 = vpack.c.b16 %v3587, %v3571
    %v3892 = vpack.c.b16 %v3604, %v3588
    %v3893 = vpack.c.b16 %v3605, %v3589
    %v3894 = vpack.c.b16 %v3606, %v3590
    %v3895 = vpack.c.b16 %v3607, %v3591
    %v3896 = vpack.c.b16 %v3608, %v3592
    %v3897 = vpack.c.b16 %v3609, %v3593
    %v3898 = vpack.c.b16 %v3610, %v3594
    %v3899 = vpack.c.b16 %v3611, %v3595
    %v3900 = vpack.c.b16 %v3612, %v3596
    %v3901 = vpack.c.b16 %v3613, %v3597
    %v3902 = vpack.c.b16 %v3614, %v3598
    %v3903 = vpack.c.b16 %v3615, %v3599
    %v3904 = vpack.c.b16 %v3616, %v3600
    %v3905 = vpack.c.b16 %v3617, %v3601
    %v3906 = vpack.c.b16 %v3618, %v3602
    %v3907 = vpack.c.b16 %v3619, %v3603
    %v3908 = vpack.c.b16 %v3636, %v3620
    %v3909 = vpack.c.b16 %v3637, %v3621
    %v3910 = vpack.c.b16 %v3638, %v3622
    %v3911 = vpack.c.b16 %v3639, %v3623
    %v3912 = vpack.c.b16 %v3640, %v3624
    %v3913 = vpack.c.b16 %v3641, %v3625
    %v3914 = vpack.c.b16 %v3642, %v3626
    %v3915 = vpack.c.b16 %v3643, %v3627
    %v3916 = vpack.c.b16 %v3644, %v3628
    %v3917 = vpack.c.b16 %v3645, %v3629
    %v3918 = vpack.c.b16 %v3646, %v3630
    %v3919 = vpack.c.b16 %v3647, %v3631
    %v3920 = vpack.c.b16 %v3648, %v3632
    %v3921 = vpack.c.b16 %v3649, %v3633
    %v3922 = vpack.c.b16 %v3650, %v3634
    %v3923 = vpack.c.b16 %v3651, %v3635
    %v3924 = vpack.c.b16 %v3668, %v3652
    %v3925 = vpack.c.b16 %v3669, %v3653
    %v3926 = vpack.c.b16 %v3670, %v3654
    %v3927 = vpack.c.b16 %v3671, %v3655
    %v3928 = vpack.c.b16 %v3672, %v3656
    %v3929 = vpack.c.b16 %v3673, %v3657
    %v3930 = vpack.c.b16 %v3674, %v3658
    %v3931 = vpack.c.b16 %v3675, %v3659
    %v3932 = vpack.c.b16 %v3676, %v3660
    %v3933 = vpack.c.b16 %v3677, %v3661
    %v3934 = vpack.c.b16 %v3678, %v3662
    %v3935 = vpack.c.b16 %v3679, %v3663
    %v3936 = vpack.c.b16 %v3680, %v3664
    %v3937 = vpack.c.b16 %v3681, %v3665
    %v3938 = vpack.c.b16 %v3682, %v3666
    %v3939 = vpack.c.b16 %v3683, %v3667
    %4196 = vmatpush.bf16.msra.mxu0 %v3796
    %4197 = vmatpush.bf16.msra.mxu0 %v3780
    %4198 = vmatpush.bf16.msra.mxu0 %v3764
    %4199 = vmatpush.bf16.msra.mxu0 %v3748
    %4200 = vmatpush.bf16.msra.mxu0 %v3732
    %4201 = vmatpush.bf16.msra.mxu0 %v3716
    %4202 = vmatpush.bf16.msra.mxu0 %v3700
    %4203 = vmatpush.bf16.msra.mxu0 %v3684
    %4204 = vmatmul.bf16.gmra.mxu0 %v2850
    %v4205 = vpop.f32.mrf.mxu0
    %v4206 = vadd.f32 %v2884, %v4205
    %v4207 = vpop.f32.mrf.mxu0
    %v4208 = vadd.f32 %v2884, %v4207
    %4209 = vmatmul.bf16.gmra.mxu0 %v2852
    %v4210 = vpop.f32.mrf.mxu0
    %v4211 = vadd.f32 %v2884, %v4210
    %v4212 = vpop.f32.mrf.mxu0
    %v4213 = vadd.f32 %v2884, %v4212
    %4214 = vmatmul.bf16.gmra.mxu0 %v2854
    %v4215 = vpop.f32.mrf.mxu0
    %v4216 = vadd.f32 %v2884, %v4215
    %v4217 = vpop.f32.mrf.mxu0
    %v4218 = vadd.f32 %v2884, %v4217
    %4219 = vmatmul.bf16.gmra.mxu0 %v2856
    %v4220 = vpop.f32.mrf.mxu0
    %v4221 = vadd.f32 %v2884, %v4220
    %v4222 = vpop.f32.mrf.mxu0
    %v4223 = vadd.f32 %v2884, %v4222
    %4224 = vmatmul.bf16.gmra.mxu0 %v2858
    %v4225 = vpop.f32.mrf.mxu0
    %v4226 = vadd.f32 %v2884, %v4225
    %v4227 = vpop.f32.mrf.mxu0
    %v4228 = vadd.f32 %v2884, %v4227
    %4229 = vmatmul.bf16.gmra.mxu0 %v2860
    %v4230 = vpop.f32.mrf.mxu0
    %v4231 = vadd.f32 %v2884, %v4230
    %v4232 = vpop.f32.mrf.mxu0
    %v4233 = vadd.f32 %v2884, %v4232
    %4234 = vmatmul.bf16.gmra.mxu0 %v2862
    %v4235 = vpop.f32.mrf.mxu0
    %v4236 = vadd.f32 %v2884, %v4235
    %v4237 = vpop.f32.mrf.mxu0
    %v4238 = vadd.f32 %v2884, %v4237
    %4239 = vmatmul.bf16.gmra.mxu0 %v2864
    %v4240 = vpop.f32.mrf.mxu0
    %v4241 = vadd.f32 %v2884, %v4240
    %v4242 = vpop.f32.mrf.mxu0
    %v4243 = vadd.f32 %v2884, %v4242
    %4244 = vmatmul.bf16.gmra.mxu0 %v2866
    %v4245 = vpop.f32.mrf.mxu0
    %v4246 = vadd.f32 %v2884, %v4245
    %v4247 = vpop.f32.mrf.mxu0
    %v4248 = vadd.f32 %v2884, %v4247
    %4249 = vmatmul.bf16.gmra.mxu0 %v2868
    %v4250 = vpop.f32.mrf.mxu0
    %v4251 = vadd.f32 %v2884, %v4250
    %v4252 = vpop.f32.mrf.mxu0
    %v4253 = vadd.f32 %v2884, %v4252
    %4254 = vmatmul.bf16.gmra.mxu0 %v2870
    %v4255 = vpop.f32.mrf.mxu0
    %v4256 = vadd.f32 %v2884, %v4255
    %v4257 = vpop.f32.mrf.mxu0
    %v4258 = vadd.f32 %v2884, %v4257
    %4259 = vmatmul.bf16.gmra.mxu0 %v2872
    %v4260 = vpop.f32.mrf.mxu0
    %v4261 = vadd.f32 %v2884, %v4260
    %v4262 = vpop.f32.mrf.mxu0
    %v4263 = vadd.f32 %v2884, %v4262
    %4264 = vmatmul.bf16.gmra.mxu0 %v2874
    %v4265 = vpop.f32.mrf.mxu0
    %v4266 = vadd.f32 %v2884, %v4265
    %v4267 = vpop.f32.mrf.mxu0
    %v4268 = vadd.f32 %v2884, %v4267
    %4269 = vmatmul.bf16.gmra.mxu0 %v2876
    %v4270 = vpop.f32.mrf.mxu0
    %v4271 = vadd.f32 %v2884, %v4270
    %v4272 = vpop.f32.mrf.mxu0
    %v4273 = vadd.f32 %v2884, %v4272
    %4274 = vmatmul.bf16.gmra.mxu0 %v2878
    %v4275 = vpop.f32.mrf.mxu0
    %v4276 = vadd.f32 %v2884, %v4275
    %v4277 = vpop.f32.mrf.mxu0
    %v4278 = vadd.f32 %v2884, %v4277
    %4279 = vmatmul.bf16.gmra.mxu0 %v2880
    %v4280 = vpop.f32.mrf.mxu0
    %v4281 = vadd.f32 %v2884, %v4280
    %v4282 = vpop.f32.mrf.mxu0
    %v4283 = vadd.f32 %v2884, %v4282
    %4284 = vdwg.mxu0
    %4285 = vmatpush.bf16.msra.mxu0 %v3924
    %4286 = vmatpush.bf16.msra.mxu0 %v3908
    %4287 = vmatpush.bf16.msra.mxu0 %v3892
    %4288 = vmatpush.bf16.msra.mxu0 %v3876
    %4289 = vmatpush.bf16.msra.mxu0 %v3860
    %4290 = vmatpush.bf16.msra.mxu0 %v3844
    %4291 = vmatpush.bf16.msra.mxu0 %v3828
    %4292 = vmatpush.bf16.msra.mxu0 %v3812
    %4293 = vmatmul.bf16.gmra.mxu0 %v2851
    %v4294 = vpop.f32.mrf.mxu0
    %v4295 = vadd.f32 %v4206, %v4294
    %v4296 = vpop.f32.mrf.mxu0
    %v4297 = vadd.f32 %v4208, %v4296
    %4298 = vmatmul.bf16.gmra.mxu0 %v2853
    %v4299 = vpop.f32.mrf.mxu0
    %v4300 = vadd.f32 %v4211, %v4299
    %v4301 = vpop.f32.mrf.mxu0
    %v4302 = vadd.f32 %v4213, %v4301
    %4303 = vmatmul.bf16.gmra.mxu0 %v2855
    %v4304 = vpop.f32.mrf.mxu0
    %v4305 = vadd.f32 %v4216, %v4304
    %v4306 = vpop.f32.mrf.mxu0
    %v4307 = vadd.f32 %v4218, %v4306
    %4308 = vmatmul.bf16.gmra.mxu0 %v2857
    %v4309 = vpop.f32.mrf.mxu0
    %v4310 = vadd.f32 %v4221, %v4309
    %v4311 = vpop.f32.mrf.mxu0
    %v4312 = vadd.f32 %v4223, %v4311
    %4313 = vmatmul.bf16.gmra.mxu0 %v2859
    %v4314 = vpop.f32.mrf.mxu0
    %v4315 = vadd.f32 %v4226, %v4314
    %v4316 = vpop.f32.mrf.mxu0
    %v4317 = vadd.f32 %v4228, %v4316
    %4318 = vmatmul.bf16.gmra.mxu0 %v2861
    %v4319 = vpop.f32.mrf.mxu0
    %v4320 = vadd.f32 %v4231, %v4319
    %v4321 = vpop.f32.mrf.mxu0
    %v4322 = vadd.f32 %v4233, %v4321
    %4323 = vmatmul.bf16.gmra.mxu0 %v2863
    %v4324 = vpop.f32.mrf.mxu0
    %v4325 = vadd.f32 %v4236, %v4324
    %v4326 = vpop.f32.mrf.mxu0
    %v4327 = vadd.f32 %v4238, %v4326
    %4328 = vmatmul.bf16.gmra.mxu0 %v2865
    %v4329 = vpop.f32.mrf.mxu0
    %v4330 = vadd.f32 %v4241, %v4329
    %v4331 = vpop.f32.mrf.mxu0
    %v4332 = vadd.f32 %v4243, %v4331
    %4333 = vmatmul.bf16.gmra.mxu0 %v2867
    %v4334 = vpop.f32.mrf.mxu0
    %v4335 = vadd.f32 %v4246, %v4334
    %v4336 = vpop.f32.mrf.mxu0
    %v4337 = vadd.f32 %v4248, %v4336
    %4338 = vmatmul.bf16.gmra.mxu0 %v2869
    %v4339 = vpop.f32.mrf.mxu0
    %v4340 = vadd.f32 %v4251, %v4339
    %v4341 = vpop.f32.mrf.mxu0
    %v4342 = vadd.f32 %v4253, %v4341
    %4343 = vmatmul.bf16.gmra.mxu0 %v2871
    %v4344 = vpop.f32.mrf.mxu0
    %v4345 = vadd.f32 %v4256, %v4344
    %v4346 = vpop.f32.mrf.mxu0
    %v4347 = vadd.f32 %v4258, %v4346
    %4348 = vmatmul.bf16.gmra.mxu0 %v2873
    %v4349 = vpop.f32.mrf.mxu0
    %v4350 = vadd.f32 %v4261, %v4349
    %v4351 = vpop.f32.mrf.mxu0
    %v4352 = vadd.f32 %v4263, %v4351
    %4353 = vmatmul.bf16.gmra.mxu0 %v2875
    %v4354 = vpop.f32.mrf.mxu0
    %v4355 = vadd.f32 %v4266, %v4354
    %v4356 = vpop.f32.mrf.mxu0
    %v4357 = vadd.f32 %v4268, %v4356
    %4358 = vmatmul.bf16.gmra.mxu0 %v2877
    %v4359 = vpop.f32.mrf.mxu0
    %v4360 = vadd.f32 %v4271, %v4359
    %v4361 = vpop.f32.mrf.mxu0
    %v4362 = vadd.f32 %v4273, %v4361
    %4363 = vmatmul.bf16.gmra.mxu0 %v2879
    %v4364 = vpop.f32.mrf.mxu0
    %v4365 = vadd.f32 %v4276, %v4364
    %v4366 = vpop.f32.mrf.mxu0
    %v4367 = vadd.f32 %v4278, %v4366
    %4368 = vmatmul.bf16.gmra.mxu0 %v2881
    %v4369 = vpop.f32.mrf.mxu0
    %v4370 = vadd.f32 %v4281, %v4369
    %v4371 = vpop.f32.mrf.mxu0
    %v4372 = vadd.f32 %v4283, %v4371
    %4373 = vdwg.mxu0
    %4374 = vmatpush.bf16.msra.mxu0 %v3797
    %4375 = vmatpush.bf16.msra.mxu0 %v3781
    %4376 = vmatpush.bf16.msra.mxu0 %v3765
    %4377 = vmatpush.bf16.msra.mxu0 %v3749
    %4378 = vmatpush.bf16.msra.mxu0 %v3733
    %4379 = vmatpush.bf16.msra.mxu0 %v3717
    %4380 = vmatpush.bf16.msra.mxu0 %v3701
    %4381 = vmatpush.bf16.msra.mxu0 %v3685
    %4382 = vmatmul.bf16.gmra.mxu0 %v2850
    %v4383 = vpop.f32.mrf.mxu0
    %v4384 = vadd.f32 %v2885, %v4383
    %v4385 = vpop.f32.mrf.mxu0
    %v4386 = vadd.f32 %v2885, %v4385
    %4387 = vmatmul.bf16.gmra.mxu0 %v2852
    %v4388 = vpop.f32.mrf.mxu0
    %v4389 = vadd.f32 %v2885, %v4388
    %v4390 = vpop.f32.mrf.mxu0
    %v4391 = vadd.f32 %v2885, %v4390
    %4392 = vmatmul.bf16.gmra.mxu0 %v2854
    %v4393 = vpop.f32.mrf.mxu0
    %v4394 = vadd.f32 %v2885, %v4393
    %v4395 = vpop.f32.mrf.mxu0
    %v4396 = vadd.f32 %v2885, %v4395
    %4397 = vmatmul.bf16.gmra.mxu0 %v2856
    %v4398 = vpop.f32.mrf.mxu0
    %v4399 = vadd.f32 %v2885, %v4398
    %v4400 = vpop.f32.mrf.mxu0
    %v4401 = vadd.f32 %v2885, %v4400
    %4402 = vmatmul.bf16.gmra.mxu0 %v2858
    %v4403 = vpop.f32.mrf.mxu0
    %v4404 = vadd.f32 %v2885, %v4403
    %v4405 = vpop.f32.mrf.mxu0
    %v4406 = vadd.f32 %v2885, %v4405
    %4407 = vmatmul.bf16.gmra.mxu0 %v2860
    %v4408 = vpop.f32.mrf.mxu0
    %v4409 = vadd.f32 %v2885, %v4408
    %v4410 = vpop.f32.mrf.mxu0
    %v4411 = vadd.f32 %v2885, %v4410
    %4412 = vmatmul.bf16.gmra.mxu0 %v2862
    %v4413 = vpop.f32.mrf.mxu0
    %v4414 = vadd.f32 %v2885, %v4413
    %v4415 = vpop.f32.mrf.mxu0
    %v4416 = vadd.f32 %v2885, %v4415
    %4417 = vmatmul.bf16.gmra.mxu0 %v2864
    %v4418 = vpop.f32.mrf.mxu0
    %v4419 = vadd.f32 %v2885, %v4418
    %v4420 = vpop.f32.mrf.mxu0
    %v4421 = vadd.f32 %v2885, %v4420
    %4422 = vmatmul.bf16.gmra.mxu0 %v2866
    %v4423 = vpop.f32.mrf.mxu0
    %v4424 = vadd.f32 %v2885, %v4423
    %v4425 = vpop.f32.mrf.mxu0
    %v4426 = vadd.f32 %v2885, %v4425
    %4427 = vmatmul.bf16.gmra.mxu0 %v2868
    %v4428 = vpop.f32.mrf.mxu0
    %v4429 = vadd.f32 %v2885, %v4428
    %v4430 = vpop.f32.mrf.mxu0
    %v4431 = vadd.f32 %v2885, %v4430
    %4432 = vmatmul.bf16.gmra.mxu0 %v2870
    %v4433 = vpop.f32.mrf.mxu0
    %v4434 = vadd.f32 %v2885, %v4433
    %v4435 = vpop.f32.mrf.mxu0
    %v4436 = vadd.f32 %v2885, %v4435
    %4437 = vmatmul.bf16.gmra.mxu0 %v2872
    %v4438 = vpop.f32.mrf.mxu0
    %v4439 = vadd.f32 %v2885, %v4438
    %v4440 = vpop.f32.mrf.mxu0
    %v4441 = vadd.f32 %v2885, %v4440
    %4442 = vmatmul.bf16.gmra.mxu0 %v2874
    %v4443 = vpop.f32.mrf.mxu0
    %v4444 = vadd.f32 %v2885, %v4443
    %v4445 = vpop.f32.mrf.mxu0
    %v4446 = vadd.f32 %v2885, %v4445
    %4447 = vmatmul.bf16.gmra.mxu0 %v2876
    %v4448 = vpop.f32.mrf.mxu0
    %v4449 = vadd.f32 %v2885, %v4448
    %v4450 = vpop.f32.mrf.mxu0
    %v4451 = vadd.f32 %v2885, %v4450
    %4452 = vmatmul.bf16.gmra.mxu0 %v2878
    %v4453 = vpop.f32.mrf.mxu0
    %v4454 = vadd.f32 %v2885, %v4453
    %v4455 = vpop.f32.mrf.mxu0
    %v4456 = vadd.f32 %v2885, %v4455
    %4457 = vmatmul.bf16.gmra.mxu0 %v2880
    %v4458 = vpop.f32.mrf.mxu0
    %v4459 = vadd.f32 %v2885, %v4458
    %v4460 = vpop.f32.mrf.mxu0
    %v4461 = vadd.f32 %v2885, %v4460
    %4462 = vdwg.mxu0
    %4463 = vmatpush.bf16.msra.mxu0 %v3925
    %4464 = vmatpush.bf16.msra.mxu0 %v3909
    %4465 = vmatpush.bf16.msra.mxu0 %v3893
    %4466 = vmatpush.bf16.msra.mxu0 %v3877
    %4467 = vmatpush.bf16.msra.mxu0 %v3861
    %4468 = vmatpush.bf16.msra.mxu0 %v3845
    %4469 = vmatpush.bf16.msra.mxu0 %v3829
    %4470 = vmatpush.bf16.msra.mxu0 %v3813
    %4471 = vmatmul.bf16.gmra.mxu0 %v2851
    %v4472 = vpop.f32.mrf.mxu0
    %v4473 = vadd.f32 %v4384, %v4472
    %v4474 = vpop.f32.mrf.mxu0
    %v4475 = vadd.f32 %v4386, %v4474
    %4476 = vmatmul.bf16.gmra.mxu0 %v2853
    %v4477 = vpop.f32.mrf.mxu0
    %v4478 = vadd.f32 %v4389, %v4477
    %v4479 = vpop.f32.mrf.mxu0
    %v4480 = vadd.f32 %v4391, %v4479
    %4481 = vmatmul.bf16.gmra.mxu0 %v2855
    %v4482 = vpop.f32.mrf.mxu0
    %v4483 = vadd.f32 %v4394, %v4482
    %v4484 = vpop.f32.mrf.mxu0
    %v4485 = vadd.f32 %v4396, %v4484
    %4486 = vmatmul.bf16.gmra.mxu0 %v2857
    %v4487 = vpop.f32.mrf.mxu0
    %v4488 = vadd.f32 %v4399, %v4487
    %v4489 = vpop.f32.mrf.mxu0
    %v4490 = vadd.f32 %v4401, %v4489
    %4491 = vmatmul.bf16.gmra.mxu0 %v2859
    %v4492 = vpop.f32.mrf.mxu0
    %v4493 = vadd.f32 %v4404, %v4492
    %v4494 = vpop.f32.mrf.mxu0
    %v4495 = vadd.f32 %v4406, %v4494
    %4496 = vmatmul.bf16.gmra.mxu0 %v2861
    %v4497 = vpop.f32.mrf.mxu0
    %v4498 = vadd.f32 %v4409, %v4497
    %v4499 = vpop.f32.mrf.mxu0
    %v4500 = vadd.f32 %v4411, %v4499
    %4501 = vmatmul.bf16.gmra.mxu0 %v2863
    %v4502 = vpop.f32.mrf.mxu0
    %v4503 = vadd.f32 %v4414, %v4502
    %v4504 = vpop.f32.mrf.mxu0
    %v4505 = vadd.f32 %v4416, %v4504
    %4506 = vmatmul.bf16.gmra.mxu0 %v2865
    %v4507 = vpop.f32.mrf.mxu0
    %v4508 = vadd.f32 %v4419, %v4507
    %v4509 = vpop.f32.mrf.mxu0
    %v4510 = vadd.f32 %v4421, %v4509
    %4511 = vmatmul.bf16.gmra.mxu0 %v2867
    %v4512 = vpop.f32.mrf.mxu0
    %v4513 = vadd.f32 %v4424, %v4512
    %v4514 = vpop.f32.mrf.mxu0
    %v4515 = vadd.f32 %v4426, %v4514
    %4516 = vmatmul.bf16.gmra.mxu0 %v2869
    %v4517 = vpop.f32.mrf.mxu0
    %v4518 = vadd.f32 %v4429, %v4517
    %v4519 = vpop.f32.mrf.mxu0
    %v4520 = vadd.f32 %v4431, %v4519
    %4521 = vmatmul.bf16.gmra.mxu0 %v2871
    %v4522 = vpop.f32.mrf.mxu0
    %v4523 = vadd.f32 %v4434, %v4522
    %v4524 = vpop.f32.mrf.mxu0
    %v4525 = vadd.f32 %v4436, %v4524
    %4526 = vmatmul.bf16.gmra.mxu0 %v2873
    %v4527 = vpop.f32.mrf.mxu0
    %v4528 = vadd.f32 %v4439, %v4527
    %v4529 = vpop.f32.mrf.mxu0
    %v4530 = vadd.f32 %v4441, %v4529
    %4531 = vmatmul.bf16.gmra.mxu0 %v2875
    %v4532 = vpop.f32.mrf.mxu0
    %v4533 = vadd.f32 %v4444, %v4532
    %v4534 = vpop.f32.mrf.mxu0
    %v4535 = vadd.f32 %v4446, %v4534
    %4536 = vmatmul.bf16.gmra.mxu0 %v2877
    %v4537 = vpop.f32.mrf.mxu0
    %v4538 = vadd.f32 %v4449, %v4537
    %v4539 = vpop.f32.mrf.mxu0
    %v4540 = vadd.f32 %v4451, %v4539
    %4541 = vmatmul.bf16.gmra.mxu0 %v2879
    %v4542 = vpop.f32.mrf.mxu0
    %v4543 = vadd.f32 %v4454, %v4542
    %v4544 = vpop.f32.mrf.mxu0
    %v4545 = vadd.f32 %v4456, %v4544
    %4546 = vmatmul.bf16.gmra.mxu0 %v2881
    %v4547 = vpop.f32.mrf.mxu0
    %v4548 = vadd.f32 %v4459, %v4547
    %v4549 = vpop.f32.mrf.mxu0
    %v4550 = vadd.f32 %v4461, %v4549
    %4551 = vdwg.mxu0
    %4552 = vmatpush.bf16.msra.mxu0 %v3798
    %4553 = vmatpush.bf16.msra.mxu0 %v3782
    %4554 = vmatpush.bf16.msra.mxu0 %v3766
    %4555 = vmatpush.bf16.msra.mxu0 %v3750
    %4556 = vmatpush.bf16.msra.mxu0 %v3734
    %4557 = vmatpush.bf16.msra.mxu0 %v3718
    %4558 = vmatpush.bf16.msra.mxu0 %v3702
    %4559 = vmatpush.bf16.msra.mxu0 %v3686
    %4560 = vmatmul.bf16.gmra.mxu0 %v2850
    %v4561 = vpop.f32.mrf.mxu0
    %v4562 = vadd.f32 %v2886, %v4561
    %v4563 = vpop.f32.mrf.mxu0
    %v4564 = vadd.f32 %v2886, %v4563
    %4565 = vmatmul.bf16.gmra.mxu0 %v2852
    %v4566 = vpop.f32.mrf.mxu0
    %v4567 = vadd.f32 %v2886, %v4566
    %v4568 = vpop.f32.mrf.mxu0
    %v4569 = vadd.f32 %v2886, %v4568
    %4570 = vmatmul.bf16.gmra.mxu0 %v2854
    %v4571 = vpop.f32.mrf.mxu0
    %v4572 = vadd.f32 %v2886, %v4571
    %v4573 = vpop.f32.mrf.mxu0
    %v4574 = vadd.f32 %v2886, %v4573
    %4575 = vmatmul.bf16.gmra.mxu0 %v2856
    %v4576 = vpop.f32.mrf.mxu0
    %v4577 = vadd.f32 %v2886, %v4576
    %v4578 = vpop.f32.mrf.mxu0
    %v4579 = vadd.f32 %v2886, %v4578
    %4580 = vmatmul.bf16.gmra.mxu0 %v2858
    %v4581 = vpop.f32.mrf.mxu0
    %v4582 = vadd.f32 %v2886, %v4581
    %v4583 = vpop.f32.mrf.mxu0
    %v4584 = vadd.f32 %v2886, %v4583
    %4585 = vmatmul.bf16.gmra.mxu0 %v2860
    %v4586 = vpop.f32.mrf.mxu0
    %v4587 = vadd.f32 %v2886, %v4586
    %v4588 = vpop.f32.mrf.mxu0
    %v4589 = vadd.f32 %v2886, %v4588
    %4590 = vmatmul.bf16.gmra.mxu0 %v2862
    %v4591 = vpop.f32.mrf.mxu0
    %v4592 = vadd.f32 %v2886, %v4591
    %v4593 = vpop.f32.mrf.mxu0
    %v4594 = vadd.f32 %v2886, %v4593
    %4595 = vmatmul.bf16.gmra.mxu0 %v2864
    %v4596 = vpop.f32.mrf.mxu0
    %v4597 = vadd.f32 %v2886, %v4596
    %v4598 = vpop.f32.mrf.mxu0
    %v4599 = vadd.f32 %v2886, %v4598
    %4600 = vmatmul.bf16.gmra.mxu0 %v2866
    %v4601 = vpop.f32.mrf.mxu0
    %v4602 = vadd.f32 %v2886, %v4601
    %v4603 = vpop.f32.mrf.mxu0
    %v4604 = vadd.f32 %v2886, %v4603
    %4605 = vmatmul.bf16.gmra.mxu0 %v2868
    %v4606 = vpop.f32.mrf.mxu0
    %v4607 = vadd.f32 %v2886, %v4606
    %v4608 = vpop.f32.mrf.mxu0
    %v4609 = vadd.f32 %v2886, %v4608
    %4610 = vmatmul.bf16.gmra.mxu0 %v2870
    %v4611 = vpop.f32.mrf.mxu0
    %v4612 = vadd.f32 %v2886, %v4611
    %v4613 = vpop.f32.mrf.mxu0
    %v4614 = vadd.f32 %v2886, %v4613
    %4615 = vmatmul.bf16.gmra.mxu0 %v2872
    %v4616 = vpop.f32.mrf.mxu0
    %v4617 = vadd.f32 %v2886, %v4616
    %v4618 = vpop.f32.mrf.mxu0
    %v4619 = vadd.f32 %v2886, %v4618
    %4620 = vmatmul.bf16.gmra.mxu0 %v2874
    %v4621 = vpop.f32.mrf.mxu0
    %v4622 = vadd.f32 %v2886, %v4621
    %v4623 = vpop.f32.mrf.mxu0
    %v4624 = vadd.f32 %v2886, %v4623
    %4625 = vmatmul.bf16.gmra.mxu0 %v2876
    %v4626 = vpop.f32.mrf.mxu0
    %v4627 = vadd.f32 %v2886, %v4626
    %v4628 = vpop.f32.mrf.mxu0
    %v4629 = vadd.f32 %v2886, %v4628
    %4630 = vmatmul.bf16.gmra.mxu0 %v2878
    %v4631 = vpop.f32.mrf.mxu0
    %v4632 = vadd.f32 %v2886, %v4631
    %v4633 = vpop.f32.mrf.mxu0
    %v4634 = vadd.f32 %v2886, %v4633
    %4635 = vmatmul.bf16.gmra.mxu0 %v2880
    %v4636 = vpop.f32.mrf.mxu0
    %v4637 = vadd.f32 %v2886, %v4636
    %v4638 = vpop.f32.mrf.mxu0
    %v4639 = vadd.f32 %v2886, %v4638
    %4640 = vdwg.mxu0
    %4641 = vmatpush.bf16.msra.mxu0 %v3926
    %4642 = vmatpush.bf16.msra.mxu0 %v3910
    %4643 = vmatpush.bf16.msra.mxu0 %v3894
    %4644 = vmatpush.bf16.msra.mxu0 %v3878
    %4645 = vmatpush.bf16.msra.mxu0 %v3862
    %4646 = vmatpush.bf16.msra.mxu0 %v3846
    %4647 = vmatpush.bf16.msra.mxu0 %v3830
    %4648 = vmatpush.bf16.msra.mxu0 %v3814
    %4649 = vmatmul.bf16.gmra.mxu0 %v2851
    %v4650 = vpop.f32.mrf.mxu0
    %v4651 = vadd.f32 %v4562, %v4650
    %v4652 = vpop.f32.mrf.mxu0
    %v4653 = vadd.f32 %v4564, %v4652
    %4654 = vmatmul.bf16.gmra.mxu0 %v2853
    %v4655 = vpop.f32.mrf.mxu0
    %v4656 = vadd.f32 %v4567, %v4655
    %v4657 = vpop.f32.mrf.mxu0
    %v4658 = vadd.f32 %v4569, %v4657
    %4659 = vmatmul.bf16.gmra.mxu0 %v2855
    %v4660 = vpop.f32.mrf.mxu0
    %v4661 = vadd.f32 %v4572, %v4660
    %v4662 = vpop.f32.mrf.mxu0
    %v4663 = vadd.f32 %v4574, %v4662
    %4664 = vmatmul.bf16.gmra.mxu0 %v2857
    %v4665 = vpop.f32.mrf.mxu0
    %v4666 = vadd.f32 %v4577, %v4665
    %v4667 = vpop.f32.mrf.mxu0
    %v4668 = vadd.f32 %v4579, %v4667
    %4669 = vmatmul.bf16.gmra.mxu0 %v2859
    %v4670 = vpop.f32.mrf.mxu0
    %v4671 = vadd.f32 %v4582, %v4670
    %v4672 = vpop.f32.mrf.mxu0
    %v4673 = vadd.f32 %v4584, %v4672
    %4674 = vmatmul.bf16.gmra.mxu0 %v2861
    %v4675 = vpop.f32.mrf.mxu0
    %v4676 = vadd.f32 %v4587, %v4675
    %v4677 = vpop.f32.mrf.mxu0
    %v4678 = vadd.f32 %v4589, %v4677
    %4679 = vmatmul.bf16.gmra.mxu0 %v2863
    %v4680 = vpop.f32.mrf.mxu0
    %v4681 = vadd.f32 %v4592, %v4680
    %v4682 = vpop.f32.mrf.mxu0
    %v4683 = vadd.f32 %v4594, %v4682
    %4684 = vmatmul.bf16.gmra.mxu0 %v2865
    %v4685 = vpop.f32.mrf.mxu0
    %v4686 = vadd.f32 %v4597, %v4685
    %v4687 = vpop.f32.mrf.mxu0
    %v4688 = vadd.f32 %v4599, %v4687
    %4689 = vmatmul.bf16.gmra.mxu0 %v2867
    %v4690 = vpop.f32.mrf.mxu0
    %v4691 = vadd.f32 %v4602, %v4690
    %v4692 = vpop.f32.mrf.mxu0
    %v4693 = vadd.f32 %v4604, %v4692
    %4694 = vmatmul.bf16.gmra.mxu0 %v2869
    %v4695 = vpop.f32.mrf.mxu0
    %v4696 = vadd.f32 %v4607, %v4695
    %v4697 = vpop.f32.mrf.mxu0
    %v4698 = vadd.f32 %v4609, %v4697
    %4699 = vmatmul.bf16.gmra.mxu0 %v2871
    %v4700 = vpop.f32.mrf.mxu0
    %v4701 = vadd.f32 %v4612, %v4700
    %v4702 = vpop.f32.mrf.mxu0
    %v4703 = vadd.f32 %v4614, %v4702
    %4704 = vmatmul.bf16.gmra.mxu0 %v2873
    %v4705 = vpop.f32.mrf.mxu0
    %v4706 = vadd.f32 %v4617, %v4705
    %v4707 = vpop.f32.mrf.mxu0
    %v4708 = vadd.f32 %v4619, %v4707
    %4709 = vmatmul.bf16.gmra.mxu0 %v2875
    %v4710 = vpop.f32.mrf.mxu0
    %v4711 = vadd.f32 %v4622, %v4710
    %v4712 = vpop.f32.mrf.mxu0
    %v4713 = vadd.f32 %v4624, %v4712
    %4714 = vmatmul.bf16.gmra.mxu0 %v2877
    %v4715 = vpop.f32.mrf.mxu0
    %v4716 = vadd.f32 %v4627, %v4715
    %v4717 = vpop.f32.mrf.mxu0
    %v4718 = vadd.f32 %v4629, %v4717
    %4719 = vmatmul.bf16.gmra.mxu0 %v2879
    %v4720 = vpop.f32.mrf.mxu0
    %v4721 = vadd.f32 %v4632, %v4720
    %v4722 = vpop.f32.mrf.mxu0
    %v4723 = vadd.f32 %v4634, %v4722
    %4724 = vmatmul.bf16.gmra.mxu0 %v2881
    %v4725 = vpop.f32.mrf.mxu0
    %v4726 = vadd.f32 %v4637, %v4725
    %v4727 = vpop.f32.mrf.mxu0
    %v4728 = vadd.f32 %v4639, %v4727
    %4729 = vdwg.mxu0
    %4730 = vmatpush.bf16.msra.mxu0 %v3799
    %4731 = vmatpush.bf16.msra.mxu0 %v3783
    %4732 = vmatpush.bf16.msra.mxu0 %v3767
    %4733 = vmatpush.bf16.msra.mxu0 %v3751
    %4734 = vmatpush.bf16.msra.mxu0 %v3735
    %4735 = vmatpush.bf16.msra.mxu0 %v3719
    %4736 = vmatpush.bf16.msra.mxu0 %v3703
    %4737 = vmatpush.bf16.msra.mxu0 %v3687
    %4738 = vmatmul.bf16.gmra.mxu0 %v2850
    %v4739 = vpop.f32.mrf.mxu0
    %v4740 = vadd.f32 %v2887, %v4739
    %v4741 = vpop.f32.mrf.mxu0
    %v4742 = vadd.f32 %v2887, %v4741
    %4743 = vmatmul.bf16.gmra.mxu0 %v2852
    %v4744 = vpop.f32.mrf.mxu0
    %v4745 = vadd.f32 %v2887, %v4744
    %v4746 = vpop.f32.mrf.mxu0
    %v4747 = vadd.f32 %v2887, %v4746
    %4748 = vmatmul.bf16.gmra.mxu0 %v2854
    %v4749 = vpop.f32.mrf.mxu0
    %v4750 = vadd.f32 %v2887, %v4749
    %v4751 = vpop.f32.mrf.mxu0
    %v4752 = vadd.f32 %v2887, %v4751
    %4753 = vmatmul.bf16.gmra.mxu0 %v2856
    %v4754 = vpop.f32.mrf.mxu0
    %v4755 = vadd.f32 %v2887, %v4754
    %v4756 = vpop.f32.mrf.mxu0
    %v4757 = vadd.f32 %v2887, %v4756
    %4758 = vmatmul.bf16.gmra.mxu0 %v2858
    %v4759 = vpop.f32.mrf.mxu0
    %v4760 = vadd.f32 %v2887, %v4759
    %v4761 = vpop.f32.mrf.mxu0
    %v4762 = vadd.f32 %v2887, %v4761
    %4763 = vmatmul.bf16.gmra.mxu0 %v2860
    %v4764 = vpop.f32.mrf.mxu0
    %v4765 = vadd.f32 %v2887, %v4764
    %v4766 = vpop.f32.mrf.mxu0
    %v4767 = vadd.f32 %v2887, %v4766
    %4768 = vmatmul.bf16.gmra.mxu0 %v2862
    %v4769 = vpop.f32.mrf.mxu0
    %v4770 = vadd.f32 %v2887, %v4769
    %v4771 = vpop.f32.mrf.mxu0
    %v4772 = vadd.f32 %v2887, %v4771
    %4773 = vmatmul.bf16.gmra.mxu0 %v2864
    %v4774 = vpop.f32.mrf.mxu0
    %v4775 = vadd.f32 %v2887, %v4774
    %v4776 = vpop.f32.mrf.mxu0
    %v4777 = vadd.f32 %v2887, %v4776
    %4778 = vmatmul.bf16.gmra.mxu0 %v2866
    %v4779 = vpop.f32.mrf.mxu0
    %v4780 = vadd.f32 %v2887, %v4779
    %v4781 = vpop.f32.mrf.mxu0
    %v4782 = vadd.f32 %v2887, %v4781
    %4783 = vmatmul.bf16.gmra.mxu0 %v2868
    %v4784 = vpop.f32.mrf.mxu0
    %v4785 = vadd.f32 %v2887, %v4784
    %v4786 = vpop.f32.mrf.mxu0
    %v4787 = vadd.f32 %v2887, %v4786
    %4788 = vmatmul.bf16.gmra.mxu0 %v2870
    %v4789 = vpop.f32.mrf.mxu0
    %v4790 = vadd.f32 %v2887, %v4789
    %v4791 = vpop.f32.mrf.mxu0
    %v4792 = vadd.f32 %v2887, %v4791
    %4793 = vmatmul.bf16.gmra.mxu0 %v2872
    %v4794 = vpop.f32.mrf.mxu0
    %v4795 = vadd.f32 %v2887, %v4794
    %v4796 = vpop.f32.mrf.mxu0
    %v4797 = vadd.f32 %v2887, %v4796
    %4798 = vmatmul.bf16.gmra.mxu0 %v2874
    %v4799 = vpop.f32.mrf.mxu0
    %v4800 = vadd.f32 %v2887, %v4799
    %v4801 = vpop.f32.mrf.mxu0
    %v4802 = vadd.f32 %v2887, %v4801
    %4803 = vmatmul.bf16.gmra.mxu0 %v2876
    %v4804 = vpop.f32.mrf.mxu0
    %v4805 = vadd.f32 %v2887, %v4804
    %v4806 = vpop.f32.mrf.mxu0
    %v4807 = vadd.f32 %v2887, %v4806
    %4808 = vmatmul.bf16.gmra.mxu0 %v2878
    %v4809 = vpop.f32.mrf.mxu0
    %v4810 = vadd.f32 %v2887, %v4809
    %v4811 = vpop.f32.mrf.mxu0
    %v4812 = vadd.f32 %v2887, %v4811
    %4813 = vmatmul.bf16.gmra.mxu0 %v2880
    %v4814 = vpop.f32.mrf.mxu0
    %v4815 = vadd.f32 %v2887, %v4814
    %v4816 = vpop.f32.mrf.mxu0
    %v4817 = vadd.f32 %v2887, %v4816
    %4818 = vdwg.mxu0
    %4819 = vmatpush.bf16.msra.mxu0 %v3927
    %4820 = vmatpush.bf16.msra.mxu0 %v3911
    %4821 = vmatpush.bf16.msra.mxu0 %v3895
    %4822 = vmatpush.bf16.msra.mxu0 %v3879
    %4823 = vmatpush.bf16.msra.mxu0 %v3863
    %4824 = vmatpush.bf16.msra.mxu0 %v3847
    %4825 = vmatpush.bf16.msra.mxu0 %v3831
    %4826 = vmatpush.bf16.msra.mxu0 %v3815
    %4827 = vmatmul.bf16.gmra.mxu0 %v2851
    %v4828 = vpop.f32.mrf.mxu0
    %v4829 = vadd.f32 %v4740, %v4828
    %v4830 = vpop.f32.mrf.mxu0
    %v4831 = vadd.f32 %v4742, %v4830
    %4832 = vmatmul.bf16.gmra.mxu0 %v2853
    %v4833 = vpop.f32.mrf.mxu0
    %v4834 = vadd.f32 %v4745, %v4833
    %v4835 = vpop.f32.mrf.mxu0
    %v4836 = vadd.f32 %v4747, %v4835
    %4837 = vmatmul.bf16.gmra.mxu0 %v2855
    %v4838 = vpop.f32.mrf.mxu0
    %v4839 = vadd.f32 %v4750, %v4838
    %v4840 = vpop.f32.mrf.mxu0
    %v4841 = vadd.f32 %v4752, %v4840
    %4842 = vmatmul.bf16.gmra.mxu0 %v2857
    %v4843 = vpop.f32.mrf.mxu0
    %v4844 = vadd.f32 %v4755, %v4843
    %v4845 = vpop.f32.mrf.mxu0
    %v4846 = vadd.f32 %v4757, %v4845
    %4847 = vmatmul.bf16.gmra.mxu0 %v2859
    %v4848 = vpop.f32.mrf.mxu0
    %v4849 = vadd.f32 %v4760, %v4848
    %v4850 = vpop.f32.mrf.mxu0
    %v4851 = vadd.f32 %v4762, %v4850
    %4852 = vmatmul.bf16.gmra.mxu0 %v2861
    %v4853 = vpop.f32.mrf.mxu0
    %v4854 = vadd.f32 %v4765, %v4853
    %v4855 = vpop.f32.mrf.mxu0
    %v4856 = vadd.f32 %v4767, %v4855
    %4857 = vmatmul.bf16.gmra.mxu0 %v2863
    %v4858 = vpop.f32.mrf.mxu0
    %v4859 = vadd.f32 %v4770, %v4858
    %v4860 = vpop.f32.mrf.mxu0
    %v4861 = vadd.f32 %v4772, %v4860
    %4862 = vmatmul.bf16.gmra.mxu0 %v2865
    %v4863 = vpop.f32.mrf.mxu0
    %v4864 = vadd.f32 %v4775, %v4863
    %v4865 = vpop.f32.mrf.mxu0
    %v4866 = vadd.f32 %v4777, %v4865
    %4867 = vmatmul.bf16.gmra.mxu0 %v2867
    %v4868 = vpop.f32.mrf.mxu0
    %v4869 = vadd.f32 %v4780, %v4868
    %v4870 = vpop.f32.mrf.mxu0
    %v4871 = vadd.f32 %v4782, %v4870
    %4872 = vmatmul.bf16.gmra.mxu0 %v2869
    %v4873 = vpop.f32.mrf.mxu0
    %v4874 = vadd.f32 %v4785, %v4873
    %v4875 = vpop.f32.mrf.mxu0
    %v4876 = vadd.f32 %v4787, %v4875
    %4877 = vmatmul.bf16.gmra.mxu0 %v2871
    %v4878 = vpop.f32.mrf.mxu0
    %v4879 = vadd.f32 %v4790, %v4878
    %v4880 = vpop.f32.mrf.mxu0
    %v4881 = vadd.f32 %v4792, %v4880
    %4882 = vmatmul.bf16.gmra.mxu0 %v2873
    %v4883 = vpop.f32.mrf.mxu0
    %v4884 = vadd.f32 %v4795, %v4883
    %v4885 = vpop.f32.mrf.mxu0
    %v4886 = vadd.f32 %v4797, %v4885
    %4887 = vmatmul.bf16.gmra.mxu0 %v2875
    %v4888 = vpop.f32.mrf.mxu0
    %v4889 = vadd.f32 %v4800, %v4888
    %v4890 = vpop.f32.mrf.mxu0
    %v4891 = vadd.f32 %v4802, %v4890
    %4892 = vmatmul.bf16.gmra.mxu0 %v2877
    %v4893 = vpop.f32.mrf.mxu0
    %v4894 = vadd.f32 %v4805, %v4893
    %v4895 = vpop.f32.mrf.mxu0
    %v4896 = vadd.f32 %v4807, %v4895
    %4897 = vmatmul.bf16.gmra.mxu0 %v2879
    %v4898 = vpop.f32.mrf.mxu0
    %v4899 = vadd.f32 %v4810, %v4898
    %v4900 = vpop.f32.mrf.mxu0
    %v4901 = vadd.f32 %v4812, %v4900
    %4902 = vmatmul.bf16.gmra.mxu0 %v2881
    %v4903 = vpop.f32.mrf.mxu0
    %v4904 = vadd.f32 %v4815, %v4903
    %v4905 = vpop.f32.mrf.mxu0
    %v4906 = vadd.f32 %v4817, %v4905
    %4907 = vdwg.mxu0
    %4908 = vmatpush.bf16.msra.mxu0 %v3800
    %4909 = vmatpush.bf16.msra.mxu0 %v3784
    %4910 = vmatpush.bf16.msra.mxu0 %v3768
    %4911 = vmatpush.bf16.msra.mxu0 %v3752
    %4912 = vmatpush.bf16.msra.mxu0 %v3736
    %4913 = vmatpush.bf16.msra.mxu0 %v3720
    %4914 = vmatpush.bf16.msra.mxu0 %v3704
    %4915 = vmatpush.bf16.msra.mxu0 %v3688
    %4916 = vmatmul.bf16.gmra.mxu0 %v2850
    %v4917 = vpop.f32.mrf.mxu0
    %v4918 = vadd.f32 %v2888, %v4917
    %v4919 = vpop.f32.mrf.mxu0
    %v4920 = vadd.f32 %v2888, %v4919
    %4921 = vmatmul.bf16.gmra.mxu0 %v2852
    %v4922 = vpop.f32.mrf.mxu0
    %v4923 = vadd.f32 %v2888, %v4922
    %v4924 = vpop.f32.mrf.mxu0
    %v4925 = vadd.f32 %v2888, %v4924
    %4926 = vmatmul.bf16.gmra.mxu0 %v2854
    %v4927 = vpop.f32.mrf.mxu0
    %v4928 = vadd.f32 %v2888, %v4927
    %v4929 = vpop.f32.mrf.mxu0
    %v4930 = vadd.f32 %v2888, %v4929
    %4931 = vmatmul.bf16.gmra.mxu0 %v2856
    %v4932 = vpop.f32.mrf.mxu0
    %v4933 = vadd.f32 %v2888, %v4932
    %v4934 = vpop.f32.mrf.mxu0
    %v4935 = vadd.f32 %v2888, %v4934
    %4936 = vmatmul.bf16.gmra.mxu0 %v2858
    %v4937 = vpop.f32.mrf.mxu0
    %v4938 = vadd.f32 %v2888, %v4937
    %v4939 = vpop.f32.mrf.mxu0
    %v4940 = vadd.f32 %v2888, %v4939
    %4941 = vmatmul.bf16.gmra.mxu0 %v2860
    %v4942 = vpop.f32.mrf.mxu0
    %v4943 = vadd.f32 %v2888, %v4942
    %v4944 = vpop.f32.mrf.mxu0
    %v4945 = vadd.f32 %v2888, %v4944
    %4946 = vmatmul.bf16.gmra.mxu0 %v2862
    %v4947 = vpop.f32.mrf.mxu0
    %v4948 = vadd.f32 %v2888, %v4947
    %v4949 = vpop.f32.mrf.mxu0
    %v4950 = vadd.f32 %v2888, %v4949
    %4951 = vmatmul.bf16.gmra.mxu0 %v2864
    %v4952 = vpop.f32.mrf.mxu0
    %v4953 = vadd.f32 %v2888, %v4952
    %v4954 = vpop.f32.mrf.mxu0
    %v4955 = vadd.f32 %v2888, %v4954
    %4956 = vmatmul.bf16.gmra.mxu0 %v2866
    %v4957 = vpop.f32.mrf.mxu0
    %v4958 = vadd.f32 %v2888, %v4957
    %v4959 = vpop.f32.mrf.mxu0
    %v4960 = vadd.f32 %v2888, %v4959
    %4961 = vmatmul.bf16.gmra.mxu0 %v2868
    %v4962 = vpop.f32.mrf.mxu0
    %v4963 = vadd.f32 %v2888, %v4962
    %v4964 = vpop.f32.mrf.mxu0
    %v4965 = vadd.f32 %v2888, %v4964
    %4966 = vmatmul.bf16.gmra.mxu0 %v2870
    %v4967 = vpop.f32.mrf.mxu0
    %v4968 = vadd.f32 %v2888, %v4967
    %v4969 = vpop.f32.mrf.mxu0
    %v4970 = vadd.f32 %v2888, %v4969
    %4971 = vmatmul.bf16.gmra.mxu0 %v2872
    %v4972 = vpop.f32.mrf.mxu0
    %v4973 = vadd.f32 %v2888, %v4972
    %v4974 = vpop.f32.mrf.mxu0
    %v4975 = vadd.f32 %v2888, %v4974
    %4976 = vmatmul.bf16.gmra.mxu0 %v2874
    %v4977 = vpop.f32.mrf.mxu0
    %v4978 = vadd.f32 %v2888, %v4977
    %v4979 = vpop.f32.mrf.mxu0
    %v4980 = vadd.f32 %v2888, %v4979
    %4981 = vmatmul.bf16.gmra.mxu0 %v2876
    %v4982 = vpop.f32.mrf.mxu0
    %v4983 = vadd.f32 %v2888, %v4982
    %v4984 = vpop.f32.mrf.mxu0
    %v4985 = vadd.f32 %v2888, %v4984
    %4986 = vmatmul.bf16.gmra.mxu0 %v2878
    %v4987 = vpop.f32.mrf.mxu0
    %v4988 = vadd.f32 %v2888, %v4987
    %v4989 = vpop.f32.mrf.mxu0
    %v4990 = vadd.f32 %v2888, %v4989
    %4991 = vmatmul.bf16.gmra.mxu0 %v2880
    %v4992 = vpop.f32.mrf.mxu0
    %v4993 = vadd.f32 %v2888, %v4992
    %v4994 = vpop.f32.mrf.mxu0
    %v4995 = vadd.f32 %v2888, %v4994
    %4996 = vdwg.mxu0
    %4997 = vmatpush.bf16.msra.mxu0 %v3928
    %4998 = vmatpush.bf16.msra.mxu0 %v3912
    %4999 = vmatpush.bf16.msra.mxu0 %v3896
    %5000 = vmatpush.bf16.msra.mxu0 %v3880
    %5001 = vmatpush.bf16.msra.mxu0 %v3864
    %5002 = vmatpush.bf16.msra.mxu0 %v3848
    %5003 = vmatpush.bf16.msra.mxu0 %v3832
    %5004 = vmatpush.bf16.msra.mxu0 %v3816
    %5005 = vmatmul.bf16.gmra.mxu0 %v2851
    %v5006 = vpop.f32.mrf.mxu0
    %v5007 = vadd.f32 %v4918, %v5006
    %v5008 = vpop.f32.mrf.mxu0
    %v5009 = vadd.f32 %v4920, %v5008
    %5010 = vmatmul.bf16.gmra.mxu0 %v2853
    %v5011 = vpop.f32.mrf.mxu0
    %v5012 = vadd.f32 %v4923, %v5011
    %v5013 = vpop.f32.mrf.mxu0
    %v5014 = vadd.f32 %v4925, %v5013
    %5015 = vmatmul.bf16.gmra.mxu0 %v2855
    %v5016 = vpop.f32.mrf.mxu0
    %v5017 = vadd.f32 %v4928, %v5016
    %v5018 = vpop.f32.mrf.mxu0
    %v5019 = vadd.f32 %v4930, %v5018
    %5020 = vmatmul.bf16.gmra.mxu0 %v2857
    %v5021 = vpop.f32.mrf.mxu0
    %v5022 = vadd.f32 %v4933, %v5021
    %v5023 = vpop.f32.mrf.mxu0
    %v5024 = vadd.f32 %v4935, %v5023
    %5025 = vmatmul.bf16.gmra.mxu0 %v2859
    %v5026 = vpop.f32.mrf.mxu0
    %v5027 = vadd.f32 %v4938, %v5026
    %v5028 = vpop.f32.mrf.mxu0
    %v5029 = vadd.f32 %v4940, %v5028
    %5030 = vmatmul.bf16.gmra.mxu0 %v2861
    %v5031 = vpop.f32.mrf.mxu0
    %v5032 = vadd.f32 %v4943, %v5031
    %v5033 = vpop.f32.mrf.mxu0
    %v5034 = vadd.f32 %v4945, %v5033
    %5035 = vmatmul.bf16.gmra.mxu0 %v2863
    %v5036 = vpop.f32.mrf.mxu0
    %v5037 = vadd.f32 %v4948, %v5036
    %v5038 = vpop.f32.mrf.mxu0
    %v5039 = vadd.f32 %v4950, %v5038
    %5040 = vmatmul.bf16.gmra.mxu0 %v2865
    %v5041 = vpop.f32.mrf.mxu0
    %v5042 = vadd.f32 %v4953, %v5041
    %v5043 = vpop.f32.mrf.mxu0
    %v5044 = vadd.f32 %v4955, %v5043
    %5045 = vmatmul.bf16.gmra.mxu0 %v2867
    %v5046 = vpop.f32.mrf.mxu0
    %v5047 = vadd.f32 %v4958, %v5046
    %v5048 = vpop.f32.mrf.mxu0
    %v5049 = vadd.f32 %v4960, %v5048
    %5050 = vmatmul.bf16.gmra.mxu0 %v2869
    %v5051 = vpop.f32.mrf.mxu0
    %v5052 = vadd.f32 %v4963, %v5051
    %v5053 = vpop.f32.mrf.mxu0
    %v5054 = vadd.f32 %v4965, %v5053
    %5055 = vmatmul.bf16.gmra.mxu0 %v2871
    %v5056 = vpop.f32.mrf.mxu0
    %v5057 = vadd.f32 %v4968, %v5056
    %v5058 = vpop.f32.mrf.mxu0
    %v5059 = vadd.f32 %v4970, %v5058
    %5060 = vmatmul.bf16.gmra.mxu0 %v2873
    %v5061 = vpop.f32.mrf.mxu0
    %v5062 = vadd.f32 %v4973, %v5061
    %v5063 = vpop.f32.mrf.mxu0
    %v5064 = vadd.f32 %v4975, %v5063
    %5065 = vmatmul.bf16.gmra.mxu0 %v2875
    %v5066 = vpop.f32.mrf.mxu0
    %v5067 = vadd.f32 %v4978, %v5066
    %v5068 = vpop.f32.mrf.mxu0
    %v5069 = vadd.f32 %v4980, %v5068
    %5070 = vmatmul.bf16.gmra.mxu0 %v2877
    %v5071 = vpop.f32.mrf.mxu0
    %v5072 = vadd.f32 %v4983, %v5071
    %v5073 = vpop.f32.mrf.mxu0
    %v5074 = vadd.f32 %v4985, %v5073
    %5075 = vmatmul.bf16.gmra.mxu0 %v2879
    %v5076 = vpop.f32.mrf.mxu0
    %v5077 = vadd.f32 %v4988, %v5076
    %v5078 = vpop.f32.mrf.mxu0
    %v5079 = vadd.f32 %v4990, %v5078
    %5080 = vmatmul.bf16.gmra.mxu0 %v2881
    %v5081 = vpop.f32.mrf.mxu0
    %v5082 = vadd.f32 %v4993, %v5081
    %v5083 = vpop.f32.mrf.mxu0
    %v5084 = vadd.f32 %v4995, %v5083
    %5085 = vdwg.mxu0
    %5086 = vmatpush.bf16.msra.mxu0 %v3801
    %5087 = vmatpush.bf16.msra.mxu0 %v3785
    %5088 = vmatpush.bf16.msra.mxu0 %v3769
    %5089 = vmatpush.bf16.msra.mxu0 %v3753
    %5090 = vmatpush.bf16.msra.mxu0 %v3737
    %5091 = vmatpush.bf16.msra.mxu0 %v3721
    %5092 = vmatpush.bf16.msra.mxu0 %v3705
    %5093 = vmatpush.bf16.msra.mxu0 %v3689
    %5094 = vmatmul.bf16.gmra.mxu0 %v2850
    %v5095 = vpop.f32.mrf.mxu0
    %v5096 = vadd.f32 %v2889, %v5095
    %v5097 = vpop.f32.mrf.mxu0
    %v5098 = vadd.f32 %v2889, %v5097
    %5099 = vmatmul.bf16.gmra.mxu0 %v2852
    %v5100 = vpop.f32.mrf.mxu0
    %v5101 = vadd.f32 %v2889, %v5100
    %v5102 = vpop.f32.mrf.mxu0
    %v5103 = vadd.f32 %v2889, %v5102
    %5104 = vmatmul.bf16.gmra.mxu0 %v2854
    %v5105 = vpop.f32.mrf.mxu0
    %v5106 = vadd.f32 %v2889, %v5105
    %v5107 = vpop.f32.mrf.mxu0
    %v5108 = vadd.f32 %v2889, %v5107
    %5109 = vmatmul.bf16.gmra.mxu0 %v2856
    %v5110 = vpop.f32.mrf.mxu0
    %v5111 = vadd.f32 %v2889, %v5110
    %v5112 = vpop.f32.mrf.mxu0
    %v5113 = vadd.f32 %v2889, %v5112
    %5114 = vmatmul.bf16.gmra.mxu0 %v2858
    %v5115 = vpop.f32.mrf.mxu0
    %v5116 = vadd.f32 %v2889, %v5115
    %v5117 = vpop.f32.mrf.mxu0
    %v5118 = vadd.f32 %v2889, %v5117
    %5119 = vmatmul.bf16.gmra.mxu0 %v2860
    %v5120 = vpop.f32.mrf.mxu0
    %v5121 = vadd.f32 %v2889, %v5120
    %v5122 = vpop.f32.mrf.mxu0
    %v5123 = vadd.f32 %v2889, %v5122
    %5124 = vmatmul.bf16.gmra.mxu0 %v2862
    %v5125 = vpop.f32.mrf.mxu0
    %v5126 = vadd.f32 %v2889, %v5125
    %v5127 = vpop.f32.mrf.mxu0
    %v5128 = vadd.f32 %v2889, %v5127
    %5129 = vmatmul.bf16.gmra.mxu0 %v2864
    %v5130 = vpop.f32.mrf.mxu0
    %v5131 = vadd.f32 %v2889, %v5130
    %v5132 = vpop.f32.mrf.mxu0
    %v5133 = vadd.f32 %v2889, %v5132
    %5134 = vmatmul.bf16.gmra.mxu0 %v2866
    %v5135 = vpop.f32.mrf.mxu0
    %v5136 = vadd.f32 %v2889, %v5135
    %v5137 = vpop.f32.mrf.mxu0
    %v5138 = vadd.f32 %v2889, %v5137
    %5139 = vmatmul.bf16.gmra.mxu0 %v2868
    %v5140 = vpop.f32.mrf.mxu0
    %v5141 = vadd.f32 %v2889, %v5140
    %v5142 = vpop.f32.mrf.mxu0
    %v5143 = vadd.f32 %v2889, %v5142
    %5144 = vmatmul.bf16.gmra.mxu0 %v2870
    %v5145 = vpop.f32.mrf.mxu0
    %v5146 = vadd.f32 %v2889, %v5145
    %v5147 = vpop.f32.mrf.mxu0
    %v5148 = vadd.f32 %v2889, %v5147
    %5149 = vmatmul.bf16.gmra.mxu0 %v2872
    %v5150 = vpop.f32.mrf.mxu0
    %v5151 = vadd.f32 %v2889, %v5150
    %v5152 = vpop.f32.mrf.mxu0
    %v5153 = vadd.f32 %v2889, %v5152
    %5154 = vmatmul.bf16.gmra.mxu0 %v2874
    %v5155 = vpop.f32.mrf.mxu0
    %v5156 = vadd.f32 %v2889, %v5155
    %v5157 = vpop.f32.mrf.mxu0
    %v5158 = vadd.f32 %v2889, %v5157
    %5159 = vmatmul.bf16.gmra.mxu0 %v2876
    %v5160 = vpop.f32.mrf.mxu0
    %v5161 = vadd.f32 %v2889, %v5160
    %v5162 = vpop.f32.mrf.mxu0
    %v5163 = vadd.f32 %v2889, %v5162
    %5164 = vmatmul.bf16.gmra.mxu0 %v2878
    %v5165 = vpop.f32.mrf.mxu0
    %v5166 = vadd.f32 %v2889, %v5165
    %v5167 = vpop.f32.mrf.mxu0
    %v5168 = vadd.f32 %v2889, %v5167
    %5169 = vmatmul.bf16.gmra.mxu0 %v2880
    %v5170 = vpop.f32.mrf.mxu0
    %v5171 = vadd.f32 %v2889, %v5170
    %v5172 = vpop.f32.mrf.mxu0
    %v5173 = vadd.f32 %v2889, %v5172
    %5174 = vdwg.mxu0
    %5175 = vmatpush.bf16.msra.mxu0 %v3929
    %5176 = vmatpush.bf16.msra.mxu0 %v3913
    %5177 = vmatpush.bf16.msra.mxu0 %v3897
    %5178 = vmatpush.bf16.msra.mxu0 %v3881
    %5179 = vmatpush.bf16.msra.mxu0 %v3865
    %5180 = vmatpush.bf16.msra.mxu0 %v3849
    %5181 = vmatpush.bf16.msra.mxu0 %v3833
    %5182 = vmatpush.bf16.msra.mxu0 %v3817
    %5183 = vmatmul.bf16.gmra.mxu0 %v2851
    %v5184 = vpop.f32.mrf.mxu0
    %v5185 = vadd.f32 %v5096, %v5184
    %v5186 = vpop.f32.mrf.mxu0
    %v5187 = vadd.f32 %v5098, %v5186
    %5188 = vmatmul.bf16.gmra.mxu0 %v2853
    %v5189 = vpop.f32.mrf.mxu0
    %v5190 = vadd.f32 %v5101, %v5189
    %v5191 = vpop.f32.mrf.mxu0
    %v5192 = vadd.f32 %v5103, %v5191
    %5193 = vmatmul.bf16.gmra.mxu0 %v2855
    %v5194 = vpop.f32.mrf.mxu0
    %v5195 = vadd.f32 %v5106, %v5194
    %v5196 = vpop.f32.mrf.mxu0
    %v5197 = vadd.f32 %v5108, %v5196
    %5198 = vmatmul.bf16.gmra.mxu0 %v2857
    %v5199 = vpop.f32.mrf.mxu0
    %v5200 = vadd.f32 %v5111, %v5199
    %v5201 = vpop.f32.mrf.mxu0
    %v5202 = vadd.f32 %v5113, %v5201
    %5203 = vmatmul.bf16.gmra.mxu0 %v2859
    %v5204 = vpop.f32.mrf.mxu0
    %v5205 = vadd.f32 %v5116, %v5204
    %v5206 = vpop.f32.mrf.mxu0
    %v5207 = vadd.f32 %v5118, %v5206
    %5208 = vmatmul.bf16.gmra.mxu0 %v2861
    %v5209 = vpop.f32.mrf.mxu0
    %v5210 = vadd.f32 %v5121, %v5209
    %v5211 = vpop.f32.mrf.mxu0
    %v5212 = vadd.f32 %v5123, %v5211
    %5213 = vmatmul.bf16.gmra.mxu0 %v2863
    %v5214 = vpop.f32.mrf.mxu0
    %v5215 = vadd.f32 %v5126, %v5214
    %v5216 = vpop.f32.mrf.mxu0
    %v5217 = vadd.f32 %v5128, %v5216
    %5218 = vmatmul.bf16.gmra.mxu0 %v2865
    %v5219 = vpop.f32.mrf.mxu0
    %v5220 = vadd.f32 %v5131, %v5219
    %v5221 = vpop.f32.mrf.mxu0
    %v5222 = vadd.f32 %v5133, %v5221
    %5223 = vmatmul.bf16.gmra.mxu0 %v2867
    %v5224 = vpop.f32.mrf.mxu0
    %v5225 = vadd.f32 %v5136, %v5224
    %v5226 = vpop.f32.mrf.mxu0
    %v5227 = vadd.f32 %v5138, %v5226
    %5228 = vmatmul.bf16.gmra.mxu0 %v2869
    %v5229 = vpop.f32.mrf.mxu0
    %v5230 = vadd.f32 %v5141, %v5229
    %v5231 = vpop.f32.mrf.mxu0
    %v5232 = vadd.f32 %v5143, %v5231
    %5233 = vmatmul.bf16.gmra.mxu0 %v2871
    %v5234 = vpop.f32.mrf.mxu0
    %v5235 = vadd.f32 %v5146, %v5234
    %v5236 = vpop.f32.mrf.mxu0
    %v5237 = vadd.f32 %v5148, %v5236
    %5238 = vmatmul.bf16.gmra.mxu0 %v2873
    %v5239 = vpop.f32.mrf.mxu0
    %v5240 = vadd.f32 %v5151, %v5239
    %v5241 = vpop.f32.mrf.mxu0
    %v5242 = vadd.f32 %v5153, %v5241
    %5243 = vmatmul.bf16.gmra.mxu0 %v2875
    %v5244 = vpop.f32.mrf.mxu0
    %v5245 = vadd.f32 %v5156, %v5244
    %v5246 = vpop.f32.mrf.mxu0
    %v5247 = vadd.f32 %v5158, %v5246
    %5248 = vmatmul.bf16.gmra.mxu0 %v2877
    %v5249 = vpop.f32.mrf.mxu0
    %v5250 = vadd.f32 %v5161, %v5249
    %v5251 = vpop.f32.mrf.mxu0
    %v5252 = vadd.f32 %v5163, %v5251
    %5253 = vmatmul.bf16.gmra.mxu0 %v2879
    %v5254 = vpop.f32.mrf.mxu0
    %v5255 = vadd.f32 %v5166, %v5254
    %v5256 = vpop.f32.mrf.mxu0
    %v5257 = vadd.f32 %v5168, %v5256
    %5258 = vmatmul.bf16.gmra.mxu0 %v2881
    %v5259 = vpop.f32.mrf.mxu0
    %v5260 = vadd.f32 %v5171, %v5259
    %v5261 = vpop.f32.mrf.mxu0
    %v5262 = vadd.f32 %v5173, %v5261
    %5263 = vdwg.mxu0
    %5264 = vmatpush.bf16.msra.mxu0 %v3802
    %5265 = vmatpush.bf16.msra.mxu0 %v3786
    %5266 = vmatpush.bf16.msra.mxu0 %v3770
    %5267 = vmatpush.bf16.msra.mxu0 %v3754
    %5268 = vmatpush.bf16.msra.mxu0 %v3738
    %5269 = vmatpush.bf16.msra.mxu0 %v3722
    %5270 = vmatpush.bf16.msra.mxu0 %v3706
    %5271 = vmatpush.bf16.msra.mxu0 %v3690
    %5272 = vmatmul.bf16.gmra.mxu0 %v2850
    %v5273 = vpop.f32.mrf.mxu0
    %v5274 = vadd.f32 %v2890, %v5273
    %v5275 = vpop.f32.mrf.mxu0
    %v5276 = vadd.f32 %v2890, %v5275
    %5277 = vmatmul.bf16.gmra.mxu0 %v2852
    %v5278 = vpop.f32.mrf.mxu0
    %v5279 = vadd.f32 %v2890, %v5278
    %v5280 = vpop.f32.mrf.mxu0
    %v5281 = vadd.f32 %v2890, %v5280
    %5282 = vmatmul.bf16.gmra.mxu0 %v2854
    %v5283 = vpop.f32.mrf.mxu0
    %v5284 = vadd.f32 %v2890, %v5283
    %v5285 = vpop.f32.mrf.mxu0
    %v5286 = vadd.f32 %v2890, %v5285
    %5287 = vmatmul.bf16.gmra.mxu0 %v2856
    %v5288 = vpop.f32.mrf.mxu0
    %v5289 = vadd.f32 %v2890, %v5288
    %v5290 = vpop.f32.mrf.mxu0
    %v5291 = vadd.f32 %v2890, %v5290
    %5292 = vmatmul.bf16.gmra.mxu0 %v2858
    %v5293 = vpop.f32.mrf.mxu0
    %v5294 = vadd.f32 %v2890, %v5293
    %v5295 = vpop.f32.mrf.mxu0
    %v5296 = vadd.f32 %v2890, %v5295
    %5297 = vmatmul.bf16.gmra.mxu0 %v2860
    %v5298 = vpop.f32.mrf.mxu0
    %v5299 = vadd.f32 %v2890, %v5298
    %v5300 = vpop.f32.mrf.mxu0
    %v5301 = vadd.f32 %v2890, %v5300
    %5302 = vmatmul.bf16.gmra.mxu0 %v2862
    %v5303 = vpop.f32.mrf.mxu0
    %v5304 = vadd.f32 %v2890, %v5303
    %v5305 = vpop.f32.mrf.mxu0
    %v5306 = vadd.f32 %v2890, %v5305
    %5307 = vmatmul.bf16.gmra.mxu0 %v2864
    %v5308 = vpop.f32.mrf.mxu0
    %v5309 = vadd.f32 %v2890, %v5308
    %v5310 = vpop.f32.mrf.mxu0
    %v5311 = vadd.f32 %v2890, %v5310
    %5312 = vmatmul.bf16.gmra.mxu0 %v2866
    %v5313 = vpop.f32.mrf.mxu0
    %v5314 = vadd.f32 %v2890, %v5313
    %v5315 = vpop.f32.mrf.mxu0
    %v5316 = vadd.f32 %v2890, %v5315
    %5317 = vmatmul.bf16.gmra.mxu0 %v2868
    %v5318 = vpop.f32.mrf.mxu0
    %v5319 = vadd.f32 %v2890, %v5318
    %v5320 = vpop.f32.mrf.mxu0
    %v5321 = vadd.f32 %v2890, %v5320
    %5322 = vmatmul.bf16.gmra.mxu0 %v2870
    %v5323 = vpop.f32.mrf.mxu0
    %v5324 = vadd.f32 %v2890, %v5323
    %v5325 = vpop.f32.mrf.mxu0
    %v5326 = vadd.f32 %v2890, %v5325
    %5327 = vmatmul.bf16.gmra.mxu0 %v2872
    %v5328 = vpop.f32.mrf.mxu0
    %v5329 = vadd.f32 %v2890, %v5328
    %v5330 = vpop.f32.mrf.mxu0
    %v5331 = vadd.f32 %v2890, %v5330
    %5332 = vmatmul.bf16.gmra.mxu0 %v2874
    %v5333 = vpop.f32.mrf.mxu0
    %v5334 = vadd.f32 %v2890, %v5333
    %v5335 = vpop.f32.mrf.mxu0
    %v5336 = vadd.f32 %v2890, %v5335
    %5337 = vmatmul.bf16.gmra.mxu0 %v2876
    %v5338 = vpop.f32.mrf.mxu0
    %v5339 = vadd.f32 %v2890, %v5338
    %v5340 = vpop.f32.mrf.mxu0
    %v5341 = vadd.f32 %v2890, %v5340
    %5342 = vmatmul.bf16.gmra.mxu0 %v2878
    %v5343 = vpop.f32.mrf.mxu0
    %v5344 = vadd.f32 %v2890, %v5343
    %v5345 = vpop.f32.mrf.mxu0
    %v5346 = vadd.f32 %v2890, %v5345
    %5347 = vmatmul.bf16.gmra.mxu0 %v2880
    %v5348 = vpop.f32.mrf.mxu0
    %v5349 = vadd.f32 %v2890, %v5348
    %v5350 = vpop.f32.mrf.mxu0
    %v5351 = vadd.f32 %v2890, %v5350
    %5352 = vdwg.mxu0
    %5353 = vmatpush.bf16.msra.mxu0 %v3930
    %5354 = vmatpush.bf16.msra.mxu0 %v3914
    %5355 = vmatpush.bf16.msra.mxu0 %v3898
    %5356 = vmatpush.bf16.msra.mxu0 %v3882
    %5357 = vmatpush.bf16.msra.mxu0 %v3866
    %5358 = vmatpush.bf16.msra.mxu0 %v3850
    %5359 = vmatpush.bf16.msra.mxu0 %v3834
    %5360 = vmatpush.bf16.msra.mxu0 %v3818
    %5361 = vmatmul.bf16.gmra.mxu0 %v2851
    %v5362 = vpop.f32.mrf.mxu0
    %v5363 = vadd.f32 %v5274, %v5362
    %v5364 = vpop.f32.mrf.mxu0
    %v5365 = vadd.f32 %v5276, %v5364
    %5366 = vmatmul.bf16.gmra.mxu0 %v2853
    %v5367 = vpop.f32.mrf.mxu0
    %v5368 = vadd.f32 %v5279, %v5367
    %v5369 = vpop.f32.mrf.mxu0
    %v5370 = vadd.f32 %v5281, %v5369
    %5371 = vmatmul.bf16.gmra.mxu0 %v2855
    %v5372 = vpop.f32.mrf.mxu0
    %v5373 = vadd.f32 %v5284, %v5372
    %v5374 = vpop.f32.mrf.mxu0
    %v5375 = vadd.f32 %v5286, %v5374
    %5376 = vmatmul.bf16.gmra.mxu0 %v2857
    %v5377 = vpop.f32.mrf.mxu0
    %v5378 = vadd.f32 %v5289, %v5377
    %v5379 = vpop.f32.mrf.mxu0
    %v5380 = vadd.f32 %v5291, %v5379
    %5381 = vmatmul.bf16.gmra.mxu0 %v2859
    %v5382 = vpop.f32.mrf.mxu0
    %v5383 = vadd.f32 %v5294, %v5382
    %v5384 = vpop.f32.mrf.mxu0
    %v5385 = vadd.f32 %v5296, %v5384
    %5386 = vmatmul.bf16.gmra.mxu0 %v2861
    %v5387 = vpop.f32.mrf.mxu0
    %v5388 = vadd.f32 %v5299, %v5387
    %v5389 = vpop.f32.mrf.mxu0
    %v5390 = vadd.f32 %v5301, %v5389
    %5391 = vmatmul.bf16.gmra.mxu0 %v2863
    %v5392 = vpop.f32.mrf.mxu0
    %v5393 = vadd.f32 %v5304, %v5392
    %v5394 = vpop.f32.mrf.mxu0
    %v5395 = vadd.f32 %v5306, %v5394
    %5396 = vmatmul.bf16.gmra.mxu0 %v2865
    %v5397 = vpop.f32.mrf.mxu0
    %v5398 = vadd.f32 %v5309, %v5397
    %v5399 = vpop.f32.mrf.mxu0
    %v5400 = vadd.f32 %v5311, %v5399
    %5401 = vmatmul.bf16.gmra.mxu0 %v2867
    %v5402 = vpop.f32.mrf.mxu0
    %v5403 = vadd.f32 %v5314, %v5402
    %v5404 = vpop.f32.mrf.mxu0
    %v5405 = vadd.f32 %v5316, %v5404
    %5406 = vmatmul.bf16.gmra.mxu0 %v2869
    %v5407 = vpop.f32.mrf.mxu0
    %v5408 = vadd.f32 %v5319, %v5407
    %v5409 = vpop.f32.mrf.mxu0
    %v5410 = vadd.f32 %v5321, %v5409
    %5411 = vmatmul.bf16.gmra.mxu0 %v2871
    %v5412 = vpop.f32.mrf.mxu0
    %v5413 = vadd.f32 %v5324, %v5412
    %v5414 = vpop.f32.mrf.mxu0
    %v5415 = vadd.f32 %v5326, %v5414
    %5416 = vmatmul.bf16.gmra.mxu0 %v2873
    %v5417 = vpop.f32.mrf.mxu0
    %v5418 = vadd.f32 %v5329, %v5417
    %v5419 = vpop.f32.mrf.mxu0
    %v5420 = vadd.f32 %v5331, %v5419
    %5421 = vmatmul.bf16.gmra.mxu0 %v2875
    %v5422 = vpop.f32.mrf.mxu0
    %v5423 = vadd.f32 %v5334, %v5422
    %v5424 = vpop.f32.mrf.mxu0
    %v5425 = vadd.f32 %v5336, %v5424
    %5426 = vmatmul.bf16.gmra.mxu0 %v2877
    %v5427 = vpop.f32.mrf.mxu0
    %v5428 = vadd.f32 %v5339, %v5427
    %v5429 = vpop.f32.mrf.mxu0
    %v5430 = vadd.f32 %v5341, %v5429
    %5431 = vmatmul.bf16.gmra.mxu0 %v2879
    %v5432 = vpop.f32.mrf.mxu0
    %v5433 = vadd.f32 %v5344, %v5432
    %v5434 = vpop.f32.mrf.mxu0
    %v5435 = vadd.f32 %v5346, %v5434
    %5436 = vmatmul.bf16.gmra.mxu0 %v2881
    %v5437 = vpop.f32.mrf.mxu0
    %v5438 = vadd.f32 %v5349, %v5437
    %v5439 = vpop.f32.mrf.mxu0
    %v5440 = vadd.f32 %v5351, %v5439
    %5441 = vdwg.mxu0
    %5442 = vmatpush.bf16.msra.mxu0 %v3803
    %5443 = vmatpush.bf16.msra.mxu0 %v3787
    %5444 = vmatpush.bf16.msra.mxu0 %v3771
    %5445 = vmatpush.bf16.msra.mxu0 %v3755
    %5446 = vmatpush.bf16.msra.mxu0 %v3739
    %5447 = vmatpush.bf16.msra.mxu0 %v3723
    %5448 = vmatpush.bf16.msra.mxu0 %v3707
    %5449 = vmatpush.bf16.msra.mxu0 %v3691
    %5450 = vmatmul.bf16.gmra.mxu0 %v2850
    %v5451 = vpop.f32.mrf.mxu0
    %v5452 = vadd.f32 %v2891, %v5451
    %v5453 = vpop.f32.mrf.mxu0
    %v5454 = vadd.f32 %v2891, %v5453
    %5455 = vmatmul.bf16.gmra.mxu0 %v2852
    %v5456 = vpop.f32.mrf.mxu0
    %v5457 = vadd.f32 %v2891, %v5456
    %v5458 = vpop.f32.mrf.mxu0
    %v5459 = vadd.f32 %v2891, %v5458
    %5460 = vmatmul.bf16.gmra.mxu0 %v2854
    %v5461 = vpop.f32.mrf.mxu0
    %v5462 = vadd.f32 %v2891, %v5461
    %v5463 = vpop.f32.mrf.mxu0
    %v5464 = vadd.f32 %v2891, %v5463
    %5465 = vmatmul.bf16.gmra.mxu0 %v2856
    %v5466 = vpop.f32.mrf.mxu0
    %v5467 = vadd.f32 %v2891, %v5466
    %v5468 = vpop.f32.mrf.mxu0
    %v5469 = vadd.f32 %v2891, %v5468
    %5470 = vmatmul.bf16.gmra.mxu0 %v2858
    %v5471 = vpop.f32.mrf.mxu0
    %v5472 = vadd.f32 %v2891, %v5471
    %v5473 = vpop.f32.mrf.mxu0
    %v5474 = vadd.f32 %v2891, %v5473
    %5475 = vmatmul.bf16.gmra.mxu0 %v2860
    %v5476 = vpop.f32.mrf.mxu0
    %v5477 = vadd.f32 %v2891, %v5476
    %v5478 = vpop.f32.mrf.mxu0
    %v5479 = vadd.f32 %v2891, %v5478
    %5480 = vmatmul.bf16.gmra.mxu0 %v2862
    %v5481 = vpop.f32.mrf.mxu0
    %v5482 = vadd.f32 %v2891, %v5481
    %v5483 = vpop.f32.mrf.mxu0
    %v5484 = vadd.f32 %v2891, %v5483
    %5485 = vmatmul.bf16.gmra.mxu0 %v2864
    %v5486 = vpop.f32.mrf.mxu0
    %v5487 = vadd.f32 %v2891, %v5486
    %v5488 = vpop.f32.mrf.mxu0
    %v5489 = vadd.f32 %v2891, %v5488
    %5490 = vmatmul.bf16.gmra.mxu0 %v2866
    %v5491 = vpop.f32.mrf.mxu0
    %v5492 = vadd.f32 %v2891, %v5491
    %v5493 = vpop.f32.mrf.mxu0
    %v5494 = vadd.f32 %v2891, %v5493
    %5495 = vmatmul.bf16.gmra.mxu0 %v2868
    %v5496 = vpop.f32.mrf.mxu0
    %v5497 = vadd.f32 %v2891, %v5496
    %v5498 = vpop.f32.mrf.mxu0
    %v5499 = vadd.f32 %v2891, %v5498
    %5500 = vmatmul.bf16.gmra.mxu0 %v2870
    %v5501 = vpop.f32.mrf.mxu0
    %v5502 = vadd.f32 %v2891, %v5501
    %v5503 = vpop.f32.mrf.mxu0
    %v5504 = vadd.f32 %v2891, %v5503
    %5505 = vmatmul.bf16.gmra.mxu0 %v2872
    %v5506 = vpop.f32.mrf.mxu0
    %v5507 = vadd.f32 %v2891, %v5506
    %v5508 = vpop.f32.mrf.mxu0
    %v5509 = vadd.f32 %v2891, %v5508
    %5510 = vmatmul.bf16.gmra.mxu0 %v2874
    %v5511 = vpop.f32.mrf.mxu0
    %v5512 = vadd.f32 %v2891, %v5511
    %v5513 = vpop.f32.mrf.mxu0
    %v5514 = vadd.f32 %v2891, %v5513
    %5515 = vmatmul.bf16.gmra.mxu0 %v2876
    %v5516 = vpop.f32.mrf.mxu0
    %v5517 = vadd.f32 %v2891, %v5516
    %v5518 = vpop.f32.mrf.mxu0
    %v5519 = vadd.f32 %v2891, %v5518
    %5520 = vmatmul.bf16.gmra.mxu0 %v2878
    %v5521 = vpop.f32.mrf.mxu0
    %v5522 = vadd.f32 %v2891, %v5521
    %v5523 = vpop.f32.mrf.mxu0
    %v5524 = vadd.f32 %v2891, %v5523
    %5525 = vmatmul.bf16.gmra.mxu0 %v2880
    %v5526 = vpop.f32.mrf.mxu0
    %v5527 = vadd.f32 %v2891, %v5526
    %v5528 = vpop.f32.mrf.mxu0
    %v5529 = vadd.f32 %v2891, %v5528
    %5530 = vdwg.mxu0
    %5531 = vmatpush.bf16.msra.mxu0 %v3931
    %5532 = vmatpush.bf16.msra.mxu0 %v3915
    %5533 = vmatpush.bf16.msra.mxu0 %v3899
    %5534 = vmatpush.bf16.msra.mxu0 %v3883
    %5535 = vmatpush.bf16.msra.mxu0 %v3867
    %5536 = vmatpush.bf16.msra.mxu0 %v3851
    %5537 = vmatpush.bf16.msra.mxu0 %v3835
    %5538 = vmatpush.bf16.msra.mxu0 %v3819
    %5539 = vmatmul.bf16.gmra.mxu0 %v2851
    %v5540 = vpop.f32.mrf.mxu0
    %v5541 = vadd.f32 %v5452, %v5540
    %v5542 = vpop.f32.mrf.mxu0
    %v5543 = vadd.f32 %v5454, %v5542
    %5544 = vmatmul.bf16.gmra.mxu0 %v2853
    %v5545 = vpop.f32.mrf.mxu0
    %v5546 = vadd.f32 %v5457, %v5545
    %v5547 = vpop.f32.mrf.mxu0
    %v5548 = vadd.f32 %v5459, %v5547
    %5549 = vmatmul.bf16.gmra.mxu0 %v2855
    %v5550 = vpop.f32.mrf.mxu0
    %v5551 = vadd.f32 %v5462, %v5550
    %v5552 = vpop.f32.mrf.mxu0
    %v5553 = vadd.f32 %v5464, %v5552
    %5554 = vmatmul.bf16.gmra.mxu0 %v2857
    %v5555 = vpop.f32.mrf.mxu0
    %v5556 = vadd.f32 %v5467, %v5555
    %v5557 = vpop.f32.mrf.mxu0
    %v5558 = vadd.f32 %v5469, %v5557
    %5559 = vmatmul.bf16.gmra.mxu0 %v2859
    %v5560 = vpop.f32.mrf.mxu0
    %v5561 = vadd.f32 %v5472, %v5560
    %v5562 = vpop.f32.mrf.mxu0
    %v5563 = vadd.f32 %v5474, %v5562
    %5564 = vmatmul.bf16.gmra.mxu0 %v2861
    %v5565 = vpop.f32.mrf.mxu0
    %v5566 = vadd.f32 %v5477, %v5565
    %v5567 = vpop.f32.mrf.mxu0
    %v5568 = vadd.f32 %v5479, %v5567
    %5569 = vmatmul.bf16.gmra.mxu0 %v2863
    %v5570 = vpop.f32.mrf.mxu0
    %v5571 = vadd.f32 %v5482, %v5570
    %v5572 = vpop.f32.mrf.mxu0
    %v5573 = vadd.f32 %v5484, %v5572
    %5574 = vmatmul.bf16.gmra.mxu0 %v2865
    %v5575 = vpop.f32.mrf.mxu0
    %v5576 = vadd.f32 %v5487, %v5575
    %v5577 = vpop.f32.mrf.mxu0
    %v5578 = vadd.f32 %v5489, %v5577
    %5579 = vmatmul.bf16.gmra.mxu0 %v2867
    %v5580 = vpop.f32.mrf.mxu0
    %v5581 = vadd.f32 %v5492, %v5580
    %v5582 = vpop.f32.mrf.mxu0
    %v5583 = vadd.f32 %v5494, %v5582
    %5584 = vmatmul.bf16.gmra.mxu0 %v2869
    %v5585 = vpop.f32.mrf.mxu0
    %v5586 = vadd.f32 %v5497, %v5585
    %v5587 = vpop.f32.mrf.mxu0
    %v5588 = vadd.f32 %v5499, %v5587
    %5589 = vmatmul.bf16.gmra.mxu0 %v2871
    %v5590 = vpop.f32.mrf.mxu0
    %v5591 = vadd.f32 %v5502, %v5590
    %v5592 = vpop.f32.mrf.mxu0
    %v5593 = vadd.f32 %v5504, %v5592
    %5594 = vmatmul.bf16.gmra.mxu0 %v2873
    %v5595 = vpop.f32.mrf.mxu0
    %v5596 = vadd.f32 %v5507, %v5595
    %v5597 = vpop.f32.mrf.mxu0
    %v5598 = vadd.f32 %v5509, %v5597
    %5599 = vmatmul.bf16.gmra.mxu0 %v2875
    %v5600 = vpop.f32.mrf.mxu0
    %v5601 = vadd.f32 %v5512, %v5600
    %v5602 = vpop.f32.mrf.mxu0
    %v5603 = vadd.f32 %v5514, %v5602
    %5604 = vmatmul.bf16.gmra.mxu0 %v2877
    %v5605 = vpop.f32.mrf.mxu0
    %v5606 = vadd.f32 %v5517, %v5605
    %v5607 = vpop.f32.mrf.mxu0
    %v5608 = vadd.f32 %v5519, %v5607
    %5609 = vmatmul.bf16.gmra.mxu0 %v2879
    %v5610 = vpop.f32.mrf.mxu0
    %v5611 = vadd.f32 %v5522, %v5610
    %v5612 = vpop.f32.mrf.mxu0
    %v5613 = vadd.f32 %v5524, %v5612
    %5614 = vmatmul.bf16.gmra.mxu0 %v2881
    %v5615 = vpop.f32.mrf.mxu0
    %v5616 = vadd.f32 %v5527, %v5615
    %v5617 = vpop.f32.mrf.mxu0
    %v5618 = vadd.f32 %v5529, %v5617
    %5619 = vdwg.mxu0
    %5620 = vmatpush.bf16.msra.mxu0 %v3804
    %5621 = vmatpush.bf16.msra.mxu0 %v3788
    %5622 = vmatpush.bf16.msra.mxu0 %v3772
    %5623 = vmatpush.bf16.msra.mxu0 %v3756
    %5624 = vmatpush.bf16.msra.mxu0 %v3740
    %5625 = vmatpush.bf16.msra.mxu0 %v3724
    %5626 = vmatpush.bf16.msra.mxu0 %v3708
    %5627 = vmatpush.bf16.msra.mxu0 %v3692
    %5628 = vmatmul.bf16.gmra.mxu0 %v2850
    %v5629 = vpop.f32.mrf.mxu0
    %v5630 = vadd.f32 %v2892, %v5629
    %v5631 = vpop.f32.mrf.mxu0
    %v5632 = vadd.f32 %v2892, %v5631
    %5633 = vmatmul.bf16.gmra.mxu0 %v2852
    %v5634 = vpop.f32.mrf.mxu0
    %v5635 = vadd.f32 %v2892, %v5634
    %v5636 = vpop.f32.mrf.mxu0
    %v5637 = vadd.f32 %v2892, %v5636
    %5638 = vmatmul.bf16.gmra.mxu0 %v2854
    %v5639 = vpop.f32.mrf.mxu0
    %v5640 = vadd.f32 %v2892, %v5639
    %v5641 = vpop.f32.mrf.mxu0
    %v5642 = vadd.f32 %v2892, %v5641
    %5643 = vmatmul.bf16.gmra.mxu0 %v2856
    %v5644 = vpop.f32.mrf.mxu0
    %v5645 = vadd.f32 %v2892, %v5644
    %v5646 = vpop.f32.mrf.mxu0
    %v5647 = vadd.f32 %v2892, %v5646
    %5648 = vmatmul.bf16.gmra.mxu0 %v2858
    %v5649 = vpop.f32.mrf.mxu0
    %v5650 = vadd.f32 %v2892, %v5649
    %v5651 = vpop.f32.mrf.mxu0
    %v5652 = vadd.f32 %v2892, %v5651
    %5653 = vmatmul.bf16.gmra.mxu0 %v2860
    %v5654 = vpop.f32.mrf.mxu0
    %v5655 = vadd.f32 %v2892, %v5654
    %v5656 = vpop.f32.mrf.mxu0
    %v5657 = vadd.f32 %v2892, %v5656
    %5658 = vmatmul.bf16.gmra.mxu0 %v2862
    %v5659 = vpop.f32.mrf.mxu0
    %v5660 = vadd.f32 %v2892, %v5659
    %v5661 = vpop.f32.mrf.mxu0
    %v5662 = vadd.f32 %v2892, %v5661
    %5663 = vmatmul.bf16.gmra.mxu0 %v2864
    %v5664 = vpop.f32.mrf.mxu0
    %v5665 = vadd.f32 %v2892, %v5664
    %v5666 = vpop.f32.mrf.mxu0
    %v5667 = vadd.f32 %v2892, %v5666
    %5668 = vmatmul.bf16.gmra.mxu0 %v2866
    %v5669 = vpop.f32.mrf.mxu0
    %v5670 = vadd.f32 %v2892, %v5669
    %v5671 = vpop.f32.mrf.mxu0
    %v5672 = vadd.f32 %v2892, %v5671
    %5673 = vmatmul.bf16.gmra.mxu0 %v2868
    %v5674 = vpop.f32.mrf.mxu0
    %v5675 = vadd.f32 %v2892, %v5674
    %v5676 = vpop.f32.mrf.mxu0
    %v5677 = vadd.f32 %v2892, %v5676
    %5678 = vmatmul.bf16.gmra.mxu0 %v2870
    %v5679 = vpop.f32.mrf.mxu0
    %v5680 = vadd.f32 %v2892, %v5679
    %v5681 = vpop.f32.mrf.mxu0
    %v5682 = vadd.f32 %v2892, %v5681
    %5683 = vmatmul.bf16.gmra.mxu0 %v2872
    %v5684 = vpop.f32.mrf.mxu0
    %v5685 = vadd.f32 %v2892, %v5684
    %v5686 = vpop.f32.mrf.mxu0
    %v5687 = vadd.f32 %v2892, %v5686
    %5688 = vmatmul.bf16.gmra.mxu0 %v2874
    %v5689 = vpop.f32.mrf.mxu0
    %v5690 = vadd.f32 %v2892, %v5689
    %v5691 = vpop.f32.mrf.mxu0
    %v5692 = vadd.f32 %v2892, %v5691
    %5693 = vmatmul.bf16.gmra.mxu0 %v2876
    %v5694 = vpop.f32.mrf.mxu0
    %v5695 = vadd.f32 %v2892, %v5694
    %v5696 = vpop.f32.mrf.mxu0
    %v5697 = vadd.f32 %v2892, %v5696
    %5698 = vmatmul.bf16.gmra.mxu0 %v2878
    %v5699 = vpop.f32.mrf.mxu0
    %v5700 = vadd.f32 %v2892, %v5699
    %v5701 = vpop.f32.mrf.mxu0
    %v5702 = vadd.f32 %v2892, %v5701
    %5703 = vmatmul.bf16.gmra.mxu0 %v2880
    %v5704 = vpop.f32.mrf.mxu0
    %v5705 = vadd.f32 %v2892, %v5704
    %v5706 = vpop.f32.mrf.mxu0
    %v5707 = vadd.f32 %v2892, %v5706
    %5708 = vdwg.mxu0
    %5709 = vmatpush.bf16.msra.mxu0 %v3932
    %5710 = vmatpush.bf16.msra.mxu0 %v3916
    %5711 = vmatpush.bf16.msra.mxu0 %v3900
    %5712 = vmatpush.bf16.msra.mxu0 %v3884
    %5713 = vmatpush.bf16.msra.mxu0 %v3868
    %5714 = vmatpush.bf16.msra.mxu0 %v3852
    %5715 = vmatpush.bf16.msra.mxu0 %v3836
    %5716 = vmatpush.bf16.msra.mxu0 %v3820
    %5717 = vmatmul.bf16.gmra.mxu0 %v2851
    %v5718 = vpop.f32.mrf.mxu0
    %v5719 = vadd.f32 %v5630, %v5718
    %v5720 = vpop.f32.mrf.mxu0
    %v5721 = vadd.f32 %v5632, %v5720
    %5722 = vmatmul.bf16.gmra.mxu0 %v2853
    %v5723 = vpop.f32.mrf.mxu0
    %v5724 = vadd.f32 %v5635, %v5723
    %v5725 = vpop.f32.mrf.mxu0
    %v5726 = vadd.f32 %v5637, %v5725
    %5727 = vmatmul.bf16.gmra.mxu0 %v2855
    %v5728 = vpop.f32.mrf.mxu0
    %v5729 = vadd.f32 %v5640, %v5728
    %v5730 = vpop.f32.mrf.mxu0
    %v5731 = vadd.f32 %v5642, %v5730
    %5732 = vmatmul.bf16.gmra.mxu0 %v2857
    %v5733 = vpop.f32.mrf.mxu0
    %v5734 = vadd.f32 %v5645, %v5733
    %v5735 = vpop.f32.mrf.mxu0
    %v5736 = vadd.f32 %v5647, %v5735
    %5737 = vmatmul.bf16.gmra.mxu0 %v2859
    %v5738 = vpop.f32.mrf.mxu0
    %v5739 = vadd.f32 %v5650, %v5738
    %v5740 = vpop.f32.mrf.mxu0
    %v5741 = vadd.f32 %v5652, %v5740
    %5742 = vmatmul.bf16.gmra.mxu0 %v2861
    %v5743 = vpop.f32.mrf.mxu0
    %v5744 = vadd.f32 %v5655, %v5743
    %v5745 = vpop.f32.mrf.mxu0
    %v5746 = vadd.f32 %v5657, %v5745
    %5747 = vmatmul.bf16.gmra.mxu0 %v2863
    %v5748 = vpop.f32.mrf.mxu0
    %v5749 = vadd.f32 %v5660, %v5748
    %v5750 = vpop.f32.mrf.mxu0
    %v5751 = vadd.f32 %v5662, %v5750
    %5752 = vmatmul.bf16.gmra.mxu0 %v2865
    %v5753 = vpop.f32.mrf.mxu0
    %v5754 = vadd.f32 %v5665, %v5753
    %v5755 = vpop.f32.mrf.mxu0
    %v5756 = vadd.f32 %v5667, %v5755
    %5757 = vmatmul.bf16.gmra.mxu0 %v2867
    %v5758 = vpop.f32.mrf.mxu0
    %v5759 = vadd.f32 %v5670, %v5758
    %v5760 = vpop.f32.mrf.mxu0
    %v5761 = vadd.f32 %v5672, %v5760
    %5762 = vmatmul.bf16.gmra.mxu0 %v2869
    %v5763 = vpop.f32.mrf.mxu0
    %v5764 = vadd.f32 %v5675, %v5763
    %v5765 = vpop.f32.mrf.mxu0
    %v5766 = vadd.f32 %v5677, %v5765
    %5767 = vmatmul.bf16.gmra.mxu0 %v2871
    %v5768 = vpop.f32.mrf.mxu0
    %v5769 = vadd.f32 %v5680, %v5768
    %v5770 = vpop.f32.mrf.mxu0
    %v5771 = vadd.f32 %v5682, %v5770
    %5772 = vmatmul.bf16.gmra.mxu0 %v2873
    %v5773 = vpop.f32.mrf.mxu0
    %v5774 = vadd.f32 %v5685, %v5773
    %v5775 = vpop.f32.mrf.mxu0
    %v5776 = vadd.f32 %v5687, %v5775
    %5777 = vmatmul.bf16.gmra.mxu0 %v2875
    %v5778 = vpop.f32.mrf.mxu0
    %v5779 = vadd.f32 %v5690, %v5778
    %v5780 = vpop.f32.mrf.mxu0
    %v5781 = vadd.f32 %v5692, %v5780
    %5782 = vmatmul.bf16.gmra.mxu0 %v2877
    %v5783 = vpop.f32.mrf.mxu0
    %v5784 = vadd.f32 %v5695, %v5783
    %v5785 = vpop.f32.mrf.mxu0
    %v5786 = vadd.f32 %v5697, %v5785
    %5787 = vmatmul.bf16.gmra.mxu0 %v2879
    %v5788 = vpop.f32.mrf.mxu0
    %v5789 = vadd.f32 %v5700, %v5788
    %v5790 = vpop.f32.mrf.mxu0
    %v5791 = vadd.f32 %v5702, %v5790
    %5792 = vmatmul.bf16.gmra.mxu0 %v2881
    %v5793 = vpop.f32.mrf.mxu0
    %v5794 = vadd.f32 %v5705, %v5793
    %v5795 = vpop.f32.mrf.mxu0
    %v5796 = vadd.f32 %v5707, %v5795
    %5797 = vdwg.mxu0
    %5798 = vmatpush.bf16.msra.mxu0 %v3805
    %5799 = vmatpush.bf16.msra.mxu0 %v3789
    %5800 = vmatpush.bf16.msra.mxu0 %v3773
    %5801 = vmatpush.bf16.msra.mxu0 %v3757
    %5802 = vmatpush.bf16.msra.mxu0 %v3741
    %5803 = vmatpush.bf16.msra.mxu0 %v3725
    %5804 = vmatpush.bf16.msra.mxu0 %v3709
    %5805 = vmatpush.bf16.msra.mxu0 %v3693
    %5806 = vmatmul.bf16.gmra.mxu0 %v2850
    %v5807 = vpop.f32.mrf.mxu0
    %v5808 = vadd.f32 %v2893, %v5807
    %v5809 = vpop.f32.mrf.mxu0
    %v5810 = vadd.f32 %v2893, %v5809
    %5811 = vmatmul.bf16.gmra.mxu0 %v2852
    %v5812 = vpop.f32.mrf.mxu0
    %v5813 = vadd.f32 %v2893, %v5812
    %v5814 = vpop.f32.mrf.mxu0
    %v5815 = vadd.f32 %v2893, %v5814
    %5816 = vmatmul.bf16.gmra.mxu0 %v2854
    %v5817 = vpop.f32.mrf.mxu0
    %v5818 = vadd.f32 %v2893, %v5817
    %v5819 = vpop.f32.mrf.mxu0
    %v5820 = vadd.f32 %v2893, %v5819
    %5821 = vmatmul.bf16.gmra.mxu0 %v2856
    %v5822 = vpop.f32.mrf.mxu0
    %v5823 = vadd.f32 %v2893, %v5822
    %v5824 = vpop.f32.mrf.mxu0
    %v5825 = vadd.f32 %v2893, %v5824
    %5826 = vmatmul.bf16.gmra.mxu0 %v2858
    %v5827 = vpop.f32.mrf.mxu0
    %v5828 = vadd.f32 %v2893, %v5827
    %v5829 = vpop.f32.mrf.mxu0
    %v5830 = vadd.f32 %v2893, %v5829
    %5831 = vmatmul.bf16.gmra.mxu0 %v2860
    %v5832 = vpop.f32.mrf.mxu0
    %v5833 = vadd.f32 %v2893, %v5832
    %v5834 = vpop.f32.mrf.mxu0
    %v5835 = vadd.f32 %v2893, %v5834
    %5836 = vmatmul.bf16.gmra.mxu0 %v2862
    %v5837 = vpop.f32.mrf.mxu0
    %v5838 = vadd.f32 %v2893, %v5837
    %v5839 = vpop.f32.mrf.mxu0
    %v5840 = vadd.f32 %v2893, %v5839
    %5841 = vmatmul.bf16.gmra.mxu0 %v2864
    %v5842 = vpop.f32.mrf.mxu0
    %v5843 = vadd.f32 %v2893, %v5842
    %v5844 = vpop.f32.mrf.mxu0
    %v5845 = vadd.f32 %v2893, %v5844
    %5846 = vmatmul.bf16.gmra.mxu0 %v2866
    %v5847 = vpop.f32.mrf.mxu0
    %v5848 = vadd.f32 %v2893, %v5847
    %v5849 = vpop.f32.mrf.mxu0
    %v5850 = vadd.f32 %v2893, %v5849
    %5851 = vmatmul.bf16.gmra.mxu0 %v2868
    %v5852 = vpop.f32.mrf.mxu0
    %v5853 = vadd.f32 %v2893, %v5852
    %v5854 = vpop.f32.mrf.mxu0
    %v5855 = vadd.f32 %v2893, %v5854
    %5856 = vmatmul.bf16.gmra.mxu0 %v2870
    %v5857 = vpop.f32.mrf.mxu0
    %v5858 = vadd.f32 %v2893, %v5857
    %v5859 = vpop.f32.mrf.mxu0
    %v5860 = vadd.f32 %v2893, %v5859
    %5861 = vmatmul.bf16.gmra.mxu0 %v2872
    %v5862 = vpop.f32.mrf.mxu0
    %v5863 = vadd.f32 %v2893, %v5862
    %v5864 = vpop.f32.mrf.mxu0
    %v5865 = vadd.f32 %v2893, %v5864
    %5866 = vmatmul.bf16.gmra.mxu0 %v2874
    %v5867 = vpop.f32.mrf.mxu0
    %v5868 = vadd.f32 %v2893, %v5867
    %v5869 = vpop.f32.mrf.mxu0
    %v5870 = vadd.f32 %v2893, %v5869
    %5871 = vmatmul.bf16.gmra.mxu0 %v2876
    %v5872 = vpop.f32.mrf.mxu0
    %v5873 = vadd.f32 %v2893, %v5872
    %v5874 = vpop.f32.mrf.mxu0
    %v5875 = vadd.f32 %v2893, %v5874
    %5876 = vmatmul.bf16.gmra.mxu0 %v2878
    %v5877 = vpop.f32.mrf.mxu0
    %v5878 = vadd.f32 %v2893, %v5877
    %v5879 = vpop.f32.mrf.mxu0
    %v5880 = vadd.f32 %v2893, %v5879
    %5881 = vmatmul.bf16.gmra.mxu0 %v2880
    %v5882 = vpop.f32.mrf.mxu0
    %v5883 = vadd.f32 %v2893, %v5882
    %v5884 = vpop.f32.mrf.mxu0
    %v5885 = vadd.f32 %v2893, %v5884
    %5886 = vdwg.mxu0
    %5887 = vmatpush.bf16.msra.mxu0 %v3933
    %5888 = vmatpush.bf16.msra.mxu0 %v3917
    %5889 = vmatpush.bf16.msra.mxu0 %v3901
    %5890 = vmatpush.bf16.msra.mxu0 %v3885
    %5891 = vmatpush.bf16.msra.mxu0 %v3869
    %5892 = vmatpush.bf16.msra.mxu0 %v3853
    %5893 = vmatpush.bf16.msra.mxu0 %v3837
    %5894 = vmatpush.bf16.msra.mxu0 %v3821
    %5895 = vmatmul.bf16.gmra.mxu0 %v2851
    %v5896 = vpop.f32.mrf.mxu0
    %v5897 = vadd.f32 %v5808, %v5896
    %v5898 = vpop.f32.mrf.mxu0
    %v5899 = vadd.f32 %v5810, %v5898
    %5900 = vmatmul.bf16.gmra.mxu0 %v2853
    %v5901 = vpop.f32.mrf.mxu0
    %v5902 = vadd.f32 %v5813, %v5901
    %v5903 = vpop.f32.mrf.mxu0
    %v5904 = vadd.f32 %v5815, %v5903
    %5905 = vmatmul.bf16.gmra.mxu0 %v2855
    %v5906 = vpop.f32.mrf.mxu0
    %v5907 = vadd.f32 %v5818, %v5906
    %v5908 = vpop.f32.mrf.mxu0
    %v5909 = vadd.f32 %v5820, %v5908
    %5910 = vmatmul.bf16.gmra.mxu0 %v2857
    %v5911 = vpop.f32.mrf.mxu0
    %v5912 = vadd.f32 %v5823, %v5911
    %v5913 = vpop.f32.mrf.mxu0
    %v5914 = vadd.f32 %v5825, %v5913
    %5915 = vmatmul.bf16.gmra.mxu0 %v2859
    %v5916 = vpop.f32.mrf.mxu0
    %v5917 = vadd.f32 %v5828, %v5916
    %v5918 = vpop.f32.mrf.mxu0
    %v5919 = vadd.f32 %v5830, %v5918
    %5920 = vmatmul.bf16.gmra.mxu0 %v2861
    %v5921 = vpop.f32.mrf.mxu0
    %v5922 = vadd.f32 %v5833, %v5921
    %v5923 = vpop.f32.mrf.mxu0
    %v5924 = vadd.f32 %v5835, %v5923
    %5925 = vmatmul.bf16.gmra.mxu0 %v2863
    %v5926 = vpop.f32.mrf.mxu0
    %v5927 = vadd.f32 %v5838, %v5926
    %v5928 = vpop.f32.mrf.mxu0
    %v5929 = vadd.f32 %v5840, %v5928
    %5930 = vmatmul.bf16.gmra.mxu0 %v2865
    %v5931 = vpop.f32.mrf.mxu0
    %v5932 = vadd.f32 %v5843, %v5931
    %v5933 = vpop.f32.mrf.mxu0
    %v5934 = vadd.f32 %v5845, %v5933
    %5935 = vmatmul.bf16.gmra.mxu0 %v2867
    %v5936 = vpop.f32.mrf.mxu0
    %v5937 = vadd.f32 %v5848, %v5936
    %v5938 = vpop.f32.mrf.mxu0
    %v5939 = vadd.f32 %v5850, %v5938
    %5940 = vmatmul.bf16.gmra.mxu0 %v2869
    %v5941 = vpop.f32.mrf.mxu0
    %v5942 = vadd.f32 %v5853, %v5941
    %v5943 = vpop.f32.mrf.mxu0
    %v5944 = vadd.f32 %v5855, %v5943
    %5945 = vmatmul.bf16.gmra.mxu0 %v2871
    %v5946 = vpop.f32.mrf.mxu0
    %v5947 = vadd.f32 %v5858, %v5946
    %v5948 = vpop.f32.mrf.mxu0
    %v5949 = vadd.f32 %v5860, %v5948
    %5950 = vmatmul.bf16.gmra.mxu0 %v2873
    %v5951 = vpop.f32.mrf.mxu0
    %v5952 = vadd.f32 %v5863, %v5951
    %v5953 = vpop.f32.mrf.mxu0
    %v5954 = vadd.f32 %v5865, %v5953
    %5955 = vmatmul.bf16.gmra.mxu0 %v2875
    %v5956 = vpop.f32.mrf.mxu0
    %v5957 = vadd.f32 %v5868, %v5956
    %v5958 = vpop.f32.mrf.mxu0
    %v5959 = vadd.f32 %v5870, %v5958
    %5960 = vmatmul.bf16.gmra.mxu0 %v2877
    %v5961 = vpop.f32.mrf.mxu0
    %v5962 = vadd.f32 %v5873, %v5961
    %v5963 = vpop.f32.mrf.mxu0
    %v5964 = vadd.f32 %v5875, %v5963
    %5965 = vmatmul.bf16.gmra.mxu0 %v2879
    %v5966 = vpop.f32.mrf.mxu0
    %v5967 = vadd.f32 %v5878, %v5966
    %v5968 = vpop.f32.mrf.mxu0
    %v5969 = vadd.f32 %v5880, %v5968
    %5970 = vmatmul.bf16.gmra.mxu0 %v2881
    %v5971 = vpop.f32.mrf.mxu0
    %v5972 = vadd.f32 %v5883, %v5971
    %v5973 = vpop.f32.mrf.mxu0
    %v5974 = vadd.f32 %v5885, %v5973
    %5975 = vdwg.mxu0
    %5976 = vmatpush.bf16.msra.mxu0 %v3806
    %5977 = vmatpush.bf16.msra.mxu0 %v3790
    %5978 = vmatpush.bf16.msra.mxu0 %v3774
    %5979 = vmatpush.bf16.msra.mxu0 %v3758
    %5980 = vmatpush.bf16.msra.mxu0 %v3742
    %5981 = vmatpush.bf16.msra.mxu0 %v3726
    %5982 = vmatpush.bf16.msra.mxu0 %v3710
    %5983 = vmatpush.bf16.msra.mxu0 %v3694
    %5984 = vmatmul.bf16.gmra.mxu0 %v2850
    %v5985 = vpop.f32.mrf.mxu0
    %v5986 = vadd.f32 %v2894, %v5985
    %v5987 = vpop.f32.mrf.mxu0
    %v5988 = vadd.f32 %v2894, %v5987
    %5989 = vmatmul.bf16.gmra.mxu0 %v2852
    %v5990 = vpop.f32.mrf.mxu0
    %v5991 = vadd.f32 %v2894, %v5990
    %v5992 = vpop.f32.mrf.mxu0
    %v5993 = vadd.f32 %v2894, %v5992
    %5994 = vmatmul.bf16.gmra.mxu0 %v2854
    %v5995 = vpop.f32.mrf.mxu0
    %v5996 = vadd.f32 %v2894, %v5995
    %v5997 = vpop.f32.mrf.mxu0
    %v5998 = vadd.f32 %v2894, %v5997
    %5999 = vmatmul.bf16.gmra.mxu0 %v2856
    %v6000 = vpop.f32.mrf.mxu0
    %v6001 = vadd.f32 %v2894, %v6000
    %v6002 = vpop.f32.mrf.mxu0
    %v6003 = vadd.f32 %v2894, %v6002
    %6004 = vmatmul.bf16.gmra.mxu0 %v2858
    %v6005 = vpop.f32.mrf.mxu0
    %v6006 = vadd.f32 %v2894, %v6005
    %v6007 = vpop.f32.mrf.mxu0
    %v6008 = vadd.f32 %v2894, %v6007
    %6009 = vmatmul.bf16.gmra.mxu0 %v2860
    %v6010 = vpop.f32.mrf.mxu0
    %v6011 = vadd.f32 %v2894, %v6010
    %v6012 = vpop.f32.mrf.mxu0
    %v6013 = vadd.f32 %v2894, %v6012
    %6014 = vmatmul.bf16.gmra.mxu0 %v2862
    %v6015 = vpop.f32.mrf.mxu0
    %v6016 = vadd.f32 %v2894, %v6015
    %v6017 = vpop.f32.mrf.mxu0
    %v6018 = vadd.f32 %v2894, %v6017
    %6019 = vmatmul.bf16.gmra.mxu0 %v2864
    %v6020 = vpop.f32.mrf.mxu0
    %v6021 = vadd.f32 %v2894, %v6020
    %v6022 = vpop.f32.mrf.mxu0
    %v6023 = vadd.f32 %v2894, %v6022
    %6024 = vmatmul.bf16.gmra.mxu0 %v2866
    %v6025 = vpop.f32.mrf.mxu0
    %v6026 = vadd.f32 %v2894, %v6025
    %v6027 = vpop.f32.mrf.mxu0
    %v6028 = vadd.f32 %v2894, %v6027
    %6029 = vmatmul.bf16.gmra.mxu0 %v2868
    %v6030 = vpop.f32.mrf.mxu0
    %v6031 = vadd.f32 %v2894, %v6030
    %v6032 = vpop.f32.mrf.mxu0
    %v6033 = vadd.f32 %v2894, %v6032
    %6034 = vmatmul.bf16.gmra.mxu0 %v2870
    %v6035 = vpop.f32.mrf.mxu0
    %v6036 = vadd.f32 %v2894, %v6035
    %v6037 = vpop.f32.mrf.mxu0
    %v6038 = vadd.f32 %v2894, %v6037
    %6039 = vmatmul.bf16.gmra.mxu0 %v2872
    %v6040 = vpop.f32.mrf.mxu0
    %v6041 = vadd.f32 %v2894, %v6040
    %v6042 = vpop.f32.mrf.mxu0
    %v6043 = vadd.f32 %v2894, %v6042
    %6044 = vmatmul.bf16.gmra.mxu0 %v2874
    %v6045 = vpop.f32.mrf.mxu0
    %v6046 = vadd.f32 %v2894, %v6045
    %v6047 = vpop.f32.mrf.mxu0
    %v6048 = vadd.f32 %v2894, %v6047
    %6049 = vmatmul.bf16.gmra.mxu0 %v2876
    %v6050 = vpop.f32.mrf.mxu0
    %v6051 = vadd.f32 %v2894, %v6050
    %v6052 = vpop.f32.mrf.mxu0
    %v6053 = vadd.f32 %v2894, %v6052
    %6054 = vmatmul.bf16.gmra.mxu0 %v2878
    %v6055 = vpop.f32.mrf.mxu0
    %v6056 = vadd.f32 %v2894, %v6055
    %v6057 = vpop.f32.mrf.mxu0
    %v6058 = vadd.f32 %v2894, %v6057
    %6059 = vmatmul.bf16.gmra.mxu0 %v2880
    %v6060 = vpop.f32.mrf.mxu0
    %v6061 = vadd.f32 %v2894, %v6060
    %v6062 = vpop.f32.mrf.mxu0
    %v6063 = vadd.f32 %v2894, %v6062
    %6064 = vdwg.mxu0
    %6065 = vmatpush.bf16.msra.mxu0 %v3934
    %6066 = vmatpush.bf16.msra.mxu0 %v3918
    %6067 = vmatpush.bf16.msra.mxu0 %v3902
    %6068 = vmatpush.bf16.msra.mxu0 %v3886
    %6069 = vmatpush.bf16.msra.mxu0 %v3870
    %6070 = vmatpush.bf16.msra.mxu0 %v3854
    %6071 = vmatpush.bf16.msra.mxu0 %v3838
    %6072 = vmatpush.bf16.msra.mxu0 %v3822
    %6073 = vmatmul.bf16.gmra.mxu0 %v2851
    %v6074 = vpop.f32.mrf.mxu0
    %v6075 = vadd.f32 %v5986, %v6074
    %v6076 = vpop.f32.mrf.mxu0
    %v6077 = vadd.f32 %v5988, %v6076
    %6078 = vmatmul.bf16.gmra.mxu0 %v2853
    %v6079 = vpop.f32.mrf.mxu0
    %v6080 = vadd.f32 %v5991, %v6079
    %v6081 = vpop.f32.mrf.mxu0
    %v6082 = vadd.f32 %v5993, %v6081
    %6083 = vmatmul.bf16.gmra.mxu0 %v2855
    %v6084 = vpop.f32.mrf.mxu0
    %v6085 = vadd.f32 %v5996, %v6084
    %v6086 = vpop.f32.mrf.mxu0
    %v6087 = vadd.f32 %v5998, %v6086
    %6088 = vmatmul.bf16.gmra.mxu0 %v2857
    %v6089 = vpop.f32.mrf.mxu0
    %v6090 = vadd.f32 %v6001, %v6089
    %v6091 = vpop.f32.mrf.mxu0
    %v6092 = vadd.f32 %v6003, %v6091
    %6093 = vmatmul.bf16.gmra.mxu0 %v2859
    %v6094 = vpop.f32.mrf.mxu0
    %v6095 = vadd.f32 %v6006, %v6094
    %v6096 = vpop.f32.mrf.mxu0
    %v6097 = vadd.f32 %v6008, %v6096
    %6098 = vmatmul.bf16.gmra.mxu0 %v2861
    %v6099 = vpop.f32.mrf.mxu0
    %v6100 = vadd.f32 %v6011, %v6099
    %v6101 = vpop.f32.mrf.mxu0
    %v6102 = vadd.f32 %v6013, %v6101
    %6103 = vmatmul.bf16.gmra.mxu0 %v2863
    %v6104 = vpop.f32.mrf.mxu0
    %v6105 = vadd.f32 %v6016, %v6104
    %v6106 = vpop.f32.mrf.mxu0
    %v6107 = vadd.f32 %v6018, %v6106
    %6108 = vmatmul.bf16.gmra.mxu0 %v2865
    %v6109 = vpop.f32.mrf.mxu0
    %v6110 = vadd.f32 %v6021, %v6109
    %v6111 = vpop.f32.mrf.mxu0
    %v6112 = vadd.f32 %v6023, %v6111
    %6113 = vmatmul.bf16.gmra.mxu0 %v2867
    %v6114 = vpop.f32.mrf.mxu0
    %v6115 = vadd.f32 %v6026, %v6114
    %v6116 = vpop.f32.mrf.mxu0
    %v6117 = vadd.f32 %v6028, %v6116
    %6118 = vmatmul.bf16.gmra.mxu0 %v2869
    %v6119 = vpop.f32.mrf.mxu0
    %v6120 = vadd.f32 %v6031, %v6119
    %v6121 = vpop.f32.mrf.mxu0
    %v6122 = vadd.f32 %v6033, %v6121
    %6123 = vmatmul.bf16.gmra.mxu0 %v2871
    %v6124 = vpop.f32.mrf.mxu0
    %v6125 = vadd.f32 %v6036, %v6124
    %v6126 = vpop.f32.mrf.mxu0
    %v6127 = vadd.f32 %v6038, %v6126
    %6128 = vmatmul.bf16.gmra.mxu0 %v2873
    %v6129 = vpop.f32.mrf.mxu0
    %v6130 = vadd.f32 %v6041, %v6129
    %v6131 = vpop.f32.mrf.mxu0
    %v6132 = vadd.f32 %v6043, %v6131
    %6133 = vmatmul.bf16.gmra.mxu0 %v2875
    %v6134 = vpop.f32.mrf.mxu0
    %v6135 = vadd.f32 %v6046, %v6134
    %v6136 = vpop.f32.mrf.mxu0
    %v6137 = vadd.f32 %v6048, %v6136
    %6138 = vmatmul.bf16.gmra.mxu0 %v2877
    %v6139 = vpop.f32.mrf.mxu0
    %v6140 = vadd.f32 %v6051, %v6139
    %v6141 = vpop.f32.mrf.mxu0
    %v6142 = vadd.f32 %v6053, %v6141
    %6143 = vmatmul.bf16.gmra.mxu0 %v2879
    %v6144 = vpop.f32.mrf.mxu0
    %v6145 = vadd.f32 %v6056, %v6144
    %v6146 = vpop.f32.mrf.mxu0
    %v6147 = vadd.f32 %v6058, %v6146
    %6148 = vmatmul.bf16.gmra.mxu0 %v2881
    %v6149 = vpop.f32.mrf.mxu0
    %v6150 = vadd.f32 %v6061, %v6149
    %v6151 = vpop.f32.mrf.mxu0
    %v6152 = vadd.f32 %v6063, %v6151
    %6153 = vdwg.mxu0
    %6154 = vmatpush.bf16.msra.mxu0 %v3807
    %6155 = vmatpush.bf16.msra.mxu0 %v3791
    %6156 = vmatpush.bf16.msra.mxu0 %v3775
    %6157 = vmatpush.bf16.msra.mxu0 %v3759
    %6158 = vmatpush.bf16.msra.mxu0 %v3743
    %6159 = vmatpush.bf16.msra.mxu0 %v3727
    %6160 = vmatpush.bf16.msra.mxu0 %v3711
    %6161 = vmatpush.bf16.msra.mxu0 %v3695
    %6162 = vmatmul.bf16.gmra.mxu0 %v2850
    %v6163 = vpop.f32.mrf.mxu0
    %v6164 = vadd.f32 %v2895, %v6163
    %v6165 = vpop.f32.mrf.mxu0
    %v6166 = vadd.f32 %v2895, %v6165
    %6167 = vmatmul.bf16.gmra.mxu0 %v2852
    %v6168 = vpop.f32.mrf.mxu0
    %v6169 = vadd.f32 %v2895, %v6168
    %v6170 = vpop.f32.mrf.mxu0
    %v6171 = vadd.f32 %v2895, %v6170
    %6172 = vmatmul.bf16.gmra.mxu0 %v2854
    %v6173 = vpop.f32.mrf.mxu0
    %v6174 = vadd.f32 %v2895, %v6173
    %v6175 = vpop.f32.mrf.mxu0
    %v6176 = vadd.f32 %v2895, %v6175
    %6177 = vmatmul.bf16.gmra.mxu0 %v2856
    %v6178 = vpop.f32.mrf.mxu0
    %v6179 = vadd.f32 %v2895, %v6178
    %v6180 = vpop.f32.mrf.mxu0
    %v6181 = vadd.f32 %v2895, %v6180
    %6182 = vmatmul.bf16.gmra.mxu0 %v2858
    %v6183 = vpop.f32.mrf.mxu0
    %v6184 = vadd.f32 %v2895, %v6183
    %v6185 = vpop.f32.mrf.mxu0
    %v6186 = vadd.f32 %v2895, %v6185
    %6187 = vmatmul.bf16.gmra.mxu0 %v2860
    %v6188 = vpop.f32.mrf.mxu0
    %v6189 = vadd.f32 %v2895, %v6188
    %v6190 = vpop.f32.mrf.mxu0
    %v6191 = vadd.f32 %v2895, %v6190
    %6192 = vmatmul.bf16.gmra.mxu0 %v2862
    %v6193 = vpop.f32.mrf.mxu0
    %v6194 = vadd.f32 %v2895, %v6193
    %v6195 = vpop.f32.mrf.mxu0
    %v6196 = vadd.f32 %v2895, %v6195
    %6197 = vmatmul.bf16.gmra.mxu0 %v2864
    %v6198 = vpop.f32.mrf.mxu0
    %v6199 = vadd.f32 %v2895, %v6198
    %v6200 = vpop.f32.mrf.mxu0
    %v6201 = vadd.f32 %v2895, %v6200
    %6202 = vmatmul.bf16.gmra.mxu0 %v2866
    %v6203 = vpop.f32.mrf.mxu0
    %v6204 = vadd.f32 %v2895, %v6203
    %v6205 = vpop.f32.mrf.mxu0
    %v6206 = vadd.f32 %v2895, %v6205
    %6207 = vmatmul.bf16.gmra.mxu0 %v2868
    %v6208 = vpop.f32.mrf.mxu0
    %v6209 = vadd.f32 %v2895, %v6208
    %v6210 = vpop.f32.mrf.mxu0
    %v6211 = vadd.f32 %v2895, %v6210
    %6212 = vmatmul.bf16.gmra.mxu0 %v2870
    %v6213 = vpop.f32.mrf.mxu0
    %v6214 = vadd.f32 %v2895, %v6213
    %v6215 = vpop.f32.mrf.mxu0
    %v6216 = vadd.f32 %v2895, %v6215
    %6217 = vmatmul.bf16.gmra.mxu0 %v2872
    %v6218 = vpop.f32.mrf.mxu0
    %v6219 = vadd.f32 %v2895, %v6218
    %v6220 = vpop.f32.mrf.mxu0
    %v6221 = vadd.f32 %v2895, %v6220
    %6222 = vmatmul.bf16.gmra.mxu0 %v2874
    %v6223 = vpop.f32.mrf.mxu0
    %v6224 = vadd.f32 %v2895, %v6223
    %v6225 = vpop.f32.mrf.mxu0
    %v6226 = vadd.f32 %v2895, %v6225
    %6227 = vmatmul.bf16.gmra.mxu0 %v2876
    %v6228 = vpop.f32.mrf.mxu0
    %v6229 = vadd.f32 %v2895, %v6228
    %v6230 = vpop.f32.mrf.mxu0
    %v6231 = vadd.f32 %v2895, %v6230
    %6232 = vmatmul.bf16.gmra.mxu0 %v2878
    %v6233 = vpop.f32.mrf.mxu0
    %v6234 = vadd.f32 %v2895, %v6233
    %v6235 = vpop.f32.mrf.mxu0
    %v6236 = vadd.f32 %v2895, %v6235
    %6237 = vmatmul.bf16.gmra.mxu0 %v2880
    %v6238 = vpop.f32.mrf.mxu0
    %v6239 = vadd.f32 %v2895, %v6238
    %v6240 = vpop.f32.mrf.mxu0
    %v6241 = vadd.f32 %v2895, %v6240
    %6242 = vdwg.mxu0
    %6243 = vmatpush.bf16.msra.mxu0 %v3935
    %6244 = vmatpush.bf16.msra.mxu0 %v3919
    %6245 = vmatpush.bf16.msra.mxu0 %v3903
    %6246 = vmatpush.bf16.msra.mxu0 %v3887
    %6247 = vmatpush.bf16.msra.mxu0 %v3871
    %6248 = vmatpush.bf16.msra.mxu0 %v3855
    %6249 = vmatpush.bf16.msra.mxu0 %v3839
    %6250 = vmatpush.bf16.msra.mxu0 %v3823
    %6251 = vmatmul.bf16.gmra.mxu0 %v2851
    %v6252 = vpop.f32.mrf.mxu0
    %v6253 = vadd.f32 %v6164, %v6252
    %v6254 = vpop.f32.mrf.mxu0
    %v6255 = vadd.f32 %v6166, %v6254
    %6256 = vmatmul.bf16.gmra.mxu0 %v2853
    %v6257 = vpop.f32.mrf.mxu0
    %v6258 = vadd.f32 %v6169, %v6257
    %v6259 = vpop.f32.mrf.mxu0
    %v6260 = vadd.f32 %v6171, %v6259
    %6261 = vmatmul.bf16.gmra.mxu0 %v2855
    %v6262 = vpop.f32.mrf.mxu0
    %v6263 = vadd.f32 %v6174, %v6262
    %v6264 = vpop.f32.mrf.mxu0
    %v6265 = vadd.f32 %v6176, %v6264
    %6266 = vmatmul.bf16.gmra.mxu0 %v2857
    %v6267 = vpop.f32.mrf.mxu0
    %v6268 = vadd.f32 %v6179, %v6267
    %v6269 = vpop.f32.mrf.mxu0
    %v6270 = vadd.f32 %v6181, %v6269
    %6271 = vmatmul.bf16.gmra.mxu0 %v2859
    %v6272 = vpop.f32.mrf.mxu0
    %v6273 = vadd.f32 %v6184, %v6272
    %v6274 = vpop.f32.mrf.mxu0
    %v6275 = vadd.f32 %v6186, %v6274
    %6276 = vmatmul.bf16.gmra.mxu0 %v2861
    %v6277 = vpop.f32.mrf.mxu0
    %v6278 = vadd.f32 %v6189, %v6277
    %v6279 = vpop.f32.mrf.mxu0
    %v6280 = vadd.f32 %v6191, %v6279
    %6281 = vmatmul.bf16.gmra.mxu0 %v2863
    %v6282 = vpop.f32.mrf.mxu0
    %v6283 = vadd.f32 %v6194, %v6282
    %v6284 = vpop.f32.mrf.mxu0
    %v6285 = vadd.f32 %v6196, %v6284
    %6286 = vmatmul.bf16.gmra.mxu0 %v2865
    %v6287 = vpop.f32.mrf.mxu0
    %v6288 = vadd.f32 %v6199, %v6287
    %v6289 = vpop.f32.mrf.mxu0
    %v6290 = vadd.f32 %v6201, %v6289
    %6291 = vmatmul.bf16.gmra.mxu0 %v2867
    %v6292 = vpop.f32.mrf.mxu0
    %v6293 = vadd.f32 %v6204, %v6292
    %v6294 = vpop.f32.mrf.mxu0
    %v6295 = vadd.f32 %v6206, %v6294
    %6296 = vmatmul.bf16.gmra.mxu0 %v2869
    %v6297 = vpop.f32.mrf.mxu0
    %v6298 = vadd.f32 %v6209, %v6297
    %v6299 = vpop.f32.mrf.mxu0
    %v6300 = vadd.f32 %v6211, %v6299
    %6301 = vmatmul.bf16.gmra.mxu0 %v2871
    %v6302 = vpop.f32.mrf.mxu0
    %v6303 = vadd.f32 %v6214, %v6302
    %v6304 = vpop.f32.mrf.mxu0
    %v6305 = vadd.f32 %v6216, %v6304
    %6306 = vmatmul.bf16.gmra.mxu0 %v2873
    %v6307 = vpop.f32.mrf.mxu0
    %v6308 = vadd.f32 %v6219, %v6307
    %v6309 = vpop.f32.mrf.mxu0
    %v6310 = vadd.f32 %v6221, %v6309
    %6311 = vmatmul.bf16.gmra.mxu0 %v2875
    %v6312 = vpop.f32.mrf.mxu0
    %v6313 = vadd.f32 %v6224, %v6312
    %v6314 = vpop.f32.mrf.mxu0
    %v6315 = vadd.f32 %v6226, %v6314
    %6316 = vmatmul.bf16.gmra.mxu0 %v2877
    %v6317 = vpop.f32.mrf.mxu0
    %v6318 = vadd.f32 %v6229, %v6317
    %v6319 = vpop.f32.mrf.mxu0
    %v6320 = vadd.f32 %v6231, %v6319
    %6321 = vmatmul.bf16.gmra.mxu0 %v2879
    %v6322 = vpop.f32.mrf.mxu0
    %v6323 = vadd.f32 %v6234, %v6322
    %v6324 = vpop.f32.mrf.mxu0
    %v6325 = vadd.f32 %v6236, %v6324
    %6326 = vmatmul.bf16.gmra.mxu0 %v2881
    %v6327 = vpop.f32.mrf.mxu0
    %v6328 = vadd.f32 %v6239, %v6327
    %v6329 = vpop.f32.mrf.mxu0
    %v6330 = vadd.f32 %v6241, %v6329
    %6331 = vdwg.mxu0
    %6332 = vmatpush.bf16.msra.mxu0 %v3808
    %6333 = vmatpush.bf16.msra.mxu0 %v3792
    %6334 = vmatpush.bf16.msra.mxu0 %v3776
    %6335 = vmatpush.bf16.msra.mxu0 %v3760
    %6336 = vmatpush.bf16.msra.mxu0 %v3744
    %6337 = vmatpush.bf16.msra.mxu0 %v3728
    %6338 = vmatpush.bf16.msra.mxu0 %v3712
    %6339 = vmatpush.bf16.msra.mxu0 %v3696
    %6340 = vmatmul.bf16.gmra.mxu0 %v2850
    %v6341 = vpop.f32.mrf.mxu0
    %v6342 = vadd.f32 %v2896, %v6341
    %v6343 = vpop.f32.mrf.mxu0
    %v6344 = vadd.f32 %v2896, %v6343
    %6345 = vmatmul.bf16.gmra.mxu0 %v2852
    %v6346 = vpop.f32.mrf.mxu0
    %v6347 = vadd.f32 %v2896, %v6346
    %v6348 = vpop.f32.mrf.mxu0
    %v6349 = vadd.f32 %v2896, %v6348
    %6350 = vmatmul.bf16.gmra.mxu0 %v2854
    %v6351 = vpop.f32.mrf.mxu0
    %v6352 = vadd.f32 %v2896, %v6351
    %v6353 = vpop.f32.mrf.mxu0
    %v6354 = vadd.f32 %v2896, %v6353
    %6355 = vmatmul.bf16.gmra.mxu0 %v2856
    %v6356 = vpop.f32.mrf.mxu0
    %v6357 = vadd.f32 %v2896, %v6356
    %v6358 = vpop.f32.mrf.mxu0
    %v6359 = vadd.f32 %v2896, %v6358
    %6360 = vmatmul.bf16.gmra.mxu0 %v2858
    %v6361 = vpop.f32.mrf.mxu0
    %v6362 = vadd.f32 %v2896, %v6361
    %v6363 = vpop.f32.mrf.mxu0
    %v6364 = vadd.f32 %v2896, %v6363
    %6365 = vmatmul.bf16.gmra.mxu0 %v2860
    %v6366 = vpop.f32.mrf.mxu0
    %v6367 = vadd.f32 %v2896, %v6366
    %v6368 = vpop.f32.mrf.mxu0
    %v6369 = vadd.f32 %v2896, %v6368
    %6370 = vmatmul.bf16.gmra.mxu0 %v2862
    %v6371 = vpop.f32.mrf.mxu0
    %v6372 = vadd.f32 %v2896, %v6371
    %v6373 = vpop.f32.mrf.mxu0
    %v6374 = vadd.f32 %v2896, %v6373
    %6375 = vmatmul.bf16.gmra.mxu0 %v2864
    %v6376 = vpop.f32.mrf.mxu0
    %v6377 = vadd.f32 %v2896, %v6376
    %v6378 = vpop.f32.mrf.mxu0
    %v6379 = vadd.f32 %v2896, %v6378
    %6380 = vmatmul.bf16.gmra.mxu0 %v2866
    %v6381 = vpop.f32.mrf.mxu0
    %v6382 = vadd.f32 %v2896, %v6381
    %v6383 = vpop.f32.mrf.mxu0
    %v6384 = vadd.f32 %v2896, %v6383
    %6385 = vmatmul.bf16.gmra.mxu0 %v2868
    %v6386 = vpop.f32.mrf.mxu0
    %v6387 = vadd.f32 %v2896, %v6386
    %v6388 = vpop.f32.mrf.mxu0
    %v6389 = vadd.f32 %v2896, %v6388
    %6390 = vmatmul.bf16.gmra.mxu0 %v2870
    %v6391 = vpop.f32.mrf.mxu0
    %v6392 = vadd.f32 %v2896, %v6391
    %v6393 = vpop.f32.mrf.mxu0
    %v6394 = vadd.f32 %v2896, %v6393
    %6395 = vmatmul.bf16.gmra.mxu0 %v2872
    %v6396 = vpop.f32.mrf.mxu0
    %v6397 = vadd.f32 %v2896, %v6396
    %v6398 = vpop.f32.mrf.mxu0
    %v6399 = vadd.f32 %v2896, %v6398
    %6400 = vmatmul.bf16.gmra.mxu0 %v2874
    %v6401 = vpop.f32.mrf.mxu0
    %v6402 = vadd.f32 %v2896, %v6401
    %v6403 = vpop.f32.mrf.mxu0
    %v6404 = vadd.f32 %v2896, %v6403
    %6405 = vmatmul.bf16.gmra.mxu0 %v2876
    %v6406 = vpop.f32.mrf.mxu0
    %v6407 = vadd.f32 %v2896, %v6406
    %v6408 = vpop.f32.mrf.mxu0
    %v6409 = vadd.f32 %v2896, %v6408
    %6410 = vmatmul.bf16.gmra.mxu0 %v2878
    %v6411 = vpop.f32.mrf.mxu0
    %v6412 = vadd.f32 %v2896, %v6411
    %v6413 = vpop.f32.mrf.mxu0
    %v6414 = vadd.f32 %v2896, %v6413
    %6415 = vmatmul.bf16.gmra.mxu0 %v2880
    %v6416 = vpop.f32.mrf.mxu0
    %v6417 = vadd.f32 %v2896, %v6416
    %v6418 = vpop.f32.mrf.mxu0
    %v6419 = vadd.f32 %v2896, %v6418
    %6420 = vdwg.mxu0
    %6421 = vmatpush.bf16.msra.mxu0 %v3936
    %6422 = vmatpush.bf16.msra.mxu0 %v3920
    %6423 = vmatpush.bf16.msra.mxu0 %v3904
    %6424 = vmatpush.bf16.msra.mxu0 %v3888
    %6425 = vmatpush.bf16.msra.mxu0 %v3872
    %6426 = vmatpush.bf16.msra.mxu0 %v3856
    %6427 = vmatpush.bf16.msra.mxu0 %v3840
    %6428 = vmatpush.bf16.msra.mxu0 %v3824
    %6429 = vmatmul.bf16.gmra.mxu0 %v2851
    %v6430 = vpop.f32.mrf.mxu0
    %v6431 = vadd.f32 %v6342, %v6430
    %v6432 = vpop.f32.mrf.mxu0
    %v6433 = vadd.f32 %v6344, %v6432
    %6434 = vmatmul.bf16.gmra.mxu0 %v2853
    %v6435 = vpop.f32.mrf.mxu0
    %v6436 = vadd.f32 %v6347, %v6435
    %v6437 = vpop.f32.mrf.mxu0
    %v6438 = vadd.f32 %v6349, %v6437
    %6439 = vmatmul.bf16.gmra.mxu0 %v2855
    %v6440 = vpop.f32.mrf.mxu0
    %v6441 = vadd.f32 %v6352, %v6440
    %v6442 = vpop.f32.mrf.mxu0
    %v6443 = vadd.f32 %v6354, %v6442
    %6444 = vmatmul.bf16.gmra.mxu0 %v2857
    %v6445 = vpop.f32.mrf.mxu0
    %v6446 = vadd.f32 %v6357, %v6445
    %v6447 = vpop.f32.mrf.mxu0
    %v6448 = vadd.f32 %v6359, %v6447
    %6449 = vmatmul.bf16.gmra.mxu0 %v2859
    %v6450 = vpop.f32.mrf.mxu0
    %v6451 = vadd.f32 %v6362, %v6450
    %v6452 = vpop.f32.mrf.mxu0
    %v6453 = vadd.f32 %v6364, %v6452
    %6454 = vmatmul.bf16.gmra.mxu0 %v2861
    %v6455 = vpop.f32.mrf.mxu0
    %v6456 = vadd.f32 %v6367, %v6455
    %v6457 = vpop.f32.mrf.mxu0
    %v6458 = vadd.f32 %v6369, %v6457
    %6459 = vmatmul.bf16.gmra.mxu0 %v2863
    %v6460 = vpop.f32.mrf.mxu0
    %v6461 = vadd.f32 %v6372, %v6460
    %v6462 = vpop.f32.mrf.mxu0
    %v6463 = vadd.f32 %v6374, %v6462
    %6464 = vmatmul.bf16.gmra.mxu0 %v2865
    %v6465 = vpop.f32.mrf.mxu0
    %v6466 = vadd.f32 %v6377, %v6465
    %v6467 = vpop.f32.mrf.mxu0
    %v6468 = vadd.f32 %v6379, %v6467
    %6469 = vmatmul.bf16.gmra.mxu0 %v2867
    %v6470 = vpop.f32.mrf.mxu0
    %v6471 = vadd.f32 %v6382, %v6470
    %v6472 = vpop.f32.mrf.mxu0
    %v6473 = vadd.f32 %v6384, %v6472
    %6474 = vmatmul.bf16.gmra.mxu0 %v2869
    %v6475 = vpop.f32.mrf.mxu0
    %v6476 = vadd.f32 %v6387, %v6475
    %v6477 = vpop.f32.mrf.mxu0
    %v6478 = vadd.f32 %v6389, %v6477
    %6479 = vmatmul.bf16.gmra.mxu0 %v2871
    %v6480 = vpop.f32.mrf.mxu0
    %v6481 = vadd.f32 %v6392, %v6480
    %v6482 = vpop.f32.mrf.mxu0
    %v6483 = vadd.f32 %v6394, %v6482
    %6484 = vmatmul.bf16.gmra.mxu0 %v2873
    %v6485 = vpop.f32.mrf.mxu0
    %v6486 = vadd.f32 %v6397, %v6485
    %v6487 = vpop.f32.mrf.mxu0
    %v6488 = vadd.f32 %v6399, %v6487
    %6489 = vmatmul.bf16.gmra.mxu0 %v2875
    %v6490 = vpop.f32.mrf.mxu0
    %v6491 = vadd.f32 %v6402, %v6490
    %v6492 = vpop.f32.mrf.mxu0
    %v6493 = vadd.f32 %v6404, %v6492
    %6494 = vmatmul.bf16.gmra.mxu0 %v2877
    %v6495 = vpop.f32.mrf.mxu0
    %v6496 = vadd.f32 %v6407, %v6495
    %v6497 = vpop.f32.mrf.mxu0
    %v6498 = vadd.f32 %v6409, %v6497
    %6499 = vmatmul.bf16.gmra.mxu0 %v2879
    %v6500 = vpop.f32.mrf.mxu0
    %v6501 = vadd.f32 %v6412, %v6500
    %v6502 = vpop.f32.mrf.mxu0
    %v6503 = vadd.f32 %v6414, %v6502
    %6504 = vmatmul.bf16.gmra.mxu0 %v2881
    %v6505 = vpop.f32.mrf.mxu0
    %v6506 = vadd.f32 %v6417, %v6505
    %v6507 = vpop.f32.mrf.mxu0
    %v6508 = vadd.f32 %v6419, %v6507
    %6509 = vdwg.mxu0
    %6510 = vmatpush.bf16.msra.mxu0 %v3809
    %6511 = vmatpush.bf16.msra.mxu0 %v3793
    %6512 = vmatpush.bf16.msra.mxu0 %v3777
    %6513 = vmatpush.bf16.msra.mxu0 %v3761
    %6514 = vmatpush.bf16.msra.mxu0 %v3745
    %6515 = vmatpush.bf16.msra.mxu0 %v3729
    %6516 = vmatpush.bf16.msra.mxu0 %v3713
    %6517 = vmatpush.bf16.msra.mxu0 %v3697
    %6518 = vmatmul.bf16.gmra.mxu0 %v2850
    %v6519 = vpop.f32.mrf.mxu0
    %v6520 = vadd.f32 %v2897, %v6519
    %v6521 = vpop.f32.mrf.mxu0
    %v6522 = vadd.f32 %v2897, %v6521
    %6523 = vmatmul.bf16.gmra.mxu0 %v2852
    %v6524 = vpop.f32.mrf.mxu0
    %v6525 = vadd.f32 %v2897, %v6524
    %v6526 = vpop.f32.mrf.mxu0
    %v6527 = vadd.f32 %v2897, %v6526
    %6528 = vmatmul.bf16.gmra.mxu0 %v2854
    %v6529 = vpop.f32.mrf.mxu0
    %v6530 = vadd.f32 %v2897, %v6529
    %v6531 = vpop.f32.mrf.mxu0
    %v6532 = vadd.f32 %v2897, %v6531
    %6533 = vmatmul.bf16.gmra.mxu0 %v2856
    %v6534 = vpop.f32.mrf.mxu0
    %v6535 = vadd.f32 %v2897, %v6534
    %v6536 = vpop.f32.mrf.mxu0
    %v6537 = vadd.f32 %v2897, %v6536
    %6538 = vmatmul.bf16.gmra.mxu0 %v2858
    %v6539 = vpop.f32.mrf.mxu0
    %v6540 = vadd.f32 %v2897, %v6539
    %v6541 = vpop.f32.mrf.mxu0
    %v6542 = vadd.f32 %v2897, %v6541
    %6543 = vmatmul.bf16.gmra.mxu0 %v2860
    %v6544 = vpop.f32.mrf.mxu0
    %v6545 = vadd.f32 %v2897, %v6544
    %v6546 = vpop.f32.mrf.mxu0
    %v6547 = vadd.f32 %v2897, %v6546
    %6548 = vmatmul.bf16.gmra.mxu0 %v2862
    %v6549 = vpop.f32.mrf.mxu0
    %v6550 = vadd.f32 %v2897, %v6549
    %v6551 = vpop.f32.mrf.mxu0
    %v6552 = vadd.f32 %v2897, %v6551
    %6553 = vmatmul.bf16.gmra.mxu0 %v2864
    %v6554 = vpop.f32.mrf.mxu0
    %v6555 = vadd.f32 %v2897, %v6554
    %v6556 = vpop.f32.mrf.mxu0
    %v6557 = vadd.f32 %v2897, %v6556
    %6558 = vmatmul.bf16.gmra.mxu0 %v2866
    %v6559 = vpop.f32.mrf.mxu0
    %v6560 = vadd.f32 %v2897, %v6559
    %v6561 = vpop.f32.mrf.mxu0
    %v6562 = vadd.f32 %v2897, %v6561
    %6563 = vmatmul.bf16.gmra.mxu0 %v2868
    %v6564 = vpop.f32.mrf.mxu0
    %v6565 = vadd.f32 %v2897, %v6564
    %v6566 = vpop.f32.mrf.mxu0
    %v6567 = vadd.f32 %v2897, %v6566
    %6568 = vmatmul.bf16.gmra.mxu0 %v2870
    %v6569 = vpop.f32.mrf.mxu0
    %v6570 = vadd.f32 %v2897, %v6569
    %v6571 = vpop.f32.mrf.mxu0
    %v6572 = vadd.f32 %v2897, %v6571
    %6573 = vmatmul.bf16.gmra.mxu0 %v2872
    %v6574 = vpop.f32.mrf.mxu0
    %v6575 = vadd.f32 %v2897, %v6574
    %v6576 = vpop.f32.mrf.mxu0
    %v6577 = vadd.f32 %v2897, %v6576
    %6578 = vmatmul.bf16.gmra.mxu0 %v2874
    %v6579 = vpop.f32.mrf.mxu0
    %v6580 = vadd.f32 %v2897, %v6579
    %v6581 = vpop.f32.mrf.mxu0
    %v6582 = vadd.f32 %v2897, %v6581
    %6583 = vmatmul.bf16.gmra.mxu0 %v2876
    %v6584 = vpop.f32.mrf.mxu0
    %v6585 = vadd.f32 %v2897, %v6584
    %v6586 = vpop.f32.mrf.mxu0
    %v6587 = vadd.f32 %v2897, %v6586
    %6588 = vmatmul.bf16.gmra.mxu0 %v2878
    %v6589 = vpop.f32.mrf.mxu0
    %v6590 = vadd.f32 %v2897, %v6589
    %v6591 = vpop.f32.mrf.mxu0
    %v6592 = vadd.f32 %v2897, %v6591
    %6593 = vmatmul.bf16.gmra.mxu0 %v2880
    %v6594 = vpop.f32.mrf.mxu0
    %v6595 = vadd.f32 %v2897, %v6594
    %v6596 = vpop.f32.mrf.mxu0
    %v6597 = vadd.f32 %v2897, %v6596
    %6598 = vdwg.mxu0
    %6599 = vmatpush.bf16.msra.mxu0 %v3937
    %6600 = vmatpush.bf16.msra.mxu0 %v3921
    %6601 = vmatpush.bf16.msra.mxu0 %v3905
    %6602 = vmatpush.bf16.msra.mxu0 %v3889
    %6603 = vmatpush.bf16.msra.mxu0 %v3873
    %6604 = vmatpush.bf16.msra.mxu0 %v3857
    %6605 = vmatpush.bf16.msra.mxu0 %v3841
    %6606 = vmatpush.bf16.msra.mxu0 %v3825
    %6607 = vmatmul.bf16.gmra.mxu0 %v2851
    %v6608 = vpop.f32.mrf.mxu0
    %v6609 = vadd.f32 %v6520, %v6608
    %v6610 = vpop.f32.mrf.mxu0
    %v6611 = vadd.f32 %v6522, %v6610
    %6612 = vmatmul.bf16.gmra.mxu0 %v2853
    %v6613 = vpop.f32.mrf.mxu0
    %v6614 = vadd.f32 %v6525, %v6613
    %v6615 = vpop.f32.mrf.mxu0
    %v6616 = vadd.f32 %v6527, %v6615
    %6617 = vmatmul.bf16.gmra.mxu0 %v2855
    %v6618 = vpop.f32.mrf.mxu0
    %v6619 = vadd.f32 %v6530, %v6618
    %v6620 = vpop.f32.mrf.mxu0
    %v6621 = vadd.f32 %v6532, %v6620
    %6622 = vmatmul.bf16.gmra.mxu0 %v2857
    %v6623 = vpop.f32.mrf.mxu0
    %v6624 = vadd.f32 %v6535, %v6623
    %v6625 = vpop.f32.mrf.mxu0
    %v6626 = vadd.f32 %v6537, %v6625
    %6627 = vmatmul.bf16.gmra.mxu0 %v2859
    %v6628 = vpop.f32.mrf.mxu0
    %v6629 = vadd.f32 %v6540, %v6628
    %v6630 = vpop.f32.mrf.mxu0
    %v6631 = vadd.f32 %v6542, %v6630
    %6632 = vmatmul.bf16.gmra.mxu0 %v2861
    %v6633 = vpop.f32.mrf.mxu0
    %v6634 = vadd.f32 %v6545, %v6633
    %v6635 = vpop.f32.mrf.mxu0
    %v6636 = vadd.f32 %v6547, %v6635
    %6637 = vmatmul.bf16.gmra.mxu0 %v2863
    %v6638 = vpop.f32.mrf.mxu0
    %v6639 = vadd.f32 %v6550, %v6638
    %v6640 = vpop.f32.mrf.mxu0
    %v6641 = vadd.f32 %v6552, %v6640
    %6642 = vmatmul.bf16.gmra.mxu0 %v2865
    %v6643 = vpop.f32.mrf.mxu0
    %v6644 = vadd.f32 %v6555, %v6643
    %v6645 = vpop.f32.mrf.mxu0
    %v6646 = vadd.f32 %v6557, %v6645
    %6647 = vmatmul.bf16.gmra.mxu0 %v2867
    %v6648 = vpop.f32.mrf.mxu0
    %v6649 = vadd.f32 %v6560, %v6648
    %v6650 = vpop.f32.mrf.mxu0
    %v6651 = vadd.f32 %v6562, %v6650
    %6652 = vmatmul.bf16.gmra.mxu0 %v2869
    %v6653 = vpop.f32.mrf.mxu0
    %v6654 = vadd.f32 %v6565, %v6653
    %v6655 = vpop.f32.mrf.mxu0
    %v6656 = vadd.f32 %v6567, %v6655
    %6657 = vmatmul.bf16.gmra.mxu0 %v2871
    %v6658 = vpop.f32.mrf.mxu0
    %v6659 = vadd.f32 %v6570, %v6658
    %v6660 = vpop.f32.mrf.mxu0
    %v6661 = vadd.f32 %v6572, %v6660
    %6662 = vmatmul.bf16.gmra.mxu0 %v2873
    %v6663 = vpop.f32.mrf.mxu0
    %v6664 = vadd.f32 %v6575, %v6663
    %v6665 = vpop.f32.mrf.mxu0
    %v6666 = vadd.f32 %v6577, %v6665
    %6667 = vmatmul.bf16.gmra.mxu0 %v2875
    %v6668 = vpop.f32.mrf.mxu0
    %v6669 = vadd.f32 %v6580, %v6668
    %v6670 = vpop.f32.mrf.mxu0
    %v6671 = vadd.f32 %v6582, %v6670
    %6672 = vmatmul.bf16.gmra.mxu0 %v2877
    %v6673 = vpop.f32.mrf.mxu0
    %v6674 = vadd.f32 %v6585, %v6673
    %v6675 = vpop.f32.mrf.mxu0
    %v6676 = vadd.f32 %v6587, %v6675
    %6677 = vmatmul.bf16.gmra.mxu0 %v2879
    %v6678 = vpop.f32.mrf.mxu0
    %v6679 = vadd.f32 %v6590, %v6678
    %v6680 = vpop.f32.mrf.mxu0
    %v6681 = vadd.f32 %v6592, %v6680
    %6682 = vmatmul.bf16.gmra.mxu0 %v2881
    %v6683 = vpop.f32.mrf.mxu0
    %v6684 = vadd.f32 %v6595, %v6683
    %v6685 = vpop.f32.mrf.mxu0
    %v6686 = vadd.f32 %v6597, %v6685
    %6687 = vdwg.mxu0
    %6688 = vmatpush.bf16.msra.mxu0 %v3810
    %6689 = vmatpush.bf16.msra.mxu0 %v3794
    %6690 = vmatpush.bf16.msra.mxu0 %v3778
    %6691 = vmatpush.bf16.msra.mxu0 %v3762
    %6692 = vmatpush.bf16.msra.mxu0 %v3746
    %6693 = vmatpush.bf16.msra.mxu0 %v3730
    %6694 = vmatpush.bf16.msra.mxu0 %v3714
    %6695 = vmatpush.bf16.msra.mxu0 %v3698
    %6696 = vmatmul.bf16.gmra.mxu0 %v2850
    %v6697 = vpop.f32.mrf.mxu0
    %v6698 = vadd.f32 %v2898, %v6697
    %v6699 = vpop.f32.mrf.mxu0
    %v6700 = vadd.f32 %v2898, %v6699
    %6701 = vmatmul.bf16.gmra.mxu0 %v2852
    %v6702 = vpop.f32.mrf.mxu0
    %v6703 = vadd.f32 %v2898, %v6702
    %v6704 = vpop.f32.mrf.mxu0
    %v6705 = vadd.f32 %v2898, %v6704
    %6706 = vmatmul.bf16.gmra.mxu0 %v2854
    %v6707 = vpop.f32.mrf.mxu0
    %v6708 = vadd.f32 %v2898, %v6707
    %v6709 = vpop.f32.mrf.mxu0
    %v6710 = vadd.f32 %v2898, %v6709
    %6711 = vmatmul.bf16.gmra.mxu0 %v2856
    %v6712 = vpop.f32.mrf.mxu0
    %v6713 = vadd.f32 %v2898, %v6712
    %v6714 = vpop.f32.mrf.mxu0
    %v6715 = vadd.f32 %v2898, %v6714
    %6716 = vmatmul.bf16.gmra.mxu0 %v2858
    %v6717 = vpop.f32.mrf.mxu0
    %v6718 = vadd.f32 %v2898, %v6717
    %v6719 = vpop.f32.mrf.mxu0
    %v6720 = vadd.f32 %v2898, %v6719
    %6721 = vmatmul.bf16.gmra.mxu0 %v2860
    %v6722 = vpop.f32.mrf.mxu0
    %v6723 = vadd.f32 %v2898, %v6722
    %v6724 = vpop.f32.mrf.mxu0
    %v6725 = vadd.f32 %v2898, %v6724
    %6726 = vmatmul.bf16.gmra.mxu0 %v2862
    %v6727 = vpop.f32.mrf.mxu0
    %v6728 = vadd.f32 %v2898, %v6727
    %v6729 = vpop.f32.mrf.mxu0
    %v6730 = vadd.f32 %v2898, %v6729
    %6731 = vmatmul.bf16.gmra.mxu0 %v2864
    %v6732 = vpop.f32.mrf.mxu0
    %v6733 = vadd.f32 %v2898, %v6732
    %v6734 = vpop.f32.mrf.mxu0
    %v6735 = vadd.f32 %v2898, %v6734
    %6736 = vmatmul.bf16.gmra.mxu0 %v2866
    %v6737 = vpop.f32.mrf.mxu0
    %v6738 = vadd.f32 %v2898, %v6737
    %v6739 = vpop.f32.mrf.mxu0
    %v6740 = vadd.f32 %v2898, %v6739
    %6741 = vmatmul.bf16.gmra.mxu0 %v2868
    %v6742 = vpop.f32.mrf.mxu0
    %v6743 = vadd.f32 %v2898, %v6742
    %v6744 = vpop.f32.mrf.mxu0
    %v6745 = vadd.f32 %v2898, %v6744
    %6746 = vmatmul.bf16.gmra.mxu0 %v2870
    %v6747 = vpop.f32.mrf.mxu0
    %v6748 = vadd.f32 %v2898, %v6747
    %v6749 = vpop.f32.mrf.mxu0
    %v6750 = vadd.f32 %v2898, %v6749
    %6751 = vmatmul.bf16.gmra.mxu0 %v2872
    %v6752 = vpop.f32.mrf.mxu0
    %v6753 = vadd.f32 %v2898, %v6752
    %v6754 = vpop.f32.mrf.mxu0
    %v6755 = vadd.f32 %v2898, %v6754
    %6756 = vmatmul.bf16.gmra.mxu0 %v2874
    %v6757 = vpop.f32.mrf.mxu0
    %v6758 = vadd.f32 %v2898, %v6757
    %v6759 = vpop.f32.mrf.mxu0
    %v6760 = vadd.f32 %v2898, %v6759
    %6761 = vmatmul.bf16.gmra.mxu0 %v2876
    %v6762 = vpop.f32.mrf.mxu0
    %v6763 = vadd.f32 %v2898, %v6762
    %v6764 = vpop.f32.mrf.mxu0
    %v6765 = vadd.f32 %v2898, %v6764
    %6766 = vmatmul.bf16.gmra.mxu0 %v2878
    %v6767 = vpop.f32.mrf.mxu0
    %v6768 = vadd.f32 %v2898, %v6767
    %v6769 = vpop.f32.mrf.mxu0
    %v6770 = vadd.f32 %v2898, %v6769
    %6771 = vmatmul.bf16.gmra.mxu0 %v2880
    %v6772 = vpop.f32.mrf.mxu0
    %v6773 = vadd.f32 %v2898, %v6772
    %v6774 = vpop.f32.mrf.mxu0
    %v6775 = vadd.f32 %v2898, %v6774
    %6776 = vdwg.mxu0
    %6777 = vmatpush.bf16.msra.mxu0 %v3938
    %6778 = vmatpush.bf16.msra.mxu0 %v3922
    %6779 = vmatpush.bf16.msra.mxu0 %v3906
    %6780 = vmatpush.bf16.msra.mxu0 %v3890
    %6781 = vmatpush.bf16.msra.mxu0 %v3874
    %6782 = vmatpush.bf16.msra.mxu0 %v3858
    %6783 = vmatpush.bf16.msra.mxu0 %v3842
    %6784 = vmatpush.bf16.msra.mxu0 %v3826
    %6785 = vmatmul.bf16.gmra.mxu0 %v2851
    %v6786 = vpop.f32.mrf.mxu0
    %v6787 = vadd.f32 %v6698, %v6786
    %v6788 = vpop.f32.mrf.mxu0
    %v6789 = vadd.f32 %v6700, %v6788
    %6790 = vmatmul.bf16.gmra.mxu0 %v2853
    %v6791 = vpop.f32.mrf.mxu0
    %v6792 = vadd.f32 %v6703, %v6791
    %v6793 = vpop.f32.mrf.mxu0
    %v6794 = vadd.f32 %v6705, %v6793
    %6795 = vmatmul.bf16.gmra.mxu0 %v2855
    %v6796 = vpop.f32.mrf.mxu0
    %v6797 = vadd.f32 %v6708, %v6796
    %v6798 = vpop.f32.mrf.mxu0
    %v6799 = vadd.f32 %v6710, %v6798
    %6800 = vmatmul.bf16.gmra.mxu0 %v2857
    %v6801 = vpop.f32.mrf.mxu0
    %v6802 = vadd.f32 %v6713, %v6801
    %v6803 = vpop.f32.mrf.mxu0
    %v6804 = vadd.f32 %v6715, %v6803
    %6805 = vmatmul.bf16.gmra.mxu0 %v2859
    %v6806 = vpop.f32.mrf.mxu0
    %v6807 = vadd.f32 %v6718, %v6806
    %v6808 = vpop.f32.mrf.mxu0
    %v6809 = vadd.f32 %v6720, %v6808
    %6810 = vmatmul.bf16.gmra.mxu0 %v2861
    %v6811 = vpop.f32.mrf.mxu0
    %v6812 = vadd.f32 %v6723, %v6811
    %v6813 = vpop.f32.mrf.mxu0
    %v6814 = vadd.f32 %v6725, %v6813
    %6815 = vmatmul.bf16.gmra.mxu0 %v2863
    %v6816 = vpop.f32.mrf.mxu0
    %v6817 = vadd.f32 %v6728, %v6816
    %v6818 = vpop.f32.mrf.mxu0
    %v6819 = vadd.f32 %v6730, %v6818
    %6820 = vmatmul.bf16.gmra.mxu0 %v2865
    %v6821 = vpop.f32.mrf.mxu0
    %v6822 = vadd.f32 %v6733, %v6821
    %v6823 = vpop.f32.mrf.mxu0
    %v6824 = vadd.f32 %v6735, %v6823
    %6825 = vmatmul.bf16.gmra.mxu0 %v2867
    %v6826 = vpop.f32.mrf.mxu0
    %v6827 = vadd.f32 %v6738, %v6826
    %v6828 = vpop.f32.mrf.mxu0
    %v6829 = vadd.f32 %v6740, %v6828
    %6830 = vmatmul.bf16.gmra.mxu0 %v2869
    %v6831 = vpop.f32.mrf.mxu0
    %v6832 = vadd.f32 %v6743, %v6831
    %v6833 = vpop.f32.mrf.mxu0
    %v6834 = vadd.f32 %v6745, %v6833
    %6835 = vmatmul.bf16.gmra.mxu0 %v2871
    %v6836 = vpop.f32.mrf.mxu0
    %v6837 = vadd.f32 %v6748, %v6836
    %v6838 = vpop.f32.mrf.mxu0
    %v6839 = vadd.f32 %v6750, %v6838
    %6840 = vmatmul.bf16.gmra.mxu0 %v2873
    %v6841 = vpop.f32.mrf.mxu0
    %v6842 = vadd.f32 %v6753, %v6841
    %v6843 = vpop.f32.mrf.mxu0
    %v6844 = vadd.f32 %v6755, %v6843
    %6845 = vmatmul.bf16.gmra.mxu0 %v2875
    %v6846 = vpop.f32.mrf.mxu0
    %v6847 = vadd.f32 %v6758, %v6846
    %v6848 = vpop.f32.mrf.mxu0
    %v6849 = vadd.f32 %v6760, %v6848
    %6850 = vmatmul.bf16.gmra.mxu0 %v2877
    %v6851 = vpop.f32.mrf.mxu0
    %v6852 = vadd.f32 %v6763, %v6851
    %v6853 = vpop.f32.mrf.mxu0
    %v6854 = vadd.f32 %v6765, %v6853
    %6855 = vmatmul.bf16.gmra.mxu0 %v2879
    %v6856 = vpop.f32.mrf.mxu0
    %v6857 = vadd.f32 %v6768, %v6856
    %v6858 = vpop.f32.mrf.mxu0
    %v6859 = vadd.f32 %v6770, %v6858
    %6860 = vmatmul.bf16.gmra.mxu0 %v2881
    %v6861 = vpop.f32.mrf.mxu0
    %v6862 = vadd.f32 %v6773, %v6861
    %v6863 = vpop.f32.mrf.mxu0
    %v6864 = vadd.f32 %v6775, %v6863
    %6865 = vdwg.mxu0
    %6866 = vmatpush.bf16.msra.mxu0 %v3811
    %6867 = vmatpush.bf16.msra.mxu0 %v3795
    %6868 = vmatpush.bf16.msra.mxu0 %v3779
    %6869 = vmatpush.bf16.msra.mxu0 %v3763
    %6870 = vmatpush.bf16.msra.mxu0 %v3747
    %6871 = vmatpush.bf16.msra.mxu0 %v3731
    %6872 = vmatpush.bf16.msra.mxu0 %v3715
    %6873 = vmatpush.bf16.msra.mxu0 %v3699
    %6874 = vmatmul.bf16.gmra.mxu0 %v2850
    %v6875 = vpop.f32.mrf.mxu0
    %v6876 = vadd.f32 %v2899, %v6875
    %v6877 = vpop.f32.mrf.mxu0
    %v6878 = vadd.f32 %v2899, %v6877
    %6879 = vmatmul.bf16.gmra.mxu0 %v2852
    %v6880 = vpop.f32.mrf.mxu0
    %v6881 = vadd.f32 %v2899, %v6880
    %v6882 = vpop.f32.mrf.mxu0
    %v6883 = vadd.f32 %v2899, %v6882
    %6884 = vmatmul.bf16.gmra.mxu0 %v2854
    %v6885 = vpop.f32.mrf.mxu0
    %v6886 = vadd.f32 %v2899, %v6885
    %v6887 = vpop.f32.mrf.mxu0
    %v6888 = vadd.f32 %v2899, %v6887
    %6889 = vmatmul.bf16.gmra.mxu0 %v2856
    %v6890 = vpop.f32.mrf.mxu0
    %v6891 = vadd.f32 %v2899, %v6890
    %v6892 = vpop.f32.mrf.mxu0
    %v6893 = vadd.f32 %v2899, %v6892
    %6894 = vmatmul.bf16.gmra.mxu0 %v2858
    %v6895 = vpop.f32.mrf.mxu0
    %v6896 = vadd.f32 %v2899, %v6895
    %v6897 = vpop.f32.mrf.mxu0
    %v6898 = vadd.f32 %v2899, %v6897
    %6899 = vmatmul.bf16.gmra.mxu0 %v2860
    %v6900 = vpop.f32.mrf.mxu0
    %v6901 = vadd.f32 %v2899, %v6900
    %v6902 = vpop.f32.mrf.mxu0
    %v6903 = vadd.f32 %v2899, %v6902
    %6904 = vmatmul.bf16.gmra.mxu0 %v2862
    %v6905 = vpop.f32.mrf.mxu0
    %v6906 = vadd.f32 %v2899, %v6905
    %v6907 = vpop.f32.mrf.mxu0
    %v6908 = vadd.f32 %v2899, %v6907
    %6909 = vmatmul.bf16.gmra.mxu0 %v2864
    %v6910 = vpop.f32.mrf.mxu0
    %v6911 = vadd.f32 %v2899, %v6910
    %v6912 = vpop.f32.mrf.mxu0
    %v6913 = vadd.f32 %v2899, %v6912
    %6914 = vmatmul.bf16.gmra.mxu0 %v2866
    %v6915 = vpop.f32.mrf.mxu0
    %v6916 = vadd.f32 %v2899, %v6915
    %v6917 = vpop.f32.mrf.mxu0
    %v6918 = vadd.f32 %v2899, %v6917
    %6919 = vmatmul.bf16.gmra.mxu0 %v2868
    %v6920 = vpop.f32.mrf.mxu0
    %v6921 = vadd.f32 %v2899, %v6920
    %v6922 = vpop.f32.mrf.mxu0
    %v6923 = vadd.f32 %v2899, %v6922
    %6924 = vmatmul.bf16.gmra.mxu0 %v2870
    %v6925 = vpop.f32.mrf.mxu0
    %v6926 = vadd.f32 %v2899, %v6925
    %v6927 = vpop.f32.mrf.mxu0
    %v6928 = vadd.f32 %v2899, %v6927
    %6929 = vmatmul.bf16.gmra.mxu0 %v2872
    %v6930 = vpop.f32.mrf.mxu0
    %v6931 = vadd.f32 %v2899, %v6930
    %v6932 = vpop.f32.mrf.mxu0
    %v6933 = vadd.f32 %v2899, %v6932
    %6934 = vmatmul.bf16.gmra.mxu0 %v2874
    %v6935 = vpop.f32.mrf.mxu0
    %v6936 = vadd.f32 %v2899, %v6935
    %v6937 = vpop.f32.mrf.mxu0
    %v6938 = vadd.f32 %v2899, %v6937
    %6939 = vmatmul.bf16.gmra.mxu0 %v2876
    %v6940 = vpop.f32.mrf.mxu0
    %v6941 = vadd.f32 %v2899, %v6940
    %v6942 = vpop.f32.mrf.mxu0
    %v6943 = vadd.f32 %v2899, %v6942
    %6944 = vmatmul.bf16.gmra.mxu0 %v2878
    %v6945 = vpop.f32.mrf.mxu0
    %v6946 = vadd.f32 %v2899, %v6945
    %v6947 = vpop.f32.mrf.mxu0
    %v6948 = vadd.f32 %v2899, %v6947
    %6949 = vmatmul.bf16.gmra.mxu0 %v2880
    %v6950 = vpop.f32.mrf.mxu0
    %v6951 = vadd.f32 %v2899, %v6950
    %v6952 = vpop.f32.mrf.mxu0
    %v6953 = vadd.f32 %v2899, %v6952
    %6954 = vdwg.mxu0
    %6955 = vmatpush.bf16.msra.mxu0 %v3939
    %6956 = vmatpush.bf16.msra.mxu0 %v3923
    %6957 = vmatpush.bf16.msra.mxu0 %v3907
    %6958 = vmatpush.bf16.msra.mxu0 %v3891
    %6959 = vmatpush.bf16.msra.mxu0 %v3875
    %6960 = vmatpush.bf16.msra.mxu0 %v3859
    %6961 = vmatpush.bf16.msra.mxu0 %v3843
    %6962 = vmatpush.bf16.msra.mxu0 %v3827
    %6963 = vmatmul.bf16.gmra.mxu0 %v2851
    %v6964 = vpop.f32.mrf.mxu0
    %v6965 = vadd.f32 %v6876, %v6964
    %v6966 = vpop.f32.mrf.mxu0
    %v6967 = vadd.f32 %v6878, %v6966
    %6968 = vmatmul.bf16.gmra.mxu0 %v2853
    %v6969 = vpop.f32.mrf.mxu0
    %v6970 = vadd.f32 %v6881, %v6969
    %v6971 = vpop.f32.mrf.mxu0
    %v6972 = vadd.f32 %v6883, %v6971
    %6973 = vmatmul.bf16.gmra.mxu0 %v2855
    %v6974 = vpop.f32.mrf.mxu0
    %v6975 = vadd.f32 %v6886, %v6974
    %v6976 = vpop.f32.mrf.mxu0
    %v6977 = vadd.f32 %v6888, %v6976
    %6978 = vmatmul.bf16.gmra.mxu0 %v2857
    %v6979 = vpop.f32.mrf.mxu0
    %v6980 = vadd.f32 %v6891, %v6979
    %v6981 = vpop.f32.mrf.mxu0
    %v6982 = vadd.f32 %v6893, %v6981
    %6983 = vmatmul.bf16.gmra.mxu0 %v2859
    %v6984 = vpop.f32.mrf.mxu0
    %v6985 = vadd.f32 %v6896, %v6984
    %v6986 = vpop.f32.mrf.mxu0
    %v6987 = vadd.f32 %v6898, %v6986
    %6988 = vmatmul.bf16.gmra.mxu0 %v2861
    %v6989 = vpop.f32.mrf.mxu0
    %v6990 = vadd.f32 %v6901, %v6989
    %v6991 = vpop.f32.mrf.mxu0
    %v6992 = vadd.f32 %v6903, %v6991
    %6993 = vmatmul.bf16.gmra.mxu0 %v2863
    %v6994 = vpop.f32.mrf.mxu0
    %v6995 = vadd.f32 %v6906, %v6994
    %v6996 = vpop.f32.mrf.mxu0
    %v6997 = vadd.f32 %v6908, %v6996
    %6998 = vmatmul.bf16.gmra.mxu0 %v2865
    %v6999 = vpop.f32.mrf.mxu0
    %v7000 = vadd.f32 %v6911, %v6999
    %v7001 = vpop.f32.mrf.mxu0
    %v7002 = vadd.f32 %v6913, %v7001
    %7003 = vmatmul.bf16.gmra.mxu0 %v2867
    %v7004 = vpop.f32.mrf.mxu0
    %v7005 = vadd.f32 %v6916, %v7004
    %v7006 = vpop.f32.mrf.mxu0
    %v7007 = vadd.f32 %v6918, %v7006
    %7008 = vmatmul.bf16.gmra.mxu0 %v2869
    %v7009 = vpop.f32.mrf.mxu0
    %v7010 = vadd.f32 %v6921, %v7009
    %v7011 = vpop.f32.mrf.mxu0
    %v7012 = vadd.f32 %v6923, %v7011
    %7013 = vmatmul.bf16.gmra.mxu0 %v2871
    %v7014 = vpop.f32.mrf.mxu0
    %v7015 = vadd.f32 %v6926, %v7014
    %v7016 = vpop.f32.mrf.mxu0
    %v7017 = vadd.f32 %v6928, %v7016
    %7018 = vmatmul.bf16.gmra.mxu0 %v2873
    %v7019 = vpop.f32.mrf.mxu0
    %v7020 = vadd.f32 %v6931, %v7019
    %v7021 = vpop.f32.mrf.mxu0
    %v7022 = vadd.f32 %v6933, %v7021
    %7023 = vmatmul.bf16.gmra.mxu0 %v2875
    %v7024 = vpop.f32.mrf.mxu0
    %v7025 = vadd.f32 %v6936, %v7024
    %v7026 = vpop.f32.mrf.mxu0
    %v7027 = vadd.f32 %v6938, %v7026
    %7028 = vmatmul.bf16.gmra.mxu0 %v2877
    %v7029 = vpop.f32.mrf.mxu0
    %v7030 = vadd.f32 %v6941, %v7029
    %v7031 = vpop.f32.mrf.mxu0
    %v7032 = vadd.f32 %v6943, %v7031
    %7033 = vmatmul.bf16.gmra.mxu0 %v2879
    %v7034 = vpop.f32.mrf.mxu0
    %v7035 = vadd.f32 %v6946, %v7034
    %v7036 = vpop.f32.mrf.mxu0
    %v7037 = vadd.f32 %v6948, %v7036
    %7038 = vmatmul.bf16.gmra.mxu0 %v2881
    %v7039 = vpop.f32.mrf.mxu0
    %v7040 = vadd.f32 %v6951, %v7039
    %v7041 = vpop.f32.mrf.mxu0
    %v7042 = vadd.f32 %v6953, %v7041
    %7043 = vdwg.mxu0
    %v7044 = vmax.f32 %v4295, 0.0
    %v7045 = vmax.f32 %v4473, 0.0
    %v7046 = vmax.f32 %v4651, 0.0
    %v7047 = vmax.f32 %v4829, 0.0
    %v7048 = vmax.f32 %v5007, 0.0
    %v7049 = vmax.f32 %v5185, 0.0
    %v7050 = vmax.f32 %v5363, 0.0
    %v7051 = vmax.f32 %v5541, 0.0
    %v7052 = vmax.f32 %v5719, 0.0
    %v7053 = vmax.f32 %v5897, 0.0
    %v7054 = vmax.f32 %v6075, 0.0
    %v7055 = vmax.f32 %v6253, 0.0
    %v7056 = vmax.f32 %v6431, 0.0
    %v7057 = vmax.f32 %v6609, 0.0
    %v7058 = vmax.f32 %v6787, 0.0
    %v7059 = vmax.f32 %v6965, 0.0
    %v7060 = vmax.f32 %v4297, 0.0
    %v7061 = vmax.f32 %v4475, 0.0
    %v7062 = vmax.f32 %v4653, 0.0
    %v7063 = vmax.f32 %v4831, 0.0
    %v7064 = vmax.f32 %v5009, 0.0
    %v7065 = vmax.f32 %v5187, 0.0
    %v7066 = vmax.f32 %v5365, 0.0
    %v7067 = vmax.f32 %v5543, 0.0
    %v7068 = vmax.f32 %v5721, 0.0
    %v7069 = vmax.f32 %v5899, 0.0
    %v7070 = vmax.f32 %v6077, 0.0
    %v7071 = vmax.f32 %v6255, 0.0
    %v7072 = vmax.f32 %v6433, 0.0
    %v7073 = vmax.f32 %v6611, 0.0
    %v7074 = vmax.f32 %v6789, 0.0
    %v7075 = vmax.f32 %v6967, 0.0
    %v7076 = vmax.f32 %v4300, 0.0
    %v7077 = vmax.f32 %v4478, 0.0
    %v7078 = vmax.f32 %v4656, 0.0
    %v7079 = vmax.f32 %v4834, 0.0
    %v7080 = vmax.f32 %v5012, 0.0
    %v7081 = vmax.f32 %v5190, 0.0
    %v7082 = vmax.f32 %v5368, 0.0
    %v7083 = vmax.f32 %v5546, 0.0
    %v7084 = vmax.f32 %v5724, 0.0
    %v7085 = vmax.f32 %v5902, 0.0
    %v7086 = vmax.f32 %v6080, 0.0
    %v7087 = vmax.f32 %v6258, 0.0
    %v7088 = vmax.f32 %v6436, 0.0
    %v7089 = vmax.f32 %v6614, 0.0
    %v7090 = vmax.f32 %v6792, 0.0
    %v7091 = vmax.f32 %v6970, 0.0
    %v7092 = vmax.f32 %v4302, 0.0
    %v7093 = vmax.f32 %v4480, 0.0
    %v7094 = vmax.f32 %v4658, 0.0
    %v7095 = vmax.f32 %v4836, 0.0
    %v7096 = vmax.f32 %v5014, 0.0
    %v7097 = vmax.f32 %v5192, 0.0
    %v7098 = vmax.f32 %v5370, 0.0
    %v7099 = vmax.f32 %v5548, 0.0
    %v7100 = vmax.f32 %v5726, 0.0
    %v7101 = vmax.f32 %v5904, 0.0
    %v7102 = vmax.f32 %v6082, 0.0
    %v7103 = vmax.f32 %v6260, 0.0
    %v7104 = vmax.f32 %v6438, 0.0
    %v7105 = vmax.f32 %v6616, 0.0
    %v7106 = vmax.f32 %v6794, 0.0
    %v7107 = vmax.f32 %v6972, 0.0
    %v7108 = vmax.f32 %v4305, 0.0
    %v7109 = vmax.f32 %v4483, 0.0
    %v7110 = vmax.f32 %v4661, 0.0
    %v7111 = vmax.f32 %v4839, 0.0
    %v7112 = vmax.f32 %v5017, 0.0
    %v7113 = vmax.f32 %v5195, 0.0
    %v7114 = vmax.f32 %v5373, 0.0
    %v7115 = vmax.f32 %v5551, 0.0
    %v7116 = vmax.f32 %v5729, 0.0
    %v7117 = vmax.f32 %v5907, 0.0
    %v7118 = vmax.f32 %v6085, 0.0
    %v7119 = vmax.f32 %v6263, 0.0
    %v7120 = vmax.f32 %v6441, 0.0
    %v7121 = vmax.f32 %v6619, 0.0
    %v7122 = vmax.f32 %v6797, 0.0
    %v7123 = vmax.f32 %v6975, 0.0
    %v7124 = vmax.f32 %v4307, 0.0
    %v7125 = vmax.f32 %v4485, 0.0
    %v7126 = vmax.f32 %v4663, 0.0
    %v7127 = vmax.f32 %v4841, 0.0
    %v7128 = vmax.f32 %v5019, 0.0
    %v7129 = vmax.f32 %v5197, 0.0
    %v7130 = vmax.f32 %v5375, 0.0
    %v7131 = vmax.f32 %v5553, 0.0
    %v7132 = vmax.f32 %v5731, 0.0
    %v7133 = vmax.f32 %v5909, 0.0
    %v7134 = vmax.f32 %v6087, 0.0
    %v7135 = vmax.f32 %v6265, 0.0
    %v7136 = vmax.f32 %v6443, 0.0
    %v7137 = vmax.f32 %v6621, 0.0
    %v7138 = vmax.f32 %v6799, 0.0
    %v7139 = vmax.f32 %v6977, 0.0
    %v7140 = vmax.f32 %v4310, 0.0
    %v7141 = vmax.f32 %v4488, 0.0
    %v7142 = vmax.f32 %v4666, 0.0
    %v7143 = vmax.f32 %v4844, 0.0
    %v7144 = vmax.f32 %v5022, 0.0
    %v7145 = vmax.f32 %v5200, 0.0
    %v7146 = vmax.f32 %v5378, 0.0
    %v7147 = vmax.f32 %v5556, 0.0
    %v7148 = vmax.f32 %v5734, 0.0
    %v7149 = vmax.f32 %v5912, 0.0
    %v7150 = vmax.f32 %v6090, 0.0
    %v7151 = vmax.f32 %v6268, 0.0
    %v7152 = vmax.f32 %v6446, 0.0
    %v7153 = vmax.f32 %v6624, 0.0
    %v7154 = vmax.f32 %v6802, 0.0
    %v7155 = vmax.f32 %v6980, 0.0
    %v7156 = vmax.f32 %v4312, 0.0
    %v7157 = vmax.f32 %v4490, 0.0
    %v7158 = vmax.f32 %v4668, 0.0
    %v7159 = vmax.f32 %v4846, 0.0
    %v7160 = vmax.f32 %v5024, 0.0
    %v7161 = vmax.f32 %v5202, 0.0
    %v7162 = vmax.f32 %v5380, 0.0
    %v7163 = vmax.f32 %v5558, 0.0
    %v7164 = vmax.f32 %v5736, 0.0
    %v7165 = vmax.f32 %v5914, 0.0
    %v7166 = vmax.f32 %v6092, 0.0
    %v7167 = vmax.f32 %v6270, 0.0
    %v7168 = vmax.f32 %v6448, 0.0
    %v7169 = vmax.f32 %v6626, 0.0
    %v7170 = vmax.f32 %v6804, 0.0
    %v7171 = vmax.f32 %v6982, 0.0
    %v7172 = vmax.f32 %v4315, 0.0
    %v7173 = vmax.f32 %v4493, 0.0
    %v7174 = vmax.f32 %v4671, 0.0
    %v7175 = vmax.f32 %v4849, 0.0
    %v7176 = vmax.f32 %v5027, 0.0
    %v7177 = vmax.f32 %v5205, 0.0
    %v7178 = vmax.f32 %v5383, 0.0
    %v7179 = vmax.f32 %v5561, 0.0
    %v7180 = vmax.f32 %v5739, 0.0
    %v7181 = vmax.f32 %v5917, 0.0
    %v7182 = vmax.f32 %v6095, 0.0
    %v7183 = vmax.f32 %v6273, 0.0
    %v7184 = vmax.f32 %v6451, 0.0
    %v7185 = vmax.f32 %v6629, 0.0
    %v7186 = vmax.f32 %v6807, 0.0
    %v7187 = vmax.f32 %v6985, 0.0
    %v7188 = vmax.f32 %v4317, 0.0
    %v7189 = vmax.f32 %v4495, 0.0
    %v7190 = vmax.f32 %v4673, 0.0
    %v7191 = vmax.f32 %v4851, 0.0
    %v7192 = vmax.f32 %v5029, 0.0
    %v7193 = vmax.f32 %v5207, 0.0
    %v7194 = vmax.f32 %v5385, 0.0
    %v7195 = vmax.f32 %v5563, 0.0
    %v7196 = vmax.f32 %v5741, 0.0
    %v7197 = vmax.f32 %v5919, 0.0
    %v7198 = vmax.f32 %v6097, 0.0
    %v7199 = vmax.f32 %v6275, 0.0
    %v7200 = vmax.f32 %v6453, 0.0
    %v7201 = vmax.f32 %v6631, 0.0
    %v7202 = vmax.f32 %v6809, 0.0
    %v7203 = vmax.f32 %v6987, 0.0
    %v7204 = vmax.f32 %v4320, 0.0
    %v7205 = vmax.f32 %v4498, 0.0
    %v7206 = vmax.f32 %v4676, 0.0
    %v7207 = vmax.f32 %v4854, 0.0
    %v7208 = vmax.f32 %v5032, 0.0
    %v7209 = vmax.f32 %v5210, 0.0
    %v7210 = vmax.f32 %v5388, 0.0
    %v7211 = vmax.f32 %v5566, 0.0
    %v7212 = vmax.f32 %v5744, 0.0
    %v7213 = vmax.f32 %v5922, 0.0
    %v7214 = vmax.f32 %v6100, 0.0
    %v7215 = vmax.f32 %v6278, 0.0
    %v7216 = vmax.f32 %v6456, 0.0
    %v7217 = vmax.f32 %v6634, 0.0
    %v7218 = vmax.f32 %v6812, 0.0
    %v7219 = vmax.f32 %v6990, 0.0
    %v7220 = vmax.f32 %v4322, 0.0
    %v7221 = vmax.f32 %v4500, 0.0
    %v7222 = vmax.f32 %v4678, 0.0
    %v7223 = vmax.f32 %v4856, 0.0
    %v7224 = vmax.f32 %v5034, 0.0
    %v7225 = vmax.f32 %v5212, 0.0
    %v7226 = vmax.f32 %v5390, 0.0
    %v7227 = vmax.f32 %v5568, 0.0
    %v7228 = vmax.f32 %v5746, 0.0
    %v7229 = vmax.f32 %v5924, 0.0
    %v7230 = vmax.f32 %v6102, 0.0
    %v7231 = vmax.f32 %v6280, 0.0
    %v7232 = vmax.f32 %v6458, 0.0
    %v7233 = vmax.f32 %v6636, 0.0
    %v7234 = vmax.f32 %v6814, 0.0
    %v7235 = vmax.f32 %v6992, 0.0
    %v7236 = vmax.f32 %v4325, 0.0
    %v7237 = vmax.f32 %v4503, 0.0
    %v7238 = vmax.f32 %v4681, 0.0
    %v7239 = vmax.f32 %v4859, 0.0
    %v7240 = vmax.f32 %v5037, 0.0
    %v7241 = vmax.f32 %v5215, 0.0
    %v7242 = vmax.f32 %v5393, 0.0
    %v7243 = vmax.f32 %v5571, 0.0
    %v7244 = vmax.f32 %v5749, 0.0
    %v7245 = vmax.f32 %v5927, 0.0
    %v7246 = vmax.f32 %v6105, 0.0
    %v7247 = vmax.f32 %v6283, 0.0
    %v7248 = vmax.f32 %v6461, 0.0
    %v7249 = vmax.f32 %v6639, 0.0
    %v7250 = vmax.f32 %v6817, 0.0
    %v7251 = vmax.f32 %v6995, 0.0
    %v7252 = vmax.f32 %v4327, 0.0
    %v7253 = vmax.f32 %v4505, 0.0
    %v7254 = vmax.f32 %v4683, 0.0
    %v7255 = vmax.f32 %v4861, 0.0
    %v7256 = vmax.f32 %v5039, 0.0
    %v7257 = vmax.f32 %v5217, 0.0
    %v7258 = vmax.f32 %v5395, 0.0
    %v7259 = vmax.f32 %v5573, 0.0
    %v7260 = vmax.f32 %v5751, 0.0
    %v7261 = vmax.f32 %v5929, 0.0
    %v7262 = vmax.f32 %v6107, 0.0
    %v7263 = vmax.f32 %v6285, 0.0
    %v7264 = vmax.f32 %v6463, 0.0
    %v7265 = vmax.f32 %v6641, 0.0
    %v7266 = vmax.f32 %v6819, 0.0
    %v7267 = vmax.f32 %v6997, 0.0
    %v7268 = vmax.f32 %v4330, 0.0
    %v7269 = vmax.f32 %v4508, 0.0
    %v7270 = vmax.f32 %v4686, 0.0
    %v7271 = vmax.f32 %v4864, 0.0
    %v7272 = vmax.f32 %v5042, 0.0
    %v7273 = vmax.f32 %v5220, 0.0
    %v7274 = vmax.f32 %v5398, 0.0
    %v7275 = vmax.f32 %v5576, 0.0
    %v7276 = vmax.f32 %v5754, 0.0
    %v7277 = vmax.f32 %v5932, 0.0
    %v7278 = vmax.f32 %v6110, 0.0
    %v7279 = vmax.f32 %v6288, 0.0
    %v7280 = vmax.f32 %v6466, 0.0
    %v7281 = vmax.f32 %v6644, 0.0
    %v7282 = vmax.f32 %v6822, 0.0
    %v7283 = vmax.f32 %v7000, 0.0
    %v7284 = vmax.f32 %v4332, 0.0
    %v7285 = vmax.f32 %v4510, 0.0
    %v7286 = vmax.f32 %v4688, 0.0
    %v7287 = vmax.f32 %v4866, 0.0
    %v7288 = vmax.f32 %v5044, 0.0
    %v7289 = vmax.f32 %v5222, 0.0
    %v7290 = vmax.f32 %v5400, 0.0
    %v7291 = vmax.f32 %v5578, 0.0
    %v7292 = vmax.f32 %v5756, 0.0
    %v7293 = vmax.f32 %v5934, 0.0
    %v7294 = vmax.f32 %v6112, 0.0
    %v7295 = vmax.f32 %v6290, 0.0
    %v7296 = vmax.f32 %v6468, 0.0
    %v7297 = vmax.f32 %v6646, 0.0
    %v7298 = vmax.f32 %v6824, 0.0
    %v7299 = vmax.f32 %v7002, 0.0
    %v7300 = vmax.f32 %v4335, 0.0
    %v7301 = vmax.f32 %v4513, 0.0
    %v7302 = vmax.f32 %v4691, 0.0
    %v7303 = vmax.f32 %v4869, 0.0
    %v7304 = vmax.f32 %v5047, 0.0
    %v7305 = vmax.f32 %v5225, 0.0
    %v7306 = vmax.f32 %v5403, 0.0
    %v7307 = vmax.f32 %v5581, 0.0
    %v7308 = vmax.f32 %v5759, 0.0
    %v7309 = vmax.f32 %v5937, 0.0
    %v7310 = vmax.f32 %v6115, 0.0
    %v7311 = vmax.f32 %v6293, 0.0
    %v7312 = vmax.f32 %v6471, 0.0
    %v7313 = vmax.f32 %v6649, 0.0
    %v7314 = vmax.f32 %v6827, 0.0
    %v7315 = vmax.f32 %v7005, 0.0
    %v7316 = vmax.f32 %v4337, 0.0
    %v7317 = vmax.f32 %v4515, 0.0
    %v7318 = vmax.f32 %v4693, 0.0
    %v7319 = vmax.f32 %v4871, 0.0
    %v7320 = vmax.f32 %v5049, 0.0
    %v7321 = vmax.f32 %v5227, 0.0
    %v7322 = vmax.f32 %v5405, 0.0
    %v7323 = vmax.f32 %v5583, 0.0
    %v7324 = vmax.f32 %v5761, 0.0
    %v7325 = vmax.f32 %v5939, 0.0
    %v7326 = vmax.f32 %v6117, 0.0
    %v7327 = vmax.f32 %v6295, 0.0
    %v7328 = vmax.f32 %v6473, 0.0
    %v7329 = vmax.f32 %v6651, 0.0
    %v7330 = vmax.f32 %v6829, 0.0
    %v7331 = vmax.f32 %v7007, 0.0
    %v7332 = vmax.f32 %v4340, 0.0
    %v7333 = vmax.f32 %v4518, 0.0
    %v7334 = vmax.f32 %v4696, 0.0
    %v7335 = vmax.f32 %v4874, 0.0
    %v7336 = vmax.f32 %v5052, 0.0
    %v7337 = vmax.f32 %v5230, 0.0
    %v7338 = vmax.f32 %v5408, 0.0
    %v7339 = vmax.f32 %v5586, 0.0
    %v7340 = vmax.f32 %v5764, 0.0
    %v7341 = vmax.f32 %v5942, 0.0
    %v7342 = vmax.f32 %v6120, 0.0
    %v7343 = vmax.f32 %v6298, 0.0
    %v7344 = vmax.f32 %v6476, 0.0
    %v7345 = vmax.f32 %v6654, 0.0
    %v7346 = vmax.f32 %v6832, 0.0
    %v7347 = vmax.f32 %v7010, 0.0
    %v7348 = vmax.f32 %v4342, 0.0
    %v7349 = vmax.f32 %v4520, 0.0
    %v7350 = vmax.f32 %v4698, 0.0
    %v7351 = vmax.f32 %v4876, 0.0
    %v7352 = vmax.f32 %v5054, 0.0
    %v7353 = vmax.f32 %v5232, 0.0
    %v7354 = vmax.f32 %v5410, 0.0
    %v7355 = vmax.f32 %v5588, 0.0
    %v7356 = vmax.f32 %v5766, 0.0
    %v7357 = vmax.f32 %v5944, 0.0
    %v7358 = vmax.f32 %v6122, 0.0
    %v7359 = vmax.f32 %v6300, 0.0
    %v7360 = vmax.f32 %v6478, 0.0
    %v7361 = vmax.f32 %v6656, 0.0
    %v7362 = vmax.f32 %v6834, 0.0
    %v7363 = vmax.f32 %v7012, 0.0
    %v7364 = vmax.f32 %v4345, 0.0
    %v7365 = vmax.f32 %v4523, 0.0
    %v7366 = vmax.f32 %v4701, 0.0
    %v7367 = vmax.f32 %v4879, 0.0
    %v7368 = vmax.f32 %v5057, 0.0
    %v7369 = vmax.f32 %v5235, 0.0
    %v7370 = vmax.f32 %v5413, 0.0
    %v7371 = vmax.f32 %v5591, 0.0
    %v7372 = vmax.f32 %v5769, 0.0
    %v7373 = vmax.f32 %v5947, 0.0
    %v7374 = vmax.f32 %v6125, 0.0
    %v7375 = vmax.f32 %v6303, 0.0
    %v7376 = vmax.f32 %v6481, 0.0
    %v7377 = vmax.f32 %v6659, 0.0
    %v7378 = vmax.f32 %v6837, 0.0
    %v7379 = vmax.f32 %v7015, 0.0
    %v7380 = vmax.f32 %v4347, 0.0
    %v7381 = vmax.f32 %v4525, 0.0
    %v7382 = vmax.f32 %v4703, 0.0
    %v7383 = vmax.f32 %v4881, 0.0
    %v7384 = vmax.f32 %v5059, 0.0
    %v7385 = vmax.f32 %v5237, 0.0
    %v7386 = vmax.f32 %v5415, 0.0
    %v7387 = vmax.f32 %v5593, 0.0
    %v7388 = vmax.f32 %v5771, 0.0
    %v7389 = vmax.f32 %v5949, 0.0
    %v7390 = vmax.f32 %v6127, 0.0
    %v7391 = vmax.f32 %v6305, 0.0
    %v7392 = vmax.f32 %v6483, 0.0
    %v7393 = vmax.f32 %v6661, 0.0
    %v7394 = vmax.f32 %v6839, 0.0
    %v7395 = vmax.f32 %v7017, 0.0
    %v7396 = vmax.f32 %v4350, 0.0
    %v7397 = vmax.f32 %v4528, 0.0
    %v7398 = vmax.f32 %v4706, 0.0
    %v7399 = vmax.f32 %v4884, 0.0
    %v7400 = vmax.f32 %v5062, 0.0
    %v7401 = vmax.f32 %v5240, 0.0
    %v7402 = vmax.f32 %v5418, 0.0
    %v7403 = vmax.f32 %v5596, 0.0
    %v7404 = vmax.f32 %v5774, 0.0
    %v7405 = vmax.f32 %v5952, 0.0
    %v7406 = vmax.f32 %v6130, 0.0
    %v7407 = vmax.f32 %v6308, 0.0
    %v7408 = vmax.f32 %v6486, 0.0
    %v7409 = vmax.f32 %v6664, 0.0
    %v7410 = vmax.f32 %v6842, 0.0
    %v7411 = vmax.f32 %v7020, 0.0
    %v7412 = vmax.f32 %v4352, 0.0
    %v7413 = vmax.f32 %v4530, 0.0
    %v7414 = vmax.f32 %v4708, 0.0
    %v7415 = vmax.f32 %v4886, 0.0
    %v7416 = vmax.f32 %v5064, 0.0
    %v7417 = vmax.f32 %v5242, 0.0
    %v7418 = vmax.f32 %v5420, 0.0
    %v7419 = vmax.f32 %v5598, 0.0
    %v7420 = vmax.f32 %v5776, 0.0
    %v7421 = vmax.f32 %v5954, 0.0
    %v7422 = vmax.f32 %v6132, 0.0
    %v7423 = vmax.f32 %v6310, 0.0
    %v7424 = vmax.f32 %v6488, 0.0
    %v7425 = vmax.f32 %v6666, 0.0
    %v7426 = vmax.f32 %v6844, 0.0
    %v7427 = vmax.f32 %v7022, 0.0
    %v7428 = vmax.f32 %v4355, 0.0
    %v7429 = vmax.f32 %v4533, 0.0
    %v7430 = vmax.f32 %v4711, 0.0
    %v7431 = vmax.f32 %v4889, 0.0
    %v7432 = vmax.f32 %v5067, 0.0
    %v7433 = vmax.f32 %v5245, 0.0
    %v7434 = vmax.f32 %v5423, 0.0
    %v7435 = vmax.f32 %v5601, 0.0
    %v7436 = vmax.f32 %v5779, 0.0
    %v7437 = vmax.f32 %v5957, 0.0
    %v7438 = vmax.f32 %v6135, 0.0
    %v7439 = vmax.f32 %v6313, 0.0
    %v7440 = vmax.f32 %v6491, 0.0
    %v7441 = vmax.f32 %v6669, 0.0
    %v7442 = vmax.f32 %v6847, 0.0
    %v7443 = vmax.f32 %v7025, 0.0
    %v7444 = vmax.f32 %v4357, 0.0
    %v7445 = vmax.f32 %v4535, 0.0
    %v7446 = vmax.f32 %v4713, 0.0
    %v7447 = vmax.f32 %v4891, 0.0
    %v7448 = vmax.f32 %v5069, 0.0
    %v7449 = vmax.f32 %v5247, 0.0
    %v7450 = vmax.f32 %v5425, 0.0
    %v7451 = vmax.f32 %v5603, 0.0
    %v7452 = vmax.f32 %v5781, 0.0
    %v7453 = vmax.f32 %v5959, 0.0
    %v7454 = vmax.f32 %v6137, 0.0
    %v7455 = vmax.f32 %v6315, 0.0
    %v7456 = vmax.f32 %v6493, 0.0
    %v7457 = vmax.f32 %v6671, 0.0
    %v7458 = vmax.f32 %v6849, 0.0
    %v7459 = vmax.f32 %v7027, 0.0
    %v7460 = vmax.f32 %v4360, 0.0
    %v7461 = vmax.f32 %v4538, 0.0
    %v7462 = vmax.f32 %v4716, 0.0
    %v7463 = vmax.f32 %v4894, 0.0
    %v7464 = vmax.f32 %v5072, 0.0
    %v7465 = vmax.f32 %v5250, 0.0
    %v7466 = vmax.f32 %v5428, 0.0
    %v7467 = vmax.f32 %v5606, 0.0
    %v7468 = vmax.f32 %v5784, 0.0
    %v7469 = vmax.f32 %v5962, 0.0
    %v7470 = vmax.f32 %v6140, 0.0
    %v7471 = vmax.f32 %v6318, 0.0
    %v7472 = vmax.f32 %v6496, 0.0
    %v7473 = vmax.f32 %v6674, 0.0
    %v7474 = vmax.f32 %v6852, 0.0
    %v7475 = vmax.f32 %v7030, 0.0
    %v7476 = vmax.f32 %v4362, 0.0
    %v7477 = vmax.f32 %v4540, 0.0
    %v7478 = vmax.f32 %v4718, 0.0
    %v7479 = vmax.f32 %v4896, 0.0
    %v7480 = vmax.f32 %v5074, 0.0
    %v7481 = vmax.f32 %v5252, 0.0
    %v7482 = vmax.f32 %v5430, 0.0
    %v7483 = vmax.f32 %v5608, 0.0
    %v7484 = vmax.f32 %v5786, 0.0
    %v7485 = vmax.f32 %v5964, 0.0
    %v7486 = vmax.f32 %v6142, 0.0
    %v7487 = vmax.f32 %v6320, 0.0
    %v7488 = vmax.f32 %v6498, 0.0
    %v7489 = vmax.f32 %v6676, 0.0
    %v7490 = vmax.f32 %v6854, 0.0
    %v7491 = vmax.f32 %v7032, 0.0
    %v7492 = vmax.f32 %v4365, 0.0
    %v7493 = vmax.f32 %v4543, 0.0
    %v7494 = vmax.f32 %v4721, 0.0
    %v7495 = vmax.f32 %v4899, 0.0
    %v7496 = vmax.f32 %v5077, 0.0
    %v7497 = vmax.f32 %v5255, 0.0
    %v7498 = vmax.f32 %v5433, 0.0
    %v7499 = vmax.f32 %v5611, 0.0
    %v7500 = vmax.f32 %v5789, 0.0
    %v7501 = vmax.f32 %v5967, 0.0
    %v7502 = vmax.f32 %v6145, 0.0
    %v7503 = vmax.f32 %v6323, 0.0
    %v7504 = vmax.f32 %v6501, 0.0
    %v7505 = vmax.f32 %v6679, 0.0
    %v7506 = vmax.f32 %v6857, 0.0
    %v7507 = vmax.f32 %v7035, 0.0
    %v7508 = vmax.f32 %v4367, 0.0
    %v7509 = vmax.f32 %v4545, 0.0
    %v7510 = vmax.f32 %v4723, 0.0
    %v7511 = vmax.f32 %v4901, 0.0
    %v7512 = vmax.f32 %v5079, 0.0
    %v7513 = vmax.f32 %v5257, 0.0
    %v7514 = vmax.f32 %v5435, 0.0
    %v7515 = vmax.f32 %v5613, 0.0
    %v7516 = vmax.f32 %v5791, 0.0
    %v7517 = vmax.f32 %v5969, 0.0
    %v7518 = vmax.f32 %v6147, 0.0
    %v7519 = vmax.f32 %v6325, 0.0
    %v7520 = vmax.f32 %v6503, 0.0
    %v7521 = vmax.f32 %v6681, 0.0
    %v7522 = vmax.f32 %v6859, 0.0
    %v7523 = vmax.f32 %v7037, 0.0
    %v7524 = vmax.f32 %v4370, 0.0
    %v7525 = vmax.f32 %v4548, 0.0
    %v7526 = vmax.f32 %v4726, 0.0
    %v7527 = vmax.f32 %v4904, 0.0
    %v7528 = vmax.f32 %v5082, 0.0
    %v7529 = vmax.f32 %v5260, 0.0
    %v7530 = vmax.f32 %v5438, 0.0
    %v7531 = vmax.f32 %v5616, 0.0
    %v7532 = vmax.f32 %v5794, 0.0
    %v7533 = vmax.f32 %v5972, 0.0
    %v7534 = vmax.f32 %v6150, 0.0
    %v7535 = vmax.f32 %v6328, 0.0
    %v7536 = vmax.f32 %v6506, 0.0
    %v7537 = vmax.f32 %v6684, 0.0
    %v7538 = vmax.f32 %v6862, 0.0
    %v7539 = vmax.f32 %v7040, 0.0
    %v7540 = vmax.f32 %v4372, 0.0
    %v7541 = vmax.f32 %v4550, 0.0
    %v7542 = vmax.f32 %v4728, 0.0
    %v7543 = vmax.f32 %v4906, 0.0
    %v7544 = vmax.f32 %v5084, 0.0
    %v7545 = vmax.f32 %v5262, 0.0
    %v7546 = vmax.f32 %v5440, 0.0
    %v7547 = vmax.f32 %v5618, 0.0
    %v7548 = vmax.f32 %v5796, 0.0
    %v7549 = vmax.f32 %v5974, 0.0
    %v7550 = vmax.f32 %v6152, 0.0
    %v7551 = vmax.f32 %v6330, 0.0
    %v7552 = vmax.f32 %v6508, 0.0
    %v7553 = vmax.f32 %v6686, 0.0
    %v7554 = vmax.f32 %v6864, 0.0
    %v7555 = vmax.f32 %v7042, 0.0
    %v7556 = vpack.c.bf16 %v7060, %v7044
    %v7557 = vpack.c.bf16 %v7061, %v7045
    %v7558 = vpack.c.bf16 %v7062, %v7046
    %v7559 = vpack.c.bf16 %v7063, %v7047
    %v7560 = vpack.c.bf16 %v7064, %v7048
    %v7561 = vpack.c.bf16 %v7065, %v7049
    %v7562 = vpack.c.bf16 %v7066, %v7050
    %v7563 = vpack.c.bf16 %v7067, %v7051
    %v7564 = vpack.c.bf16 %v7068, %v7052
    %v7565 = vpack.c.bf16 %v7069, %v7053
    %v7566 = vpack.c.bf16 %v7070, %v7054
    %v7567 = vpack.c.bf16 %v7071, %v7055
    %v7568 = vpack.c.bf16 %v7072, %v7056
    %v7569 = vpack.c.bf16 %v7073, %v7057
    %v7570 = vpack.c.bf16 %v7074, %v7058
    %v7571 = vpack.c.bf16 %v7075, %v7059
    %v7572 = vpack.c.bf16 %v7092, %v7076
    %v7573 = vpack.c.bf16 %v7093, %v7077
    %v7574 = vpack.c.bf16 %v7094, %v7078
    %v7575 = vpack.c.bf16 %v7095, %v7079
    %v7576 = vpack.c.bf16 %v7096, %v7080
    %v7577 = vpack.c.bf16 %v7097, %v7081
    %v7578 = vpack.c.bf16 %v7098, %v7082
    %v7579 = vpack.c.bf16 %v7099, %v7083
    %v7580 = vpack.c.bf16 %v7100, %v7084
    %v7581 = vpack.c.bf16 %v7101, %v7085
    %v7582 = vpack.c.bf16 %v7102, %v7086
    %v7583 = vpack.c.bf16 %v7103, %v7087
    %v7584 = vpack.c.bf16 %v7104, %v7088
    %v7585 = vpack.c.bf16 %v7105, %v7089
    %v7586 = vpack.c.bf16 %v7106, %v7090
    %v7587 = vpack.c.bf16 %v7107, %v7091
    %v7588 = vpack.c.bf16 %v7124, %v7108
    %v7589 = vpack.c.bf16 %v7125, %v7109
    %v7590 = vpack.c.bf16 %v7126, %v7110
    %v7591 = vpack.c.bf16 %v7127, %v7111
    %v7592 = vpack.c.bf16 %v7128, %v7112
    %v7593 = vpack.c.bf16 %v7129, %v7113
    %v7594 = vpack.c.bf16 %v7130, %v7114
    %v7595 = vpack.c.bf16 %v7131, %v7115
    %v7596 = vpack.c.bf16 %v7132, %v7116
    %v7597 = vpack.c.bf16 %v7133, %v7117
    %v7598 = vpack.c.bf16 %v7134, %v7118
    %v7599 = vpack.c.bf16 %v7135, %v7119
    %v7600 = vpack.c.bf16 %v7136, %v7120
    %v7601 = vpack.c.bf16 %v7137, %v7121
    %v7602 = vpack.c.bf16 %v7138, %v7122
    %v7603 = vpack.c.bf16 %v7139, %v7123
    %v7604 = vpack.c.bf16 %v7156, %v7140
    %v7605 = vpack.c.bf16 %v7157, %v7141
    %v7606 = vpack.c.bf16 %v7158, %v7142
    %v7607 = vpack.c.bf16 %v7159, %v7143
    %v7608 = vpack.c.bf16 %v7160, %v7144
    %v7609 = vpack.c.bf16 %v7161, %v7145
    %v7610 = vpack.c.bf16 %v7162, %v7146
    %v7611 = vpack.c.bf16 %v7163, %v7147
    %v7612 = vpack.c.bf16 %v7164, %v7148
    %v7613 = vpack.c.bf16 %v7165, %v7149
    %v7614 = vpack.c.bf16 %v7166, %v7150
    %v7615 = vpack.c.bf16 %v7167, %v7151
    %v7616 = vpack.c.bf16 %v7168, %v7152
    %v7617 = vpack.c.bf16 %v7169, %v7153
    %v7618 = vpack.c.bf16 %v7170, %v7154
    %v7619 = vpack.c.bf16 %v7171, %v7155
    %v7620 = vpack.c.bf16 %v7188, %v7172
    %v7621 = vpack.c.bf16 %v7189, %v7173
    %v7622 = vpack.c.bf16 %v7190, %v7174
    %v7623 = vpack.c.bf16 %v7191, %v7175
    %v7624 = vpack.c.bf16 %v7192, %v7176
    %v7625 = vpack.c.bf16 %v7193, %v7177
    %v7626 = vpack.c.bf16 %v7194, %v7178
    %v7627 = vpack.c.bf16 %v7195, %v7179
    %v7628 = vpack.c.bf16 %v7196, %v7180
    %v7629 = vpack.c.bf16 %v7197, %v7181
    %v7630 = vpack.c.bf16 %v7198, %v7182
    %v7631 = vpack.c.bf16 %v7199, %v7183
    %v7632 = vpack.c.bf16 %v7200, %v7184
    %v7633 = vpack.c.bf16 %v7201, %v7185
    %v7634 = vpack.c.bf16 %v7202, %v7186
    %v7635 = vpack.c.bf16 %v7203, %v7187
    %v7636 = vpack.c.bf16 %v7220, %v7204
    %v7637 = vpack.c.bf16 %v7221, %v7205
    %v7638 = vpack.c.bf16 %v7222, %v7206
    %v7639 = vpack.c.bf16 %v7223, %v7207
    %v7640 = vpack.c.bf16 %v7224, %v7208
    %v7641 = vpack.c.bf16 %v7225, %v7209
    %v7642 = vpack.c.bf16 %v7226, %v7210
    %v7643 = vpack.c.bf16 %v7227, %v7211
    %v7644 = vpack.c.bf16 %v7228, %v7212
    %v7645 = vpack.c.bf16 %v7229, %v7213
    %v7646 = vpack.c.bf16 %v7230, %v7214
    %v7647 = vpack.c.bf16 %v7231, %v7215
    %v7648 = vpack.c.bf16 %v7232, %v7216
    %v7649 = vpack.c.bf16 %v7233, %v7217
    %v7650 = vpack.c.bf16 %v7234, %v7218
    %v7651 = vpack.c.bf16 %v7235, %v7219
    %v7652 = vpack.c.bf16 %v7252, %v7236
    %v7653 = vpack.c.bf16 %v7253, %v7237
    %v7654 = vpack.c.bf16 %v7254, %v7238
    %v7655 = vpack.c.bf16 %v7255, %v7239
    %v7656 = vpack.c.bf16 %v7256, %v7240
    %v7657 = vpack.c.bf16 %v7257, %v7241
    %v7658 = vpack.c.bf16 %v7258, %v7242
    %v7659 = vpack.c.bf16 %v7259, %v7243
    %v7660 = vpack.c.bf16 %v7260, %v7244
    %v7661 = vpack.c.bf16 %v7261, %v7245
    %v7662 = vpack.c.bf16 %v7262, %v7246
    %v7663 = vpack.c.bf16 %v7263, %v7247
    %v7664 = vpack.c.bf16 %v7264, %v7248
    %v7665 = vpack.c.bf16 %v7265, %v7249
    %v7666 = vpack.c.bf16 %v7266, %v7250
    %v7667 = vpack.c.bf16 %v7267, %v7251
    %v7668 = vpack.c.bf16 %v7284, %v7268
    %v7669 = vpack.c.bf16 %v7285, %v7269
    %v7670 = vpack.c.bf16 %v7286, %v7270
    %v7671 = vpack.c.bf16 %v7287, %v7271
    %v7672 = vpack.c.bf16 %v7288, %v7272
    %v7673 = vpack.c.bf16 %v7289, %v7273
    %v7674 = vpack.c.bf16 %v7290, %v7274
    %v7675 = vpack.c.bf16 %v7291, %v7275
    %v7676 = vpack.c.bf16 %v7292, %v7276
    %v7677 = vpack.c.bf16 %v7293, %v7277
    %v7678 = vpack.c.bf16 %v7294, %v7278
    %v7679 = vpack.c.bf16 %v7295, %v7279
    %v7680 = vpack.c.bf16 %v7296, %v7280
    %v7681 = vpack.c.bf16 %v7297, %v7281
    %v7682 = vpack.c.bf16 %v7298, %v7282
    %v7683 = vpack.c.bf16 %v7299, %v7283
    %v7684 = vpack.c.bf16 %v7316, %v7300
    %v7685 = vpack.c.bf16 %v7317, %v7301
    %v7686 = vpack.c.bf16 %v7318, %v7302
    %v7687 = vpack.c.bf16 %v7319, %v7303
    %v7688 = vpack.c.bf16 %v7320, %v7304
    %v7689 = vpack.c.bf16 %v7321, %v7305
    %v7690 = vpack.c.bf16 %v7322, %v7306
    %v7691 = vpack.c.bf16 %v7323, %v7307
    %v7692 = vpack.c.bf16 %v7324, %v7308
    %v7693 = vpack.c.bf16 %v7325, %v7309
    %v7694 = vpack.c.bf16 %v7326, %v7310
    %v7695 = vpack.c.bf16 %v7327, %v7311
    %v7696 = vpack.c.bf16 %v7328, %v7312
    %v7697 = vpack.c.bf16 %v7329, %v7313
    %v7698 = vpack.c.bf16 %v7330, %v7314
    %v7699 = vpack.c.bf16 %v7331, %v7315
    %v7700 = vpack.c.bf16 %v7348, %v7332
    %v7701 = vpack.c.bf16 %v7349, %v7333
    %v7702 = vpack.c.bf16 %v7350, %v7334
    %v7703 = vpack.c.bf16 %v7351, %v7335
    %v7704 = vpack.c.bf16 %v7352, %v7336
    %v7705 = vpack.c.bf16 %v7353, %v7337
    %v7706 = vpack.c.bf16 %v7354, %v7338
    %v7707 = vpack.c.bf16 %v7355, %v7339
    %v7708 = vpack.c.bf16 %v7356, %v7340
    %v7709 = vpack.c.bf16 %v7357, %v7341
    %v7710 = vpack.c.bf16 %v7358, %v7342
    %v7711 = vpack.c.bf16 %v7359, %v7343
    %v7712 = vpack.c.bf16 %v7360, %v7344
    %v7713 = vpack.c.bf16 %v7361, %v7345
    %v7714 = vpack.c.bf16 %v7362, %v7346
    %v7715 = vpack.c.bf16 %v7363, %v7347
    %v7716 = vpack.c.bf16 %v7380, %v7364
    %v7717 = vpack.c.bf16 %v7381, %v7365
    %v7718 = vpack.c.bf16 %v7382, %v7366
    %v7719 = vpack.c.bf16 %v7383, %v7367
    %v7720 = vpack.c.bf16 %v7384, %v7368
    %v7721 = vpack.c.bf16 %v7385, %v7369
    %v7722 = vpack.c.bf16 %v7386, %v7370
    %v7723 = vpack.c.bf16 %v7387, %v7371
    %v7724 = vpack.c.bf16 %v7388, %v7372
    %v7725 = vpack.c.bf16 %v7389, %v7373
    %v7726 = vpack.c.bf16 %v7390, %v7374
    %v7727 = vpack.c.bf16 %v7391, %v7375
    %v7728 = vpack.c.bf16 %v7392, %v7376
    %v7729 = vpack.c.bf16 %v7393, %v7377
    %v7730 = vpack.c.bf16 %v7394, %v7378
    %v7731 = vpack.c.bf16 %v7395, %v7379
    %v7732 = vpack.c.bf16 %v7412, %v7396
    %v7733 = vpack.c.bf16 %v7413, %v7397
    %v7734 = vpack.c.bf16 %v7414, %v7398
    %v7735 = vpack.c.bf16 %v7415, %v7399
    %v7736 = vpack.c.bf16 %v7416, %v7400
    %v7737 = vpack.c.bf16 %v7417, %v7401
    %v7738 = vpack.c.bf16 %v7418, %v7402
    %v7739 = vpack.c.bf16 %v7419, %v7403
    %v7740 = vpack.c.bf16 %v7420, %v7404
    %v7741 = vpack.c.bf16 %v7421, %v7405
    %v7742 = vpack.c.bf16 %v7422, %v7406
    %v7743 = vpack.c.bf16 %v7423, %v7407
    %v7744 = vpack.c.bf16 %v7424, %v7408
    %v7745 = vpack.c.bf16 %v7425, %v7409
    %v7746 = vpack.c.bf16 %v7426, %v7410
    %v7747 = vpack.c.bf16 %v7427, %v7411
    %v7748 = vpack.c.bf16 %v7444, %v7428
    %v7749 = vpack.c.bf16 %v7445, %v7429
    %v7750 = vpack.c.bf16 %v7446, %v7430
    %v7751 = vpack.c.bf16 %v7447, %v7431
    %v7752 = vpack.c.bf16 %v7448, %v7432
    %v7753 = vpack.c.bf16 %v7449, %v7433
    %v7754 = vpack.c.bf16 %v7450, %v7434
    %v7755 = vpack.c.bf16 %v7451, %v7435
    %v7756 = vpack.c.bf16 %v7452, %v7436
    %v7757 = vpack.c.bf16 %v7453, %v7437
    %v7758 = vpack.c.bf16 %v7454, %v7438
    %v7759 = vpack.c.bf16 %v7455, %v7439
    %v7760 = vpack.c.bf16 %v7456, %v7440
    %v7761 = vpack.c.bf16 %v7457, %v7441
    %v7762 = vpack.c.bf16 %v7458, %v7442
    %v7763 = vpack.c.bf16 %v7459, %v7443
    %v7764 = vpack.c.bf16 %v7476, %v7460
    %v7765 = vpack.c.bf16 %v7477, %v7461
    %v7766 = vpack.c.bf16 %v7478, %v7462
    %v7767 = vpack.c.bf16 %v7479, %v7463
    %v7768 = vpack.c.bf16 %v7480, %v7464
    %v7769 = vpack.c.bf16 %v7481, %v7465
    %v7770 = vpack.c.bf16 %v7482, %v7466
    %v7771 = vpack.c.bf16 %v7483, %v7467
    %v7772 = vpack.c.bf16 %v7484, %v7468
    %v7773 = vpack.c.bf16 %v7485, %v7469
    %v7774 = vpack.c.bf16 %v7486, %v7470
    %v7775 = vpack.c.bf16 %v7487, %v7471
    %v7776 = vpack.c.bf16 %v7488, %v7472
    %v7777 = vpack.c.bf16 %v7489, %v7473
    %v7778 = vpack.c.bf16 %v7490, %v7474
    %v7779 = vpack.c.bf16 %v7491, %v7475
    %v7780 = vpack.c.bf16 %v7508, %v7492
    %v7781 = vpack.c.bf16 %v7509, %v7493
    %v7782 = vpack.c.bf16 %v7510, %v7494
    %v7783 = vpack.c.bf16 %v7511, %v7495
    %v7784 = vpack.c.bf16 %v7512, %v7496
    %v7785 = vpack.c.bf16 %v7513, %v7497
    %v7786 = vpack.c.bf16 %v7514, %v7498
    %v7787 = vpack.c.bf16 %v7515, %v7499
    %v7788 = vpack.c.bf16 %v7516, %v7500
    %v7789 = vpack.c.bf16 %v7517, %v7501
    %v7790 = vpack.c.bf16 %v7518, %v7502
    %v7791 = vpack.c.bf16 %v7519, %v7503
    %v7792 = vpack.c.bf16 %v7520, %v7504
    %v7793 = vpack.c.bf16 %v7521, %v7505
    %v7794 = vpack.c.bf16 %v7522, %v7506
    %v7795 = vpack.c.bf16 %v7523, %v7507
    %v7796 = vpack.c.bf16 %v7540, %v7524
    %v7797 = vpack.c.bf16 %v7541, %v7525
    %v7798 = vpack.c.bf16 %v7542, %v7526
    %v7799 = vpack.c.bf16 %v7543, %v7527
    %v7800 = vpack.c.bf16 %v7544, %v7528
    %v7801 = vpack.c.bf16 %v7545, %v7529
    %v7802 = vpack.c.bf16 %v7546, %v7530
    %v7803 = vpack.c.bf16 %v7547, %v7531
    %v7804 = vpack.c.bf16 %v7548, %v7532
    %v7805 = vpack.c.bf16 %v7549, %v7533
    %v7806 = vpack.c.bf16 %v7550, %v7534
    %v7807 = vpack.c.bf16 %v7551, %v7535
    %v7808 = vpack.c.bf16 %v7552, %v7536
    %v7809 = vpack.c.bf16 %v7553, %v7537
    %v7810 = vpack.c.bf16 %v7554, %v7538
    %v7811 = vpack.c.bf16 %v7555, %v7539
    %v7813 = vperm.slane %v2474, 0
    %v8071 = vunpack.c.l.b16 %v2218
    %v8072 = vunpack.c.l.b16 %v2219
    %v8073 = vunpack.c.l.b16 %v2220
    %v8074 = vunpack.c.l.b16 %v2221
    %v8075 = vunpack.c.l.b16 %v2222
    %v8076 = vunpack.c.l.b16 %v2223
    %v8077 = vunpack.c.l.b16 %v2224
    %v8078 = vunpack.c.l.b16 %v2225
    %v8079 = vunpack.c.l.b16 %v2226
    %v8080 = vunpack.c.l.b16 %v2227
    %v8081 = vunpack.c.l.b16 %v2228
    %v8082 = vunpack.c.l.b16 %v2229
    %v8083 = vunpack.c.l.b16 %v2230
    %v8084 = vunpack.c.l.b16 %v2231
    %v8085 = vunpack.c.l.b16 %v2232
    %v8086 = vunpack.c.l.b16 %v2233
    %v8087 = vunpack.c.l.b16 %v2234
    %v8088 = vunpack.c.l.b16 %v2235
    %v8089 = vunpack.c.l.b16 %v2236
    %v8090 = vunpack.c.l.b16 %v2237
    %v8091 = vunpack.c.l.b16 %v2238
    %v8092 = vunpack.c.l.b16 %v2239
    %v8093 = vunpack.c.l.b16 %v2240
    %v8094 = vunpack.c.l.b16 %v2241
    %v8095 = vunpack.c.l.b16 %v2242
    %v8096 = vunpack.c.l.b16 %v2243
    %v8097 = vunpack.c.l.b16 %v2244
    %v8098 = vunpack.c.l.b16 %v2245
    %v8099 = vunpack.c.l.b16 %v2246
    %v8100 = vunpack.c.l.b16 %v2247
    %v8101 = vunpack.c.l.b16 %v2248
    %v8102 = vunpack.c.l.b16 %v2249
    %v8103 = vunpack.c.l.b16 %v2250
    %v8104 = vunpack.c.l.b16 %v2251
    %v8105 = vunpack.c.l.b16 %v2252
    %v8106 = vunpack.c.l.b16 %v2253
    %v8107 = vunpack.c.l.b16 %v2254
    %v8108 = vunpack.c.l.b16 %v2255
    %v8109 = vunpack.c.l.b16 %v2256
    %v8110 = vunpack.c.l.b16 %v2257
    %v8111 = vunpack.c.l.b16 %v2258
    %v8112 = vunpack.c.l.b16 %v2259
    %v8113 = vunpack.c.l.b16 %v2260
    %v8114 = vunpack.c.l.b16 %v2261
    %v8115 = vunpack.c.l.b16 %v2262
    %v8116 = vunpack.c.l.b16 %v2263
    %v8117 = vunpack.c.l.b16 %v2264
    %v8118 = vunpack.c.l.b16 %v2265
    %v8119 = vunpack.c.l.b16 %v2266
    %v8120 = vunpack.c.l.b16 %v2267
    %v8121 = vunpack.c.l.b16 %v2268
    %v8122 = vunpack.c.l.b16 %v2269
    %v8123 = vunpack.c.l.b16 %v2270
    %v8124 = vunpack.c.l.b16 %v2271
    %v8125 = vunpack.c.l.b16 %v2272
    %v8126 = vunpack.c.l.b16 %v2273
    %v8127 = vunpack.c.l.b16 %v2274
    %v8128 = vunpack.c.l.b16 %v2275
    %v8129 = vunpack.c.l.b16 %v2276
    %v8130 = vunpack.c.l.b16 %v2277
    %v8131 = vunpack.c.l.b16 %v2278
    %v8132 = vunpack.c.l.b16 %v2279
    %v8133 = vunpack.c.l.b16 %v2280
    %v8134 = vunpack.c.l.b16 %v2281
    %v8135 = vunpack.c.l.b16 %v2282
    %v8136 = vunpack.c.l.b16 %v2283
    %v8137 = vunpack.c.l.b16 %v2284
    %v8138 = vunpack.c.l.b16 %v2285
    %v8139 = vunpack.c.l.b16 %v2286
    %v8140 = vunpack.c.l.b16 %v2287
    %v8141 = vunpack.c.l.b16 %v2288
    %v8142 = vunpack.c.l.b16 %v2289
    %v8143 = vunpack.c.l.b16 %v2290
    %v8144 = vunpack.c.l.b16 %v2291
    %v8145 = vunpack.c.l.b16 %v2292
    %v8146 = vunpack.c.l.b16 %v2293
    %v8147 = vunpack.c.l.b16 %v2294
    %v8148 = vunpack.c.l.b16 %v2295
    %v8149 = vunpack.c.l.b16 %v2296
    %v8150 = vunpack.c.l.b16 %v2297
    %v8151 = vunpack.c.l.b16 %v2298
    %v8152 = vunpack.c.l.b16 %v2299
    %v8153 = vunpack.c.l.b16 %v2300
    %v8154 = vunpack.c.l.b16 %v2301
    %v8155 = vunpack.c.l.b16 %v2302
    %v8156 = vunpack.c.l.b16 %v2303
    %v8157 = vunpack.c.l.b16 %v2304
    %v8158 = vunpack.c.l.b16 %v2305
    %v8159 = vunpack.c.l.b16 %v2306
    %v8160 = vunpack.c.l.b16 %v2307
    %v8161 = vunpack.c.l.b16 %v2308
    %v8162 = vunpack.c.l.b16 %v2309
    %v8163 = vunpack.c.l.b16 %v2310
    %v8164 = vunpack.c.l.b16 %v2311
    %v8165 = vunpack.c.l.b16 %v2312
    %v8166 = vunpack.c.l.b16 %v2313
    %v8167 = vunpack.c.l.b16 %v2314
    %v8168 = vunpack.c.l.b16 %v2315
    %v8169 = vunpack.c.l.b16 %v2316
    %v8170 = vunpack.c.l.b16 %v2317
    %v8171 = vunpack.c.l.b16 %v2318
    %v8172 = vunpack.c.l.b16 %v2319
    %v8173 = vunpack.c.l.b16 %v2320
    %v8174 = vunpack.c.l.b16 %v2321
    %v8175 = vunpack.c.l.b16 %v2322
    %v8176 = vunpack.c.l.b16 %v2323
    %v8177 = vunpack.c.l.b16 %v2324
    %v8178 = vunpack.c.l.b16 %v2325
    %v8179 = vunpack.c.l.b16 %v2326
    %v8180 = vunpack.c.l.b16 %v2327
    %v8181 = vunpack.c.l.b16 %v2328
    %v8182 = vunpack.c.l.b16 %v2329
    %v8183 = vunpack.c.l.b16 %v2330
    %v8184 = vunpack.c.l.b16 %v2331
    %v8185 = vunpack.c.l.b16 %v2332
    %v8186 = vunpack.c.l.b16 %v2333
    %v8187 = vunpack.c.l.b16 %v2334
    %v8188 = vunpack.c.l.b16 %v2335
    %v8189 = vunpack.c.l.b16 %v2336
    %v8190 = vunpack.c.l.b16 %v2337
    %v8191 = vunpack.c.l.b16 %v2338
    %v8192 = vunpack.c.l.b16 %v2339
    %v8193 = vunpack.c.l.b16 %v2340
    %v8194 = vunpack.c.l.b16 %v2341
    %v8195 = vunpack.c.l.b16 %v2342
    %v8196 = vunpack.c.l.b16 %v2343
    %v8197 = vunpack.c.l.b16 %v2344
    %v8198 = vunpack.c.l.b16 %v2345
    %v8199 = vunpack.c.l.b16 %v2346
    %v8200 = vunpack.c.l.b16 %v2347
    %v8201 = vunpack.c.l.b16 %v2348
    %v8202 = vunpack.c.l.b16 %v2349
    %v8203 = vunpack.c.l.b16 %v2350
    %v8204 = vunpack.c.l.b16 %v2351
    %v8205 = vunpack.c.l.b16 %v2352
    %v8206 = vunpack.c.l.b16 %v2353
    %v8207 = vunpack.c.l.b16 %v2354
    %v8208 = vunpack.c.l.b16 %v2355
    %v8209 = vunpack.c.l.b16 %v2356
    %v8210 = vunpack.c.l.b16 %v2357
    %v8211 = vunpack.c.l.b16 %v2358
    %v8212 = vunpack.c.l.b16 %v2359
    %v8213 = vunpack.c.l.b16 %v2360
    %v8214 = vunpack.c.l.b16 %v2361
    %v8215 = vunpack.c.l.b16 %v2362
    %v8216 = vunpack.c.l.b16 %v2363
    %v8217 = vunpack.c.l.b16 %v2364
    %v8218 = vunpack.c.l.b16 %v2365
    %v8219 = vunpack.c.l.b16 %v2366
    %v8220 = vunpack.c.l.b16 %v2367
    %v8221 = vunpack.c.l.b16 %v2368
    %v8222 = vunpack.c.l.b16 %v2369
    %v8223 = vunpack.c.l.b16 %v2370
    %v8224 = vunpack.c.l.b16 %v2371
    %v8225 = vunpack.c.l.b16 %v2372
    %v8226 = vunpack.c.l.b16 %v2373
    %v8227 = vunpack.c.l.b16 %v2374
    %v8228 = vunpack.c.l.b16 %v2375
    %v8229 = vunpack.c.l.b16 %v2376
    %v8230 = vunpack.c.l.b16 %v2377
    %v8231 = vunpack.c.l.b16 %v2378
    %v8232 = vunpack.c.l.b16 %v2379
    %v8233 = vunpack.c.l.b16 %v2380
    %v8234 = vunpack.c.l.b16 %v2381
    %v8235 = vunpack.c.l.b16 %v2382
    %v8236 = vunpack.c.l.b16 %v2383
    %v8237 = vunpack.c.l.b16 %v2384
    %v8238 = vunpack.c.l.b16 %v2385
    %v8239 = vunpack.c.l.b16 %v2386
    %v8240 = vunpack.c.l.b16 %v2387
    %v8241 = vunpack.c.l.b16 %v2388
    %v8242 = vunpack.c.l.b16 %v2389
    %v8243 = vunpack.c.l.b16 %v2390
    %v8244 = vunpack.c.l.b16 %v2391
    %v8245 = vunpack.c.l.b16 %v2392
    %v8246 = vunpack.c.l.b16 %v2393
    %v8247 = vunpack.c.l.b16 %v2394
    %v8248 = vunpack.c.l.b16 %v2395
    %v8249 = vunpack.c.l.b16 %v2396
    %v8250 = vunpack.c.l.b16 %v2397
    %v8251 = vunpack.c.l.b16 %v2398
    %v8252 = vunpack.c.l.b16 %v2399
    %v8253 = vunpack.c.l.b16 %v2400
    %v8254 = vunpack.c.l.b16 %v2401
    %v8255 = vunpack.c.l.b16 %v2402
    %v8256 = vunpack.c.l.b16 %v2403
    %v8257 = vunpack.c.l.b16 %v2404
    %v8258 = vunpack.c.l.b16 %v2405
    %v8259 = vunpack.c.l.b16 %v2406
    %v8260 = vunpack.c.l.b16 %v2407
    %v8261 = vunpack.c.l.b16 %v2408
    %v8262 = vunpack.c.l.b16 %v2409
    %v8263 = vunpack.c.l.b16 %v2410
    %v8264 = vunpack.c.l.b16 %v2411
    %v8265 = vunpack.c.l.b16 %v2412
    %v8266 = vunpack.c.l.b16 %v2413
    %v8267 = vunpack.c.l.b16 %v2414
    %v8268 = vunpack.c.l.b16 %v2415
    %v8269 = vunpack.c.l.b16 %v2416
    %v8270 = vunpack.c.l.b16 %v2417
    %v8271 = vunpack.c.l.b16 %v2418
    %v8272 = vunpack.c.l.b16 %v2419
    %v8273 = vunpack.c.l.b16 %v2420
    %v8274 = vunpack.c.l.b16 %v2421
    %v8275 = vunpack.c.l.b16 %v2422
    %v8276 = vunpack.c.l.b16 %v2423
    %v8277 = vunpack.c.l.b16 %v2424
    %v8278 = vunpack.c.l.b16 %v2425
    %v8279 = vunpack.c.l.b16 %v2426
    %v8280 = vunpack.c.l.b16 %v2427
    %v8281 = vunpack.c.l.b16 %v2428
    %v8282 = vunpack.c.l.b16 %v2429
    %v8283 = vunpack.c.l.b16 %v2430
    %v8284 = vunpack.c.l.b16 %v2431
    %v8285 = vunpack.c.l.b16 %v2432
    %v8286 = vunpack.c.l.b16 %v2433
    %v8287 = vunpack.c.l.b16 %v2434
    %v8288 = vunpack.c.l.b16 %v2435
    %v8289 = vunpack.c.l.b16 %v2436
    %v8290 = vunpack.c.l.b16 %v2437
    %v8291 = vunpack.c.l.b16 %v2438
    %v8292 = vunpack.c.l.b16 %v2439
    %v8293 = vunpack.c.l.b16 %v2440
    %v8294 = vunpack.c.l.b16 %v2441
    %v8295 = vunpack.c.l.b16 %v2442
    %v8296 = vunpack.c.l.b16 %v2443
    %v8297 = vunpack.c.l.b16 %v2444
    %v8298 = vunpack.c.l.b16 %v2445
    %v8299 = vunpack.c.l.b16 %v2446
    %v8300 = vunpack.c.l.b16 %v2447
    %v8301 = vunpack.c.l.b16 %v2448
    %v8302 = vunpack.c.l.b16 %v2449
    %v8303 = vunpack.c.l.b16 %v2450
    %v8304 = vunpack.c.l.b16 %v2451
    %v8305 = vunpack.c.l.b16 %v2452
    %v8306 = vunpack.c.l.b16 %v2453
    %v8307 = vunpack.c.l.b16 %v2454
    %v8308 = vunpack.c.l.b16 %v2455
    %v8309 = vunpack.c.l.b16 %v2456
    %v8310 = vunpack.c.l.b16 %v2457
    %v8311 = vunpack.c.l.b16 %v2458
    %v8312 = vunpack.c.l.b16 %v2459
    %v8313 = vunpack.c.l.b16 %v2460
    %v8314 = vunpack.c.l.b16 %v2461
    %v8315 = vunpack.c.l.b16 %v2462
    %v8316 = vunpack.c.l.b16 %v2463
    %v8317 = vunpack.c.l.b16 %v2464
    %v8318 = vunpack.c.l.b16 %v2465
    %v8319 = vunpack.c.l.b16 %v2466
    %v8320 = vunpack.c.l.b16 %v2467
    %v8321 = vunpack.c.l.b16 %v2468
    %v8322 = vunpack.c.l.b16 %v2469
    %v8323 = vunpack.c.l.b16 %v2470
    %v8324 = vunpack.c.l.b16 %v2471
    %v8325 = vunpack.c.l.b16 %v2472
    %v8326 = vunpack.c.l.b16 %v2473
    %v8327 = vpack.c.b16 %v8072, %v8071
    %v8328 = vpack.c.b16 %v8074, %v8073
    %v8329 = vpack.c.b16 %v8076, %v8075
    %v8330 = vpack.c.b16 %v8078, %v8077
    %v8331 = vpack.c.b16 %v8080, %v8079
    %v8332 = vpack.c.b16 %v8082, %v8081
    %v8333 = vpack.c.b16 %v8084, %v8083
    %v8334 = vpack.c.b16 %v8086, %v8085
    %v8335 = vpack.c.b16 %v8088, %v8087
    %v8336 = vpack.c.b16 %v8090, %v8089
    %v8337 = vpack.c.b16 %v8092, %v8091
    %v8338 = vpack.c.b16 %v8094, %v8093
    %v8339 = vpack.c.b16 %v8096, %v8095
    %v8340 = vpack.c.b16 %v8098, %v8097
    %v8341 = vpack.c.b16 %v8100, %v8099
    %v8342 = vpack.c.b16 %v8102, %v8101
    %v8343 = vpack.c.b16 %v8104, %v8103
    %v8344 = vpack.c.b16 %v8106, %v8105
    %v8345 = vpack.c.b16 %v8108, %v8107
    %v8346 = vpack.c.b16 %v8110, %v8109
    %v8347 = vpack.c.b16 %v8112, %v8111
    %v8348 = vpack.c.b16 %v8114, %v8113
    %v8349 = vpack.c.b16 %v8116, %v8115
    %v8350 = vpack.c.b16 %v8118, %v8117
    %v8351 = vpack.c.b16 %v8120, %v8119
    %v8352 = vpack.c.b16 %v8122, %v8121
    %v8353 = vpack.c.b16 %v8124, %v8123
    %v8354 = vpack.c.b16 %v8126, %v8125
    %v8355 = vpack.c.b16 %v8128, %v8127
    %v8356 = vpack.c.b16 %v8130, %v8129
    %v8357 = vpack.c.b16 %v8132, %v8131
    %v8358 = vpack.c.b16 %v8134, %v8133
    %v8359 = vpack.c.b16 %v8136, %v8135
    %v8360 = vpack.c.b16 %v8138, %v8137
    %v8361 = vpack.c.b16 %v8140, %v8139
    %v8362 = vpack.c.b16 %v8142, %v8141
    %v8363 = vpack.c.b16 %v8144, %v8143
    %v8364 = vpack.c.b16 %v8146, %v8145
    %v8365 = vpack.c.b16 %v8148, %v8147
    %v8366 = vpack.c.b16 %v8150, %v8149
    %v8367 = vpack.c.b16 %v8152, %v8151
    %v8368 = vpack.c.b16 %v8154, %v8153
    %v8369 = vpack.c.b16 %v8156, %v8155
    %v8370 = vpack.c.b16 %v8158, %v8157
    %v8371 = vpack.c.b16 %v8160, %v8159
    %v8372 = vpack.c.b16 %v8162, %v8161
    %v8373 = vpack.c.b16 %v8164, %v8163
    %v8374 = vpack.c.b16 %v8166, %v8165
    %v8375 = vpack.c.b16 %v8168, %v8167
    %v8376 = vpack.c.b16 %v8170, %v8169
    %v8377 = vpack.c.b16 %v8172, %v8171
    %v8378 = vpack.c.b16 %v8174, %v8173
    %v8379 = vpack.c.b16 %v8176, %v8175
    %v8380 = vpack.c.b16 %v8178, %v8177
    %v8381 = vpack.c.b16 %v8180, %v8179
    %v8382 = vpack.c.b16 %v8182, %v8181
    %v8383 = vpack.c.b16 %v8184, %v8183
    %v8384 = vpack.c.b16 %v8186, %v8185
    %v8385 = vpack.c.b16 %v8188, %v8187
    %v8386 = vpack.c.b16 %v8190, %v8189
    %v8387 = vpack.c.b16 %v8192, %v8191
    %v8388 = vpack.c.b16 %v8194, %v8193
    %v8389 = vpack.c.b16 %v8196, %v8195
    %v8390 = vpack.c.b16 %v8198, %v8197
    %v8391 = vpack.c.b16 %v8200, %v8199
    %v8392 = vpack.c.b16 %v8202, %v8201
    %v8393 = vpack.c.b16 %v8204, %v8203
    %v8394 = vpack.c.b16 %v8206, %v8205
    %v8395 = vpack.c.b16 %v8208, %v8207
    %v8396 = vpack.c.b16 %v8210, %v8209
    %v8397 = vpack.c.b16 %v8212, %v8211
    %v8398 = vpack.c.b16 %v8214, %v8213
    %v8399 = vpack.c.b16 %v8216, %v8215
    %v8400 = vpack.c.b16 %v8218, %v8217
    %v8401 = vpack.c.b16 %v8220, %v8219
    %v8402 = vpack.c.b16 %v8222, %v8221
    %v8403 = vpack.c.b16 %v8224, %v8223
    %v8404 = vpack.c.b16 %v8226, %v8225
    %v8405 = vpack.c.b16 %v8228, %v8227
    %v8406 = vpack.c.b16 %v8230, %v8229
    %v8407 = vpack.c.b16 %v8232, %v8231
    %v8408 = vpack.c.b16 %v8234, %v8233
    %v8409 = vpack.c.b16 %v8236, %v8235
    %v8410 = vpack.c.b16 %v8238, %v8237
    %v8411 = vpack.c.b16 %v8240, %v8239
    %v8412 = vpack.c.b16 %v8242, %v8241
    %v8413 = vpack.c.b16 %v8244, %v8243
    %v8414 = vpack.c.b16 %v8246, %v8245
    %v8415 = vpack.c.b16 %v8248, %v8247
    %v8416 = vpack.c.b16 %v8250, %v8249
    %v8417 = vpack.c.b16 %v8252, %v8251
    %v8418 = vpack.c.b16 %v8254, %v8253
    %v8419 = vpack.c.b16 %v8256, %v8255
    %v8420 = vpack.c.b16 %v8258, %v8257
    %v8421 = vpack.c.b16 %v8260, %v8259
    %v8422 = vpack.c.b16 %v8262, %v8261
    %v8423 = vpack.c.b16 %v8264, %v8263
    %v8424 = vpack.c.b16 %v8266, %v8265
    %v8425 = vpack.c.b16 %v8268, %v8267
    %v8426 = vpack.c.b16 %v8270, %v8269
    %v8427 = vpack.c.b16 %v8272, %v8271
    %v8428 = vpack.c.b16 %v8274, %v8273
    %v8429 = vpack.c.b16 %v8276, %v8275
    %v8430 = vpack.c.b16 %v8278, %v8277
    %v8431 = vpack.c.b16 %v8280, %v8279
    %v8432 = vpack.c.b16 %v8282, %v8281
    %v8433 = vpack.c.b16 %v8284, %v8283
    %v8434 = vpack.c.b16 %v8286, %v8285
    %v8435 = vpack.c.b16 %v8288, %v8287
    %v8436 = vpack.c.b16 %v8290, %v8289
    %v8437 = vpack.c.b16 %v8292, %v8291
    %v8438 = vpack.c.b16 %v8294, %v8293
    %v8439 = vpack.c.b16 %v8296, %v8295
    %v8440 = vpack.c.b16 %v8298, %v8297
    %v8441 = vpack.c.b16 %v8300, %v8299
    %v8442 = vpack.c.b16 %v8302, %v8301
    %v8443 = vpack.c.b16 %v8304, %v8303
    %v8444 = vpack.c.b16 %v8306, %v8305
    %v8445 = vpack.c.b16 %v8308, %v8307
    %v8446 = vpack.c.b16 %v8310, %v8309
    %v8447 = vpack.c.b16 %v8312, %v8311
    %v8448 = vpack.c.b16 %v8314, %v8313
    %v8449 = vpack.c.b16 %v8316, %v8315
    %v8450 = vpack.c.b16 %v8318, %v8317
    %v8451 = vpack.c.b16 %v8320, %v8319
    %v8452 = vpack.c.b16 %v8322, %v8321
    %v8453 = vpack.c.b16 %v8324, %v8323
    %v8454 = vpack.c.b16 %v8326, %v8325
    %8583 = vmatpush.bf16.msra.mxu0 %v8334
    %8584 = vmatpush.bf16.msra.mxu0 %v8333
    %8585 = vmatpush.bf16.msra.mxu0 %v8332
    %8586 = vmatpush.bf16.msra.mxu0 %v8331
    %8587 = vmatpush.bf16.msra.mxu0 %v8330
    %8588 = vmatpush.bf16.msra.mxu0 %v8329
    %8589 = vmatpush.bf16.msra.mxu0 %v8328
    %8590 = vmatpush.bf16.msra.mxu0 %v8327
    %8591 = vmatmul.bf16.gmra.mxu0 %v7556
    %v8592 = vpop.f32.mrf.mxu0
    %v8593 = vadd.f32 %v7813, %v8592
    %v8594 = vpop.f32.mrf.mxu0
    %v8595 = vadd.f32 %v7813, %v8594
    %8596 = vmatmul.bf16.gmra.mxu0 %v7572
    %v8597 = vpop.f32.mrf.mxu0
    %v8598 = vadd.f32 %v7813, %v8597
    %v8599 = vpop.f32.mrf.mxu0
    %v8600 = vadd.f32 %v7813, %v8599
    %8601 = vmatmul.bf16.gmra.mxu0 %v7588
    %v8602 = vpop.f32.mrf.mxu0
    %v8603 = vadd.f32 %v7813, %v8602
    %v8604 = vpop.f32.mrf.mxu0
    %v8605 = vadd.f32 %v7813, %v8604
    %8606 = vmatmul.bf16.gmra.mxu0 %v7604
    %v8607 = vpop.f32.mrf.mxu0
    %v8608 = vadd.f32 %v7813, %v8607
    %v8609 = vpop.f32.mrf.mxu0
    %v8610 = vadd.f32 %v7813, %v8609
    %8611 = vmatmul.bf16.gmra.mxu0 %v7620
    %v8612 = vpop.f32.mrf.mxu0
    %v8613 = vadd.f32 %v7813, %v8612
    %v8614 = vpop.f32.mrf.mxu0
    %v8615 = vadd.f32 %v7813, %v8614
    %8616 = vmatmul.bf16.gmra.mxu0 %v7636
    %v8617 = vpop.f32.mrf.mxu0
    %v8618 = vadd.f32 %v7813, %v8617
    %v8619 = vpop.f32.mrf.mxu0
    %v8620 = vadd.f32 %v7813, %v8619
    %8621 = vmatmul.bf16.gmra.mxu0 %v7652
    %v8622 = vpop.f32.mrf.mxu0
    %v8623 = vadd.f32 %v7813, %v8622
    %v8624 = vpop.f32.mrf.mxu0
    %v8625 = vadd.f32 %v7813, %v8624
    %8626 = vmatmul.bf16.gmra.mxu0 %v7668
    %v8627 = vpop.f32.mrf.mxu0
    %v8628 = vadd.f32 %v7813, %v8627
    %v8629 = vpop.f32.mrf.mxu0
    %v8630 = vadd.f32 %v7813, %v8629
    %8631 = vmatmul.bf16.gmra.mxu0 %v7684
    %v8632 = vpop.f32.mrf.mxu0
    %v8633 = vadd.f32 %v7813, %v8632
    %v8634 = vpop.f32.mrf.mxu0
    %v8635 = vadd.f32 %v7813, %v8634
    %8636 = vmatmul.bf16.gmra.mxu0 %v7700
    %v8637 = vpop.f32.mrf.mxu0
    %v8638 = vadd.f32 %v7813, %v8637
    %v8639 = vpop.f32.mrf.mxu0
    %v8640 = vadd.f32 %v7813, %v8639
    %8641 = vmatmul.bf16.gmra.mxu0 %v7716
    %v8642 = vpop.f32.mrf.mxu0
    %v8643 = vadd.f32 %v7813, %v8642
    %v8644 = vpop.f32.mrf.mxu0
    %v8645 = vadd.f32 %v7813, %v8644
    %8646 = vmatmul.bf16.gmra.mxu0 %v7732
    %v8647 = vpop.f32.mrf.mxu0
    %v8648 = vadd.f32 %v7813, %v8647
    %v8649 = vpop.f32.mrf.mxu0
    %v8650 = vadd.f32 %v7813, %v8649
    %8651 = vmatmul.bf16.gmra.mxu0 %v7748
    %v8652 = vpop.f32.mrf.mxu0
    %v8653 = vadd.f32 %v7813, %v8652
    %v8654 = vpop.f32.mrf.mxu0
    %v8655 = vadd.f32 %v7813, %v8654
    %8656 = vmatmul.bf16.gmra.mxu0 %v7764
    %v8657 = vpop.f32.mrf.mxu0
    %v8658 = vadd.f32 %v7813, %v8657
    %v8659 = vpop.f32.mrf.mxu0
    %v8660 = vadd.f32 %v7813, %v8659
    %8661 = vmatmul.bf16.gmra.mxu0 %v7780
    %v8662 = vpop.f32.mrf.mxu0
    %v8663 = vadd.f32 %v7813, %v8662
    %v8664 = vpop.f32.mrf.mxu0
    %v8665 = vadd.f32 %v7813, %v8664
    %8666 = vmatmul.bf16.gmra.mxu0 %v7796
    %v8667 = vpop.f32.mrf.mxu0
    %v8668 = vadd.f32 %v7813, %v8667
    %v8669 = vpop.f32.mrf.mxu0
    %v8670 = vadd.f32 %v7813, %v8669
    %8671 = vdwg.mxu0
    %8672 = vmatpush.bf16.msra.mxu0 %v8342
    %8673 = vmatpush.bf16.msra.mxu0 %v8341
    %8674 = vmatpush.bf16.msra.mxu0 %v8340
    %8675 = vmatpush.bf16.msra.mxu0 %v8339
    %8676 = vmatpush.bf16.msra.mxu0 %v8338
    %8677 = vmatpush.bf16.msra.mxu0 %v8337
    %8678 = vmatpush.bf16.msra.mxu0 %v8336
    %8679 = vmatpush.bf16.msra.mxu0 %v8335
    %8680 = vmatmul.bf16.gmra.mxu0 %v7557
    %v8681 = vpop.f32.mrf.mxu0
    %v8682 = vadd.f32 %v8593, %v8681
    %v8683 = vpop.f32.mrf.mxu0
    %v8684 = vadd.f32 %v8595, %v8683
    %8685 = vmatmul.bf16.gmra.mxu0 %v7573
    %v8686 = vpop.f32.mrf.mxu0
    %v8687 = vadd.f32 %v8598, %v8686
    %v8688 = vpop.f32.mrf.mxu0
    %v8689 = vadd.f32 %v8600, %v8688
    %8690 = vmatmul.bf16.gmra.mxu0 %v7589
    %v8691 = vpop.f32.mrf.mxu0
    %v8692 = vadd.f32 %v8603, %v8691
    %v8693 = vpop.f32.mrf.mxu0
    %v8694 = vadd.f32 %v8605, %v8693
    %8695 = vmatmul.bf16.gmra.mxu0 %v7605
    %v8696 = vpop.f32.mrf.mxu0
    %v8697 = vadd.f32 %v8608, %v8696
    %v8698 = vpop.f32.mrf.mxu0
    %v8699 = vadd.f32 %v8610, %v8698
    %8700 = vmatmul.bf16.gmra.mxu0 %v7621
    %v8701 = vpop.f32.mrf.mxu0
    %v8702 = vadd.f32 %v8613, %v8701
    %v8703 = vpop.f32.mrf.mxu0
    %v8704 = vadd.f32 %v8615, %v8703
    %8705 = vmatmul.bf16.gmra.mxu0 %v7637
    %v8706 = vpop.f32.mrf.mxu0
    %v8707 = vadd.f32 %v8618, %v8706
    %v8708 = vpop.f32.mrf.mxu0
    %v8709 = vadd.f32 %v8620, %v8708
    %8710 = vmatmul.bf16.gmra.mxu0 %v7653
    %v8711 = vpop.f32.mrf.mxu0
    %v8712 = vadd.f32 %v8623, %v8711
    %v8713 = vpop.f32.mrf.mxu0
    %v8714 = vadd.f32 %v8625, %v8713
    %8715 = vmatmul.bf16.gmra.mxu0 %v7669
    %v8716 = vpop.f32.mrf.mxu0
    %v8717 = vadd.f32 %v8628, %v8716
    %v8718 = vpop.f32.mrf.mxu0
    %v8719 = vadd.f32 %v8630, %v8718
    %8720 = vmatmul.bf16.gmra.mxu0 %v7685
    %v8721 = vpop.f32.mrf.mxu0
    %v8722 = vadd.f32 %v8633, %v8721
    %v8723 = vpop.f32.mrf.mxu0
    %v8724 = vadd.f32 %v8635, %v8723
    %8725 = vmatmul.bf16.gmra.mxu0 %v7701
    %v8726 = vpop.f32.mrf.mxu0
    %v8727 = vadd.f32 %v8638, %v8726
    %v8728 = vpop.f32.mrf.mxu0
    %v8729 = vadd.f32 %v8640, %v8728
    %8730 = vmatmul.bf16.gmra.mxu0 %v7717
    %v8731 = vpop.f32.mrf.mxu0
    %v8732 = vadd.f32 %v8643, %v8731
    %v8733 = vpop.f32.mrf.mxu0
    %v8734 = vadd.f32 %v8645, %v8733
    %8735 = vmatmul.bf16.gmra.mxu0 %v7733
    %v8736 = vpop.f32.mrf.mxu0
    %v8737 = vadd.f32 %v8648, %v8736
    %v8738 = vpop.f32.mrf.mxu0
    %v8739 = vadd.f32 %v8650, %v8738
    %8740 = vmatmul.bf16.gmra.mxu0 %v7749
    %v8741 = vpop.f32.mrf.mxu0
    %v8742 = vadd.f32 %v8653, %v8741
    %v8743 = vpop.f32.mrf.mxu0
    %v8744 = vadd.f32 %v8655, %v8743
    %8745 = vmatmul.bf16.gmra.mxu0 %v7765
    %v8746 = vpop.f32.mrf.mxu0
    %v8747 = vadd.f32 %v8658, %v8746
    %v8748 = vpop.f32.mrf.mxu0
    %v8749 = vadd.f32 %v8660, %v8748
    %8750 = vmatmul.bf16.gmra.mxu0 %v7781
    %v8751 = vpop.f32.mrf.mxu0
    %v8752 = vadd.f32 %v8663, %v8751
    %v8753 = vpop.f32.mrf.mxu0
    %v8754 = vadd.f32 %v8665, %v8753
    %8755 = vmatmul.bf16.gmra.mxu0 %v7797
    %v8756 = vpop.f32.mrf.mxu0
    %v8757 = vadd.f32 %v8668, %v8756
    %v8758 = vpop.f32.mrf.mxu0
    %v8759 = vadd.f32 %v8670, %v8758
    %8760 = vdwg.mxu0
    %8761 = vmatpush.bf16.msra.mxu0 %v8350
    %8762 = vmatpush.bf16.msra.mxu0 %v8349
    %8763 = vmatpush.bf16.msra.mxu0 %v8348
    %8764 = vmatpush.bf16.msra.mxu0 %v8347
    %8765 = vmatpush.bf16.msra.mxu0 %v8346
    %8766 = vmatpush.bf16.msra.mxu0 %v8345
    %8767 = vmatpush.bf16.msra.mxu0 %v8344
    %8768 = vmatpush.bf16.msra.mxu0 %v8343
    %8769 = vmatmul.bf16.gmra.mxu0 %v7558
    %v8770 = vpop.f32.mrf.mxu0
    %v8771 = vadd.f32 %v8682, %v8770
    %v8772 = vpop.f32.mrf.mxu0
    %v8773 = vadd.f32 %v8684, %v8772
    %8774 = vmatmul.bf16.gmra.mxu0 %v7574
    %v8775 = vpop.f32.mrf.mxu0
    %v8776 = vadd.f32 %v8687, %v8775
    %v8777 = vpop.f32.mrf.mxu0
    %v8778 = vadd.f32 %v8689, %v8777
    %8779 = vmatmul.bf16.gmra.mxu0 %v7590
    %v8780 = vpop.f32.mrf.mxu0
    %v8781 = vadd.f32 %v8692, %v8780
    %v8782 = vpop.f32.mrf.mxu0
    %v8783 = vadd.f32 %v8694, %v8782
    %8784 = vmatmul.bf16.gmra.mxu0 %v7606
    %v8785 = vpop.f32.mrf.mxu0
    %v8786 = vadd.f32 %v8697, %v8785
    %v8787 = vpop.f32.mrf.mxu0
    %v8788 = vadd.f32 %v8699, %v8787
    %8789 = vmatmul.bf16.gmra.mxu0 %v7622
    %v8790 = vpop.f32.mrf.mxu0
    %v8791 = vadd.f32 %v8702, %v8790
    %v8792 = vpop.f32.mrf.mxu0
    %v8793 = vadd.f32 %v8704, %v8792
    %8794 = vmatmul.bf16.gmra.mxu0 %v7638
    %v8795 = vpop.f32.mrf.mxu0
    %v8796 = vadd.f32 %v8707, %v8795
    %v8797 = vpop.f32.mrf.mxu0
    %v8798 = vadd.f32 %v8709, %v8797
    %8799 = vmatmul.bf16.gmra.mxu0 %v7654
    %v8800 = vpop.f32.mrf.mxu0
    %v8801 = vadd.f32 %v8712, %v8800
    %v8802 = vpop.f32.mrf.mxu0
    %v8803 = vadd.f32 %v8714, %v8802
    %8804 = vmatmul.bf16.gmra.mxu0 %v7670
    %v8805 = vpop.f32.mrf.mxu0
    %v8806 = vadd.f32 %v8717, %v8805
    %v8807 = vpop.f32.mrf.mxu0
    %v8808 = vadd.f32 %v8719, %v8807
    %8809 = vmatmul.bf16.gmra.mxu0 %v7686
    %v8810 = vpop.f32.mrf.mxu0
    %v8811 = vadd.f32 %v8722, %v8810
    %v8812 = vpop.f32.mrf.mxu0
    %v8813 = vadd.f32 %v8724, %v8812
    %8814 = vmatmul.bf16.gmra.mxu0 %v7702
    %v8815 = vpop.f32.mrf.mxu0
    %v8816 = vadd.f32 %v8727, %v8815
    %v8817 = vpop.f32.mrf.mxu0
    %v8818 = vadd.f32 %v8729, %v8817
    %8819 = vmatmul.bf16.gmra.mxu0 %v7718
    %v8820 = vpop.f32.mrf.mxu0
    %v8821 = vadd.f32 %v8732, %v8820
    %v8822 = vpop.f32.mrf.mxu0
    %v8823 = vadd.f32 %v8734, %v8822
    %8824 = vmatmul.bf16.gmra.mxu0 %v7734
    %v8825 = vpop.f32.mrf.mxu0
    %v8826 = vadd.f32 %v8737, %v8825
    %v8827 = vpop.f32.mrf.mxu0
    %v8828 = vadd.f32 %v8739, %v8827
    %8829 = vmatmul.bf16.gmra.mxu0 %v7750
    %v8830 = vpop.f32.mrf.mxu0
    %v8831 = vadd.f32 %v8742, %v8830
    %v8832 = vpop.f32.mrf.mxu0
    %v8833 = vadd.f32 %v8744, %v8832
    %8834 = vmatmul.bf16.gmra.mxu0 %v7766
    %v8835 = vpop.f32.mrf.mxu0
    %v8836 = vadd.f32 %v8747, %v8835
    %v8837 = vpop.f32.mrf.mxu0
    %v8838 = vadd.f32 %v8749, %v8837
    %8839 = vmatmul.bf16.gmra.mxu0 %v7782
    %v8840 = vpop.f32.mrf.mxu0
    %v8841 = vadd.f32 %v8752, %v8840
    %v8842 = vpop.f32.mrf.mxu0
    %v8843 = vadd.f32 %v8754, %v8842
    %8844 = vmatmul.bf16.gmra.mxu0 %v7798
    %v8845 = vpop.f32.mrf.mxu0
    %v8846 = vadd.f32 %v8757, %v8845
    %v8847 = vpop.f32.mrf.mxu0
    %v8848 = vadd.f32 %v8759, %v8847
    %8849 = vdwg.mxu0
    %8850 = vmatpush.bf16.msra.mxu0 %v8358
    %8851 = vmatpush.bf16.msra.mxu0 %v8357
    %8852 = vmatpush.bf16.msra.mxu0 %v8356
    %8853 = vmatpush.bf16.msra.mxu0 %v8355
    %8854 = vmatpush.bf16.msra.mxu0 %v8354
    %8855 = vmatpush.bf16.msra.mxu0 %v8353
    %8856 = vmatpush.bf16.msra.mxu0 %v8352
    %8857 = vmatpush.bf16.msra.mxu0 %v8351
    %8858 = vmatmul.bf16.gmra.mxu0 %v7559
    %v8859 = vpop.f32.mrf.mxu0
    %v8860 = vadd.f32 %v8771, %v8859
    %v8861 = vpop.f32.mrf.mxu0
    %v8862 = vadd.f32 %v8773, %v8861
    %8863 = vmatmul.bf16.gmra.mxu0 %v7575
    %v8864 = vpop.f32.mrf.mxu0
    %v8865 = vadd.f32 %v8776, %v8864
    %v8866 = vpop.f32.mrf.mxu0
    %v8867 = vadd.f32 %v8778, %v8866
    %8868 = vmatmul.bf16.gmra.mxu0 %v7591
    %v8869 = vpop.f32.mrf.mxu0
    %v8870 = vadd.f32 %v8781, %v8869
    %v8871 = vpop.f32.mrf.mxu0
    %v8872 = vadd.f32 %v8783, %v8871
    %8873 = vmatmul.bf16.gmra.mxu0 %v7607
    %v8874 = vpop.f32.mrf.mxu0
    %v8875 = vadd.f32 %v8786, %v8874
    %v8876 = vpop.f32.mrf.mxu0
    %v8877 = vadd.f32 %v8788, %v8876
    %8878 = vmatmul.bf16.gmra.mxu0 %v7623
    %v8879 = vpop.f32.mrf.mxu0
    %v8880 = vadd.f32 %v8791, %v8879
    %v8881 = vpop.f32.mrf.mxu0
    %v8882 = vadd.f32 %v8793, %v8881
    %8883 = vmatmul.bf16.gmra.mxu0 %v7639
    %v8884 = vpop.f32.mrf.mxu0
    %v8885 = vadd.f32 %v8796, %v8884
    %v8886 = vpop.f32.mrf.mxu0
    %v8887 = vadd.f32 %v8798, %v8886
    %8888 = vmatmul.bf16.gmra.mxu0 %v7655
    %v8889 = vpop.f32.mrf.mxu0
    %v8890 = vadd.f32 %v8801, %v8889
    %v8891 = vpop.f32.mrf.mxu0
    %v8892 = vadd.f32 %v8803, %v8891
    %8893 = vmatmul.bf16.gmra.mxu0 %v7671
    %v8894 = vpop.f32.mrf.mxu0
    %v8895 = vadd.f32 %v8806, %v8894
    %v8896 = vpop.f32.mrf.mxu0
    %v8897 = vadd.f32 %v8808, %v8896
    %8898 = vmatmul.bf16.gmra.mxu0 %v7687
    %v8899 = vpop.f32.mrf.mxu0
    %v8900 = vadd.f32 %v8811, %v8899
    %v8901 = vpop.f32.mrf.mxu0
    %v8902 = vadd.f32 %v8813, %v8901
    %8903 = vmatmul.bf16.gmra.mxu0 %v7703
    %v8904 = vpop.f32.mrf.mxu0
    %v8905 = vadd.f32 %v8816, %v8904
    %v8906 = vpop.f32.mrf.mxu0
    %v8907 = vadd.f32 %v8818, %v8906
    %8908 = vmatmul.bf16.gmra.mxu0 %v7719
    %v8909 = vpop.f32.mrf.mxu0
    %v8910 = vadd.f32 %v8821, %v8909
    %v8911 = vpop.f32.mrf.mxu0
    %v8912 = vadd.f32 %v8823, %v8911
    %8913 = vmatmul.bf16.gmra.mxu0 %v7735
    %v8914 = vpop.f32.mrf.mxu0
    %v8915 = vadd.f32 %v8826, %v8914
    %v8916 = vpop.f32.mrf.mxu0
    %v8917 = vadd.f32 %v8828, %v8916
    %8918 = vmatmul.bf16.gmra.mxu0 %v7751
    %v8919 = vpop.f32.mrf.mxu0
    %v8920 = vadd.f32 %v8831, %v8919
    %v8921 = vpop.f32.mrf.mxu0
    %v8922 = vadd.f32 %v8833, %v8921
    %8923 = vmatmul.bf16.gmra.mxu0 %v7767
    %v8924 = vpop.f32.mrf.mxu0
    %v8925 = vadd.f32 %v8836, %v8924
    %v8926 = vpop.f32.mrf.mxu0
    %v8927 = vadd.f32 %v8838, %v8926
    %8928 = vmatmul.bf16.gmra.mxu0 %v7783
    %v8929 = vpop.f32.mrf.mxu0
    %v8930 = vadd.f32 %v8841, %v8929
    %v8931 = vpop.f32.mrf.mxu0
    %v8932 = vadd.f32 %v8843, %v8931
    %8933 = vmatmul.bf16.gmra.mxu0 %v7799
    %v8934 = vpop.f32.mrf.mxu0
    %v8935 = vadd.f32 %v8846, %v8934
    %v8936 = vpop.f32.mrf.mxu0
    %v8937 = vadd.f32 %v8848, %v8936
    %8938 = vdwg.mxu0
    %8939 = vmatpush.bf16.msra.mxu0 %v8366
    %8940 = vmatpush.bf16.msra.mxu0 %v8365
    %8941 = vmatpush.bf16.msra.mxu0 %v8364
    %8942 = vmatpush.bf16.msra.mxu0 %v8363
    %8943 = vmatpush.bf16.msra.mxu0 %v8362
    %8944 = vmatpush.bf16.msra.mxu0 %v8361
    %8945 = vmatpush.bf16.msra.mxu0 %v8360
    %8946 = vmatpush.bf16.msra.mxu0 %v8359
    %8947 = vmatmul.bf16.gmra.mxu0 %v7560
    %v8948 = vpop.f32.mrf.mxu0
    %v8949 = vadd.f32 %v8860, %v8948
    %v8950 = vpop.f32.mrf.mxu0
    %v8951 = vadd.f32 %v8862, %v8950
    %8952 = vmatmul.bf16.gmra.mxu0 %v7576
    %v8953 = vpop.f32.mrf.mxu0
    %v8954 = vadd.f32 %v8865, %v8953
    %v8955 = vpop.f32.mrf.mxu0
    %v8956 = vadd.f32 %v8867, %v8955
    %8957 = vmatmul.bf16.gmra.mxu0 %v7592
    %v8958 = vpop.f32.mrf.mxu0
    %v8959 = vadd.f32 %v8870, %v8958
    %v8960 = vpop.f32.mrf.mxu0
    %v8961 = vadd.f32 %v8872, %v8960
    %8962 = vmatmul.bf16.gmra.mxu0 %v7608
    %v8963 = vpop.f32.mrf.mxu0
    %v8964 = vadd.f32 %v8875, %v8963
    %v8965 = vpop.f32.mrf.mxu0
    %v8966 = vadd.f32 %v8877, %v8965
    %8967 = vmatmul.bf16.gmra.mxu0 %v7624
    %v8968 = vpop.f32.mrf.mxu0
    %v8969 = vadd.f32 %v8880, %v8968
    %v8970 = vpop.f32.mrf.mxu0
    %v8971 = vadd.f32 %v8882, %v8970
    %8972 = vmatmul.bf16.gmra.mxu0 %v7640
    %v8973 = vpop.f32.mrf.mxu0
    %v8974 = vadd.f32 %v8885, %v8973
    %v8975 = vpop.f32.mrf.mxu0
    %v8976 = vadd.f32 %v8887, %v8975
    %8977 = vmatmul.bf16.gmra.mxu0 %v7656
    %v8978 = vpop.f32.mrf.mxu0
    %v8979 = vadd.f32 %v8890, %v8978
    %v8980 = vpop.f32.mrf.mxu0
    %v8981 = vadd.f32 %v8892, %v8980
    %8982 = vmatmul.bf16.gmra.mxu0 %v7672
    %v8983 = vpop.f32.mrf.mxu0
    %v8984 = vadd.f32 %v8895, %v8983
    %v8985 = vpop.f32.mrf.mxu0
    %v8986 = vadd.f32 %v8897, %v8985
    %8987 = vmatmul.bf16.gmra.mxu0 %v7688
    %v8988 = vpop.f32.mrf.mxu0
    %v8989 = vadd.f32 %v8900, %v8988
    %v8990 = vpop.f32.mrf.mxu0
    %v8991 = vadd.f32 %v8902, %v8990
    %8992 = vmatmul.bf16.gmra.mxu0 %v7704
    %v8993 = vpop.f32.mrf.mxu0
    %v8994 = vadd.f32 %v8905, %v8993
    %v8995 = vpop.f32.mrf.mxu0
    %v8996 = vadd.f32 %v8907, %v8995
    %8997 = vmatmul.bf16.gmra.mxu0 %v7720
    %v8998 = vpop.f32.mrf.mxu0
    %v8999 = vadd.f32 %v8910, %v8998
    %v9000 = vpop.f32.mrf.mxu0
    %v9001 = vadd.f32 %v8912, %v9000
    %9002 = vmatmul.bf16.gmra.mxu0 %v7736
    %v9003 = vpop.f32.mrf.mxu0
    %v9004 = vadd.f32 %v8915, %v9003
    %v9005 = vpop.f32.mrf.mxu0
    %v9006 = vadd.f32 %v8917, %v9005
    %9007 = vmatmul.bf16.gmra.mxu0 %v7752
    %v9008 = vpop.f32.mrf.mxu0
    %v9009 = vadd.f32 %v8920, %v9008
    %v9010 = vpop.f32.mrf.mxu0
    %v9011 = vadd.f32 %v8922, %v9010
    %9012 = vmatmul.bf16.gmra.mxu0 %v7768
    %v9013 = vpop.f32.mrf.mxu0
    %v9014 = vadd.f32 %v8925, %v9013
    %v9015 = vpop.f32.mrf.mxu0
    %v9016 = vadd.f32 %v8927, %v9015
    %9017 = vmatmul.bf16.gmra.mxu0 %v7784
    %v9018 = vpop.f32.mrf.mxu0
    %v9019 = vadd.f32 %v8930, %v9018
    %v9020 = vpop.f32.mrf.mxu0
    %v9021 = vadd.f32 %v8932, %v9020
    %9022 = vmatmul.bf16.gmra.mxu0 %v7800
    %v9023 = vpop.f32.mrf.mxu0
    %v9024 = vadd.f32 %v8935, %v9023
    %v9025 = vpop.f32.mrf.mxu0
    %v9026 = vadd.f32 %v8937, %v9025
    %9027 = vdwg.mxu0
    %9028 = vmatpush.bf16.msra.mxu0 %v8374
    %9029 = vmatpush.bf16.msra.mxu0 %v8373
    %9030 = vmatpush.bf16.msra.mxu0 %v8372
    %9031 = vmatpush.bf16.msra.mxu0 %v8371
    %9032 = vmatpush.bf16.msra.mxu0 %v8370
    %9033 = vmatpush.bf16.msra.mxu0 %v8369
    %9034 = vmatpush.bf16.msra.mxu0 %v8368
    %9035 = vmatpush.bf16.msra.mxu0 %v8367
    %9036 = vmatmul.bf16.gmra.mxu0 %v7561
    %v9037 = vpop.f32.mrf.mxu0
    %v9038 = vadd.f32 %v8949, %v9037
    %v9039 = vpop.f32.mrf.mxu0
    %v9040 = vadd.f32 %v8951, %v9039
    %9041 = vmatmul.bf16.gmra.mxu0 %v7577
    %v9042 = vpop.f32.mrf.mxu0
    %v9043 = vadd.f32 %v8954, %v9042
    %v9044 = vpop.f32.mrf.mxu0
    %v9045 = vadd.f32 %v8956, %v9044
    %9046 = vmatmul.bf16.gmra.mxu0 %v7593
    %v9047 = vpop.f32.mrf.mxu0
    %v9048 = vadd.f32 %v8959, %v9047
    %v9049 = vpop.f32.mrf.mxu0
    %v9050 = vadd.f32 %v8961, %v9049
    %9051 = vmatmul.bf16.gmra.mxu0 %v7609
    %v9052 = vpop.f32.mrf.mxu0
    %v9053 = vadd.f32 %v8964, %v9052
    %v9054 = vpop.f32.mrf.mxu0
    %v9055 = vadd.f32 %v8966, %v9054
    %9056 = vmatmul.bf16.gmra.mxu0 %v7625
    %v9057 = vpop.f32.mrf.mxu0
    %v9058 = vadd.f32 %v8969, %v9057
    %v9059 = vpop.f32.mrf.mxu0
    %v9060 = vadd.f32 %v8971, %v9059
    %9061 = vmatmul.bf16.gmra.mxu0 %v7641
    %v9062 = vpop.f32.mrf.mxu0
    %v9063 = vadd.f32 %v8974, %v9062
    %v9064 = vpop.f32.mrf.mxu0
    %v9065 = vadd.f32 %v8976, %v9064
    %9066 = vmatmul.bf16.gmra.mxu0 %v7657
    %v9067 = vpop.f32.mrf.mxu0
    %v9068 = vadd.f32 %v8979, %v9067
    %v9069 = vpop.f32.mrf.mxu0
    %v9070 = vadd.f32 %v8981, %v9069
    %9071 = vmatmul.bf16.gmra.mxu0 %v7673
    %v9072 = vpop.f32.mrf.mxu0
    %v9073 = vadd.f32 %v8984, %v9072
    %v9074 = vpop.f32.mrf.mxu0
    %v9075 = vadd.f32 %v8986, %v9074
    %9076 = vmatmul.bf16.gmra.mxu0 %v7689
    %v9077 = vpop.f32.mrf.mxu0
    %v9078 = vadd.f32 %v8989, %v9077
    %v9079 = vpop.f32.mrf.mxu0
    %v9080 = vadd.f32 %v8991, %v9079
    %9081 = vmatmul.bf16.gmra.mxu0 %v7705
    %v9082 = vpop.f32.mrf.mxu0
    %v9083 = vadd.f32 %v8994, %v9082
    %v9084 = vpop.f32.mrf.mxu0
    %v9085 = vadd.f32 %v8996, %v9084
    %9086 = vmatmul.bf16.gmra.mxu0 %v7721
    %v9087 = vpop.f32.mrf.mxu0
    %v9088 = vadd.f32 %v8999, %v9087
    %v9089 = vpop.f32.mrf.mxu0
    %v9090 = vadd.f32 %v9001, %v9089
    %9091 = vmatmul.bf16.gmra.mxu0 %v7737
    %v9092 = vpop.f32.mrf.mxu0
    %v9093 = vadd.f32 %v9004, %v9092
    %v9094 = vpop.f32.mrf.mxu0
    %v9095 = vadd.f32 %v9006, %v9094
    %9096 = vmatmul.bf16.gmra.mxu0 %v7753
    %v9097 = vpop.f32.mrf.mxu0
    %v9098 = vadd.f32 %v9009, %v9097
    %v9099 = vpop.f32.mrf.mxu0
    %v9100 = vadd.f32 %v9011, %v9099
    %9101 = vmatmul.bf16.gmra.mxu0 %v7769
    %v9102 = vpop.f32.mrf.mxu0
    %v9103 = vadd.f32 %v9014, %v9102
    %v9104 = vpop.f32.mrf.mxu0
    %v9105 = vadd.f32 %v9016, %v9104
    %9106 = vmatmul.bf16.gmra.mxu0 %v7785
    %v9107 = vpop.f32.mrf.mxu0
    %v9108 = vadd.f32 %v9019, %v9107
    %v9109 = vpop.f32.mrf.mxu0
    %v9110 = vadd.f32 %v9021, %v9109
    %9111 = vmatmul.bf16.gmra.mxu0 %v7801
    %v9112 = vpop.f32.mrf.mxu0
    %v9113 = vadd.f32 %v9024, %v9112
    %v9114 = vpop.f32.mrf.mxu0
    %v9115 = vadd.f32 %v9026, %v9114
    %9116 = vdwg.mxu0
    %9117 = vmatpush.bf16.msra.mxu0 %v8382
    %9118 = vmatpush.bf16.msra.mxu0 %v8381
    %9119 = vmatpush.bf16.msra.mxu0 %v8380
    %9120 = vmatpush.bf16.msra.mxu0 %v8379
    %9121 = vmatpush.bf16.msra.mxu0 %v8378
    %9122 = vmatpush.bf16.msra.mxu0 %v8377
    %9123 = vmatpush.bf16.msra.mxu0 %v8376
    %9124 = vmatpush.bf16.msra.mxu0 %v8375
    %9125 = vmatmul.bf16.gmra.mxu0 %v7562
    %v9126 = vpop.f32.mrf.mxu0
    %v9127 = vadd.f32 %v9038, %v9126
    %v9128 = vpop.f32.mrf.mxu0
    %v9129 = vadd.f32 %v9040, %v9128
    %9130 = vmatmul.bf16.gmra.mxu0 %v7578
    %v9131 = vpop.f32.mrf.mxu0
    %v9132 = vadd.f32 %v9043, %v9131
    %v9133 = vpop.f32.mrf.mxu0
    %v9134 = vadd.f32 %v9045, %v9133
    %9135 = vmatmul.bf16.gmra.mxu0 %v7594
    %v9136 = vpop.f32.mrf.mxu0
    %v9137 = vadd.f32 %v9048, %v9136
    %v9138 = vpop.f32.mrf.mxu0
    %v9139 = vadd.f32 %v9050, %v9138
    %9140 = vmatmul.bf16.gmra.mxu0 %v7610
    %v9141 = vpop.f32.mrf.mxu0
    %v9142 = vadd.f32 %v9053, %v9141
    %v9143 = vpop.f32.mrf.mxu0
    %v9144 = vadd.f32 %v9055, %v9143
    %9145 = vmatmul.bf16.gmra.mxu0 %v7626
    %v9146 = vpop.f32.mrf.mxu0
    %v9147 = vadd.f32 %v9058, %v9146
    %v9148 = vpop.f32.mrf.mxu0
    %v9149 = vadd.f32 %v9060, %v9148
    %9150 = vmatmul.bf16.gmra.mxu0 %v7642
    %v9151 = vpop.f32.mrf.mxu0
    %v9152 = vadd.f32 %v9063, %v9151
    %v9153 = vpop.f32.mrf.mxu0
    %v9154 = vadd.f32 %v9065, %v9153
    %9155 = vmatmul.bf16.gmra.mxu0 %v7658
    %v9156 = vpop.f32.mrf.mxu0
    %v9157 = vadd.f32 %v9068, %v9156
    %v9158 = vpop.f32.mrf.mxu0
    %v9159 = vadd.f32 %v9070, %v9158
    %9160 = vmatmul.bf16.gmra.mxu0 %v7674
    %v9161 = vpop.f32.mrf.mxu0
    %v9162 = vadd.f32 %v9073, %v9161
    %v9163 = vpop.f32.mrf.mxu0
    %v9164 = vadd.f32 %v9075, %v9163
    %9165 = vmatmul.bf16.gmra.mxu0 %v7690
    %v9166 = vpop.f32.mrf.mxu0
    %v9167 = vadd.f32 %v9078, %v9166
    %v9168 = vpop.f32.mrf.mxu0
    %v9169 = vadd.f32 %v9080, %v9168
    %9170 = vmatmul.bf16.gmra.mxu0 %v7706
    %v9171 = vpop.f32.mrf.mxu0
    %v9172 = vadd.f32 %v9083, %v9171
    %v9173 = vpop.f32.mrf.mxu0
    %v9174 = vadd.f32 %v9085, %v9173
    %9175 = vmatmul.bf16.gmra.mxu0 %v7722
    %v9176 = vpop.f32.mrf.mxu0
    %v9177 = vadd.f32 %v9088, %v9176
    %v9178 = vpop.f32.mrf.mxu0
    %v9179 = vadd.f32 %v9090, %v9178
    %9180 = vmatmul.bf16.gmra.mxu0 %v7738
    %v9181 = vpop.f32.mrf.mxu0
    %v9182 = vadd.f32 %v9093, %v9181
    %v9183 = vpop.f32.mrf.mxu0
    %v9184 = vadd.f32 %v9095, %v9183
    %9185 = vmatmul.bf16.gmra.mxu0 %v7754
    %v9186 = vpop.f32.mrf.mxu0
    %v9187 = vadd.f32 %v9098, %v9186
    %v9188 = vpop.f32.mrf.mxu0
    %v9189 = vadd.f32 %v9100, %v9188
    %9190 = vmatmul.bf16.gmra.mxu0 %v7770
    %v9191 = vpop.f32.mrf.mxu0
    %v9192 = vadd.f32 %v9103, %v9191
    %v9193 = vpop.f32.mrf.mxu0
    %v9194 = vadd.f32 %v9105, %v9193
    %9195 = vmatmul.bf16.gmra.mxu0 %v7786
    %v9196 = vpop.f32.mrf.mxu0
    %v9197 = vadd.f32 %v9108, %v9196
    %v9198 = vpop.f32.mrf.mxu0
    %v9199 = vadd.f32 %v9110, %v9198
    %9200 = vmatmul.bf16.gmra.mxu0 %v7802
    %v9201 = vpop.f32.mrf.mxu0
    %v9202 = vadd.f32 %v9113, %v9201
    %v9203 = vpop.f32.mrf.mxu0
    %v9204 = vadd.f32 %v9115, %v9203
    %9205 = vdwg.mxu0
    %9206 = vmatpush.bf16.msra.mxu0 %v8390
    %9207 = vmatpush.bf16.msra.mxu0 %v8389
    %9208 = vmatpush.bf16.msra.mxu0 %v8388
    %9209 = vmatpush.bf16.msra.mxu0 %v8387
    %9210 = vmatpush.bf16.msra.mxu0 %v8386
    %9211 = vmatpush.bf16.msra.mxu0 %v8385
    %9212 = vmatpush.bf16.msra.mxu0 %v8384
    %9213 = vmatpush.bf16.msra.mxu0 %v8383
    %9214 = vmatmul.bf16.gmra.mxu0 %v7563
    %v9215 = vpop.f32.mrf.mxu0
    %v9216 = vadd.f32 %v9127, %v9215
    %v9217 = vpop.f32.mrf.mxu0
    %v9218 = vadd.f32 %v9129, %v9217
    %9219 = vmatmul.bf16.gmra.mxu0 %v7579
    %v9220 = vpop.f32.mrf.mxu0
    %v9221 = vadd.f32 %v9132, %v9220
    %v9222 = vpop.f32.mrf.mxu0
    %v9223 = vadd.f32 %v9134, %v9222
    %9224 = vmatmul.bf16.gmra.mxu0 %v7595
    %v9225 = vpop.f32.mrf.mxu0
    %v9226 = vadd.f32 %v9137, %v9225
    %v9227 = vpop.f32.mrf.mxu0
    %v9228 = vadd.f32 %v9139, %v9227
    %9229 = vmatmul.bf16.gmra.mxu0 %v7611
    %v9230 = vpop.f32.mrf.mxu0
    %v9231 = vadd.f32 %v9142, %v9230
    %v9232 = vpop.f32.mrf.mxu0
    %v9233 = vadd.f32 %v9144, %v9232
    %9234 = vmatmul.bf16.gmra.mxu0 %v7627
    %v9235 = vpop.f32.mrf.mxu0
    %v9236 = vadd.f32 %v9147, %v9235
    %v9237 = vpop.f32.mrf.mxu0
    %v9238 = vadd.f32 %v9149, %v9237
    %9239 = vmatmul.bf16.gmra.mxu0 %v7643
    %v9240 = vpop.f32.mrf.mxu0
    %v9241 = vadd.f32 %v9152, %v9240
    %v9242 = vpop.f32.mrf.mxu0
    %v9243 = vadd.f32 %v9154, %v9242
    %9244 = vmatmul.bf16.gmra.mxu0 %v7659
    %v9245 = vpop.f32.mrf.mxu0
    %v9246 = vadd.f32 %v9157, %v9245
    %v9247 = vpop.f32.mrf.mxu0
    %v9248 = vadd.f32 %v9159, %v9247
    %9249 = vmatmul.bf16.gmra.mxu0 %v7675
    %v9250 = vpop.f32.mrf.mxu0
    %v9251 = vadd.f32 %v9162, %v9250
    %v9252 = vpop.f32.mrf.mxu0
    %v9253 = vadd.f32 %v9164, %v9252
    %9254 = vmatmul.bf16.gmra.mxu0 %v7691
    %v9255 = vpop.f32.mrf.mxu0
    %v9256 = vadd.f32 %v9167, %v9255
    %v9257 = vpop.f32.mrf.mxu0
    %v9258 = vadd.f32 %v9169, %v9257
    %9259 = vmatmul.bf16.gmra.mxu0 %v7707
    %v9260 = vpop.f32.mrf.mxu0
    %v9261 = vadd.f32 %v9172, %v9260
    %v9262 = vpop.f32.mrf.mxu0
    %v9263 = vadd.f32 %v9174, %v9262
    %9264 = vmatmul.bf16.gmra.mxu0 %v7723
    %v9265 = vpop.f32.mrf.mxu0
    %v9266 = vadd.f32 %v9177, %v9265
    %v9267 = vpop.f32.mrf.mxu0
    %v9268 = vadd.f32 %v9179, %v9267
    %9269 = vmatmul.bf16.gmra.mxu0 %v7739
    %v9270 = vpop.f32.mrf.mxu0
    %v9271 = vadd.f32 %v9182, %v9270
    %v9272 = vpop.f32.mrf.mxu0
    %v9273 = vadd.f32 %v9184, %v9272
    %9274 = vmatmul.bf16.gmra.mxu0 %v7755
    %v9275 = vpop.f32.mrf.mxu0
    %v9276 = vadd.f32 %v9187, %v9275
    %v9277 = vpop.f32.mrf.mxu0
    %v9278 = vadd.f32 %v9189, %v9277
    %9279 = vmatmul.bf16.gmra.mxu0 %v7771
    %v9280 = vpop.f32.mrf.mxu0
    %v9281 = vadd.f32 %v9192, %v9280
    %v9282 = vpop.f32.mrf.mxu0
    %v9283 = vadd.f32 %v9194, %v9282
    %9284 = vmatmul.bf16.gmra.mxu0 %v7787
    %v9285 = vpop.f32.mrf.mxu0
    %v9286 = vadd.f32 %v9197, %v9285
    %v9287 = vpop.f32.mrf.mxu0
    %v9288 = vadd.f32 %v9199, %v9287
    %9289 = vmatmul.bf16.gmra.mxu0 %v7803
    %v9290 = vpop.f32.mrf.mxu0
    %v9291 = vadd.f32 %v9202, %v9290
    %v9292 = vpop.f32.mrf.mxu0
    %v9293 = vadd.f32 %v9204, %v9292
    %9294 = vdwg.mxu0
    %9295 = vmatpush.bf16.msra.mxu0 %v8398
    %9296 = vmatpush.bf16.msra.mxu0 %v8397
    %9297 = vmatpush.bf16.msra.mxu0 %v8396
    %9298 = vmatpush.bf16.msra.mxu0 %v8395
    %9299 = vmatpush.bf16.msra.mxu0 %v8394
    %9300 = vmatpush.bf16.msra.mxu0 %v8393
    %9301 = vmatpush.bf16.msra.mxu0 %v8392
    %9302 = vmatpush.bf16.msra.mxu0 %v8391
    %9303 = vmatmul.bf16.gmra.mxu0 %v7564
    %v9304 = vpop.f32.mrf.mxu0
    %v9305 = vadd.f32 %v9216, %v9304
    %v9306 = vpop.f32.mrf.mxu0
    %v9307 = vadd.f32 %v9218, %v9306
    %9308 = vmatmul.bf16.gmra.mxu0 %v7580
    %v9309 = vpop.f32.mrf.mxu0
    %v9310 = vadd.f32 %v9221, %v9309
    %v9311 = vpop.f32.mrf.mxu0
    %v9312 = vadd.f32 %v9223, %v9311
    %9313 = vmatmul.bf16.gmra.mxu0 %v7596
    %v9314 = vpop.f32.mrf.mxu0
    %v9315 = vadd.f32 %v9226, %v9314
    %v9316 = vpop.f32.mrf.mxu0
    %v9317 = vadd.f32 %v9228, %v9316
    %9318 = vmatmul.bf16.gmra.mxu0 %v7612
    %v9319 = vpop.f32.mrf.mxu0
    %v9320 = vadd.f32 %v9231, %v9319
    %v9321 = vpop.f32.mrf.mxu0
    %v9322 = vadd.f32 %v9233, %v9321
    %9323 = vmatmul.bf16.gmra.mxu0 %v7628
    %v9324 = vpop.f32.mrf.mxu0
    %v9325 = vadd.f32 %v9236, %v9324
    %v9326 = vpop.f32.mrf.mxu0
    %v9327 = vadd.f32 %v9238, %v9326
    %9328 = vmatmul.bf16.gmra.mxu0 %v7644
    %v9329 = vpop.f32.mrf.mxu0
    %v9330 = vadd.f32 %v9241, %v9329
    %v9331 = vpop.f32.mrf.mxu0
    %v9332 = vadd.f32 %v9243, %v9331
    %9333 = vmatmul.bf16.gmra.mxu0 %v7660
    %v9334 = vpop.f32.mrf.mxu0
    %v9335 = vadd.f32 %v9246, %v9334
    %v9336 = vpop.f32.mrf.mxu0
    %v9337 = vadd.f32 %v9248, %v9336
    %9338 = vmatmul.bf16.gmra.mxu0 %v7676
    %v9339 = vpop.f32.mrf.mxu0
    %v9340 = vadd.f32 %v9251, %v9339
    %v9341 = vpop.f32.mrf.mxu0
    %v9342 = vadd.f32 %v9253, %v9341
    %9343 = vmatmul.bf16.gmra.mxu0 %v7692
    %v9344 = vpop.f32.mrf.mxu0
    %v9345 = vadd.f32 %v9256, %v9344
    %v9346 = vpop.f32.mrf.mxu0
    %v9347 = vadd.f32 %v9258, %v9346
    %9348 = vmatmul.bf16.gmra.mxu0 %v7708
    %v9349 = vpop.f32.mrf.mxu0
    %v9350 = vadd.f32 %v9261, %v9349
    %v9351 = vpop.f32.mrf.mxu0
    %v9352 = vadd.f32 %v9263, %v9351
    %9353 = vmatmul.bf16.gmra.mxu0 %v7724
    %v9354 = vpop.f32.mrf.mxu0
    %v9355 = vadd.f32 %v9266, %v9354
    %v9356 = vpop.f32.mrf.mxu0
    %v9357 = vadd.f32 %v9268, %v9356
    %9358 = vmatmul.bf16.gmra.mxu0 %v7740
    %v9359 = vpop.f32.mrf.mxu0
    %v9360 = vadd.f32 %v9271, %v9359
    %v9361 = vpop.f32.mrf.mxu0
    %v9362 = vadd.f32 %v9273, %v9361
    %9363 = vmatmul.bf16.gmra.mxu0 %v7756
    %v9364 = vpop.f32.mrf.mxu0
    %v9365 = vadd.f32 %v9276, %v9364
    %v9366 = vpop.f32.mrf.mxu0
    %v9367 = vadd.f32 %v9278, %v9366
    %9368 = vmatmul.bf16.gmra.mxu0 %v7772
    %v9369 = vpop.f32.mrf.mxu0
    %v9370 = vadd.f32 %v9281, %v9369
    %v9371 = vpop.f32.mrf.mxu0
    %v9372 = vadd.f32 %v9283, %v9371
    %9373 = vmatmul.bf16.gmra.mxu0 %v7788
    %v9374 = vpop.f32.mrf.mxu0
    %v9375 = vadd.f32 %v9286, %v9374
    %v9376 = vpop.f32.mrf.mxu0
    %v9377 = vadd.f32 %v9288, %v9376
    %9378 = vmatmul.bf16.gmra.mxu0 %v7804
    %v9379 = vpop.f32.mrf.mxu0
    %v9380 = vadd.f32 %v9291, %v9379
    %v9381 = vpop.f32.mrf.mxu0
    %v9382 = vadd.f32 %v9293, %v9381
    %9383 = vdwg.mxu0
    %9384 = vmatpush.bf16.msra.mxu0 %v8406
    %9385 = vmatpush.bf16.msra.mxu0 %v8405
    %9386 = vmatpush.bf16.msra.mxu0 %v8404
    %9387 = vmatpush.bf16.msra.mxu0 %v8403
    %9388 = vmatpush.bf16.msra.mxu0 %v8402
    %9389 = vmatpush.bf16.msra.mxu0 %v8401
    %9390 = vmatpush.bf16.msra.mxu0 %v8400
    %9391 = vmatpush.bf16.msra.mxu0 %v8399
    %9392 = vmatmul.bf16.gmra.mxu0 %v7565
    %v9393 = vpop.f32.mrf.mxu0
    %v9394 = vadd.f32 %v9305, %v9393
    %v9395 = vpop.f32.mrf.mxu0
    %v9396 = vadd.f32 %v9307, %v9395
    %9397 = vmatmul.bf16.gmra.mxu0 %v7581
    %v9398 = vpop.f32.mrf.mxu0
    %v9399 = vadd.f32 %v9310, %v9398
    %v9400 = vpop.f32.mrf.mxu0
    %v9401 = vadd.f32 %v9312, %v9400
    %9402 = vmatmul.bf16.gmra.mxu0 %v7597
    %v9403 = vpop.f32.mrf.mxu0
    %v9404 = vadd.f32 %v9315, %v9403
    %v9405 = vpop.f32.mrf.mxu0
    %v9406 = vadd.f32 %v9317, %v9405
    %9407 = vmatmul.bf16.gmra.mxu0 %v7613
    %v9408 = vpop.f32.mrf.mxu0
    %v9409 = vadd.f32 %v9320, %v9408
    %v9410 = vpop.f32.mrf.mxu0
    %v9411 = vadd.f32 %v9322, %v9410
    %9412 = vmatmul.bf16.gmra.mxu0 %v7629
    %v9413 = vpop.f32.mrf.mxu0
    %v9414 = vadd.f32 %v9325, %v9413
    %v9415 = vpop.f32.mrf.mxu0
    %v9416 = vadd.f32 %v9327, %v9415
    %9417 = vmatmul.bf16.gmra.mxu0 %v7645
    %v9418 = vpop.f32.mrf.mxu0
    %v9419 = vadd.f32 %v9330, %v9418
    %v9420 = vpop.f32.mrf.mxu0
    %v9421 = vadd.f32 %v9332, %v9420
    %9422 = vmatmul.bf16.gmra.mxu0 %v7661
    %v9423 = vpop.f32.mrf.mxu0
    %v9424 = vadd.f32 %v9335, %v9423
    %v9425 = vpop.f32.mrf.mxu0
    %v9426 = vadd.f32 %v9337, %v9425
    %9427 = vmatmul.bf16.gmra.mxu0 %v7677
    %v9428 = vpop.f32.mrf.mxu0
    %v9429 = vadd.f32 %v9340, %v9428
    %v9430 = vpop.f32.mrf.mxu0
    %v9431 = vadd.f32 %v9342, %v9430
    %9432 = vmatmul.bf16.gmra.mxu0 %v7693
    %v9433 = vpop.f32.mrf.mxu0
    %v9434 = vadd.f32 %v9345, %v9433
    %v9435 = vpop.f32.mrf.mxu0
    %v9436 = vadd.f32 %v9347, %v9435
    %9437 = vmatmul.bf16.gmra.mxu0 %v7709
    %v9438 = vpop.f32.mrf.mxu0
    %v9439 = vadd.f32 %v9350, %v9438
    %v9440 = vpop.f32.mrf.mxu0
    %v9441 = vadd.f32 %v9352, %v9440
    %9442 = vmatmul.bf16.gmra.mxu0 %v7725
    %v9443 = vpop.f32.mrf.mxu0
    %v9444 = vadd.f32 %v9355, %v9443
    %v9445 = vpop.f32.mrf.mxu0
    %v9446 = vadd.f32 %v9357, %v9445
    %9447 = vmatmul.bf16.gmra.mxu0 %v7741
    %v9448 = vpop.f32.mrf.mxu0
    %v9449 = vadd.f32 %v9360, %v9448
    %v9450 = vpop.f32.mrf.mxu0
    %v9451 = vadd.f32 %v9362, %v9450
    %9452 = vmatmul.bf16.gmra.mxu0 %v7757
    %v9453 = vpop.f32.mrf.mxu0
    %v9454 = vadd.f32 %v9365, %v9453
    %v9455 = vpop.f32.mrf.mxu0
    %v9456 = vadd.f32 %v9367, %v9455
    %9457 = vmatmul.bf16.gmra.mxu0 %v7773
    %v9458 = vpop.f32.mrf.mxu0
    %v9459 = vadd.f32 %v9370, %v9458
    %v9460 = vpop.f32.mrf.mxu0
    %v9461 = vadd.f32 %v9372, %v9460
    %9462 = vmatmul.bf16.gmra.mxu0 %v7789
    %v9463 = vpop.f32.mrf.mxu0
    %v9464 = vadd.f32 %v9375, %v9463
    %v9465 = vpop.f32.mrf.mxu0
    %v9466 = vadd.f32 %v9377, %v9465
    %9467 = vmatmul.bf16.gmra.mxu0 %v7805
    %v9468 = vpop.f32.mrf.mxu0
    %v9469 = vadd.f32 %v9380, %v9468
    %v9470 = vpop.f32.mrf.mxu0
    %v9471 = vadd.f32 %v9382, %v9470
    %9472 = vdwg.mxu0
    %9473 = vmatpush.bf16.msra.mxu0 %v8414
    %9474 = vmatpush.bf16.msra.mxu0 %v8413
    %9475 = vmatpush.bf16.msra.mxu0 %v8412
    %9476 = vmatpush.bf16.msra.mxu0 %v8411
    %9477 = vmatpush.bf16.msra.mxu0 %v8410
    %9478 = vmatpush.bf16.msra.mxu0 %v8409
    %9479 = vmatpush.bf16.msra.mxu0 %v8408
    %9480 = vmatpush.bf16.msra.mxu0 %v8407
    %9481 = vmatmul.bf16.gmra.mxu0 %v7566
    %v9482 = vpop.f32.mrf.mxu0
    %v9483 = vadd.f32 %v9394, %v9482
    %v9484 = vpop.f32.mrf.mxu0
    %v9485 = vadd.f32 %v9396, %v9484
    %9486 = vmatmul.bf16.gmra.mxu0 %v7582
    %v9487 = vpop.f32.mrf.mxu0
    %v9488 = vadd.f32 %v9399, %v9487
    %v9489 = vpop.f32.mrf.mxu0
    %v9490 = vadd.f32 %v9401, %v9489
    %9491 = vmatmul.bf16.gmra.mxu0 %v7598
    %v9492 = vpop.f32.mrf.mxu0
    %v9493 = vadd.f32 %v9404, %v9492
    %v9494 = vpop.f32.mrf.mxu0
    %v9495 = vadd.f32 %v9406, %v9494
    %9496 = vmatmul.bf16.gmra.mxu0 %v7614
    %v9497 = vpop.f32.mrf.mxu0
    %v9498 = vadd.f32 %v9409, %v9497
    %v9499 = vpop.f32.mrf.mxu0
    %v9500 = vadd.f32 %v9411, %v9499
    %9501 = vmatmul.bf16.gmra.mxu0 %v7630
    %v9502 = vpop.f32.mrf.mxu0
    %v9503 = vadd.f32 %v9414, %v9502
    %v9504 = vpop.f32.mrf.mxu0
    %v9505 = vadd.f32 %v9416, %v9504
    %9506 = vmatmul.bf16.gmra.mxu0 %v7646
    %v9507 = vpop.f32.mrf.mxu0
    %v9508 = vadd.f32 %v9419, %v9507
    %v9509 = vpop.f32.mrf.mxu0
    %v9510 = vadd.f32 %v9421, %v9509
    %9511 = vmatmul.bf16.gmra.mxu0 %v7662
    %v9512 = vpop.f32.mrf.mxu0
    %v9513 = vadd.f32 %v9424, %v9512
    %v9514 = vpop.f32.mrf.mxu0
    %v9515 = vadd.f32 %v9426, %v9514
    %9516 = vmatmul.bf16.gmra.mxu0 %v7678
    %v9517 = vpop.f32.mrf.mxu0
    %v9518 = vadd.f32 %v9429, %v9517
    %v9519 = vpop.f32.mrf.mxu0
    %v9520 = vadd.f32 %v9431, %v9519
    %9521 = vmatmul.bf16.gmra.mxu0 %v7694
    %v9522 = vpop.f32.mrf.mxu0
    %v9523 = vadd.f32 %v9434, %v9522
    %v9524 = vpop.f32.mrf.mxu0
    %v9525 = vadd.f32 %v9436, %v9524
    %9526 = vmatmul.bf16.gmra.mxu0 %v7710
    %v9527 = vpop.f32.mrf.mxu0
    %v9528 = vadd.f32 %v9439, %v9527
    %v9529 = vpop.f32.mrf.mxu0
    %v9530 = vadd.f32 %v9441, %v9529
    %9531 = vmatmul.bf16.gmra.mxu0 %v7726
    %v9532 = vpop.f32.mrf.mxu0
    %v9533 = vadd.f32 %v9444, %v9532
    %v9534 = vpop.f32.mrf.mxu0
    %v9535 = vadd.f32 %v9446, %v9534
    %9536 = vmatmul.bf16.gmra.mxu0 %v7742
    %v9537 = vpop.f32.mrf.mxu0
    %v9538 = vadd.f32 %v9449, %v9537
    %v9539 = vpop.f32.mrf.mxu0
    %v9540 = vadd.f32 %v9451, %v9539
    %9541 = vmatmul.bf16.gmra.mxu0 %v7758
    %v9542 = vpop.f32.mrf.mxu0
    %v9543 = vadd.f32 %v9454, %v9542
    %v9544 = vpop.f32.mrf.mxu0
    %v9545 = vadd.f32 %v9456, %v9544
    %9546 = vmatmul.bf16.gmra.mxu0 %v7774
    %v9547 = vpop.f32.mrf.mxu0
    %v9548 = vadd.f32 %v9459, %v9547
    %v9549 = vpop.f32.mrf.mxu0
    %v9550 = vadd.f32 %v9461, %v9549
    %9551 = vmatmul.bf16.gmra.mxu0 %v7790
    %v9552 = vpop.f32.mrf.mxu0
    %v9553 = vadd.f32 %v9464, %v9552
    %v9554 = vpop.f32.mrf.mxu0
    %v9555 = vadd.f32 %v9466, %v9554
    %9556 = vmatmul.bf16.gmra.mxu0 %v7806
    %v9557 = vpop.f32.mrf.mxu0
    %v9558 = vadd.f32 %v9469, %v9557
    %v9559 = vpop.f32.mrf.mxu0
    %v9560 = vadd.f32 %v9471, %v9559
    %9561 = vdwg.mxu0
    %9562 = vmatpush.bf16.msra.mxu0 %v8422
    %9563 = vmatpush.bf16.msra.mxu0 %v8421
    %9564 = vmatpush.bf16.msra.mxu0 %v8420
    %9565 = vmatpush.bf16.msra.mxu0 %v8419
    %9566 = vmatpush.bf16.msra.mxu0 %v8418
    %9567 = vmatpush.bf16.msra.mxu0 %v8417
    %9568 = vmatpush.bf16.msra.mxu0 %v8416
    %9569 = vmatpush.bf16.msra.mxu0 %v8415
    %9570 = vmatmul.bf16.gmra.mxu0 %v7567
    %v9571 = vpop.f32.mrf.mxu0
    %v9572 = vadd.f32 %v9483, %v9571
    %v9573 = vpop.f32.mrf.mxu0
    %v9574 = vadd.f32 %v9485, %v9573
    %9575 = vmatmul.bf16.gmra.mxu0 %v7583
    %v9576 = vpop.f32.mrf.mxu0
    %v9577 = vadd.f32 %v9488, %v9576
    %v9578 = vpop.f32.mrf.mxu0
    %v9579 = vadd.f32 %v9490, %v9578
    %9580 = vmatmul.bf16.gmra.mxu0 %v7599
    %v9581 = vpop.f32.mrf.mxu0
    %v9582 = vadd.f32 %v9493, %v9581
    %v9583 = vpop.f32.mrf.mxu0
    %v9584 = vadd.f32 %v9495, %v9583
    %9585 = vmatmul.bf16.gmra.mxu0 %v7615
    %v9586 = vpop.f32.mrf.mxu0
    %v9587 = vadd.f32 %v9498, %v9586
    %v9588 = vpop.f32.mrf.mxu0
    %v9589 = vadd.f32 %v9500, %v9588
    %9590 = vmatmul.bf16.gmra.mxu0 %v7631
    %v9591 = vpop.f32.mrf.mxu0
    %v9592 = vadd.f32 %v9503, %v9591
    %v9593 = vpop.f32.mrf.mxu0
    %v9594 = vadd.f32 %v9505, %v9593
    %9595 = vmatmul.bf16.gmra.mxu0 %v7647
    %v9596 = vpop.f32.mrf.mxu0
    %v9597 = vadd.f32 %v9508, %v9596
    %v9598 = vpop.f32.mrf.mxu0
    %v9599 = vadd.f32 %v9510, %v9598
    %9600 = vmatmul.bf16.gmra.mxu0 %v7663
    %v9601 = vpop.f32.mrf.mxu0
    %v9602 = vadd.f32 %v9513, %v9601
    %v9603 = vpop.f32.mrf.mxu0
    %v9604 = vadd.f32 %v9515, %v9603
    %9605 = vmatmul.bf16.gmra.mxu0 %v7679
    %v9606 = vpop.f32.mrf.mxu0
    %v9607 = vadd.f32 %v9518, %v9606
    %v9608 = vpop.f32.mrf.mxu0
    %v9609 = vadd.f32 %v9520, %v9608
    %9610 = vmatmul.bf16.gmra.mxu0 %v7695
    %v9611 = vpop.f32.mrf.mxu0
    %v9612 = vadd.f32 %v9523, %v9611
    %v9613 = vpop.f32.mrf.mxu0
    %v9614 = vadd.f32 %v9525, %v9613
    %9615 = vmatmul.bf16.gmra.mxu0 %v7711
    %v9616 = vpop.f32.mrf.mxu0
    %v9617 = vadd.f32 %v9528, %v9616
    %v9618 = vpop.f32.mrf.mxu0
    %v9619 = vadd.f32 %v9530, %v9618
    %9620 = vmatmul.bf16.gmra.mxu0 %v7727
    %v9621 = vpop.f32.mrf.mxu0
    %v9622 = vadd.f32 %v9533, %v9621
    %v9623 = vpop.f32.mrf.mxu0
    %v9624 = vadd.f32 %v9535, %v9623
    %9625 = vmatmul.bf16.gmra.mxu0 %v7743
    %v9626 = vpop.f32.mrf.mxu0
    %v9627 = vadd.f32 %v9538, %v9626
    %v9628 = vpop.f32.mrf.mxu0
    %v9629 = vadd.f32 %v9540, %v9628
    %9630 = vmatmul.bf16.gmra.mxu0 %v7759
    %v9631 = vpop.f32.mrf.mxu0
    %v9632 = vadd.f32 %v9543, %v9631
    %v9633 = vpop.f32.mrf.mxu0
    %v9634 = vadd.f32 %v9545, %v9633
    %9635 = vmatmul.bf16.gmra.mxu0 %v7775
    %v9636 = vpop.f32.mrf.mxu0
    %v9637 = vadd.f32 %v9548, %v9636
    %v9638 = vpop.f32.mrf.mxu0
    %v9639 = vadd.f32 %v9550, %v9638
    %9640 = vmatmul.bf16.gmra.mxu0 %v7791
    %v9641 = vpop.f32.mrf.mxu0
    %v9642 = vadd.f32 %v9553, %v9641
    %v9643 = vpop.f32.mrf.mxu0
    %v9644 = vadd.f32 %v9555, %v9643
    %9645 = vmatmul.bf16.gmra.mxu0 %v7807
    %v9646 = vpop.f32.mrf.mxu0
    %v9647 = vadd.f32 %v9558, %v9646
    %v9648 = vpop.f32.mrf.mxu0
    %v9649 = vadd.f32 %v9560, %v9648
    %9650 = vdwg.mxu0
    %9651 = vmatpush.bf16.msra.mxu0 %v8430
    %9652 = vmatpush.bf16.msra.mxu0 %v8429
    %9653 = vmatpush.bf16.msra.mxu0 %v8428
    %9654 = vmatpush.bf16.msra.mxu0 %v8427
    %9655 = vmatpush.bf16.msra.mxu0 %v8426
    %9656 = vmatpush.bf16.msra.mxu0 %v8425
    %9657 = vmatpush.bf16.msra.mxu0 %v8424
    %9658 = vmatpush.bf16.msra.mxu0 %v8423
    %9659 = vmatmul.bf16.gmra.mxu0 %v7568
    %v9660 = vpop.f32.mrf.mxu0
    %v9661 = vadd.f32 %v9572, %v9660
    %v9662 = vpop.f32.mrf.mxu0
    %v9663 = vadd.f32 %v9574, %v9662
    %9664 = vmatmul.bf16.gmra.mxu0 %v7584
    %v9665 = vpop.f32.mrf.mxu0
    %v9666 = vadd.f32 %v9577, %v9665
    %v9667 = vpop.f32.mrf.mxu0
    %v9668 = vadd.f32 %v9579, %v9667
    %9669 = vmatmul.bf16.gmra.mxu0 %v7600
    %v9670 = vpop.f32.mrf.mxu0
    %v9671 = vadd.f32 %v9582, %v9670
    %v9672 = vpop.f32.mrf.mxu0
    %v9673 = vadd.f32 %v9584, %v9672
    %9674 = vmatmul.bf16.gmra.mxu0 %v7616
    %v9675 = vpop.f32.mrf.mxu0
    %v9676 = vadd.f32 %v9587, %v9675
    %v9677 = vpop.f32.mrf.mxu0
    %v9678 = vadd.f32 %v9589, %v9677
    %9679 = vmatmul.bf16.gmra.mxu0 %v7632
    %v9680 = vpop.f32.mrf.mxu0
    %v9681 = vadd.f32 %v9592, %v9680
    %v9682 = vpop.f32.mrf.mxu0
    %v9683 = vadd.f32 %v9594, %v9682
    %9684 = vmatmul.bf16.gmra.mxu0 %v7648
    %v9685 = vpop.f32.mrf.mxu0
    %v9686 = vadd.f32 %v9597, %v9685
    %v9687 = vpop.f32.mrf.mxu0
    %v9688 = vadd.f32 %v9599, %v9687
    %9689 = vmatmul.bf16.gmra.mxu0 %v7664
    %v9690 = vpop.f32.mrf.mxu0
    %v9691 = vadd.f32 %v9602, %v9690
    %v9692 = vpop.f32.mrf.mxu0
    %v9693 = vadd.f32 %v9604, %v9692
    %9694 = vmatmul.bf16.gmra.mxu0 %v7680
    %v9695 = vpop.f32.mrf.mxu0
    %v9696 = vadd.f32 %v9607, %v9695
    %v9697 = vpop.f32.mrf.mxu0
    %v9698 = vadd.f32 %v9609, %v9697
    %9699 = vmatmul.bf16.gmra.mxu0 %v7696
    %v9700 = vpop.f32.mrf.mxu0
    %v9701 = vadd.f32 %v9612, %v9700
    %v9702 = vpop.f32.mrf.mxu0
    %v9703 = vadd.f32 %v9614, %v9702
    %9704 = vmatmul.bf16.gmra.mxu0 %v7712
    %v9705 = vpop.f32.mrf.mxu0
    %v9706 = vadd.f32 %v9617, %v9705
    %v9707 = vpop.f32.mrf.mxu0
    %v9708 = vadd.f32 %v9619, %v9707
    %9709 = vmatmul.bf16.gmra.mxu0 %v7728
    %v9710 = vpop.f32.mrf.mxu0
    %v9711 = vadd.f32 %v9622, %v9710
    %v9712 = vpop.f32.mrf.mxu0
    %v9713 = vadd.f32 %v9624, %v9712
    %9714 = vmatmul.bf16.gmra.mxu0 %v7744
    %v9715 = vpop.f32.mrf.mxu0
    %v9716 = vadd.f32 %v9627, %v9715
    %v9717 = vpop.f32.mrf.mxu0
    %v9718 = vadd.f32 %v9629, %v9717
    %9719 = vmatmul.bf16.gmra.mxu0 %v7760
    %v9720 = vpop.f32.mrf.mxu0
    %v9721 = vadd.f32 %v9632, %v9720
    %v9722 = vpop.f32.mrf.mxu0
    %v9723 = vadd.f32 %v9634, %v9722
    %9724 = vmatmul.bf16.gmra.mxu0 %v7776
    %v9725 = vpop.f32.mrf.mxu0
    %v9726 = vadd.f32 %v9637, %v9725
    %v9727 = vpop.f32.mrf.mxu0
    %v9728 = vadd.f32 %v9639, %v9727
    %9729 = vmatmul.bf16.gmra.mxu0 %v7792
    %v9730 = vpop.f32.mrf.mxu0
    %v9731 = vadd.f32 %v9642, %v9730
    %v9732 = vpop.f32.mrf.mxu0
    %v9733 = vadd.f32 %v9644, %v9732
    %9734 = vmatmul.bf16.gmra.mxu0 %v7808
    %v9735 = vpop.f32.mrf.mxu0
    %v9736 = vadd.f32 %v9647, %v9735
    %v9737 = vpop.f32.mrf.mxu0
    %v9738 = vadd.f32 %v9649, %v9737
    %9739 = vdwg.mxu0
    %9740 = vmatpush.bf16.msra.mxu0 %v8438
    %9741 = vmatpush.bf16.msra.mxu0 %v8437
    %9742 = vmatpush.bf16.msra.mxu0 %v8436
    %9743 = vmatpush.bf16.msra.mxu0 %v8435
    %9744 = vmatpush.bf16.msra.mxu0 %v8434
    %9745 = vmatpush.bf16.msra.mxu0 %v8433
    %9746 = vmatpush.bf16.msra.mxu0 %v8432
    %9747 = vmatpush.bf16.msra.mxu0 %v8431
    %9748 = vmatmul.bf16.gmra.mxu0 %v7569
    %v9749 = vpop.f32.mrf.mxu0
    %v9750 = vadd.f32 %v9661, %v9749
    %v9751 = vpop.f32.mrf.mxu0
    %v9752 = vadd.f32 %v9663, %v9751
    %9753 = vmatmul.bf16.gmra.mxu0 %v7585
    %v9754 = vpop.f32.mrf.mxu0
    %v9755 = vadd.f32 %v9666, %v9754
    %v9756 = vpop.f32.mrf.mxu0
    %v9757 = vadd.f32 %v9668, %v9756
    %9758 = vmatmul.bf16.gmra.mxu0 %v7601
    %v9759 = vpop.f32.mrf.mxu0
    %v9760 = vadd.f32 %v9671, %v9759
    %v9761 = vpop.f32.mrf.mxu0
    %v9762 = vadd.f32 %v9673, %v9761
    %9763 = vmatmul.bf16.gmra.mxu0 %v7617
    %v9764 = vpop.f32.mrf.mxu0
    %v9765 = vadd.f32 %v9676, %v9764
    %v9766 = vpop.f32.mrf.mxu0
    %v9767 = vadd.f32 %v9678, %v9766
    %9768 = vmatmul.bf16.gmra.mxu0 %v7633
    %v9769 = vpop.f32.mrf.mxu0
    %v9770 = vadd.f32 %v9681, %v9769
    %v9771 = vpop.f32.mrf.mxu0
    %v9772 = vadd.f32 %v9683, %v9771
    %9773 = vmatmul.bf16.gmra.mxu0 %v7649
    %v9774 = vpop.f32.mrf.mxu0
    %v9775 = vadd.f32 %v9686, %v9774
    %v9776 = vpop.f32.mrf.mxu0
    %v9777 = vadd.f32 %v9688, %v9776
    %9778 = vmatmul.bf16.gmra.mxu0 %v7665
    %v9779 = vpop.f32.mrf.mxu0
    %v9780 = vadd.f32 %v9691, %v9779
    %v9781 = vpop.f32.mrf.mxu0
    %v9782 = vadd.f32 %v9693, %v9781
    %9783 = vmatmul.bf16.gmra.mxu0 %v7681
    %v9784 = vpop.f32.mrf.mxu0
    %v9785 = vadd.f32 %v9696, %v9784
    %v9786 = vpop.f32.mrf.mxu0
    %v9787 = vadd.f32 %v9698, %v9786
    %9788 = vmatmul.bf16.gmra.mxu0 %v7697
    %v9789 = vpop.f32.mrf.mxu0
    %v9790 = vadd.f32 %v9701, %v9789
    %v9791 = vpop.f32.mrf.mxu0
    %v9792 = vadd.f32 %v9703, %v9791
    %9793 = vmatmul.bf16.gmra.mxu0 %v7713
    %v9794 = vpop.f32.mrf.mxu0
    %v9795 = vadd.f32 %v9706, %v9794
    %v9796 = vpop.f32.mrf.mxu0
    %v9797 = vadd.f32 %v9708, %v9796
    %9798 = vmatmul.bf16.gmra.mxu0 %v7729
    %v9799 = vpop.f32.mrf.mxu0
    %v9800 = vadd.f32 %v9711, %v9799
    %v9801 = vpop.f32.mrf.mxu0
    %v9802 = vadd.f32 %v9713, %v9801
    %9803 = vmatmul.bf16.gmra.mxu0 %v7745
    %v9804 = vpop.f32.mrf.mxu0
    %v9805 = vadd.f32 %v9716, %v9804
    %v9806 = vpop.f32.mrf.mxu0
    %v9807 = vadd.f32 %v9718, %v9806
    %9808 = vmatmul.bf16.gmra.mxu0 %v7761
    %v9809 = vpop.f32.mrf.mxu0
    %v9810 = vadd.f32 %v9721, %v9809
    %v9811 = vpop.f32.mrf.mxu0
    %v9812 = vadd.f32 %v9723, %v9811
    %9813 = vmatmul.bf16.gmra.mxu0 %v7777
    %v9814 = vpop.f32.mrf.mxu0
    %v9815 = vadd.f32 %v9726, %v9814
    %v9816 = vpop.f32.mrf.mxu0
    %v9817 = vadd.f32 %v9728, %v9816
    %9818 = vmatmul.bf16.gmra.mxu0 %v7793
    %v9819 = vpop.f32.mrf.mxu0
    %v9820 = vadd.f32 %v9731, %v9819
    %v9821 = vpop.f32.mrf.mxu0
    %v9822 = vadd.f32 %v9733, %v9821
    %9823 = vmatmul.bf16.gmra.mxu0 %v7809
    %v9824 = vpop.f32.mrf.mxu0
    %v9825 = vadd.f32 %v9736, %v9824
    %v9826 = vpop.f32.mrf.mxu0
    %v9827 = vadd.f32 %v9738, %v9826
    %9828 = vdwg.mxu0
    %9829 = vmatpush.bf16.msra.mxu0 %v8446
    %9830 = vmatpush.bf16.msra.mxu0 %v8445
    %9831 = vmatpush.bf16.msra.mxu0 %v8444
    %9832 = vmatpush.bf16.msra.mxu0 %v8443
    %9833 = vmatpush.bf16.msra.mxu0 %v8442
    %9834 = vmatpush.bf16.msra.mxu0 %v8441
    %9835 = vmatpush.bf16.msra.mxu0 %v8440
    %9836 = vmatpush.bf16.msra.mxu0 %v8439
    %9837 = vmatmul.bf16.gmra.mxu0 %v7570
    %v9838 = vpop.f32.mrf.mxu0
    %v9839 = vadd.f32 %v9750, %v9838
    %v9840 = vpop.f32.mrf.mxu0
    %v9841 = vadd.f32 %v9752, %v9840
    %9842 = vmatmul.bf16.gmra.mxu0 %v7586
    %v9843 = vpop.f32.mrf.mxu0
    %v9844 = vadd.f32 %v9755, %v9843
    %v9845 = vpop.f32.mrf.mxu0
    %v9846 = vadd.f32 %v9757, %v9845
    %9847 = vmatmul.bf16.gmra.mxu0 %v7602
    %v9848 = vpop.f32.mrf.mxu0
    %v9849 = vadd.f32 %v9760, %v9848
    %v9850 = vpop.f32.mrf.mxu0
    %v9851 = vadd.f32 %v9762, %v9850
    %9852 = vmatmul.bf16.gmra.mxu0 %v7618
    %v9853 = vpop.f32.mrf.mxu0
    %v9854 = vadd.f32 %v9765, %v9853
    %v9855 = vpop.f32.mrf.mxu0
    %v9856 = vadd.f32 %v9767, %v9855
    %9857 = vmatmul.bf16.gmra.mxu0 %v7634
    %v9858 = vpop.f32.mrf.mxu0
    %v9859 = vadd.f32 %v9770, %v9858
    %v9860 = vpop.f32.mrf.mxu0
    %v9861 = vadd.f32 %v9772, %v9860
    %9862 = vmatmul.bf16.gmra.mxu0 %v7650
    %v9863 = vpop.f32.mrf.mxu0
    %v9864 = vadd.f32 %v9775, %v9863
    %v9865 = vpop.f32.mrf.mxu0
    %v9866 = vadd.f32 %v9777, %v9865
    %9867 = vmatmul.bf16.gmra.mxu0 %v7666
    %v9868 = vpop.f32.mrf.mxu0
    %v9869 = vadd.f32 %v9780, %v9868
    %v9870 = vpop.f32.mrf.mxu0
    %v9871 = vadd.f32 %v9782, %v9870
    %9872 = vmatmul.bf16.gmra.mxu0 %v7682
    %v9873 = vpop.f32.mrf.mxu0
    %v9874 = vadd.f32 %v9785, %v9873
    %v9875 = vpop.f32.mrf.mxu0
    %v9876 = vadd.f32 %v9787, %v9875
    %9877 = vmatmul.bf16.gmra.mxu0 %v7698
    %v9878 = vpop.f32.mrf.mxu0
    %v9879 = vadd.f32 %v9790, %v9878
    %v9880 = vpop.f32.mrf.mxu0
    %v9881 = vadd.f32 %v9792, %v9880
    %9882 = vmatmul.bf16.gmra.mxu0 %v7714
    %v9883 = vpop.f32.mrf.mxu0
    %v9884 = vadd.f32 %v9795, %v9883
    %v9885 = vpop.f32.mrf.mxu0
    %v9886 = vadd.f32 %v9797, %v9885
    %9887 = vmatmul.bf16.gmra.mxu0 %v7730
    %v9888 = vpop.f32.mrf.mxu0
    %v9889 = vadd.f32 %v9800, %v9888
    %v9890 = vpop.f32.mrf.mxu0
    %v9891 = vadd.f32 %v9802, %v9890
    %9892 = vmatmul.bf16.gmra.mxu0 %v7746
    %v9893 = vpop.f32.mrf.mxu0
    %v9894 = vadd.f32 %v9805, %v9893
    %v9895 = vpop.f32.mrf.mxu0
    %v9896 = vadd.f32 %v9807, %v9895
    %9897 = vmatmul.bf16.gmra.mxu0 %v7762
    %v9898 = vpop.f32.mrf.mxu0
    %v9899 = vadd.f32 %v9810, %v9898
    %v9900 = vpop.f32.mrf.mxu0
    %v9901 = vadd.f32 %v9812, %v9900
    %9902 = vmatmul.bf16.gmra.mxu0 %v7778
    %v9903 = vpop.f32.mrf.mxu0
    %v9904 = vadd.f32 %v9815, %v9903
    %v9905 = vpop.f32.mrf.mxu0
    %v9906 = vadd.f32 %v9817, %v9905
    %9907 = vmatmul.bf16.gmra.mxu0 %v7794
    %v9908 = vpop.f32.mrf.mxu0
    %v9909 = vadd.f32 %v9820, %v9908
    %v9910 = vpop.f32.mrf.mxu0
    %v9911 = vadd.f32 %v9822, %v9910
    %9912 = vmatmul.bf16.gmra.mxu0 %v7810
    %v9913 = vpop.f32.mrf.mxu0
    %v9914 = vadd.f32 %v9825, %v9913
    %v9915 = vpop.f32.mrf.mxu0
    %v9916 = vadd.f32 %v9827, %v9915
    %9917 = vdwg.mxu0
    %9918 = vmatpush.bf16.msra.mxu0 %v8454
    %9919 = vmatpush.bf16.msra.mxu0 %v8453
    %9920 = vmatpush.bf16.msra.mxu0 %v8452
    %9921 = vmatpush.bf16.msra.mxu0 %v8451
    %9922 = vmatpush.bf16.msra.mxu0 %v8450
    %9923 = vmatpush.bf16.msra.mxu0 %v8449
    %9924 = vmatpush.bf16.msra.mxu0 %v8448
    %9925 = vmatpush.bf16.msra.mxu0 %v8447
    %9926 = vmatmul.bf16.gmra.mxu0 %v7571
    %v9927 = vpop.f32.mrf.mxu0
    %v9928 = vadd.f32 %v9839, %v9927
    %v9929 = vpop.f32.mrf.mxu0
    %v9930 = vadd.f32 %v9841, %v9929
    %9931 = vmatmul.bf16.gmra.mxu0 %v7587
    %v9932 = vpop.f32.mrf.mxu0
    %v9933 = vadd.f32 %v9844, %v9932
    %v9934 = vpop.f32.mrf.mxu0
    %v9935 = vadd.f32 %v9846, %v9934
    %9936 = vmatmul.bf16.gmra.mxu0 %v7603
    %v9937 = vpop.f32.mrf.mxu0
    %v9938 = vadd.f32 %v9849, %v9937
    %v9939 = vpop.f32.mrf.mxu0
    %v9940 = vadd.f32 %v9851, %v9939
    %9941 = vmatmul.bf16.gmra.mxu0 %v7619
    %v9942 = vpop.f32.mrf.mxu0
    %v9943 = vadd.f32 %v9854, %v9942
    %v9944 = vpop.f32.mrf.mxu0
    %v9945 = vadd.f32 %v9856, %v9944
    %9946 = vmatmul.bf16.gmra.mxu0 %v7635
    %v9947 = vpop.f32.mrf.mxu0
    %v9948 = vadd.f32 %v9859, %v9947
    %v9949 = vpop.f32.mrf.mxu0
    %v9950 = vadd.f32 %v9861, %v9949
    %9951 = vmatmul.bf16.gmra.mxu0 %v7651
    %v9952 = vpop.f32.mrf.mxu0
    %v9953 = vadd.f32 %v9864, %v9952
    %v9954 = vpop.f32.mrf.mxu0
    %v9955 = vadd.f32 %v9866, %v9954
    %9956 = vmatmul.bf16.gmra.mxu0 %v7667
    %v9957 = vpop.f32.mrf.mxu0
    %v9958 = vadd.f32 %v9869, %v9957
    %v9959 = vpop.f32.mrf.mxu0
    %v9960 = vadd.f32 %v9871, %v9959
    %9961 = vmatmul.bf16.gmra.mxu0 %v7683
    %v9962 = vpop.f32.mrf.mxu0
    %v9963 = vadd.f32 %v9874, %v9962
    %v9964 = vpop.f32.mrf.mxu0
    %v9965 = vadd.f32 %v9876, %v9964
    %9966 = vmatmul.bf16.gmra.mxu0 %v7699
    %v9967 = vpop.f32.mrf.mxu0
    %v9968 = vadd.f32 %v9879, %v9967
    %v9969 = vpop.f32.mrf.mxu0
    %v9970 = vadd.f32 %v9881, %v9969
    %9971 = vmatmul.bf16.gmra.mxu0 %v7715
    %v9972 = vpop.f32.mrf.mxu0
    %v9973 = vadd.f32 %v9884, %v9972
    %v9974 = vpop.f32.mrf.mxu0
    %v9975 = vadd.f32 %v9886, %v9974
    %9976 = vmatmul.bf16.gmra.mxu0 %v7731
    %v9977 = vpop.f32.mrf.mxu0
    %v9978 = vadd.f32 %v9889, %v9977
    %v9979 = vpop.f32.mrf.mxu0
    %v9980 = vadd.f32 %v9891, %v9979
    %9981 = vmatmul.bf16.gmra.mxu0 %v7747
    %v9982 = vpop.f32.mrf.mxu0
    %v9983 = vadd.f32 %v9894, %v9982
    %v9984 = vpop.f32.mrf.mxu0
    %v9985 = vadd.f32 %v9896, %v9984
    %9986 = vmatmul.bf16.gmra.mxu0 %v7763
    %v9987 = vpop.f32.mrf.mxu0
    %v9988 = vadd.f32 %v9899, %v9987
    %v9989 = vpop.f32.mrf.mxu0
    %v9990 = vadd.f32 %v9901, %v9989
    %9991 = vmatmul.bf16.gmra.mxu0 %v7779
    %v9992 = vpop.f32.mrf.mxu0
    %v9993 = vadd.f32 %v9904, %v9992
    %v9994 = vpop.f32.mrf.mxu0
    %v9995 = vadd.f32 %v9906, %v9994
    %9996 = vmatmul.bf16.gmra.mxu0 %v7795
    %v9997 = vpop.f32.mrf.mxu0
    %v9998 = vadd.f32 %v9909, %v9997
    %v9999 = vpop.f32.mrf.mxu0
    %v10000 = vadd.f32 %v9911, %v9999
    %10001 = vmatmul.bf16.gmra.mxu0 %v7811
    %v10002 = vpop.f32.mrf.mxu0
    %v10003 = vadd.f32 %v9914, %v10002
    %v10004 = vpop.f32.mrf.mxu0
    %v10005 = vadd.f32 %v9916, %v10004
    %10006 = vdwg.mxu0
    %v10007 = vtanh.pop %v9928
    %v10008 = vtanh.pop %v9930
    %v10009 = vtanh.pop %v9933
    %v10010 = vtanh.pop %v9935
    %v10011 = vtanh.pop %v9938
    %v10012 = vtanh.pop %v9940
    %v10013 = vtanh.pop %v9943
    %v10014 = vtanh.pop %v9945
    %v10015 = vtanh.pop %v9948
    %v10016 = vtanh.pop %v9950
    %v10017 = vtanh.pop %v9953
    %v10018 = vtanh.pop %v9955
    %v10019 = vtanh.pop %v9958
    %v10020 = vtanh.pop %v9960
    %v10021 = vtanh.pop %v9963
    %v10022 = vtanh.pop %v9965
    %v10023 = vtanh.pop %v9968
    %v10024 = vtanh.pop %v9970
    %v10025 = vtanh.pop %v9973
    %v10026 = vtanh.pop %v9975
    %v10027 = vtanh.pop %v9978
    %v10028 = vtanh.pop %v9980
    %v10029 = vtanh.pop %v9983
    %v10030 = vtanh.pop %v9985
    %v10031 = vtanh.pop %v9988
    %v10032 = vtanh.pop %v9990
    %v10033 = vtanh.pop %v9993
    %v10034 = vtanh.pop %v9995
    %v10035 = vtanh.pop %v9998
    %v10036 = vtanh.pop %v10000
    %v10037 = vtanh.pop %v10003
    %v10038 = vtanh.pop %v10005
    %v10039 = vpack.c.bf16 %v10007, %v10007
    %v10040 = vpack.c.bf16 %v10008, %v10008
    %v10041 = vpack.c.bf16 %v10009, %v10009
    %v10042 = vpack.c.bf16 %v10010, %v10010
    %v10043 = vpack.c.bf16 %v10011, %v10011
    %v10044 = vpack.c.bf16 %v10012, %v10012
    %v10045 = vpack.c.bf16 %v10013, %v10013
    %v10046 = vpack.c.bf16 %v10014, %v10014
    %v10047 = vpack.c.bf16 %v10015, %v10015
    %v10048 = vpack.c.bf16 %v10016, %v10016
    %v10049 = vpack.c.bf16 %v10017, %v10017
    %v10050 = vpack.c.bf16 %v10018, %v10018
    %v10051 = vpack.c.bf16 %v10019, %v10019
    %v10052 = vpack.c.bf16 %v10020, %v10020
    %v10053 = vpack.c.bf16 %v10021, %v10021
    %v10054 = vpack.c.bf16 %v10022, %v10022
    %v10055 = vpack.c.bf16 %v10023, %v10023
    %v10056 = vpack.c.bf16 %v10024, %v10024
    %v10057 = vpack.c.bf16 %v10025, %v10025
    %v10058 = vpack.c.bf16 %v10026, %v10026
    %v10059 = vpack.c.bf16 %v10027, %v10027
    %v10060 = vpack.c.bf16 %v10028, %v10028
    %v10061 = vpack.c.bf16 %v10029, %v10029
    %v10062 = vpack.c.bf16 %v10030, %v10030
    %v10063 = vpack.c.bf16 %v10031, %v10031
    %v10064 = vpack.c.bf16 %v10032, %v10032
    %v10065 = vpack.c.bf16 %v10033, %v10033
    %v10066 = vpack.c.bf16 %v10034, %v10034
    %v10067 = vpack.c.bf16 %v10035, %v10035
    %v10068 = vpack.c.bf16 %v10036, %v10036
    %v10069 = vpack.c.bf16 %v10037, %v10037
    %v10070 = vpack.c.bf16 %v10038, %v10038
    %10071 = vst [vmem:[#allocation14] sm:$0xf] %v10039
    %10072 = vst [vmem:[#allocation14 + $0x4] sm:$0xf] %v10040
    %10073 = vst [vmem:[#allocation14 + $0x8] sm:$0xf] %v10041
    %10074 = vst [vmem:[#allocation14 + $0xc] sm:$0xf] %v10042
    %10075 = vst [vmem:[#allocation14 + $0x10] sm:$0xf] %v10043
    %10076 = vst [vmem:[#allocation14 + $0x14] sm:$0xf] %v10044
    %10077 = vst [vmem:[#allocation14 + $0x18] sm:$0xf] %v10045
    %10078 = vst [vmem:[#allocation14 + $0x1c] sm:$0xf] %v10046
    %10079 = vst [vmem:[#allocation14 + $0x20] sm:$0xf] %v10047
    %10080 = vst [vmem:[#allocation14 + $0x24] sm:$0xf] %v10048
    %10081 = vst [vmem:[#allocation14 + $0x28] sm:$0xf] %v10049
    %10082 = vst [vmem:[#allocation14 + $0x2c] sm:$0xf] %v10050
    %10083 = vst [vmem:[#allocation14 + $0x30] sm:$0xf] %v10051
    %10084 = vst [vmem:[#allocation14 + $0x34] sm:$0xf] %v10052
    %10085 = vst [vmem:[#allocation14 + $0x38] sm:$0xf] %v10053
    %10086 = vst [vmem:[#allocation14 + $0x3c] sm:$0xf] %v10054
    %10087 = vst [vmem:[#allocation14 + $0x40] sm:$0xf] %v10055
    %10088 = vst [vmem:[#allocation14 + $0x44] sm:$0xf] %v10056
    %10089 = vst [vmem:[#allocation14 + $0x48] sm:$0xf] %v10057
    %10090 = vst [vmem:[#allocation14 + $0x4c] sm:$0xf] %v10058
    %10091 = vst [vmem:[#allocation14 + $0x50] sm:$0xf] %v10059
    %10092 = vst [vmem:[#allocation14 + $0x54] sm:$0xf] %v10060
    %10093 = vst [vmem:[#allocation14 + $0x58] sm:$0xf] %v10061
    %10094 = vst [vmem:[#allocation14 + $0x5c] sm:$0xf] %v10062
    %10095 = vst [vmem:[#allocation14 + $0x60] sm:$0xf] %v10063
    %10096 = vst [vmem:[#allocation14 + $0x64] sm:$0xf] %v10064
    %10097 = vst [vmem:[#allocation14 + $0x68] sm:$0xf] %v10065
    %10098 = vst [vmem:[#allocation14 + $0x6c] sm:$0xf] %v10066
    %10099 = vst [vmem:[#allocation14 + $0x70] sm:$0xf] %v10067
    %10100 = vst [vmem:[#allocation14 + $0x74] sm:$0xf] %v10068
    %10101 = vst [vmem:[#allocation14 + $0x78] sm:$0xf] %v10069
    %10102 = vst [vmem:[#allocation14 + $0x7c] sm:$0xf] %v10070
    // Predicated region
    $region90: #{tpu_custom_call.1} parent=1 // pred_check
      _
    $region91: #{tpu_custom_call.1} parent=1 // pred_check_branch
      %10104 = sbr.rel (0) target = $region93
    $region92: #{tpu_custom_call.1} parent=1 // pred_region
      %10106 = vsyncadd [#allocation4], 0
      %s10107 = sshll.u32 [#allocation13], 4
      %s10108 = int_to_ptr.vmem [resolvable:$true] %s10107
      %s10109 = sshll.u32 %s16, 4
      %s10110 = int_to_ptr.hbm [resolvable:$true] %s10109
      %10115 = dma.vmem_to_hbm [thread:$0]  %s10108, 4096, %s10110, [#allocation4], 128, 128, 8
    $region93: #{tpu_custom_call.1} parent=1 // pred_fallthru
      _
    // Predicated region
    $region94: #{tpu_custom_call.1} parent=1 // pred_check
      _
    $region95: #{tpu_custom_call.1} parent=1 // pred_check_branch
      %10117 = sbr.rel (0) target = $region97
    $region96: #{tpu_custom_call.1} parent=1 // pred_region
      %10119 = vsyncadd [#allocation15], 0
      %s10120 = sshll.u32 [#allocation14], 4
      %s10121 = int_to_ptr.vmem [resolvable:$true] %s10120
      %s10122 = sshll.u32 %s17, 4
      %s10123 = int_to_ptr.hbm [resolvable:$true] %s10122
      %10128 = dma.vmem_to_hbm [thread:$0]  %s10121, 2048, %s10123, [#allocation15], 64, 64, 4
    $region97: #{tpu_custom_call.1} parent=1 // pred_fallthru
      _
    // Predicated region
    $region98: #{tpu_custom_call.1} parent=1 // pred_check
      _
    $region99: #{tpu_custom_call.1} parent=1 // pred_check_branch
      %10130 = sbr.rel (0) target = $region101
    $region100: #{tpu_custom_call.1} parent=1 // pred_region
      %10132 = dma.done [#allocation4], 4096
    $region101: #{tpu_custom_call.1} parent=1 // pred_fallthru
      _
    // Predicated region
    $region102: #{tpu_custom_call.1} parent=1 // pred_check
      _
    $region103: #{tpu_custom_call.1} parent=1 // pred_check_branch
      %10134 = sbr.rel (0) target = $region105
    $region104: #{tpu_custom_call.1} parent=1 // pred_region
      %10136 = dma.done [#allocation15], 2048
    $region105: #{tpu_custom_call.1} parent=1 // pred_fallthru
      _
    %10137 = vsyncpa [#allocation3], 1
    %10138 = vsyncpa [#allocation6], 1
    %10139 = vsyncpa [#allocation9], 1
    %10140 = vsyncpa [#allocation12], 1
    %10141 = vsyncpa [#allocation4], 1
    %10142 = vsyncpa [#allocation15], 1

</llo_original>
